<compile_context>
chip_gen: v7x
topology: tpu7x:2x2x1
jax: 0.10.0
libtpu: 0.0.40
codegen_flags: <defaults>
</compile_context>

<pallas_src>
import jax
import jax.numpy as jnp
from jax import lax
from jax.experimental import pallas as pl
from jax.experimental.pallas import tpu as pltpu


_CHUNK_H = 8  # image rows per in-kernel tile -> (CH*W, Cp) accumulator stays in vregs


def _conv3x3_chunk(src_ref, w_ref, c, nchunks, CH, W, Cp):
    """Accumulate the 9 taps of a 3x3 'same' conv for one CH-row output chunk.

    src_ref: (3, H+2, W, Cp) VMEM ref holding the three W-shifted copies of the
             (conceptually zero-padded) input.  Slab rows 1..H hold data; rows 0,
             H+1 and the shifted-in edge column of slabs 0/2 are never written and
             are masked here at read time (so they need no initialization).
    Returns the f32 accumulator of shape (CH*W, Cp).
    """
    col = lax.broadcasted_iota(jnp.int32, (CH, W, Cp), 1)
    row = lax.broadcasted_iota(jnp.int32, (CH, W, Cp), 0)
    left_ok = col >= 1            # for dx == 0: zero-pad column j = 0
    right_ok = col <= W - 2       # for dx == 2: zero-pad column j = W-1
    top_ok = row >= 1             # first patch row is padded image row -1
    bottom_ok = row <= CH - 2     # last patch row is padded image row H

    acc = jnp.zeros((CH * W, Cp), jnp.float32)
    for dy in range(3):
        start = c * CH + dy       # slab row of the chunk's first patch row (static)
        for dx in range(3):
            patch = src_ref[dx, start:start + CH, :, :]   # leading-dim slice: free
            # jnp.where is a select, so uninitialized data (even NaN/Inf) in the
            # masked-off halo locations never reaches arithmetic.
            if dx == 0:
                patch = jnp.where(left_ok, patch, 0.0)
            elif dx == 2:
                patch = jnp.where(right_ok, patch, 0.0)
            if c == 0 and dy == 0:
                patch = jnp.where(top_ok, patch, 0.0)
            if c == nchunks - 1 and dy == 2:
                patch = jnp.where(bottom_ok, patch, 0.0)
            # W % 8 == 0 -> layout-preserving reshape (no relayout copy).
            acc = acc + jnp.dot(patch.reshape(CH * W, Cp), w_ref[dy, dx],
                                preferred_element_type=jnp.float32)
    return acc


def _basic_block_kernel(x_ref, w1_ref, w2_ref, o_ref, xsh_ref, msh_ref):
    """Fused BasicBlock forward for one image of the batch.

    x_ref:   (1, H, W, Cp)    channel-padded input (padded channels are zero)
    w1_ref:  (3, 3, Cp, Cp)   HWIO weights, channel-padded with zeros
    w2_ref:  (3, 3, Cp, Cp)
    o_ref:   (1, H, W, Cout)  real (unpadded) output channels only
    xsh_ref: (3, H+2, W, Cp)  W-shifted copies of x:      slab[dx][1+i, j] = x[i, j+dx-1]
    msh_ref: (3, H+2, W, Cp)  W-shifted copies of relu(conv1(x))
    """
    _, H, W, Cp = x_ref.shape
    Cout = o_ref.shape[-1]
    CH = _CHUNK_H
    nchunks = H // CH

    # --- stage 0: build the three W-shifted copies of x (rows 1..H of each slab) ----
    # Only slabs 0 and 2 need a one-sublane-shifted sub-window store; slab 1 is a
    # clean full-width copy and doubles as the residual source later (x read once).
    for c in range(nchunks):
        r = c * CH
        xrows = x_ref[0, r:r + CH, :, :].astype(jnp.float32)
        xsh_ref[1, r + 1:r + 1 + CH, :, :] = xrows
        xsh_ref[0, r + 1:r + 1 + CH, 1:W, :] = xrows[:, 0:W - 1, :]
        xsh_ref[2, r + 1:r + 1 + CH, 0:W - 1, :] = xrows[:, 1:W, :]

    # --- stage 1: conv3x3(x, w1) + ReLU, stored as W-shifted copies for conv2 --------
    for c in range(nchunks):
        acc1 = _conv3x3_chunk(xsh_ref, w1_ref, c, nchunks, CH, W, Cp)
        relu1 = jnp.maximum(acc1, 0.0).reshape(CH, W, Cp)
        r = c * CH
        msh_ref[1, r + 1:r + 1 + CH, :, :] = relu1
        msh_ref[0, r + 1:r + 1 + CH, 1:W, :] = relu1[:, 0:W - 1, :]
        msh_ref[2, r + 1:r + 1 + CH, 0:W - 1, :] = relu1[:, 1:W, :]

    # --- stage 2: conv3x3(mid, w2) + residual add + final ReLU -----------------------
    for c in range(nchunks):
        acc2 = _conv3x3_chunk(msh_ref, w2_ref, c, nchunks, CH, W, Cp)
        r = c * CH
        residual = xsh_ref[1, r + 1:r + 1 + CH, :, :].reshape(CH * W, Cp)
        out = jnp.maximum(acc2 + residual, 0.0).reshape(CH, W, Cp)
        # Write only the real output channels: 4 KiB/image HBM writeback, no wrapper slice.
        o_ref[0, r:r + CH, :, :] = out[:, :, :Cout].astype(o_ref.dtype)


def basic_block_forward_nhwc(x_nhwc, w1_hwio, w2_hwio):
    """BasicBlock forward on NHWC input with HWIO weights. Returns NHWC."""
    N, H, W, Cin = x_nhwc.shape
    Cout = w1_hwio.shape[-1]
    assert w1_hwio.shape == (3, 3, Cin, Cout)
    assert w2_hwio.shape == (3, 3, Cout, Cout)
    assert Cin == Cout, "identity residual path requires in_chs == out_chs"
    assert W % 8 == 0, "W must be a multiple of 8 (sublane quantum / free reshape)"
    assert H % _CHUNK_H == 0, "H must be a multiple of the in-kernel row tile"

    # Pad channels only to the f32 sublane quantum (8), NOT to 128: at small C this
    # cuts weight bytes and MXU passes ~16x vs lane-padding the contraction dim.
    # (Real ResNet channel counts are already multiples of 8 -> this is a no-op.)
    Cp = 8 * pl.cdiv(max(Cin, Cout), 8)
    f32 = jnp.float32
    w1p = jnp.zeros((3, 3, Cp, Cp), f32).at[:, :, :Cin, :Cout].set(w1_hwio.astype(f32))
    w2p = jnp.zeros((3, 3, Cp, Cp), f32).at[:, :, :Cout, :Cout].set(w2_hwio.astype(f32))
    x_p = x_nhwc if Cin == Cp else jnp.pad(
        x_nhwc, ((0, 0), (0, 0), (0, 0), (0, Cp - Cin)))

    return pl.pallas_call(
        _basic_block_kernel,
        out_shape=jax.ShapeDtypeStruct((N, H, W, Cout), x_nhwc.dtype),
        grid=(N,),
        in_specs=[
            pl.BlockSpec((1, H, W, Cp), lambda n: (n, 0, 0, 0)),
            pl.BlockSpec((3, 3, Cp, Cp), lambda n: (0, 0, 0, 0)),
            pl.BlockSpec((3, 3, Cp, Cp), lambda n: (0, 0, 0, 0)),
        ],
        out_specs=pl.BlockSpec((1, H, W, Cout), lambda n: (n, 0, 0, 0)),
        scratch_shapes=[
            pltpu.VMEM((3, H + 2, W, Cp), jnp.float32),   # W-shifted copies of x
            pltpu.VMEM((3, H + 2, W, Cp), jnp.float32),   # W-shifted copies of relu(conv1)
        ],
        compiler_params=pltpu.CompilerParams(
            # Batch sharding across TensorCores (v7x) is safe here: no grid step
            # reads scratch it did not fully write or mask itself, so there is no
            # first-iteration initialization that a second core could skip.
            dimension_semantics=("parallel",),
            # Actual VMEM footprint is ~1.5 MiB; 16 MiB is comfortable headroom and
            # well under every generation's scoped/physical limits (v7x: 64 MiB).
            vmem_limit_bytes=16 * 1024 * 1024,
        ),
    )(x_p, w1p, w2p)


def basic_block_forward(x_nchw, w1_hwio, w2_hwio):
    """PyTorch-parity wrapper: NCHW in, NCHW out (transposes at the boundary only)."""
    x_nhwc = jnp.transpose(x_nchw, (0, 2, 3, 1))
    out = basic_block_forward_nhwc(x_nhwc, w1_hwio, w2_hwio)
    return jnp.transpose(out, (0, 3, 1, 2))


def _reference_forward(x_nchw, w1_hwio, w2_hwio):
    # Pure-JAX reference (XLA conv) for the correctness check.
    x = jnp.transpose(x_nchw, (0, 2, 3, 1))
    dn = ("NHWC", "HWIO", "NHWC")
    mid = lax.conv_general_dilated(x, w1_hwio, (1, 1), ((1, 1), (1, 1)),
                                   dimension_numbers=dn)
    mid = jnp.maximum(mid, 0.0)
    out = lax.conv_general_dilated(mid, w2_hwio, (1, 1), ((1, 1), (1, 1)),
                                   dimension_numbers=dn)
    out = jnp.maximum(out + x, 0.0)
    return jnp.transpose(out, (0, 3, 1, 2))


if __name__ == "__main__":
    # BasicBlock(in_chs=4, out_chs=4, stride=1, downsample=None)
    N, C, H, W = 2, 4, 16, 16
    key = jax.random.PRNGKey(0)
    kx, k1, k2 = jax.random.split(key, 3)

    x = jax.random.normal(kx, (N, C, H, W), dtype=jnp.float32)

    # Deterministic conv weights (kaiming-uniform-like bound, as in nn.Conv2d init).
    fan_in = C * 3 * 3
    bound = 1.0 / (fan_in ** 0.5)
    w1 = jax.random.uniform(k1, (3, 3, C, C), jnp.float32, -bound, bound)  # HWIO
    w2 = jax.random.uniform(k2, (3, 3, C, C), jnp.float32, -bound, bound)  # HWIO

    out = basic_block_forward(x, w1, w2)
    out = jax.block_until_ready(out)

    ref = _reference_forward(x, w1, w2)
    assert out.shape == (N, C, H, W)
    assert jnp.allclose(out, ref, atol=1e-3, rtol=1e-3), "mismatch vs reference"

    print("KERNEL_OK")
</pallas_src>

<mosaic_0001>
module attributes {stable_mosaic.version = 11 : i64} {
  func.func @_basic_block_kernel(%arg0: i32, %arg1: memref<1x16x16x8xf32, #tpu.memory_space<vmem>>, %arg2: memref<3x3x8x8xf32, #tpu.memory_space<vmem>>, %arg3: memref<3x3x8x8xf32, #tpu.memory_space<vmem>>, %arg4: memref<1x16x16x4xf32, #tpu.memory_space<vmem>>, %arg5: memref<3x18x16x8xf32, #tpu.memory_space<vmem>>, %arg6: memref<3x18x16x8xf32, #tpu.memory_space<vmem>>) attributes {dimension_semantics = [#tpu.dimension_semantics<parallel>], iteration_bounds = array<i64: 2>, scalar_prefetch = 0 : i64, scratch_operands = 2 : i64, tpu.core_type = #tpu.core_type<tc>, window_params = [{transform_indices = @transform_0, window_bounds = array<i64: 1, 16, 16, 8>}, {pipeline_mode = #tpu.pipeline_mode<synchronous>, transform_indices = @transform_1, window_bounds = array<i64: 3, 3, 8, 8>}, {pipeline_mode = #tpu.pipeline_mode<synchronous>, transform_indices = @transform_2, window_bounds = array<i64: 3, 3, 8, 8>}, {transform_indices = @transform_3, window_bounds = array<i64: 1, 16, 16, 4>}]} {
    %c0 = arith.constant 0 : index
    %c0_0 = arith.constant 0 : index
    %c0_1 = arith.constant 0 : index
    %c0_2 = arith.constant 0 : index
    %0 = vector.load %arg1[%c0, %c0_0, %c0_1, %c0_2] : memref<1x16x16x8xf32, #tpu.memory_space<vmem>>, vector<1x8x16x8xf32>
    %1 = vector.shape_cast %0 : vector<1x8x16x8xf32> to vector<8x16x8xf32>
    %c1 = arith.constant 1 : index
    %c1_3 = arith.constant 1 : index
    %c0_4 = arith.constant 0 : index
    %c0_5 = arith.constant 0 : index
    %2 = vector.load %arg5[%c1, %c1_3, %c0_4, %c0_5] : memref<3x18x16x8xf32, #tpu.memory_space<vmem>>, vector<1x8x16x8xf32>
    %3 = vector.shape_cast %2 : vector<1x8x16x8xf32> to vector<8x16x8xf32>
    %4 = vector.shape_cast %1 : vector<8x16x8xf32> to vector<1x8x16x8xf32>
    tpu.vector_store %arg5[%c1, %c1_3, %c0_4, %c0_5], %4 {strides = array<i32>} : memref<3x18x16x8xf32, #tpu.memory_space<vmem>>, vector<1x8x16x8xf32>,
    %5 = vector.extract_strided_slice %1 {offsets = [0, 0, 0], sizes = [8, 15, 8], strides = [1, 1, 1]} : vector<8x16x8xf32> to vector<8x15x8xf32>
    %c0_6 = arith.constant 0 : index
    %c1_7 = arith.constant 1 : index
    %c1_8 = arith.constant 1 : index
    %c0_9 = arith.constant 0 : index
    %6 = vector.load %arg5[%c0_6, %c1_7, %c1_8, %c0_9] : memref<3x18x16x8xf32, #tpu.memory_space<vmem>>, vector<1x8x15x8xf32>
    %7 = vector.shape_cast %6 : vector<1x8x15x8xf32> to vector<8x15x8xf32>
    %8 = vector.shape_cast %5 : vector<8x15x8xf32> to vector<1x8x15x8xf32>
    tpu.vector_store %arg5[%c0_6, %c1_7, %c1_8, %c0_9], %8 {strides = array<i32>} : memref<3x18x16x8xf32, #tpu.memory_space<vmem>>, vector<1x8x15x8xf32>,
    %9 = vector.extract_strided_slice %1 {offsets = [0, 1, 0], sizes = [8, 15, 8], strides = [1, 1, 1]} : vector<8x16x8xf32> to vector<8x15x8xf32>
    %c2 = arith.constant 2 : index
    %c1_10 = arith.constant 1 : index
    %c0_11 = arith.constant 0 : index
    %c0_12 = arith.constant 0 : index
    %10 = vector.load %arg5[%c2, %c1_10, %c0_11, %c0_12] : memref<3x18x16x8xf32, #tpu.memory_space<vmem>>, vector<1x8x15x8xf32>
    %11 = vector.shape_cast %10 : vector<1x8x15x8xf32> to vector<8x15x8xf32>
    %12 = vector.shape_cast %9 : vector<8x15x8xf32> to vector<1x8x15x8xf32>
    tpu.vector_store %arg5[%c2, %c1_10, %c0_11, %c0_12], %12 {strides = array<i32>} : memref<3x18x16x8xf32, #tpu.memory_space<vmem>>, vector<1x8x15x8xf32>,
    %c0_13 = arith.constant 0 : index
    %c8 = arith.constant 8 : index
    %c0_14 = arith.constant 0 : index
    %c0_15 = arith.constant 0 : index
    %13 = vector.load %arg1[%c0_13, %c8, %c0_14, %c0_15] : memref<1x16x16x8xf32, #tpu.memory_space<vmem>>, vector<1x8x16x8xf32>
    %14 = vector.shape_cast %13 : vector<1x8x16x8xf32> to vector<8x16x8xf32>
    %c1_16 = arith.constant 1 : index
    %c9 = arith.constant 9 : index
    %c0_17 = arith.constant 0 : index
    %c0_18 = arith.constant 0 : index
    %15 = vector.load %arg5[%c1_16, %c9, %c0_17, %c0_18] : memref<3x18x16x8xf32, #tpu.memory_space<vmem>>, vector<1x8x16x8xf32>
    %16 = vector.shape_cast %15 : vector<1x8x16x8xf32> to vector<8x16x8xf32>
    %17 = vector.shape_cast %14 : vector<8x16x8xf32> to vector<1x8x16x8xf32>
    tpu.vector_store %arg5[%c1_16, %c9, %c0_17, %c0_18], %17 {strides = array<i32>} : memref<3x18x16x8xf32, #tpu.memory_space<vmem>>, vector<1x8x16x8xf32>,
    %18 = vector.extract_strided_slice %14 {offsets = [0, 0, 0], sizes = [8, 15, 8], strides = [1, 1, 1]} : vector<8x16x8xf32> to vector<8x15x8xf32>
    %c0_19 = arith.constant 0 : index
    %c9_20 = arith.constant 9 : index
    %c1_21 = arith.constant 1 : index
    %c0_22 = arith.constant 0 : index
    %19 = vector.load %arg5[%c0_19, %c9_20, %c1_21, %c0_22] : memref<3x18x16x8xf32, #tpu.memory_space<vmem>>, vector<1x8x15x8xf32>
    %20 = vector.shape_cast %19 : vector<1x8x15x8xf32> to vector<8x15x8xf32>
    %21 = vector.shape_cast %18 : vector<8x15x8xf32> to vector<1x8x15x8xf32>
    tpu.vector_store %arg5[%c0_19, %c9_20, %c1_21, %c0_22], %21 {strides = array<i32>} : memref<3x18x16x8xf32, #tpu.memory_space<vmem>>, vector<1x8x15x8xf32>,
    %22 = vector.extract_strided_slice %14 {offsets = [0, 1, 0], sizes = [8, 15, 8], strides = [1, 1, 1]} : vector<8x16x8xf32> to vector<8x15x8xf32>
    %c2_23 = arith.constant 2 : index
    %c9_24 = arith.constant 9 : index
    %c0_25 = arith.constant 0 : index
    %c0_26 = arith.constant 0 : index
    %23 = vector.load %arg5[%c2_23, %c9_24, %c0_25, %c0_26] : memref<3x18x16x8xf32, #tpu.memory_space<vmem>>, vector<1x8x15x8xf32>
    %24 = vector.shape_cast %23 : vector<1x8x15x8xf32> to vector<8x15x8xf32>
    %25 = vector.shape_cast %22 : vector<8x15x8xf32> to vector<1x8x15x8xf32>
    tpu.vector_store %arg5[%c2_23, %c9_24, %c0_25, %c0_26], %25 {strides = array<i32>} : memref<3x18x16x8xf32, #tpu.memory_space<vmem>>, vector<1x8x15x8xf32>,
    %26 = tpu.iota {dimensions = array<i32: 1>} : vector<8x16x8xi32>
    %27 = tpu.iota {dimensions = array<i32: 0>} : vector<8x16x8xi32>
    %c1_i32 = arith.constant 1 : i32
    %28 = vector.broadcast %c1_i32 : i32 to vector<8x16x8xi32>
    %29 = arith.cmpi sge, %26, %28 : vector<8x16x8xi32>
    %c14_i32 = arith.constant 14 : i32
    %30 = vector.broadcast %c14_i32 : i32 to vector<8x16x8xi32>
    %31 = arith.cmpi sle, %26, %30 : vector<8x16x8xi32>
    %c1_i32_27 = arith.constant 1 : i32
    %32 = vector.broadcast %c1_i32_27 : i32 to vector<8x16x8xi32>
    %33 = arith.cmpi sge, %27, %32 : vector<8x16x8xi32>
    %cst = arith.constant 0.000000e+00 : f32
    %34 = vector.broadcast %cst : f32 to vector<128x8xf32>
    %c0_28 = arith.constant 0 : index
    %c0_29 = arith.constant 0 : index
    %c0_30 = arith.constant 0 : index
    %c0_31 = arith.constant 0 : index
    %35 = vector.load %arg5[%c0_28, %c0_29, %c0_30, %c0_31] : memref<3x18x16x8xf32, #tpu.memory_space<vmem>>, vector<1x8x16x8xf32>
    %36 = vector.shape_cast %35 : vector<1x8x16x8xf32> to vector<8x16x8xf32>
    %cst_32 = arith.constant 0.000000e+00 : f32
    %37 = vector.broadcast %cst_32 : f32 to vector<8x16x8xf32>
    %38 = arith.select %29, %36, %37 : vector<8x16x8xi1>, vector<8x16x8xf32>
    %cst_33 = arith.constant 0.000000e+00 : f32
    %39 = vector.broadcast %cst_33 : f32 to vector<8x16x8xf32>
    %40 = arith.select %33, %38, %39 : vector<8x16x8xi1>, vector<8x16x8xf32>
    %41 = vector.shape_cast %40 : vector<8x16x8xf32> to vector<128x8xf32>
    %c0_34 = arith.constant 0 : index
    %c0_35 = arith.constant 0 : index
    %c0_36 = arith.constant 0 : index
    %c0_37 = arith.constant 0 : index
    %42 = vector.load %arg2[%c0_34, %c0_35, %c0_36, %c0_37] : memref<3x3x8x8xf32, #tpu.memory_space<vmem>>, vector<1x1x8x8xf32>
    %43 = vector.shape_cast %42 : vector<1x1x8x8xf32> to vector<8x8xf32>
    %cst_38 = arith.constant dense<0.000000e+00> : vector<128x8xf32>
    %44 = tpu.matmul %41, %43, %cst_38 {dimension_numbers = #tpu.dot_dimension_numbers<[1], [0], [0], [1], [0, 0, 1, 1], [], []>} : vector<128x8xf32>, vector<8x8xf32>, vector<128x8xf32> -> vector<128x8xf32>
    %45 = arith.addf %34, %44 : vector<128x8xf32>
    %c1_39 = arith.constant 1 : index
    %c0_40 = arith.constant 0 : index
    %c0_41 = arith.constant 0 : index
    %c0_42 = arith.constant 0 : index
    %46 = vector.load %arg5[%c1_39, %c0_40, %c0_41, %c0_42] : memref<3x18x16x8xf32, #tpu.memory_space<vmem>>, vector<1x8x16x8xf32>
    %47 = vector.shape_cast %46 : vector<1x8x16x8xf32> to vector<8x16x8xf32>
    %cst_43 = arith.constant 0.000000e+00 : f32
    %48 = vector.broadcast %cst_43 : f32 to vector<8x16x8xf32>
    %49 = arith.select %33, %47, %48 : vector<8x16x8xi1>, vector<8x16x8xf32>
    %50 = vector.shape_cast %49 : vector<8x16x8xf32> to vector<128x8xf32>
    %c0_44 = arith.constant 0 : index
    %c1_45 = arith.constant 1 : index
    %c0_46 = arith.constant 0 : index
    %c0_47 = arith.constant 0 : index
    %51 = vector.load %arg2[%c0_44, %c1_45, %c0_46, %c0_47] : memref<3x3x8x8xf32, #tpu.memory_space<vmem>>, vector<1x1x8x8xf32>
    %52 = vector.shape_cast %51 : vector<1x1x8x8xf32> to vector<8x8xf32>
    %cst_48 = arith.constant dense<0.000000e+00> : vector<128x8xf32>
    %53 = tpu.matmul %50, %52, %cst_48 {dimension_numbers = #tpu.dot_dimension_numbers<[1], [0], [0], [1], [0, 0, 1, 1], [], []>} : vector<128x8xf32>, vector<8x8xf32>, vector<128x8xf32> -> vector<128x8xf32>
    %54 = arith.addf %45, %53 : vector<128x8xf32>
    %c2_49 = arith.constant 2 : index
    %c0_50 = arith.constant 0 : index
    %c0_51 = arith.constant 0 : index
    %c0_52 = arith.constant 0 : index
    %55 = vector.load %arg5[%c2_49, %c0_50, %c0_51, %c0_52] : memref<3x18x16x8xf32, #tpu.memory_space<vmem>>, vector<1x8x16x8xf32>
    %56 = vector.shape_cast %55 : vector<1x8x16x8xf32> to vector<8x16x8xf32>
    %cst_53 = arith.constant 0.000000e+00 : f32
    %57 = vector.broadcast %cst_53 : f32 to vector<8x16x8xf32>
    %58 = arith.select %31, %56, %57 : vector<8x16x8xi1>, vector<8x16x8xf32>
    %cst_54 = arith.constant 0.000000e+00 : f32
    %59 = vector.broadcast %cst_54 : f32 to vector<8x16x8xf32>
    %60 = arith.select %33, %58, %59 : vector<8x16x8xi1>, vector<8x16x8xf32>
    %61 = vector.shape_cast %60 : vector<8x16x8xf32> to vector<128x8xf32>
    %c0_55 = arith.constant 0 : index
    %c2_56 = arith.constant 2 : index
    %c0_57 = arith.constant 0 : index
    %c0_58 = arith.constant 0 : index
    %62 = vector.load %arg2[%c0_55, %c2_56, %c0_57, %c0_58] : memref<3x3x8x8xf32, #tpu.memory_space<vmem>>, vector<1x1x8x8xf32>
    %63 = vector.shape_cast %62 : vector<1x1x8x8xf32> to vector<8x8xf32>
    %cst_59 = arith.constant dense<0.000000e+00> : vector<128x8xf32>
    %64 = tpu.matmul %61, %63, %cst_59 {dimension_numbers = #tpu.dot_dimension_numbers<[1], [0], [0], [1], [0, 0, 1, 1], [], []>} : vector<128x8xf32>, vector<8x8xf32>, vector<128x8xf32> -> vector<128x8xf32>
    %65 = arith.addf %54, %64 : vector<128x8xf32>
    %c0_60 = arith.constant 0 : index
    %c1_61 = arith.constant 1 : index
    %c0_62 = arith.constant 0 : index
    %c0_63 = arith.constant 0 : index
    %66 = vector.load %arg5[%c0_60, %c1_61, %c0_62, %c0_63] : memref<3x18x16x8xf32, #tpu.memory_space<vmem>>, vector<1x8x16x8xf32>
    %67 = vector.shape_cast %66 : vector<1x8x16x8xf32> to vector<8x16x8xf32>
    %cst_64 = arith.constant 0.000000e+00 : f32
    %68 = vector.broadcast %cst_64 : f32 to vector<8x16x8xf32>
    %69 = arith.select %29, %67, %68 : vector<8x16x8xi1>, vector<8x16x8xf32>
    %70 = vector.shape_cast %69 : vector<8x16x8xf32> to vector<128x8xf32>
    %c1_65 = arith.constant 1 : index
    %c0_66 = arith.constant 0 : index
    %c0_67 = arith.constant 0 : index
    %c0_68 = arith.constant 0 : index
    %71 = vector.load %arg2[%c1_65, %c0_66, %c0_67, %c0_68] : memref<3x3x8x8xf32, #tpu.memory_space<vmem>>, vector<1x1x8x8xf32>
    %72 = vector.shape_cast %71 : vector<1x1x8x8xf32> to vector<8x8xf32>
    %cst_69 = arith.constant dense<0.000000e+00> : vector<128x8xf32>
    %73 = tpu.matmul %70, %72, %cst_69 {dimension_numbers = #tpu.dot_dimension_numbers<[1], [0], [0], [1], [0, 0, 1, 1], [], []>} : vector<128x8xf32>, vector<8x8xf32>, vector<128x8xf32> -> vector<128x8xf32>
    %74 = arith.addf %65, %73 : vector<128x8xf32>
    %c1_70 = arith.constant 1 : index
    %c1_71 = arith.constant 1 : index
    %c0_72 = arith.constant 0 : index
    %c0_73 = arith.constant 0 : index
    %75 = vector.load %arg5[%c1_70, %c1_71, %c0_72, %c0_73] : memref<3x18x16x8xf32, #tpu.memory_space<vmem>>, vector<1x8x16x8xf32>
    %76 = vector.shape_cast %75 : vector<1x8x16x8xf32> to vector<8x16x8xf32>
    %77 = vector.shape_cast %76 : vector<8x16x8xf32> to vector<128x8xf32>
    %c1_74 = arith.constant 1 : index
    %c1_75 = arith.constant 1 : index
    %c0_76 = arith.constant 0 : index
    %c0_77 = arith.constant 0 : index
    %78 = vector.load %arg2[%c1_74, %c1_75, %c0_76, %c0_77] : memref<3x3x8x8xf32, #tpu.memory_space<vmem>>, vector<1x1x8x8xf32>
    %79 = vector.shape_cast %78 : vector<1x1x8x8xf32> to vector<8x8xf32>
    %cst_78 = arith.constant dense<0.000000e+00> : vector<128x8xf32>
    %80 = tpu.matmul %77, %79, %cst_78 {dimension_numbers = #tpu.dot_dimension_numbers<[1], [0], [0], [1], [0, 0, 1, 1], [], []>} : vector<128x8xf32>, vector<8x8xf32>, vector<128x8xf32> -> vector<128x8xf32>
    %81 = arith.addf %74, %80 : vector<128x8xf32>
    %c2_79 = arith.constant 2 : index
    %c1_80 = arith.constant 1 : index
    %c0_81 = arith.constant 0 : index
    %c0_82 = arith.constant 0 : index
    %82 = vector.load %arg5[%c2_79, %c1_80, %c0_81, %c0_82] : memref<3x18x16x8xf32, #tpu.memory_space<vmem>>, vector<1x8x16x8xf32>
    %83 = vector.shape_cast %82 : vector<1x8x16x8xf32> to vector<8x16x8xf32>
    %cst_83 = arith.constant 0.000000e+00 : f32
    %84 = vector.broadcast %cst_83 : f32 to vector<8x16x8xf32>
    %85 = arith.select %31, %83, %84 : vector<8x16x8xi1>, vector<8x16x8xf32>
    %86 = vector.shape_cast %85 : vector<8x16x8xf32> to vector<128x8xf32>
    %c1_84 = arith.constant 1 : index
    %c2_85 = arith.constant 2 : index
    %c0_86 = arith.constant 0 : index
    %c0_87 = arith.constant 0 : index
    %87 = vector.load %arg2[%c1_84, %c2_85, %c0_86, %c0_87] : memref<3x3x8x8xf32, #tpu.memory_space<vmem>>, vector<1x1x8x8xf32>
    %88 = vector.shape_cast %87 : vector<1x1x8x8xf32> to vector<8x8xf32>
    %cst_88 = arith.constant dense<0.000000e+00> : vector<128x8xf32>
    %89 = tpu.matmul %86, %88, %cst_88 {dimension_numbers = #tpu.dot_dimension_numbers<[1], [0], [0], [1], [0, 0, 1, 1], [], []>} : vector<128x8xf32>, vector<8x8xf32>, vector<128x8xf32> -> vector<128x8xf32>
    %90 = arith.addf %81, %89 : vector<128x8xf32>
    %c0_89 = arith.constant 0 : index
    %c2_90 = arith.constant 2 : index
    %c0_91 = arith.constant 0 : index
    %c0_92 = arith.constant 0 : index
    %91 = vector.load %arg5[%c0_89, %c2_90, %c0_91, %c0_92] : memref<3x18x16x8xf32, #tpu.memory_space<vmem>>, vector<1x8x16x8xf32>
    %92 = vector.shape_cast %91 : vector<1x8x16x8xf32> to vector<8x16x8xf32>
    %cst_93 = arith.constant 0.000000e+00 : f32
    %93 = vector.broadcast %cst_93 : f32 to vector<8x16x8xf32>
    %94 = arith.select %29, %92, %93 : vector<8x16x8xi1>, vector<8x16x8xf32>
    %95 = vector.shape_cast %94 : vector<8x16x8xf32> to vector<128x8xf32>
    %c2_94 = arith.constant 2 : index
    %c0_95 = arith.constant 0 : index
    %c0_96 = arith.constant 0 : index
    %c0_97 = arith.constant 0 : index
    %96 = vector.load %arg2[%c2_94, %c0_95, %c0_96, %c0_97] : memref<3x3x8x8xf32, #tpu.memory_space<vmem>>, vector<1x1x8x8xf32>
    %97 = vector.shape_cast %96 : vector<1x1x8x8xf32> to vector<8x8xf32>
    %cst_98 = arith.constant dense<0.000000e+00> : vector<128x8xf32>
    %98 = tpu.matmul %95, %97, %cst_98 {dimension_numbers = #tpu.dot_dimension_numbers<[1], [0], [0], [1], [0, 0, 1, 1], [], []>} : vector<128x8xf32>, vector<8x8xf32>, vector<128x8xf32> -> vector<128x8xf32>
    %99 = arith.addf %90, %98 : vector<128x8xf32>
    %c1_99 = arith.constant 1 : index
    %c2_100 = arith.constant 2 : index
    %c0_101 = arith.constant 0 : index
    %c0_102 = arith.constant 0 : index
    %100 = vector.load %arg5[%c1_99, %c2_100, %c0_101, %c0_102] : memref<3x18x16x8xf32, #tpu.memory_space<vmem>>, vector<1x8x16x8xf32>
    %101 = vector.shape_cast %100 : vector<1x8x16x8xf32> to vector<8x16x8xf32>
    %102 = vector.shape_cast %101 : vector<8x16x8xf32> to vector<128x8xf32>
    %c2_103 = arith.constant 2 : index
    %c1_104 = arith.constant 1 : index
    %c0_105 = arith.constant 0 : index
    %c0_106 = arith.constant 0 : index
    %103 = vector.load %arg2[%c2_103, %c1_104, %c0_105, %c0_106] : memref<3x3x8x8xf32, #tpu.memory_space<vmem>>, vector<1x1x8x8xf32>
    %104 = vector.shape_cast %103 : vector<1x1x8x8xf32> to vector<8x8xf32>
    %cst_107 = arith.constant dense<0.000000e+00> : vector<128x8xf32>
    %105 = tpu.matmul %102, %104, %cst_107 {dimension_numbers = #tpu.dot_dimension_numbers<[1], [0], [0], [1], [0, 0, 1, 1], [], []>} : vector<128x8xf32>, vector<8x8xf32>, vector<128x8xf32> -> vector<128x8xf32>
    %106 = arith.addf %99, %105 : vector<128x8xf32>
    %c2_108 = arith.constant 2 : index
    %c2_109 = arith.constant 2 : index
    %c0_110 = arith.constant 0 : index
    %c0_111 = arith.constant 0 : index
    %107 = vector.load %arg5[%c2_108, %c2_109, %c0_110, %c0_111] : memref<3x18x16x8xf32, #tpu.memory_space<vmem>>, vector<1x8x16x8xf32>
    %108 = vector.shape_cast %107 : vector<1x8x16x8xf32> to vector<8x16x8xf32>
    %cst_112 = arith.constant 0.000000e+00 : f32
    %109 = vector.broadcast %cst_112 : f32 to vector<8x16x8xf32>
    %110 = arith.select %31, %108, %109 : vector<8x16x8xi1>, vector<8x16x8xf32>
    %111 = vector.shape_cast %110 : vector<8x16x8xf32> to vector<128x8xf32>
    %c2_113 = arith.constant 2 : index
    %c2_114 = arith.constant 2 : index
    %c0_115 = arith.constant 0 : index
    %c0_116 = arith.constant 0 : index
    %112 = vector.load %arg2[%c2_113, %c2_114, %c0_115, %c0_116] : memref<3x3x8x8xf32, #tpu.memory_space<vmem>>, vector<1x1x8x8xf32>
    %113 = vector.shape_cast %112 : vector<1x1x8x8xf32> to vector<8x8xf32>
    %cst_117 = arith.constant dense<0.000000e+00> : vector<128x8xf32>
    %114 = tpu.matmul %111, %113, %cst_117 {dimension_numbers = #tpu.dot_dimension_numbers<[1], [0], [0], [1], [0, 0, 1, 1], [], []>} : vector<128x8xf32>, vector<8x8xf32>, vector<128x8xf32> -> vector<128x8xf32>
    %115 = arith.addf %106, %114 : vector<128x8xf32>
    %cst_118 = arith.constant 0.000000e+00 : f32
    %116 = vector.broadcast %cst_118 : f32 to vector<128x8xf32>
    %117 = arith.maximumf %115, %116 : vector<128x8xf32>
    %118 = vector.shape_cast %117 : vector<128x8xf32> to vector<8x16x8xf32>
    %c1_119 = arith.constant 1 : index
    %c1_120 = arith.constant 1 : index
    %c0_121 = arith.constant 0 : index
    %c0_122 = arith.constant 0 : index
    %119 = vector.load %arg6[%c1_119, %c1_120, %c0_121, %c0_122] : memref<3x18x16x8xf32, #tpu.memory_space<vmem>>, vector<1x8x16x8xf32>
    %120 = vector.shape_cast %119 : vector<1x8x16x8xf32> to vector<8x16x8xf32>
    %121 = vector.shape_cast %118 : vector<8x16x8xf32> to vector<1x8x16x8xf32>
    tpu.vector_store %arg6[%c1_119, %c1_120, %c0_121, %c0_122], %121 {strides = array<i32>} : memref<3x18x16x8xf32, #tpu.memory_space<vmem>>, vector<1x8x16x8xf32>,
    %122 = vector.extract_strided_slice %118 {offsets = [0, 0, 0], sizes = [8, 15, 8], strides = [1, 1, 1]} : vector<8x16x8xf32> to vector<8x15x8xf32>
    %c0_123 = arith.constant 0 : index
    %c1_124 = arith.constant 1 : index
    %c1_125 = arith.constant 1 : index
    %c0_126 = arith.constant 0 : index
    %123 = vector.load %arg6[%c0_123, %c1_124, %c1_125, %c0_126] : memref<3x18x16x8xf32, #tpu.memory_space<vmem>>, vector<1x8x15x8xf32>
    %124 = vector.shape_cast %123 : vector<1x8x15x8xf32> to vector<8x15x8xf32>
    %125 = vector.shape_cast %122 : vector<8x15x8xf32> to vector<1x8x15x8xf32>
    tpu.vector_store %arg6[%c0_123, %c1_124, %c1_125, %c0_126], %125 {strides = array<i32>} : memref<3x18x16x8xf32, #tpu.memory_space<vmem>>, vector<1x8x15x8xf32>,
    %126 = vector.extract_strided_slice %118 {offsets = [0, 1, 0], sizes = [8, 15, 8], strides = [1, 1, 1]} : vector<8x16x8xf32> to vector<8x15x8xf32>
    %c2_127 = arith.constant 2 : index
    %c1_128 = arith.constant 1 : index
    %c0_129 = arith.constant 0 : index
    %c0_130 = arith.constant 0 : index
    %127 = vector.load %arg6[%c2_127, %c1_128, %c0_129, %c0_130] : memref<3x18x16x8xf32, #tpu.memory_space<vmem>>, vector<1x8x15x8xf32>
    %128 = vector.shape_cast %127 : vector<1x8x15x8xf32> to vector<8x15x8xf32>
    %129 = vector.shape_cast %126 : vector<8x15x8xf32> to vector<1x8x15x8xf32>
    tpu.vector_store %arg6[%c2_127, %c1_128, %c0_129, %c0_130], %129 {strides = array<i32>} : memref<3x18x16x8xf32, #tpu.memory_space<vmem>>, vector<1x8x15x8xf32>,
    %130 = tpu.iota {dimensions = array<i32: 1>} : vector<8x16x8xi32>
    %131 = tpu.iota {dimensions = array<i32: 0>} : vector<8x16x8xi32>
    %c1_i32_131 = arith.constant 1 : i32
    %132 = vector.broadcast %c1_i32_131 : i32 to vector<8x16x8xi32>
    %133 = arith.cmpi sge, %130, %132 : vector<8x16x8xi32>
    %c14_i32_132 = arith.constant 14 : i32
    %134 = vector.broadcast %c14_i32_132 : i32 to vector<8x16x8xi32>
    %135 = arith.cmpi sle, %130, %134 : vector<8x16x8xi32>
    %c6_i32 = arith.constant 6 : i32
    %136 = vector.broadcast %c6_i32 : i32 to vector<8x16x8xi32>
    %137 = arith.cmpi sle, %131, %136 : vector<8x16x8xi32>
    %cst_133 = arith.constant 0.000000e+00 : f32
    %138 = vector.broadcast %cst_133 : f32 to vector<128x8xf32>
    %c0_134 = arith.constant 0 : index
    %c8_135 = arith.constant 8 : index
    %c0_136 = arith.constant 0 : index
    %c0_137 = arith.constant 0 : index
    %139 = vector.load %arg5[%c0_134, %c8_135, %c0_136, %c0_137] : memref<3x18x16x8xf32, #tpu.memory_space<vmem>>, vector<1x8x16x8xf32>
    %140 = vector.shape_cast %139 : vector<1x8x16x8xf32> to vector<8x16x8xf32>
    %cst_138 = arith.constant 0.000000e+00 : f32
    %141 = vector.broadcast %cst_138 : f32 to vector<8x16x8xf32>
    %142 = arith.select %133, %140, %141 : vector<8x16x8xi1>, vector<8x16x8xf32>
    %143 = vector.shape_cast %142 : vector<8x16x8xf32> to vector<128x8xf32>
    %c0_139 = arith.constant 0 : index
    %c0_140 = arith.constant 0 : index
    %c0_141 = arith.constant 0 : index
    %c0_142 = arith.constant 0 : index
    %144 = vector.load %arg2[%c0_139, %c0_140, %c0_141, %c0_142] : memref<3x3x8x8xf32, #tpu.memory_space<vmem>>, vector<1x1x8x8xf32>
    %145 = vector.shape_cast %144 : vector<1x1x8x8xf32> to vector<8x8xf32>
    %cst_143 = arith.constant dense<0.000000e+00> : vector<128x8xf32>
    %146 = tpu.matmul %143, %145, %cst_143 {dimension_numbers = #tpu.dot_dimension_numbers<[1], [0], [0], [1], [0, 0, 1, 1], [], []>} : vector<128x8xf32>, vector<8x8xf32>, vector<128x8xf32> -> vector<128x8xf32>
    %147 = arith.addf %138, %146 : vector<128x8xf32>
    %c1_144 = arith.constant 1 : index
    %c8_145 = arith.constant 8 : index
    %c0_146 = arith.constant 0 : index
    %c0_147 = arith.constant 0 : index
    %148 = vector.load %arg5[%c1_144, %c8_145, %c0_146, %c0_147] : memref<3x18x16x8xf32, #tpu.memory_space<vmem>>, vector<1x8x16x8xf32>
    %149 = vector.shape_cast %148 : vector<1x8x16x8xf32> to vector<8x16x8xf32>
    %150 = vector.shape_cast %149 : vector<8x16x8xf32> to vector<128x8xf32>
    %c0_148 = arith.constant 0 : index
    %c1_149 = arith.constant 1 : index
    %c0_150 = arith.constant 0 : index
    %c0_151 = arith.constant 0 : index
    %151 = vector.load %arg2[%c0_148, %c1_149, %c0_150, %c0_151] : memref<3x3x8x8xf32, #tpu.memory_space<vmem>>, vector<1x1x8x8xf32>
    %152 = vector.shape_cast %151 : vector<1x1x8x8xf32> to vector<8x8xf32>
    %cst_152 = arith.constant dense<0.000000e+00> : vector<128x8xf32>
    %153 = tpu.matmul %150, %152, %cst_152 {dimension_numbers = #tpu.dot_dimension_numbers<[1], [0], [0], [1], [0, 0, 1, 1], [], []>} : vector<128x8xf32>, vector<8x8xf32>, vector<128x8xf32> -> vector<128x8xf32>
    %154 = arith.addf %147, %153 : vector<128x8xf32>
    %c2_153 = arith.constant 2 : index
    %c8_154 = arith.constant 8 : index
    %c0_155 = arith.constant 0 : index
    %c0_156 = arith.constant 0 : index
    %155 = vector.load %arg5[%c2_153, %c8_154, %c0_155, %c0_156] : memref<3x18x16x8xf32, #tpu.memory_space<vmem>>, vector<1x8x16x8xf32>
    %156 = vector.shape_cast %155 : vector<1x8x16x8xf32> to vector<8x16x8xf32>
    %cst_157 = arith.constant 0.000000e+00 : f32
    %157 = vector.broadcast %cst_157 : f32 to vector<8x16x8xf32>
    %158 = arith.select %135, %156, %157 : vector<8x16x8xi1>, vector<8x16x8xf32>
    %159 = vector.shape_cast %158 : vector<8x16x8xf32> to vector<128x8xf32>
    %c0_158 = arith.constant 0 : index
    %c2_159 = arith.constant 2 : index
    %c0_160 = arith.constant 0 : index
    %c0_161 = arith.constant 0 : index
    %160 = vector.load %arg2[%c0_158, %c2_159, %c0_160, %c0_161] : memref<3x3x8x8xf32, #tpu.memory_space<vmem>>, vector<1x1x8x8xf32>
    %161 = vector.shape_cast %160 : vector<1x1x8x8xf32> to vector<8x8xf32>
    %cst_162 = arith.constant dense<0.000000e+00> : vector<128x8xf32>
    %162 = tpu.matmul %159, %161, %cst_162 {dimension_numbers = #tpu.dot_dimension_numbers<[1], [0], [0], [1], [0, 0, 1, 1], [], []>} : vector<128x8xf32>, vector<8x8xf32>, vector<128x8xf32> -> vector<128x8xf32>
    %163 = arith.addf %154, %162 : vector<128x8xf32>
    %c0_163 = arith.constant 0 : index
    %c9_164 = arith.constant 9 : index
    %c0_165 = arith.constant 0 : index
    %c0_166 = arith.constant 0 : index
    %164 = vector.load %arg5[%c0_163, %c9_164, %c0_165, %c0_166] : memref<3x18x16x8xf32, #tpu.memory_space<vmem>>, vector<1x8x16x8xf32>
    %165 = vector.shape_cast %164 : vector<1x8x16x8xf32> to vector<8x16x8xf32>
    %cst_167 = arith.constant 0.000000e+00 : f32
    %166 = vector.broadcast %cst_167 : f32 to vector<8x16x8xf32>
    %167 = arith.select %133, %165, %166 : vector<8x16x8xi1>, vector<8x16x8xf32>
    %168 = vector.shape_cast %167 : vector<8x16x8xf32> to vector<128x8xf32>
    %c1_168 = arith.constant 1 : index
    %c0_169 = arith.constant 0 : index
    %c0_170 = arith.constant 0 : index
    %c0_171 = arith.constant 0 : index
    %169 = vector.load %arg2[%c1_168, %c0_169, %c0_170, %c0_171] : memref<3x3x8x8xf32, #tpu.memory_space<vmem>>, vector<1x1x8x8xf32>
    %170 = vector.shape_cast %169 : vector<1x1x8x8xf32> to vector<8x8xf32>
    %cst_172 = arith.constant dense<0.000000e+00> : vector<128x8xf32>
    %171 = tpu.matmul %168, %170, %cst_172 {dimension_numbers = #tpu.dot_dimension_numbers<[1], [0], [0], [1], [0, 0, 1, 1], [], []>} : vector<128x8xf32>, vector<8x8xf32>, vector<128x8xf32> -> vector<128x8xf32>
    %172 = arith.addf %163, %171 : vector<128x8xf32>
    %c1_173 = arith.constant 1 : index
    %c9_174 = arith.constant 9 : index
    %c0_175 = arith.constant 0 : index
    %c0_176 = arith.constant 0 : index
    %173 = vector.load %arg5[%c1_173, %c9_174, %c0_175, %c0_176] : memref<3x18x16x8xf32, #tpu.memory_space<vmem>>, vector<1x8x16x8xf32>
    %174 = vector.shape_cast %173 : vector<1x8x16x8xf32> to vector<8x16x8xf32>
    %175 = vector.shape_cast %174 : vector<8x16x8xf32> to vector<128x8xf32>
    %c1_177 = arith.constant 1 : index
    %c1_178 = arith.constant 1 : index
    %c0_179 = arith.constant 0 : index
    %c0_180 = arith.constant 0 : index
    %176 = vector.load %arg2[%c1_177, %c1_178, %c0_179, %c0_180] : memref<3x3x8x8xf32, #tpu.memory_space<vmem>>, vector<1x1x8x8xf32>
    %177 = vector.shape_cast %176 : vector<1x1x8x8xf32> to vector<8x8xf32>
    %cst_181 = arith.constant dense<0.000000e+00> : vector<128x8xf32>
    %178 = tpu.matmul %175, %177, %cst_181 {dimension_numbers = #tpu.dot_dimension_numbers<[1], [0], [0], [1], [0, 0, 1, 1], [], []>} : vector<128x8xf32>, vector<8x8xf32>, vector<128x8xf32> -> vector<128x8xf32>
    %179 = arith.addf %172, %178 : vector<128x8xf32>
    %c2_182 = arith.constant 2 : index
    %c9_183 = arith.constant 9 : index
    %c0_184 = arith.constant 0 : index
    %c0_185 = arith.constant 0 : index
    %180 = vector.load %arg5[%c2_182, %c9_183, %c0_184, %c0_185] : memref<3x18x16x8xf32, #tpu.memory_space<vmem>>, vector<1x8x16x8xf32>
    %181 = vector.shape_cast %180 : vector<1x8x16x8xf32> to vector<8x16x8xf32>
    %cst_186 = arith.constant 0.000000e+00 : f32
    %182 = vector.broadcast %cst_186 : f32 to vector<8x16x8xf32>
    %183 = arith.select %135, %181, %182 : vector<8x16x8xi1>, vector<8x16x8xf32>
    %184 = vector.shape_cast %183 : vector<8x16x8xf32> to vector<128x8xf32>
    %c1_187 = arith.constant 1 : index
    %c2_188 = arith.constant 2 : index
    %c0_189 = arith.constant 0 : index
    %c0_190 = arith.constant 0 : index
    %185 = vector.load %arg2[%c1_187, %c2_188, %c0_189, %c0_190] : memref<3x3x8x8xf32, #tpu.memory_space<vmem>>, vector<1x1x8x8xf32>
    %186 = vector.shape_cast %185 : vector<1x1x8x8xf32> to vector<8x8xf32>
    %cst_191 = arith.constant dense<0.000000e+00> : vector<128x8xf32>
    %187 = tpu.matmul %184, %186, %cst_191 {dimension_numbers = #tpu.dot_dimension_numbers<[1], [0], [0], [1], [0, 0, 1, 1], [], []>} : vector<128x8xf32>, vector<8x8xf32>, vector<128x8xf32> -> vector<128x8xf32>
    %188 = arith.addf %179, %187 : vector<128x8xf32>
    %c0_192 = arith.constant 0 : index
    %c10 = arith.constant 10 : index
    %c0_193 = arith.constant 0 : index
    %c0_194 = arith.constant 0 : index
    %189 = vector.load %arg5[%c0_192, %c10, %c0_193, %c0_194] : memref<3x18x16x8xf32, #tpu.memory_space<vmem>>, vector<1x8x16x8xf32>
    %190 = vector.shape_cast %189 : vector<1x8x16x8xf32> to vector<8x16x8xf32>
    %cst_195 = arith.constant 0.000000e+00 : f32
    %191 = vector.broadcast %cst_195 : f32 to vector<8x16x8xf32>
    %192 = arith.select %133, %190, %191 : vector<8x16x8xi1>, vector<8x16x8xf32>
    %cst_196 = arith.constant 0.000000e+00 : f32
    %193 = vector.broadcast %cst_196 : f32 to vector<8x16x8xf32>
    %194 = arith.select %137, %192, %193 : vector<8x16x8xi1>, vector<8x16x8xf32>
    %195 = vector.shape_cast %194 : vector<8x16x8xf32> to vector<128x8xf32>
    %c2_197 = arith.constant 2 : index
    %c0_198 = arith.constant 0 : index
    %c0_199 = arith.constant 0 : index
    %c0_200 = arith.constant 0 : index
    %196 = vector.load %arg2[%c2_197, %c0_198, %c0_199, %c0_200] : memref<3x3x8x8xf32, #tpu.memory_space<vmem>>, vector<1x1x8x8xf32>
    %197 = vector.shape_cast %196 : vector<1x1x8x8xf32> to vector<8x8xf32>
    %cst_201 = arith.constant dense<0.000000e+00> : vector<128x8xf32>
    %198 = tpu.matmul %195, %197, %cst_201 {dimension_numbers = #tpu.dot_dimension_numbers<[1], [0], [0], [1], [0, 0, 1, 1], [], []>} : vector<128x8xf32>, vector<8x8xf32>, vector<128x8xf32> -> vector<128x8xf32>
    %199 = arith.addf %188, %198 : vector<128x8xf32>
    %c1_202 = arith.constant 1 : index
    %c10_203 = arith.constant 10 : index
    %c0_204 = arith.constant 0 : index
    %c0_205 = arith.constant 0 : index
    %200 = vector.load %arg5[%c1_202, %c10_203, %c0_204, %c0_205] : memref<3x18x16x8xf32, #tpu.memory_space<vmem>>, vector<1x8x16x8xf32>
    %201 = vector.shape_cast %200 : vector<1x8x16x8xf32> to vector<8x16x8xf32>
    %cst_206 = arith.constant 0.000000e+00 : f32
    %202 = vector.broadcast %cst_206 : f32 to vector<8x16x8xf32>
    %203 = arith.select %137, %201, %202 : vector<8x16x8xi1>, vector<8x16x8xf32>
    %204 = vector.shape_cast %203 : vector<8x16x8xf32> to vector<128x8xf32>
    %c2_207 = arith.constant 2 : index
    %c1_208 = arith.constant 1 : index
    %c0_209 = arith.constant 0 : index
    %c0_210 = arith.constant 0 : index
    %205 = vector.load %arg2[%c2_207, %c1_208, %c0_209, %c0_210] : memref<3x3x8x8xf32, #tpu.memory_space<vmem>>, vector<1x1x8x8xf32>
    %206 = vector.shape_cast %205 : vector<1x1x8x8xf32> to vector<8x8xf32>
    %cst_211 = arith.constant dense<0.000000e+00> : vector<128x8xf32>
    %207 = tpu.matmul %204, %206, %cst_211 {dimension_numbers = #tpu.dot_dimension_numbers<[1], [0], [0], [1], [0, 0, 1, 1], [], []>} : vector<128x8xf32>, vector<8x8xf32>, vector<128x8xf32> -> vector<128x8xf32>
    %208 = arith.addf %199, %207 : vector<128x8xf32>
    %c2_212 = arith.constant 2 : index
    %c10_213 = arith.constant 10 : index
    %c0_214 = arith.constant 0 : index
    %c0_215 = arith.constant 0 : index
    %209 = vector.load %arg5[%c2_212, %c10_213, %c0_214, %c0_215] : memref<3x18x16x8xf32, #tpu.memory_space<vmem>>, vector<1x8x16x8xf32>
    %210 = vector.shape_cast %209 : vector<1x8x16x8xf32> to vector<8x16x8xf32>
    %cst_216 = arith.constant 0.000000e+00 : f32
    %211 = vector.broadcast %cst_216 : f32 to vector<8x16x8xf32>
    %212 = arith.select %135, %210, %211 : vector<8x16x8xi1>, vector<8x16x8xf32>
    %cst_217 = arith.constant 0.000000e+00 : f32
    %213 = vector.broadcast %cst_217 : f32 to vector<8x16x8xf32>
    %214 = arith.select %137, %212, %213 : vector<8x16x8xi1>, vector<8x16x8xf32>
    %215 = vector.shape_cast %214 : vector<8x16x8xf32> to vector<128x8xf32>
    %c2_218 = arith.constant 2 : index
    %c2_219 = arith.constant 2 : index
    %c0_220 = arith.constant 0 : index
    %c0_221 = arith.constant 0 : index
    %216 = vector.load %arg2[%c2_218, %c2_219, %c0_220, %c0_221] : memref<3x3x8x8xf32, #tpu.memory_space<vmem>>, vector<1x1x8x8xf32>
    %217 = vector.shape_cast %216 : vector<1x1x8x8xf32> to vector<8x8xf32>
    %cst_222 = arith.constant dense<0.000000e+00> : vector<128x8xf32>
    %218 = tpu.matmul %215, %217, %cst_222 {dimension_numbers = #tpu.dot_dimension_numbers<[1], [0], [0], [1], [0, 0, 1, 1], [], []>} : vector<128x8xf32>, vector<8x8xf32>, vector<128x8xf32> -> vector<128x8xf32>
    %219 = arith.addf %208, %218 : vector<128x8xf32>
    %cst_223 = arith.constant 0.000000e+00 : f32
    %220 = vector.broadcast %cst_223 : f32 to vector<128x8xf32>
    %221 = arith.maximumf %219, %220 : vector<128x8xf32>
    %222 = vector.shape_cast %221 : vector<128x8xf32> to vector<8x16x8xf32>
    %c1_224 = arith.constant 1 : index
    %c9_225 = arith.constant 9 : index
    %c0_226 = arith.constant 0 : index
    %c0_227 = arith.constant 0 : index
    %223 = vector.load %arg6[%c1_224, %c9_225, %c0_226, %c0_227] : memref<3x18x16x8xf32, #tpu.memory_space<vmem>>, vector<1x8x16x8xf32>
    %224 = vector.shape_cast %223 : vector<1x8x16x8xf32> to vector<8x16x8xf32>
    %225 = vector.shape_cast %222 : vector<8x16x8xf32> to vector<1x8x16x8xf32>
    tpu.vector_store %arg6[%c1_224, %c9_225, %c0_226, %c0_227], %225 {strides = array<i32>} : memref<3x18x16x8xf32, #tpu.memory_space<vmem>>, vector<1x8x16x8xf32>,
    %226 = vector.extract_strided_slice %222 {offsets = [0, 0, 0], sizes = [8, 15, 8], strides = [1, 1, 1]} : vector<8x16x8xf32> to vector<8x15x8xf32>
    %c0_228 = arith.constant 0 : index
    %c9_229 = arith.constant 9 : index
    %c1_230 = arith.constant 1 : index
    %c0_231 = arith.constant 0 : index
    %227 = vector.load %arg6[%c0_228, %c9_229, %c1_230, %c0_231] : memref<3x18x16x8xf32, #tpu.memory_space<vmem>>, vector<1x8x15x8xf32>
    %228 = vector.shape_cast %227 : vector<1x8x15x8xf32> to vector<8x15x8xf32>
    %229 = vector.shape_cast %226 : vector<8x15x8xf32> to vector<1x8x15x8xf32>
    tpu.vector_store %arg6[%c0_228, %c9_229, %c1_230, %c0_231], %229 {strides = array<i32>} : memref<3x18x16x8xf32, #tpu.memory_space<vmem>>, vector<1x8x15x8xf32>,
    %230 = vector.extract_strided_slice %222 {offsets = [0, 1, 0], sizes = [8, 15, 8], strides = [1, 1, 1]} : vector<8x16x8xf32> to vector<8x15x8xf32>
    %c2_232 = arith.constant 2 : index
    %c9_233 = arith.constant 9 : index
    %c0_234 = arith.constant 0 : index
    %c0_235 = arith.constant 0 : index
    %231 = vector.load %arg6[%c2_232, %c9_233, %c0_234, %c0_235] : memref<3x18x16x8xf32, #tpu.memory_space<vmem>>, vector<1x8x15x8xf32>
    %232 = vector.shape_cast %231 : vector<1x8x15x8xf32> to vector<8x15x8xf32>
    %233 = vector.shape_cast %230 : vector<8x15x8xf32> to vector<1x8x15x8xf32>
    tpu.vector_store %arg6[%c2_232, %c9_233, %c0_234, %c0_235], %233 {strides = array<i32>} : memref<3x18x16x8xf32, #tpu.memory_space<vmem>>, vector<1x8x15x8xf32>,
    %234 = tpu.iota {dimensions = array<i32: 1>} : vector<8x16x8xi32>
    %235 = tpu.iota {dimensions = array<i32: 0>} : vector<8x16x8xi32>
    %c1_i32_236 = arith.constant 1 : i32
    %236 = vector.broadcast %c1_i32_236 : i32 to vector<8x16x8xi32>
    %237 = arith.cmpi sge, %234, %236 : vector<8x16x8xi32>
    %c14_i32_237 = arith.constant 14 : i32
    %238 = vector.broadcast %c14_i32_237 : i32 to vector<8x16x8xi32>
    %239 = arith.cmpi sle, %234, %238 : vector<8x16x8xi32>
    %c1_i32_238 = arith.constant 1 : i32
    %240 = vector.broadcast %c1_i32_238 : i32 to vector<8x16x8xi32>
    %241 = arith.cmpi sge, %235, %240 : vector<8x16x8xi32>
    %cst_239 = arith.constant 0.000000e+00 : f32
    %242 = vector.broadcast %cst_239 : f32 to vector<128x8xf32>
    %c0_240 = arith.constant 0 : index
    %c0_241 = arith.constant 0 : index
    %c0_242 = arith.constant 0 : index
    %c0_243 = arith.constant 0 : index
    %243 = vector.load %arg6[%c0_240, %c0_241, %c0_242, %c0_243] : memref<3x18x16x8xf32, #tpu.memory_space<vmem>>, vector<1x8x16x8xf32>
    %244 = vector.shape_cast %243 : vector<1x8x16x8xf32> to vector<8x16x8xf32>
    %cst_244 = arith.constant 0.000000e+00 : f32
    %245 = vector.broadcast %cst_244 : f32 to vector<8x16x8xf32>
    %246 = arith.select %237, %244, %245 : vector<8x16x8xi1>, vector<8x16x8xf32>
    %cst_245 = arith.constant 0.000000e+00 : f32
    %247 = vector.broadcast %cst_245 : f32 to vector<8x16x8xf32>
    %248 = arith.select %241, %246, %247 : vector<8x16x8xi1>, vector<8x16x8xf32>
    %249 = vector.shape_cast %248 : vector<8x16x8xf32> to vector<128x8xf32>
    %c0_246 = arith.constant 0 : index
    %c0_247 = arith.constant 0 : index
    %c0_248 = arith.constant 0 : index
    %c0_249 = arith.constant 0 : index
    %250 = vector.load %arg3[%c0_246, %c0_247, %c0_248, %c0_249] : memref<3x3x8x8xf32, #tpu.memory_space<vmem>>, vector<1x1x8x8xf32>
    %251 = vector.shape_cast %250 : vector<1x1x8x8xf32> to vector<8x8xf32>
    %cst_250 = arith.constant dense<0.000000e+00> : vector<128x8xf32>
    %252 = tpu.matmul %249, %251, %cst_250 {dimension_numbers = #tpu.dot_dimension_numbers<[1], [0], [0], [1], [0, 0, 1, 1], [], []>} : vector<128x8xf32>, vector<8x8xf32>, vector<128x8xf32> -> vector<128x8xf32>
    %253 = arith.addf %242, %252 : vector<128x8xf32>
    %c1_251 = arith.constant 1 : index
    %c0_252 = arith.constant 0 : index
    %c0_253 = arith.constant 0 : index
    %c0_254 = arith.constant 0 : index
    %254 = vector.load %arg6[%c1_251, %c0_252, %c0_253, %c0_254] : memref<3x18x16x8xf32, #tpu.memory_space<vmem>>, vector<1x8x16x8xf32>
    %255 = vector.shape_cast %254 : vector<1x8x16x8xf32> to vector<8x16x8xf32>
    %cst_255 = arith.constant 0.000000e+00 : f32
    %256 = vector.broadcast %cst_255 : f32 to vector<8x16x8xf32>
    %257 = arith.select %241, %255, %256 : vector<8x16x8xi1>, vector<8x16x8xf32>
    %258 = vector.shape_cast %257 : vector<8x16x8xf32> to vector<128x8xf32>
    %c0_256 = arith.constant 0 : index
    %c1_257 = arith.constant 1 : index
    %c0_258 = arith.constant 0 : index
    %c0_259 = arith.constant 0 : index
    %259 = vector.load %arg3[%c0_256, %c1_257, %c0_258, %c0_259] : memref<3x3x8x8xf32, #tpu.memory_space<vmem>>, vector<1x1x8x8xf32>
    %260 = vector.shape_cast %259 : vector<1x1x8x8xf32> to vector<8x8xf32>
    %cst_260 = arith.constant dense<0.000000e+00> : vector<128x8xf32>
    %261 = tpu.matmul %258, %260, %cst_260 {dimension_numbers = #tpu.dot_dimension_numbers<[1], [0], [0], [1], [0, 0, 1, 1], [], []>} : vector<128x8xf32>, vector<8x8xf32>, vector<128x8xf32> -> vector<128x8xf32>
    %262 = arith.addf %253, %261 : vector<128x8xf32>
    %c2_261 = arith.constant 2 : index
    %c0_262 = arith.constant 0 : index
    %c0_263 = arith.constant 0 : index
    %c0_264 = arith.constant 0 : index
    %263 = vector.load %arg6[%c2_261, %c0_262, %c0_263, %c0_264] : memref<3x18x16x8xf32, #tpu.memory_space<vmem>>, vector<1x8x16x8xf32>
    %264 = vector.shape_cast %263 : vector<1x8x16x8xf32> to vector<8x16x8xf32>
    %cst_265 = arith.constant 0.000000e+00 : f32
    %265 = vector.broadcast %cst_265 : f32 to vector<8x16x8xf32>
    %266 = arith.select %239, %264, %265 : vector<8x16x8xi1>, vector<8x16x8xf32>
    %cst_266 = arith.constant 0.000000e+00 : f32
    %267 = vector.broadcast %cst_266 : f32 to vector<8x16x8xf32>
    %268 = arith.select %241, %266, %267 : vector<8x16x8xi1>, vector<8x16x8xf32>
    %269 = vector.shape_cast %268 : vector<8x16x8xf32> to vector<128x8xf32>
    %c0_267 = arith.constant 0 : index
    %c2_268 = arith.constant 2 : index
    %c0_269 = arith.constant 0 : index
    %c0_270 = arith.constant 0 : index
    %270 = vector.load %arg3[%c0_267, %c2_268, %c0_269, %c0_270] : memref<3x3x8x8xf32, #tpu.memory_space<vmem>>, vector<1x1x8x8xf32>
    %271 = vector.shape_cast %270 : vector<1x1x8x8xf32> to vector<8x8xf32>
    %cst_271 = arith.constant dense<0.000000e+00> : vector<128x8xf32>
    %272 = tpu.matmul %269, %271, %cst_271 {dimension_numbers = #tpu.dot_dimension_numbers<[1], [0], [0], [1], [0, 0, 1, 1], [], []>} : vector<128x8xf32>, vector<8x8xf32>, vector<128x8xf32> -> vector<128x8xf32>
    %273 = arith.addf %262, %272 : vector<128x8xf32>
    %c0_272 = arith.constant 0 : index
    %c1_273 = arith.constant 1 : index
    %c0_274 = arith.constant 0 : index
    %c0_275 = arith.constant 0 : index
    %274 = vector.load %arg6[%c0_272, %c1_273, %c0_274, %c0_275] : memref<3x18x16x8xf32, #tpu.memory_space<vmem>>, vector<1x8x16x8xf32>
    %275 = vector.shape_cast %274 : vector<1x8x16x8xf32> to vector<8x16x8xf32>
    %cst_276 = arith.constant 0.000000e+00 : f32
    %276 = vector.broadcast %cst_276 : f32 to vector<8x16x8xf32>
    %277 = arith.select %237, %275, %276 : vector<8x16x8xi1>, vector<8x16x8xf32>
    %278 = vector.shape_cast %277 : vector<8x16x8xf32> to vector<128x8xf32>
    %c1_277 = arith.constant 1 : index
    %c0_278 = arith.constant 0 : index
    %c0_279 = arith.constant 0 : index
    %c0_280 = arith.constant 0 : index
    %279 = vector.load %arg3[%c1_277, %c0_278, %c0_279, %c0_280] : memref<3x3x8x8xf32, #tpu.memory_space<vmem>>, vector<1x1x8x8xf32>
    %280 = vector.shape_cast %279 : vector<1x1x8x8xf32> to vector<8x8xf32>
    %cst_281 = arith.constant dense<0.000000e+00> : vector<128x8xf32>
    %281 = tpu.matmul %278, %280, %cst_281 {dimension_numbers = #tpu.dot_dimension_numbers<[1], [0], [0], [1], [0, 0, 1, 1], [], []>} : vector<128x8xf32>, vector<8x8xf32>, vector<128x8xf32> -> vector<128x8xf32>
    %282 = arith.addf %273, %281 : vector<128x8xf32>
    %c1_282 = arith.constant 1 : index
    %c1_283 = arith.constant 1 : index
    %c0_284 = arith.constant 0 : index
    %c0_285 = arith.constant 0 : index
    %283 = vector.load %arg6[%c1_282, %c1_283, %c0_284, %c0_285] : memref<3x18x16x8xf32, #tpu.memory_space<vmem>>, vector<1x8x16x8xf32>
    %284 = vector.shape_cast %283 : vector<1x8x16x8xf32> to vector<8x16x8xf32>
    %285 = vector.shape_cast %284 : vector<8x16x8xf32> to vector<128x8xf32>
    %c1_286 = arith.constant 1 : index
    %c1_287 = arith.constant 1 : index
    %c0_288 = arith.constant 0 : index
    %c0_289 = arith.constant 0 : index
    %286 = vector.load %arg3[%c1_286, %c1_287, %c0_288, %c0_289] : memref<3x3x8x8xf32, #tpu.memory_space<vmem>>, vector<1x1x8x8xf32>
    %287 = vector.shape_cast %286 : vector<1x1x8x8xf32> to vector<8x8xf32>
    %cst_290 = arith.constant dense<0.000000e+00> : vector<128x8xf32>
    %288 = tpu.matmul %285, %287, %cst_290 {dimension_numbers = #tpu.dot_dimension_numbers<[1], [0], [0], [1], [0, 0, 1, 1], [], []>} : vector<128x8xf32>, vector<8x8xf32>, vector<128x8xf32> -> vector<128x8xf32>
    %289 = arith.addf %282, %288 : vector<128x8xf32>
    %c2_291 = arith.constant 2 : index
    %c1_292 = arith.constant 1 : index
    %c0_293 = arith.constant 0 : index
    %c0_294 = arith.constant 0 : index
    %290 = vector.load %arg6[%c2_291, %c1_292, %c0_293, %c0_294] : memref<3x18x16x8xf32, #tpu.memory_space<vmem>>, vector<1x8x16x8xf32>
    %291 = vector.shape_cast %290 : vector<1x8x16x8xf32> to vector<8x16x8xf32>
    %cst_295 = arith.constant 0.000000e+00 : f32
    %292 = vector.broadcast %cst_295 : f32 to vector<8x16x8xf32>
    %293 = arith.select %239, %291, %292 : vector<8x16x8xi1>, vector<8x16x8xf32>
    %294 = vector.shape_cast %293 : vector<8x16x8xf32> to vector<128x8xf32>
    %c1_296 = arith.constant 1 : index
    %c2_297 = arith.constant 2 : index
    %c0_298 = arith.constant 0 : index
    %c0_299 = arith.constant 0 : index
    %295 = vector.load %arg3[%c1_296, %c2_297, %c0_298, %c0_299] : memref<3x3x8x8xf32, #tpu.memory_space<vmem>>, vector<1x1x8x8xf32>
    %296 = vector.shape_cast %295 : vector<1x1x8x8xf32> to vector<8x8xf32>
    %cst_300 = arith.constant dense<0.000000e+00> : vector<128x8xf32>
    %297 = tpu.matmul %294, %296, %cst_300 {dimension_numbers = #tpu.dot_dimension_numbers<[1], [0], [0], [1], [0, 0, 1, 1], [], []>} : vector<128x8xf32>, vector<8x8xf32>, vector<128x8xf32> -> vector<128x8xf32>
    %298 = arith.addf %289, %297 : vector<128x8xf32>
    %c0_301 = arith.constant 0 : index
    %c2_302 = arith.constant 2 : index
    %c0_303 = arith.constant 0 : index
    %c0_304 = arith.constant 0 : index
    %299 = vector.load %arg6[%c0_301, %c2_302, %c0_303, %c0_304] : memref<3x18x16x8xf32, #tpu.memory_space<vmem>>, vector<1x8x16x8xf32>
    %300 = vector.shape_cast %299 : vector<1x8x16x8xf32> to vector<8x16x8xf32>
    %cst_305 = arith.constant 0.000000e+00 : f32
    %301 = vector.broadcast %cst_305 : f32 to vector<8x16x8xf32>
    %302 = arith.select %237, %300, %301 : vector<8x16x8xi1>, vector<8x16x8xf32>
    %303 = vector.shape_cast %302 : vector<8x16x8xf32> to vector<128x8xf32>
    %c2_306 = arith.constant 2 : index
    %c0_307 = arith.constant 0 : index
    %c0_308 = arith.constant 0 : index
    %c0_309 = arith.constant 0 : index
    %304 = vector.load %arg3[%c2_306, %c0_307, %c0_308, %c0_309] : memref<3x3x8x8xf32, #tpu.memory_space<vmem>>, vector<1x1x8x8xf32>
    %305 = vector.shape_cast %304 : vector<1x1x8x8xf32> to vector<8x8xf32>
    %cst_310 = arith.constant dense<0.000000e+00> : vector<128x8xf32>
    %306 = tpu.matmul %303, %305, %cst_310 {dimension_numbers = #tpu.dot_dimension_numbers<[1], [0], [0], [1], [0, 0, 1, 1], [], []>} : vector<128x8xf32>, vector<8x8xf32>, vector<128x8xf32> -> vector<128x8xf32>
    %307 = arith.addf %298, %306 : vector<128x8xf32>
    %c1_311 = arith.constant 1 : index
    %c2_312 = arith.constant 2 : index
    %c0_313 = arith.constant 0 : index
    %c0_314 = arith.constant 0 : index
    %308 = vector.load %arg6[%c1_311, %c2_312, %c0_313, %c0_314] : memref<3x18x16x8xf32, #tpu.memory_space<vmem>>, vector<1x8x16x8xf32>
    %309 = vector.shape_cast %308 : vector<1x8x16x8xf32> to vector<8x16x8xf32>
    %310 = vector.shape_cast %309 : vector<8x16x8xf32> to vector<128x8xf32>
    %c2_315 = arith.constant 2 : index
    %c1_316 = arith.constant 1 : index
    %c0_317 = arith.constant 0 : index
    %c0_318 = arith.constant 0 : index
    %311 = vector.load %arg3[%c2_315, %c1_316, %c0_317, %c0_318] : memref<3x3x8x8xf32, #tpu.memory_space<vmem>>, vector<1x1x8x8xf32>
    %312 = vector.shape_cast %311 : vector<1x1x8x8xf32> to vector<8x8xf32>
    %cst_319 = arith.constant dense<0.000000e+00> : vector<128x8xf32>
    %313 = tpu.matmul %310, %312, %cst_319 {dimension_numbers = #tpu.dot_dimension_numbers<[1], [0], [0], [1], [0, 0, 1, 1], [], []>} : vector<128x8xf32>, vector<8x8xf32>, vector<128x8xf32> -> vector<128x8xf32>
    %314 = arith.addf %307, %313 : vector<128x8xf32>
    %c2_320 = arith.constant 2 : index
    %c2_321 = arith.constant 2 : index
    %c0_322 = arith.constant 0 : index
    %c0_323 = arith.constant 0 : index
    %315 = vector.load %arg6[%c2_320, %c2_321, %c0_322, %c0_323] : memref<3x18x16x8xf32, #tpu.memory_space<vmem>>, vector<1x8x16x8xf32>
    %316 = vector.shape_cast %315 : vector<1x8x16x8xf32> to vector<8x16x8xf32>
    %cst_324 = arith.constant 0.000000e+00 : f32
    %317 = vector.broadcast %cst_324 : f32 to vector<8x16x8xf32>
    %318 = arith.select %239, %316, %317 : vector<8x16x8xi1>, vector<8x16x8xf32>
    %319 = vector.shape_cast %318 : vector<8x16x8xf32> to vector<128x8xf32>
    %c2_325 = arith.constant 2 : index
    %c2_326 = arith.constant 2 : index
    %c0_327 = arith.constant 0 : index
    %c0_328 = arith.constant 0 : index
    %320 = vector.load %arg3[%c2_325, %c2_326, %c0_327, %c0_328] : memref<3x3x8x8xf32, #tpu.memory_space<vmem>>, vector<1x1x8x8xf32>
    %321 = vector.shape_cast %320 : vector<1x1x8x8xf32> to vector<8x8xf32>
    %cst_329 = arith.constant dense<0.000000e+00> : vector<128x8xf32>
    %322 = tpu.matmul %319, %321, %cst_329 {dimension_numbers = #tpu.dot_dimension_numbers<[1], [0], [0], [1], [0, 0, 1, 1], [], []>} : vector<128x8xf32>, vector<8x8xf32>, vector<128x8xf32> -> vector<128x8xf32>
    %323 = arith.addf %314, %322 : vector<128x8xf32>
    %c1_330 = arith.constant 1 : index
    %c1_331 = arith.constant 1 : index
    %c0_332 = arith.constant 0 : index
    %c0_333 = arith.constant 0 : index
    %324 = vector.load %arg5[%c1_330, %c1_331, %c0_332, %c0_333] : memref<3x18x16x8xf32, #tpu.memory_space<vmem>>, vector<1x8x16x8xf32>
    %325 = vector.shape_cast %324 : vector<1x8x16x8xf32> to vector<8x16x8xf32>
    %326 = vector.shape_cast %325 : vector<8x16x8xf32> to vector<128x8xf32>
    %327 = arith.addf %323, %326 : vector<128x8xf32>
    %cst_334 = arith.constant 0.000000e+00 : f32
    %328 = vector.broadcast %cst_334 : f32 to vector<128x8xf32>
    %329 = arith.maximumf %327, %328 : vector<128x8xf32>
    %330 = vector.shape_cast %329 : vector<128x8xf32> to vector<8x16x8xf32>
    %331 = vector.extract_strided_slice %330 {offsets = [0, 0, 0], sizes = [8, 16, 4], strides = [1, 1, 1]} : vector<8x16x8xf32> to vector<8x16x4xf32>
    %c0_335 = arith.constant 0 : index
    %c0_336 = arith.constant 0 : index
    %c0_337 = arith.constant 0 : index
    %c0_338 = arith.constant 0 : index
    %332 = vector.load %arg4[%c0_335, %c0_336, %c0_337, %c0_338] : memref<1x16x16x4xf32, #tpu.memory_space<vmem>>, vector<1x8x16x4xf32>
    %333 = vector.shape_cast %332 : vector<1x8x16x4xf32> to vector<8x16x4xf32>
    %334 = vector.shape_cast %331 : vector<8x16x4xf32> to vector<1x8x16x4xf32>
    tpu.vector_store %arg4[%c0_335, %c0_336, %c0_337, %c0_338], %334 {strides = array<i32>} : memref<1x16x16x4xf32, #tpu.memory_space<vmem>>, vector<1x8x16x4xf32>,
    %335 = tpu.iota {dimensions = array<i32: 1>} : vector<8x16x8xi32>
    %336 = tpu.iota {dimensions = array<i32: 0>} : vector<8x16x8xi32>
    %c1_i32_339 = arith.constant 1 : i32
    %337 = vector.broadcast %c1_i32_339 : i32 to vector<8x16x8xi32>
    %338 = arith.cmpi sge, %335, %337 : vector<8x16x8xi32>
    %c14_i32_340 = arith.constant 14 : i32
    %339 = vector.broadcast %c14_i32_340 : i32 to vector<8x16x8xi32>
    %340 = arith.cmpi sle, %335, %339 : vector<8x16x8xi32>
    %c6_i32_341 = arith.constant 6 : i32
    %341 = vector.broadcast %c6_i32_341 : i32 to vector<8x16x8xi32>
    %342 = arith.cmpi sle, %336, %341 : vector<8x16x8xi32>
    %cst_342 = arith.constant 0.000000e+00 : f32
    %343 = vector.broadcast %cst_342 : f32 to vector<128x8xf32>
    %c0_343 = arith.constant 0 : index
    %c8_344 = arith.constant 8 : index
    %c0_345 = arith.constant 0 : index
    %c0_346 = arith.constant 0 : index
    %344 = vector.load %arg6[%c0_343, %c8_344, %c0_345, %c0_346] : memref<3x18x16x8xf32, #tpu.memory_space<vmem>>, vector<1x8x16x8xf32>
    %345 = vector.shape_cast %344 : vector<1x8x16x8xf32> to vector<8x16x8xf32>
    %cst_347 = arith.constant 0.000000e+00 : f32
    %346 = vector.broadcast %cst_347 : f32 to vector<8x16x8xf32>
    %347 = arith.select %338, %345, %346 : vector<8x16x8xi1>, vector<8x16x8xf32>
    %348 = vector.shape_cast %347 : vector<8x16x8xf32> to vector<128x8xf32>
    %c0_348 = arith.constant 0 : index
    %c0_349 = arith.constant 0 : index
    %c0_350 = arith.constant 0 : index
    %c0_351 = arith.constant 0 : index
    %349 = vector.load %arg3[%c0_348, %c0_349, %c0_350, %c0_351] : memref<3x3x8x8xf32, #tpu.memory_space<vmem>>, vector<1x1x8x8xf32>
    %350 = vector.shape_cast %349 : vector<1x1x8x8xf32> to vector<8x8xf32>
    %cst_352 = arith.constant dense<0.000000e+00> : vector<128x8xf32>
    %351 = tpu.matmul %348, %350, %cst_352 {dimension_numbers = #tpu.dot_dimension_numbers<[1], [0], [0], [1], [0, 0, 1, 1], [], []>} : vector<128x8xf32>, vector<8x8xf32>, vector<128x8xf32> -> vector<128x8xf32>
    %352 = arith.addf %343, %351 : vector<128x8xf32>
    %c1_353 = arith.constant 1 : index
    %c8_354 = arith.constant 8 : index
    %c0_355 = arith.constant 0 : index
    %c0_356 = arith.constant 0 : index
    %353 = vector.load %arg6[%c1_353, %c8_354, %c0_355, %c0_356] : memref<3x18x16x8xf32, #tpu.memory_space<vmem>>, vector<1x8x16x8xf32>
    %354 = vector.shape_cast %353 : vector<1x8x16x8xf32> to vector<8x16x8xf32>
    %355 = vector.shape_cast %354 : vector<8x16x8xf32> to vector<128x8xf32>
    %c0_357 = arith.constant 0 : index
    %c1_358 = arith.constant 1 : index
    %c0_359 = arith.constant 0 : index
    %c0_360 = arith.constant 0 : index
    %356 = vector.load %arg3[%c0_357, %c1_358, %c0_359, %c0_360] : memref<3x3x8x8xf32, #tpu.memory_space<vmem>>, vector<1x1x8x8xf32>
    %357 = vector.shape_cast %356 : vector<1x1x8x8xf32> to vector<8x8xf32>
    %cst_361 = arith.constant dense<0.000000e+00> : vector<128x8xf32>
    %358 = tpu.matmul %355, %357, %cst_361 {dimension_numbers = #tpu.dot_dimension_numbers<[1], [0], [0], [1], [0, 0, 1, 1], [], []>} : vector<128x8xf32>, vector<8x8xf32>, vector<128x8xf32> -> vector<128x8xf32>
    %359 = arith.addf %352, %358 : vector<128x8xf32>
    %c2_362 = arith.constant 2 : index
    %c8_363 = arith.constant 8 : index
    %c0_364 = arith.constant 0 : index
    %c0_365 = arith.constant 0 : index
    %360 = vector.load %arg6[%c2_362, %c8_363, %c0_364, %c0_365] : memref<3x18x16x8xf32, #tpu.memory_space<vmem>>, vector<1x8x16x8xf32>
    %361 = vector.shape_cast %360 : vector<1x8x16x8xf32> to vector<8x16x8xf32>
    %cst_366 = arith.constant 0.000000e+00 : f32
    %362 = vector.broadcast %cst_366 : f32 to vector<8x16x8xf32>
    %363 = arith.select %340, %361, %362 : vector<8x16x8xi1>, vector<8x16x8xf32>
    %364 = vector.shape_cast %363 : vector<8x16x8xf32> to vector<128x8xf32>
    %c0_367 = arith.constant 0 : index
    %c2_368 = arith.constant 2 : index
    %c0_369 = arith.constant 0 : index
    %c0_370 = arith.constant 0 : index
    %365 = vector.load %arg3[%c0_367, %c2_368, %c0_369, %c0_370] : memref<3x3x8x8xf32, #tpu.memory_space<vmem>>, vector<1x1x8x8xf32>
    %366 = vector.shape_cast %365 : vector<1x1x8x8xf32> to vector<8x8xf32>
    %cst_371 = arith.constant dense<0.000000e+00> : vector<128x8xf32>
    %367 = tpu.matmul %364, %366, %cst_371 {dimension_numbers = #tpu.dot_dimension_numbers<[1], [0], [0], [1], [0, 0, 1, 1], [], []>} : vector<128x8xf32>, vector<8x8xf32>, vector<128x8xf32> -> vector<128x8xf32>
    %368 = arith.addf %359, %367 : vector<128x8xf32>
    %c0_372 = arith.constant 0 : index
    %c9_373 = arith.constant 9 : index
    %c0_374 = arith.constant 0 : index
    %c0_375 = arith.constant 0 : index
    %369 = vector.load %arg6[%c0_372, %c9_373, %c0_374, %c0_375] : memref<3x18x16x8xf32, #tpu.memory_space<vmem>>, vector<1x8x16x8xf32>
    %370 = vector.shape_cast %369 : vector<1x8x16x8xf32> to vector<8x16x8xf32>
    %cst_376 = arith.constant 0.000000e+00 : f32
    %371 = vector.broadcast %cst_376 : f32 to vector<8x16x8xf32>
    %372 = arith.select %338, %370, %371 : vector<8x16x8xi1>, vector<8x16x8xf32>
    %373 = vector.shape_cast %372 : vector<8x16x8xf32> to vector<128x8xf32>
    %c1_377 = arith.constant 1 : index
    %c0_378 = arith.constant 0 : index
    %c0_379 = arith.constant 0 : index
    %c0_380 = arith.constant 0 : index
    %374 = vector.load %arg3[%c1_377, %c0_378, %c0_379, %c0_380] : memref<3x3x8x8xf32, #tpu.memory_space<vmem>>, vector<1x1x8x8xf32>
    %375 = vector.shape_cast %374 : vector<1x1x8x8xf32> to vector<8x8xf32>
    %cst_381 = arith.constant dense<0.000000e+00> : vector<128x8xf32>
    %376 = tpu.matmul %373, %375, %cst_381 {dimension_numbers = #tpu.dot_dimension_numbers<[1], [0], [0], [1], [0, 0, 1, 1], [], []>} : vector<128x8xf32>, vector<8x8xf32>, vector<128x8xf32> -> vector<128x8xf32>
    %377 = arith.addf %368, %376 : vector<128x8xf32>
    %c1_382 = arith.constant 1 : index
    %c9_383 = arith.constant 9 : index
    %c0_384 = arith.constant 0 : index
    %c0_385 = arith.constant 0 : index
    %378 = vector.load %arg6[%c1_382, %c9_383, %c0_384, %c0_385] : memref<3x18x16x8xf32, #tpu.memory_space<vmem>>, vector<1x8x16x8xf32>
    %379 = vector.shape_cast %378 : vector<1x8x16x8xf32> to vector<8x16x8xf32>
    %380 = vector.shape_cast %379 : vector<8x16x8xf32> to vector<128x8xf32>
    %c1_386 = arith.constant 1 : index
    %c1_387 = arith.constant 1 : index
    %c0_388 = arith.constant 0 : index
    %c0_389 = arith.constant 0 : index
    %381 = vector.load %arg3[%c1_386, %c1_387, %c0_388, %c0_389] : memref<3x3x8x8xf32, #tpu.memory_space<vmem>>, vector<1x1x8x8xf32>
    %382 = vector.shape_cast %381 : vector<1x1x8x8xf32> to vector<8x8xf32>
    %cst_390 = arith.constant dense<0.000000e+00> : vector<128x8xf32>
    %383 = tpu.matmul %380, %382, %cst_390 {dimension_numbers = #tpu.dot_dimension_numbers<[1], [0], [0], [1], [0, 0, 1, 1], [], []>} : vector<128x8xf32>, vector<8x8xf32>, vector<128x8xf32> -> vector<128x8xf32>
    %384 = arith.addf %377, %383 : vector<128x8xf32>
    %c2_391 = arith.constant 2 : index
    %c9_392 = arith.constant 9 : index
    %c0_393 = arith.constant 0 : index
    %c0_394 = arith.constant 0 : index
    %385 = vector.load %arg6[%c2_391, %c9_392, %c0_393, %c0_394] : memref<3x18x16x8xf32, #tpu.memory_space<vmem>>, vector<1x8x16x8xf32>
    %386 = vector.shape_cast %385 : vector<1x8x16x8xf32> to vector<8x16x8xf32>
    %cst_395 = arith.constant 0.000000e+00 : f32
    %387 = vector.broadcast %cst_395 : f32 to vector<8x16x8xf32>
    %388 = arith.select %340, %386, %387 : vector<8x16x8xi1>, vector<8x16x8xf32>
    %389 = vector.shape_cast %388 : vector<8x16x8xf32> to vector<128x8xf32>
    %c1_396 = arith.constant 1 : index
    %c2_397 = arith.constant 2 : index
    %c0_398 = arith.constant 0 : index
    %c0_399 = arith.constant 0 : index
    %390 = vector.load %arg3[%c1_396, %c2_397, %c0_398, %c0_399] : memref<3x3x8x8xf32, #tpu.memory_space<vmem>>, vector<1x1x8x8xf32>
    %391 = vector.shape_cast %390 : vector<1x1x8x8xf32> to vector<8x8xf32>
    %cst_400 = arith.constant dense<0.000000e+00> : vector<128x8xf32>
    %392 = tpu.matmul %389, %391, %cst_400 {dimension_numbers = #tpu.dot_dimension_numbers<[1], [0], [0], [1], [0, 0, 1, 1], [], []>} : vector<128x8xf32>, vector<8x8xf32>, vector<128x8xf32> -> vector<128x8xf32>
    %393 = arith.addf %384, %392 : vector<128x8xf32>
    %c0_401 = arith.constant 0 : index
    %c10_402 = arith.constant 10 : index
    %c0_403 = arith.constant 0 : index
    %c0_404 = arith.constant 0 : index
    %394 = vector.load %arg6[%c0_401, %c10_402, %c0_403, %c0_404] : memref<3x18x16x8xf32, #tpu.memory_space<vmem>>, vector<1x8x16x8xf32>
    %395 = vector.shape_cast %394 : vector<1x8x16x8xf32> to vector<8x16x8xf32>
    %cst_405 = arith.constant 0.000000e+00 : f32
    %396 = vector.broadcast %cst_405 : f32 to vector<8x16x8xf32>
    %397 = arith.select %338, %395, %396 : vector<8x16x8xi1>, vector<8x16x8xf32>
    %cst_406 = arith.constant 0.000000e+00 : f32
    %398 = vector.broadcast %cst_406 : f32 to vector<8x16x8xf32>
    %399 = arith.select %342, %397, %398 : vector<8x16x8xi1>, vector<8x16x8xf32>
    %400 = vector.shape_cast %399 : vector<8x16x8xf32> to vector<128x8xf32>
    %c2_407 = arith.constant 2 : index
    %c0_408 = arith.constant 0 : index
    %c0_409 = arith.constant 0 : index
    %c0_410 = arith.constant 0 : index
    %401 = vector.load %arg3[%c2_407, %c0_408, %c0_409, %c0_410] : memref<3x3x8x8xf32, #tpu.memory_space<vmem>>, vector<1x1x8x8xf32>
    %402 = vector.shape_cast %401 : vector<1x1x8x8xf32> to vector<8x8xf32>
    %cst_411 = arith.constant dense<0.000000e+00> : vector<128x8xf32>
    %403 = tpu.matmul %400, %402, %cst_411 {dimension_numbers = #tpu.dot_dimension_numbers<[1], [0], [0], [1], [0, 0, 1, 1], [], []>} : vector<128x8xf32>, vector<8x8xf32>, vector<128x8xf32> -> vector<128x8xf32>
    %404 = arith.addf %393, %403 : vector<128x8xf32>
    %c1_412 = arith.constant 1 : index
    %c10_413 = arith.constant 10 : index
    %c0_414 = arith.constant 0 : index
    %c0_415 = arith.constant 0 : index
    %405 = vector.load %arg6[%c1_412, %c10_413, %c0_414, %c0_415] : memref<3x18x16x8xf32, #tpu.memory_space<vmem>>, vector<1x8x16x8xf32>
    %406 = vector.shape_cast %405 : vector<1x8x16x8xf32> to vector<8x16x8xf32>
    %cst_416 = arith.constant 0.000000e+00 : f32
    %407 = vector.broadcast %cst_416 : f32 to vector<8x16x8xf32>
    %408 = arith.select %342, %406, %407 : vector<8x16x8xi1>, vector<8x16x8xf32>
    %409 = vector.shape_cast %408 : vector<8x16x8xf32> to vector<128x8xf32>
    %c2_417 = arith.constant 2 : index
    %c1_418 = arith.constant 1 : index
    %c0_419 = arith.constant 0 : index
    %c0_420 = arith.constant 0 : index
    %410 = vector.load %arg3[%c2_417, %c1_418, %c0_419, %c0_420] : memref<3x3x8x8xf32, #tpu.memory_space<vmem>>, vector<1x1x8x8xf32>
    %411 = vector.shape_cast %410 : vector<1x1x8x8xf32> to vector<8x8xf32>
    %cst_421 = arith.constant dense<0.000000e+00> : vector<128x8xf32>
    %412 = tpu.matmul %409, %411, %cst_421 {dimension_numbers = #tpu.dot_dimension_numbers<[1], [0], [0], [1], [0, 0, 1, 1], [], []>} : vector<128x8xf32>, vector<8x8xf32>, vector<128x8xf32> -> vector<128x8xf32>
    %413 = arith.addf %404, %412 : vector<128x8xf32>
    %c2_422 = arith.constant 2 : index
    %c10_423 = arith.constant 10 : index
    %c0_424 = arith.constant 0 : index
    %c0_425 = arith.constant 0 : index
    %414 = vector.load %arg6[%c2_422, %c10_423, %c0_424, %c0_425] : memref<3x18x16x8xf32, #tpu.memory_space<vmem>>, vector<1x8x16x8xf32>
    %415 = vector.shape_cast %414 : vector<1x8x16x8xf32> to vector<8x16x8xf32>
    %cst_426 = arith.constant 0.000000e+00 : f32
    %416 = vector.broadcast %cst_426 : f32 to vector<8x16x8xf32>
    %417 = arith.select %340, %415, %416 : vector<8x16x8xi1>, vector<8x16x8xf32>
    %cst_427 = arith.constant 0.000000e+00 : f32
    %418 = vector.broadcast %cst_427 : f32 to vector<8x16x8xf32>
    %419 = arith.select %342, %417, %418 : vector<8x16x8xi1>, vector<8x16x8xf32>
    %420 = vector.shape_cast %419 : vector<8x16x8xf32> to vector<128x8xf32>
    %c2_428 = arith.constant 2 : index
    %c2_429 = arith.constant 2 : index
    %c0_430 = arith.constant 0 : index
    %c0_431 = arith.constant 0 : index
    %421 = vector.load %arg3[%c2_428, %c2_429, %c0_430, %c0_431] : memref<3x3x8x8xf32, #tpu.memory_space<vmem>>, vector<1x1x8x8xf32>
    %422 = vector.shape_cast %421 : vector<1x1x8x8xf32> to vector<8x8xf32>
    %cst_432 = arith.constant dense<0.000000e+00> : vector<128x8xf32>
    %423 = tpu.matmul %420, %422, %cst_432 {dimension_numbers = #tpu.dot_dimension_numbers<[1], [0], [0], [1], [0, 0, 1, 1], [], []>} : vector<128x8xf32>, vector<8x8xf32>, vector<128x8xf32> -> vector<128x8xf32>
    %424 = arith.addf %413, %423 : vector<128x8xf32>
    %c1_433 = arith.constant 1 : index
    %c9_434 = arith.constant 9 : index
    %c0_435 = arith.constant 0 : index
    %c0_436 = arith.constant 0 : index
    %425 = vector.load %arg5[%c1_433, %c9_434, %c0_435, %c0_436] : memref<3x18x16x8xf32, #tpu.memory_space<vmem>>, vector<1x8x16x8xf32>
    %426 = vector.shape_cast %425 : vector<1x8x16x8xf32> to vector<8x16x8xf32>
    %427 = vector.shape_cast %426 : vector<8x16x8xf32> to vector<128x8xf32>
    %428 = arith.addf %424, %427 : vector<128x8xf32>
    %cst_437 = arith.constant 0.000000e+00 : f32
    %429 = vector.broadcast %cst_437 : f32 to vector<128x8xf32>
    %430 = arith.maximumf %428, %429 : vector<128x8xf32>
    %431 = vector.shape_cast %430 : vector<128x8xf32> to vector<8x16x8xf32>
    %432 = vector.extract_strided_slice %431 {offsets = [0, 0, 0], sizes = [8, 16, 4], strides = [1, 1, 1]} : vector<8x16x8xf32> to vector<8x16x4xf32>
    %c0_438 = arith.constant 0 : index
    %c8_439 = arith.constant 8 : index
    %c0_440 = arith.constant 0 : index
    %c0_441 = arith.constant 0 : index
    %433 = vector.load %arg4[%c0_438, %c8_439, %c0_440, %c0_441] : memref<1x16x16x4xf32, #tpu.memory_space<vmem>>, vector<1x8x16x4xf32>
    %434 = vector.shape_cast %433 : vector<1x8x16x4xf32> to vector<8x16x4xf32>
    %435 = vector.shape_cast %432 : vector<8x16x4xf32> to vector<1x8x16x4xf32>
    tpu.vector_store %arg4[%c0_438, %c8_439, %c0_440, %c0_441], %435 {strides = array<i32>} : memref<1x16x16x4xf32, #tpu.memory_space<vmem>>, vector<1x8x16x4xf32>,
    return
  }
  func.func @transform_0(%arg0: i32) -> (i32, i32, i32, i32) {
    %c0_i32 = arith.constant 0 : i32
    %c0_i32_0 = arith.constant 0 : i32
    %c0_i32_1 = arith.constant 0 : i32
    %c0_i32_2 = arith.constant 0 : i32
    return %arg0, %c0_i32, %c0_i32_0, %c0_i32_1 : i32, i32, i32, i32
  }
  func.func @transform_1(%arg0: i32) -> (i32, i32, i32, i32) {
    %c0_i32 = arith.constant 0 : i32
    %c0_i32_0 = arith.constant 0 : i32
    %c0_i32_1 = arith.constant 0 : i32
    %c0_i32_2 = arith.constant 0 : i32
    %c0_i32_3 = arith.constant 0 : i32
    return %c0_i32, %c0_i32_0, %c0_i32_1, %c0_i32_2 : i32, i32, i32, i32
  }
  func.func @transform_2(%arg0: i32) -> (i32, i32, i32, i32) {
    %c0_i32 = arith.constant 0 : i32
    %c0_i32_0 = arith.constant 0 : i32
    %c0_i32_1 = arith.constant 0 : i32
    %c0_i32_2 = arith.constant 0 : i32
    %c0_i32_3 = arith.constant 0 : i32
    return %c0_i32, %c0_i32_0, %c0_i32_1, %c0_i32_2 : i32, i32, i32, i32
  }
  func.func @transform_3(%arg0: i32) -> (i32, i32, i32, i32) {
    %c0_i32 = arith.constant 0 : i32
    %c0_i32_0 = arith.constant 0 : i32
    %c0_i32_1 = arith.constant 0 : i32
    %c0_i32_2 = arith.constant 0 : i32
    return %arg0, %c0_i32, %c0_i32_0, %c0_i32_1 : i32, i32, i32, i32
  }
}

</mosaic_0001>

<llo_original>
// kernel: tpu_custom_call.1
$region0: #{tpu_custom_call.1}
  #allocation0 [shape = 'u32[]', space=smem, size = 0x4, offset = 0x4, fixed_abs, tag = 'smem constant byte address 0x4 - core index']
  #allocation1 [shape = 'u32[144,128]{1,0:T(1,128)}', space=vmem, size = 0x12000, scoped, tag = 'internal scratch']
  #allocation2 [shape = 'f32[3,18,16,8]{3,2,1,0:T(8,128)}', space=vmem, size = 0x6c000, scoped, tag = 'scratch operand']
  #allocation3 [shape = 'f32[3,18,16,8]{3,2,1,0:T(8,128)}', space=vmem, size = 0x6c000, scoped, tag = 'scratch operand']
  %s0 = inlined_call_operand.vmem [shape: f32[2,16,16,8], index: 0, kind: input, shape index: {}]
  %s1 = inlined_call_operand.vmem [shape: f32[3,3,8,8], index: 1, kind: input, shape index: {}]
  %s2 = inlined_call_operand.vmem [shape: f32[3,3,8,8], index: 2, kind: input, shape index: {}]
  %s3 = inlined_call_operand.vmem [shape: f32[2,16,16,4], index: 3, kind: output, shape index: {}]
  %s4 = sld [smem:[#allocation0]]
  $region45: #{tpu_custom_call.1} parent=0
    _
  %s6 = ssub.s32 1, %s4
  %s7 = scalar_select 0, %s6, %s4
  loop: start=0, step=1, limit=4
  $region2: #{tpu_custom_call.1} parent=0 // loop_pre_header
    _
  $region3: #{tpu_custom_call.1} parent=0 // loop_header
    %s9 = sphi 0, %s13
    %p10 = scmp.ge.s32.totalorder %s9, 4
    %s19 = sphi 0, %s21
    %s22 = sphi 0, %s19
    %s23 = sphi 0, %s22
    %s39 = sphi 0, %s23
    %s43 = sphi 0, %s43
    %s45 = sphi 0, %s43
    %s46 = sphi 0, %s45
    %s60 = sphi 0, %s46
    %s64 = sphi 0, %s64
    %s66 = sphi 0, %s64
    %s67 = sphi 0, %s66
    %s81 = sphi 0, %s67
    %s87 = sphi 0, %s89
    %s90 = sphi 0, %s87
    %s91 = sphi 0, %s90
    %s107 = sphi 0, %s91
  $region4: #{tpu_custom_call.1} parent=0 // loop_header_branch
    %12 = sbr.rel (%p10) target = $region8
  $region5: #{tpu_custom_call.1} parent=0 // loop_body
    %s14 = ssub.s32 %s9, 1
    %s15 = ssub.s32 %s9, 2
    %s16 = sadd.s32 %s9, 1
    %s17 = ssub.s32 %s9, %s16
    %p18 = scmp.eq.s32.totalorder %s17, 0
    %s20 = sadd.s32 %s19, 1
    %s21 = scalar_select %p18, %s19, %s20
    %p24 = pneg %p18
    %p25 = scmp.eq.s32.totalorder %s9, 1
    %p26 = por %p24, %p25
    %p27 = scmp.ne.s32.totalorder %s19, %s22
    %p28 = scmp.eq.s32.totalorder %s9, 0
    %p29 = por %p27, %p28
    %p30 = scmp.ne.s32.totalorder %s19, %s22
    %p31 = scmp.eq.s32.totalorder %s14, 1
    %p32 = por %p30, %p31
    %p33 = scmp.ne.s32.totalorder %s22, %s23
    %p34 = scmp.eq.s32.totalorder %s14, 0
    %p35 = por %p33, %p34
    %p36 = scmp.ne.s32.totalorder %s22, %s23
    %p37 = scmp.eq.s32.totalorder %s15, 1
    %p38 = por %p36, %p37
    %p40 = scmp.ne.s32.totalorder %s23, %s39
    %p41 = scmp.eq.s32.totalorder %s15, 0
    %p42 = por %p40, %p41
    %s44 = sadd.s32 %s43, 1
    %p47 = scmp.eq.s32.totalorder %s9, 1
    %p48 = scmp.ne.s32.totalorder %s43, %s45
    %p49 = scmp.eq.s32.totalorder %s9, 0
    %p50 = por %p48, %p49
    %p51 = scmp.ne.s32.totalorder %s43, %s45
    %p52 = scmp.eq.s32.totalorder %s14, 1
    %p53 = por %p51, %p52
    %p54 = scmp.ne.s32.totalorder %s45, %s46
    %p55 = scmp.eq.s32.totalorder %s14, 0
    %p56 = por %p54, %p55
    %p57 = scmp.ne.s32.totalorder %s45, %s46
    %p58 = scmp.eq.s32.totalorder %s15, 1
    %p59 = por %p57, %p58
    %p61 = scmp.ne.s32.totalorder %s46, %s60
    %p62 = scmp.eq.s32.totalorder %s15, 0
    %p63 = por %p61, %p62
    %s65 = sadd.s32 %s64, 1
    %p68 = scmp.eq.s32.totalorder %s9, 1
    %p69 = scmp.ne.s32.totalorder %s64, %s66
    %p70 = scmp.eq.s32.totalorder %s9, 0
    %p71 = por %p69, %p70
    %p72 = scmp.ne.s32.totalorder %s64, %s66
    %p73 = scmp.eq.s32.totalorder %s14, 1
    %p74 = por %p72, %p73
    %p75 = scmp.ne.s32.totalorder %s66, %s67
    %p76 = scmp.eq.s32.totalorder %s14, 0
    %p77 = por %p75, %p76
    %p78 = scmp.ne.s32.totalorder %s66, %s67
    %p79 = scmp.eq.s32.totalorder %s15, 1
    %p80 = por %p78, %p79
    %p82 = scmp.ne.s32.totalorder %s67, %s81
    %p83 = scmp.eq.s32.totalorder %s15, 0
    %p84 = por %p82, %p83
    %s85 = ssub.s32 %s9, %s16
    %p86 = scmp.eq.s32.totalorder %s85, 0
    %s88 = sadd.s32 %s87, 1
    %s89 = scalar_select %p86, %s87, %s88
    %p92 = pneg %p86
    %p93 = scmp.eq.s32.totalorder %s9, 1
    %p94 = por %p92, %p93
    %p95 = scmp.ne.s32.totalorder %s87, %s90
    %p96 = scmp.eq.s32.totalorder %s9, 0
    %p97 = por %p95, %p96
    %p98 = scmp.ne.s32.totalorder %s87, %s90
    %p99 = scmp.eq.s32.totalorder %s14, 1
    %p100 = por %p98, %p99
    %p101 = scmp.ne.s32.totalorder %s90, %s91
    %p102 = scmp.eq.s32.totalorder %s14, 0
    %p103 = por %p101, %p102
    %p104 = scmp.ne.s32.totalorder %s90, %s91
    %p105 = scmp.eq.s32.totalorder %s15, 1
    %p106 = por %p104, %p105
    %p108 = scmp.ne.s32.totalorder %s91, %s107
    %p109 = scmp.eq.s32.totalorder %s15, 0
    %p110 = por %p108, %p109
    %p111 = scmp.le.s32.totalorder 1, %s9
    %p112 = scmp.lt.s32.totalorder %s9, 3
    %p113 = pnand %p111, %p112
    %p114 = pneg %p113
    // Predicated region
    $region9: #{tpu_custom_call.1} parent=5 // pred_check
      _
    $region10: #{tpu_custom_call.1} parent=5 // pred_check_branch
      %116 = sbr.rel (%p113) target = $region12
    $region11: #{tpu_custom_call.1} parent=5 // pred_region
      %s117 = ssub.s32 %s9, 1
      // Predicated region
      $region13: #{tpu_custom_call.1} parent=11 // pred_check
        %p118 = pneg %p56
      $region14: #{tpu_custom_call.1} parent=11 // pred_check_branch
        %120 = sbr.rel (%p118) target = $region16
      $region15: #{tpu_custom_call.1} parent=11 // pred_region
        _
      $region16: #{tpu_custom_call.1} parent=11 // pred_fallthru
        _
      // Predicated region
      $region17: #{tpu_custom_call.1} parent=11 // pred_check
        %p121 = pneg %p77
      $region18: #{tpu_custom_call.1} parent=11 // pred_check_branch
        %123 = sbr.rel (%p121) target = $region20
      $region19: #{tpu_custom_call.1} parent=11 // pred_region
        _
      $region20: #{tpu_custom_call.1} parent=11 // pred_fallthru
        _
    $region12: #{tpu_custom_call.1} parent=5 // pred_fallthru
      _
    %p124 = scmp.lt.s32.totalorder %s9, 2
    // Predicated region
    $region21: #{tpu_custom_call.1} parent=5 // pred_check
      %p125 = pneg %p124
    $region22: #{tpu_custom_call.1} parent=5 // pred_check_branch
      %127 = sbr.rel (%p125) target = $region24
    $region23: #{tpu_custom_call.1} parent=5 // pred_region
      // Predicated region
      $region25: #{tpu_custom_call.1} parent=23 // pred_check
        %p128 = pneg %p29
      $region26: #{tpu_custom_call.1} parent=23 // pred_check_branch
        %130 = sbr.rel (%p128) target = $region28
      $region27: #{tpu_custom_call.1} parent=23 // pred_region
        %p131 = scmp.lt.s32.totalorder %s9, 1
        %s132 = scalar_select %p131, %s9, 1
        %s133 = smul.addr %s132, 32
        %s134 = smul.addr %s133, 8
        %s135 = scalar_lea.vmem %s0, %s134
      $region28: #{tpu_custom_call.1} parent=23 // pred_fallthru
        _
    $region24: #{tpu_custom_call.1} parent=5 // pred_fallthru
      _
    %p136 = scmp.le.s32.totalorder 1, %s9
    %p137 = scmp.lt.s32.totalorder %s9, 3
    %p138 = pnand %p136, %p137
    %p139 = pneg %p138
    // Predicated region
    $region29: #{tpu_custom_call.1} parent=5 // pred_check
      _
    $region30: #{tpu_custom_call.1} parent=5 // pred_check_branch
      %141 = sbr.rel (%p138) target = $region32
    $region31: #{tpu_custom_call.1} parent=5 // pred_region
      %s142 = ssub.s32 %s9, 1
      %p143 = scmp.lt.s32.totalorder %s14, 1
      %s144 = scalar_select %p143, %s14, 1
      %s145 = smul.addr %s144, 32
      %s146 = smul.addr %s145, 8
      %s147 = scalar_lea.vmem %s0, %s146
      %p148 = pneg %p35
      %p149 = pneg %p32
      %p150 = pneg %p56
      %p151 = pneg %p53
      %p152 = pneg %p77
      %p153 = pneg %p74
      %p154 = pneg %p103
      %p155 = pneg %p100
      %p156 = scmp.lt.s32.totalorder %s14, 1
      %s157 = scalar_select %p156, %s14, 1
      %s158 = smul.addr %s157, 32
      %s159 = smul.addr %s158, 8
      %s160 = scalar_lea.vmem %s3, %s159
      %p161 = scmp.lt.s32.totalorder %s14, 1
      %s162 = scalar_select %p161, %s14, 1
      %s163 = smul.addr %s162, 32
      %s164 = smul.addr %s163, 8
      %s165 = scalar_lea.vmem %s0, %s164
      %p166 = scmp.lt.s32.totalorder %s14, 1
      %s167 = scalar_select %p166, %s14, 1
      %s168 = smul.addr %s167, 32
      %s169 = smul.addr %s168, 8
      %s170 = scalar_lea.vmem %s3, %s169
      %v171 = vld [vmem:[%s165] sm:$0xff]
      %v172 = vld [vmem:[%s165 + $0x8] sm:$0xff]
      %v173 = vld [vmem:[%s165 + $0x10] sm:$0xff]
      %v174 = vld [vmem:[%s165 + $0x18] sm:$0xff]
      %v175 = vld [vmem:[%s165 + $0x20] sm:$0xff]
      %v176 = vld [vmem:[%s165 + $0x28] sm:$0xff]
      %v177 = vld [vmem:[%s165 + $0x30] sm:$0xff]
      %v178 = vld [vmem:[%s165 + $0x38] sm:$0xff]
      %v179 = vld [vmem:[%s165 + $0x40] sm:$0xff]
      %v180 = vld [vmem:[%s165 + $0x48] sm:$0xff]
      %v181 = vld [vmem:[%s165 + $0x50] sm:$0xff]
      %v182 = vld [vmem:[%s165 + $0x58] sm:$0xff]
      %v183 = vld [vmem:[%s165 + $0x60] sm:$0xff]
      %v184 = vld [vmem:[%s165 + $0x68] sm:$0xff]
      %v185 = vld [vmem:[%s165 + $0x70] sm:$0xff]
      %v186 = vld [vmem:[%s165 + $0x78] sm:$0xff]
      %s187 = scalar_lea.vmem [#allocation2], 304
      %vm188 = vcmask 64512
      %189 = vst.msk [vmem:[%s187] sm:$0xff] %vm188, %v171
      %190 = vst.msk [vmem:[%s187 + $0x8] sm:$0xff] %vm188, %v172
      %191 = vst.msk [vmem:[%s187 + $0x10] sm:$0xff] %vm188, %v173
      %192 = vst.msk [vmem:[%s187 + $0x18] sm:$0xff] %vm188, %v174
      %193 = vst.msk [vmem:[%s187 + $0x20] sm:$0xff] %vm188, %v175
      %194 = vst.msk [vmem:[%s187 + $0x28] sm:$0xff] %vm188, %v176
      %195 = vst.msk [vmem:[%s187 + $0x30] sm:$0xff] %vm188, %v177
      %196 = vst.msk [vmem:[%s187 + $0x38] sm:$0xff] %vm188, %v178
      %197 = vst.msk [vmem:[%s187 + $0x40] sm:$0xff] %vm188, %v179
      %198 = vst.msk [vmem:[%s187 + $0x48] sm:$0xff] %vm188, %v180
      %199 = vst.msk [vmem:[%s187 + $0x50] sm:$0xff] %vm188, %v181
      %200 = vst.msk [vmem:[%s187 + $0x58] sm:$0xff] %vm188, %v182
      %201 = vst.msk [vmem:[%s187 + $0x60] sm:$0xff] %vm188, %v183
      %202 = vst.msk [vmem:[%s187 + $0x68] sm:$0xff] %vm188, %v184
      %203 = vst.msk [vmem:[%s187 + $0x70] sm:$0xff] %vm188, %v185
      %204 = vst.msk [vmem:[%s187 + $0x78] sm:$0xff] %vm188, %v186
      %s205 = scalar_lea.vmem [#allocation2], 16
      %206 = vst.msk [vmem:[%s205 + $0x1] sm:$0xff] %vm188, %v171
      %vm207 = vcmask 63488
      %208 = vst.msk [vmem:[%s205 + $0x9] sm:$0x7f] %vm207, %v172
      %209 = vst.msk [vmem:[%s205 + $0x11] sm:$0xff] %vm188, %v173
      %210 = vst.msk [vmem:[%s205 + $0x19] sm:$0x7f] %vm207, %v174
      %211 = vst.msk [vmem:[%s205 + $0x21] sm:$0xff] %vm188, %v175
      %212 = vst.msk [vmem:[%s205 + $0x29] sm:$0x7f] %vm207, %v176
      %213 = vst.msk [vmem:[%s205 + $0x31] sm:$0xff] %vm188, %v177
      %214 = vst.msk [vmem:[%s205 + $0x39] sm:$0x7f] %vm207, %v178
      %215 = vst.msk [vmem:[%s205 + $0x41] sm:$0xff] %vm188, %v179
      %216 = vst.msk [vmem:[%s205 + $0x49] sm:$0x7f] %vm207, %v180
      %217 = vst.msk [vmem:[%s205 + $0x51] sm:$0xff] %vm188, %v181
      %218 = vst.msk [vmem:[%s205 + $0x59] sm:$0x7f] %vm207, %v182
      %219 = vst.msk [vmem:[%s205 + $0x61] sm:$0xff] %vm188, %v183
      %220 = vst.msk [vmem:[%s205 + $0x69] sm:$0x7f] %vm207, %v184
      %221 = vst.msk [vmem:[%s205 + $0x71] sm:$0xff] %vm188, %v185
      %222 = vst.msk [vmem:[%s205 + $0x79] sm:$0x7f] %vm207, %v186
      %s223 = scalar_lea.vmem [#allocation2], 592
      %vm224 = vcmask 64513
      %225 = vst.msk [vmem:[%s223 - $0x1] sm:$0xfe] %vm224, %v171
      %226 = vst.msk [vmem:[%s223 + $0x7] sm:$0xff] %vm188, %v172
      %227 = vst.msk [vmem:[%s223 + $0xf] sm:$0xfe] %vm224, %v173
      %228 = vst.msk [vmem:[%s223 + $0x17] sm:$0xff] %vm188, %v174
      %229 = vst.msk [vmem:[%s223 + $0x1f] sm:$0xfe] %vm224, %v175
      %230 = vst.msk [vmem:[%s223 + $0x27] sm:$0xff] %vm188, %v176
      %231 = vst.msk [vmem:[%s223 + $0x2f] sm:$0xfe] %vm224, %v177
      %232 = vst.msk [vmem:[%s223 + $0x37] sm:$0xff] %vm188, %v178
      %233 = vst.msk [vmem:[%s223 + $0x3f] sm:$0xfe] %vm224, %v179
      %234 = vst.msk [vmem:[%s223 + $0x47] sm:$0xff] %vm188, %v180
      %235 = vst.msk [vmem:[%s223 + $0x4f] sm:$0xfe] %vm224, %v181
      %236 = vst.msk [vmem:[%s223 + $0x57] sm:$0xff] %vm188, %v182
      %237 = vst.msk [vmem:[%s223 + $0x5f] sm:$0xfe] %vm224, %v183
      %238 = vst.msk [vmem:[%s223 + $0x67] sm:$0xff] %vm188, %v184
      %239 = vst.msk [vmem:[%s223 + $0x6f] sm:$0xfe] %vm224, %v185
      %240 = vst.msk [vmem:[%s223 + $0x77] sm:$0xff] %vm188, %v186
      %s241 = scalar_lea.vmem %s165, 128
      %v242 = vld [vmem:[%s241] sm:$0xff]
      %v243 = vld [vmem:[%s241 + $0x8] sm:$0xff]
      %v244 = vld [vmem:[%s241 + $0x10] sm:$0xff]
      %v245 = vld [vmem:[%s241 + $0x18] sm:$0xff]
      %v246 = vld [vmem:[%s241 + $0x20] sm:$0xff]
      %v247 = vld [vmem:[%s241 + $0x28] sm:$0xff]
      %v248 = vld [vmem:[%s241 + $0x30] sm:$0xff]
      %v249 = vld [vmem:[%s241 + $0x38] sm:$0xff]
      %v250 = vld [vmem:[%s241 + $0x40] sm:$0xff]
      %v251 = vld [vmem:[%s241 + $0x48] sm:$0xff]
      %v252 = vld [vmem:[%s241 + $0x50] sm:$0xff]
      %v253 = vld [vmem:[%s241 + $0x58] sm:$0xff]
      %v254 = vld [vmem:[%s241 + $0x60] sm:$0xff]
      %v255 = vld [vmem:[%s241 + $0x68] sm:$0xff]
      %v256 = vld [vmem:[%s241 + $0x70] sm:$0xff]
      %v257 = vld [vmem:[%s241 + $0x78] sm:$0xff]
      %s258 = scalar_lea.vmem [#allocation2], 432
      %259 = vst.msk [vmem:[%s258] sm:$0xff] %vm188, %v242
      %260 = vst.msk [vmem:[%s258 + $0x8] sm:$0xff] %vm188, %v243
      %261 = vst.msk [vmem:[%s258 + $0x10] sm:$0xff] %vm188, %v244
      %262 = vst.msk [vmem:[%s258 + $0x18] sm:$0xff] %vm188, %v245
      %263 = vst.msk [vmem:[%s258 + $0x20] sm:$0xff] %vm188, %v246
      %264 = vst.msk [vmem:[%s258 + $0x28] sm:$0xff] %vm188, %v247
      %265 = vst.msk [vmem:[%s258 + $0x30] sm:$0xff] %vm188, %v248
      %266 = vst.msk [vmem:[%s258 + $0x38] sm:$0xff] %vm188, %v249
      %267 = vst.msk [vmem:[%s258 + $0x40] sm:$0xff] %vm188, %v250
      %268 = vst.msk [vmem:[%s258 + $0x48] sm:$0xff] %vm188, %v251
      %269 = vst.msk [vmem:[%s258 + $0x50] sm:$0xff] %vm188, %v252
      %270 = vst.msk [vmem:[%s258 + $0x58] sm:$0xff] %vm188, %v253
      %271 = vst.msk [vmem:[%s258 + $0x60] sm:$0xff] %vm188, %v254
      %272 = vst.msk [vmem:[%s258 + $0x68] sm:$0xff] %vm188, %v255
      %273 = vst.msk [vmem:[%s258 + $0x70] sm:$0xff] %vm188, %v256
      %274 = vst.msk [vmem:[%s258 + $0x78] sm:$0xff] %vm188, %v257
      %s275 = scalar_lea.vmem [#allocation2], 144
      %276 = vst.msk [vmem:[%s275 + $0x1] sm:$0xff] %vm188, %v242
      %277 = vst.msk [vmem:[%s275 + $0x9] sm:$0x7f] %vm207, %v243
      %278 = vst.msk [vmem:[%s275 + $0x11] sm:$0xff] %vm188, %v244
      %279 = vst.msk [vmem:[%s275 + $0x19] sm:$0x7f] %vm207, %v245
      %280 = vst.msk [vmem:[%s275 + $0x21] sm:$0xff] %vm188, %v246
      %281 = vst.msk [vmem:[%s275 + $0x29] sm:$0x7f] %vm207, %v247
      %282 = vst.msk [vmem:[%s275 + $0x31] sm:$0xff] %vm188, %v248
      %283 = vst.msk [vmem:[%s275 + $0x39] sm:$0x7f] %vm207, %v249
      %284 = vst.msk [vmem:[%s275 + $0x41] sm:$0xff] %vm188, %v250
      %285 = vst.msk [vmem:[%s275 + $0x49] sm:$0x7f] %vm207, %v251
      %286 = vst.msk [vmem:[%s275 + $0x51] sm:$0xff] %vm188, %v252
      %287 = vst.msk [vmem:[%s275 + $0x59] sm:$0x7f] %vm207, %v253
      %288 = vst.msk [vmem:[%s275 + $0x61] sm:$0xff] %vm188, %v254
      %289 = vst.msk [vmem:[%s275 + $0x69] sm:$0x7f] %vm207, %v255
      %290 = vst.msk [vmem:[%s275 + $0x71] sm:$0xff] %vm188, %v256
      %291 = vst.msk [vmem:[%s275 + $0x79] sm:$0x7f] %vm207, %v257
      %s292 = scalar_lea.vmem [#allocation2], 720
      %293 = vst.msk [vmem:[%s292 - $0x1] sm:$0xfe] %vm224, %v242
      %294 = vst.msk [vmem:[%s292 + $0x7] sm:$0xff] %vm188, %v243
      %295 = vst.msk [vmem:[%s292 + $0xf] sm:$0xfe] %vm224, %v244
      %296 = vst.msk [vmem:[%s292 + $0x17] sm:$0xff] %vm188, %v245
      %297 = vst.msk [vmem:[%s292 + $0x1f] sm:$0xfe] %vm224, %v246
      %298 = vst.msk [vmem:[%s292 + $0x27] sm:$0xff] %vm188, %v247
      %299 = vst.msk [vmem:[%s292 + $0x2f] sm:$0xfe] %vm224, %v248
      %300 = vst.msk [vmem:[%s292 + $0x37] sm:$0xff] %vm188, %v249
      %301 = vst.msk [vmem:[%s292 + $0x3f] sm:$0xfe] %vm224, %v250
      %302 = vst.msk [vmem:[%s292 + $0x47] sm:$0xff] %vm188, %v251
      %303 = vst.msk [vmem:[%s292 + $0x4f] sm:$0xfe] %vm224, %v252
      %304 = vst.msk [vmem:[%s292 + $0x57] sm:$0xff] %vm188, %v253
      %305 = vst.msk [vmem:[%s292 + $0x5f] sm:$0xfe] %vm224, %v254
      %306 = vst.msk [vmem:[%s292 + $0x67] sm:$0xff] %vm188, %v255
      %307 = vst.msk [vmem:[%s292 + $0x6f] sm:$0xfe] %vm224, %v256
      %308 = vst.msk [vmem:[%s292 + $0x77] sm:$0xff] %vm188, %v257
      %v309 = vlaneseq
      %v310 = vshrl.u32 %v309, 7
      %v311 = vadd.s32 %v310, 8
      %vm312 = vcmp.ge.s32.totalorder %v310, 1
      %vm313 = vcmp.ge.s32.totalorder %v311, 1
      %vm314 = vcmp.le.s32.totalorder %v310, 14
      %vm315 = vcmp.le.s32.totalorder %v311, 14
      %v316 = vld [vmem:[#allocation2] sm:$0xff]
      %v317 = vld [vmem:[#allocation2 + $0x8] sm:$0xff]
      %v318 = vld [vmem:[#allocation2 + $0x10] sm:$0xff]
      %v319 = vld [vmem:[#allocation2 + $0x18] sm:$0xff]
      %v320 = vld [vmem:[#allocation2 + $0x20] sm:$0xff]
      %v321 = vld [vmem:[#allocation2 + $0x28] sm:$0xff]
      %v322 = vld [vmem:[#allocation2 + $0x30] sm:$0xff]
      %v323 = vld [vmem:[#allocation2 + $0x38] sm:$0xff]
      %v324 = vld [vmem:[#allocation2 + $0x40] sm:$0xff]
      %v325 = vld [vmem:[#allocation2 + $0x48] sm:$0xff]
      %v326 = vld [vmem:[#allocation2 + $0x50] sm:$0xff]
      %v327 = vld [vmem:[#allocation2 + $0x58] sm:$0xff]
      %v328 = vld [vmem:[#allocation2 + $0x60] sm:$0xff]
      %v329 = vld [vmem:[#allocation2 + $0x68] sm:$0xff]
      %v330 = vld [vmem:[#allocation2 + $0x70] sm:$0xff]
      %v331 = vld [vmem:[#allocation2 + $0x78] sm:$0xff]
      %v332 = vsel %vm312, %v316, 0.0
      %v333 = vsel %vm313, %v317, 0.0
      %v334 = vsel %vm312, %v318, 0.0
      %v335 = vsel %vm313, %v319, 0.0
      %v336 = vsel %vm312, %v320, 0.0
      %v337 = vsel %vm313, %v321, 0.0
      %v338 = vsel %vm312, %v322, 0.0
      %v339 = vsel %vm313, %v323, 0.0
      %v340 = vsel %vm312, %v324, 0.0
      %v341 = vsel %vm313, %v325, 0.0
      %v342 = vsel %vm312, %v326, 0.0
      %v343 = vsel %vm313, %v327, 0.0
      %v344 = vsel %vm312, %v328, 0.0
      %v345 = vsel %vm313, %v329, 0.0
      %v346 = vsel %vm312, %v330, 0.0
      %v347 = vsel %vm313, %v331, 0.0
      %v348 = vsel 0, %v332, 0.0
      %v349 = vsel 0, %v333, 0.0
      %v350 = vsel 1, %v334, 0.0
      %v351 = vsel 1, %v335, 0.0
      %v352 = vsel 1, %v336, 0.0
      %v353 = vsel 1, %v337, 0.0
      %v354 = vsel 1, %v338, 0.0
      %v355 = vsel 1, %v339, 0.0
      %v356 = vsel 1, %v340, 0.0
      %v357 = vsel 1, %v341, 0.0
      %v358 = vsel 1, %v342, 0.0
      %v359 = vsel 1, %v343, 0.0
      %v360 = vsel 1, %v344, 0.0
      %v361 = vsel 1, %v345, 0.0
      %v362 = vsel 1, %v346, 0.0
      %v363 = vsel 1, %v347, 0.0
      %v364 = vld [vmem:[%s1] sm:$0xff]
      %s365 = scalar_lea.vmem [#allocation2], 288
      %v366 = vld [vmem:[%s365] sm:$0xff]
      %v367 = vld [vmem:[%s365 + $0x8] sm:$0xff]
      %v368 = vld [vmem:[%s365 + $0x10] sm:$0xff]
      %v369 = vld [vmem:[%s365 + $0x18] sm:$0xff]
      %v370 = vld [vmem:[%s365 + $0x20] sm:$0xff]
      %v371 = vld [vmem:[%s365 + $0x28] sm:$0xff]
      %v372 = vld [vmem:[%s365 + $0x30] sm:$0xff]
      %v373 = vld [vmem:[%s365 + $0x38] sm:$0xff]
      %v374 = vld [vmem:[%s365 + $0x40] sm:$0xff]
      %v375 = vld [vmem:[%s365 + $0x48] sm:$0xff]
      %v376 = vld [vmem:[%s365 + $0x50] sm:$0xff]
      %v377 = vld [vmem:[%s365 + $0x58] sm:$0xff]
      %v378 = vld [vmem:[%s365 + $0x60] sm:$0xff]
      %v379 = vld [vmem:[%s365 + $0x68] sm:$0xff]
      %v380 = vld [vmem:[%s365 + $0x70] sm:$0xff]
      %v381 = vld [vmem:[%s365 + $0x78] sm:$0xff]
      %v382 = vsel 0, %v366, 0.0
      %v383 = vsel 0, %v367, 0.0
      %v384 = vsel 1, %v368, 0.0
      %v385 = vsel 1, %v369, 0.0
      %v386 = vsel 1, %v370, 0.0
      %v387 = vsel 1, %v371, 0.0
      %v388 = vsel 1, %v372, 0.0
      %v389 = vsel 1, %v373, 0.0
      %v390 = vsel 1, %v374, 0.0
      %v391 = vsel 1, %v375, 0.0
      %v392 = vsel 1, %v376, 0.0
      %v393 = vsel 1, %v377, 0.0
      %v394 = vsel 1, %v378, 0.0
      %v395 = vsel 1, %v379, 0.0
      %v396 = vsel 1, %v380, 0.0
      %v397 = vsel 1, %v381, 0.0
      %s398 = scalar_lea.vmem %s1, 8
      %v399 = vld [vmem:[%s398] sm:$0xff]
      %v401 = vsel %vm188, %v382, 0
      %v404 = vsel %vm188, %v383, 0
      %v407 = vsel %vm188, %v384, 0
      %v410 = vsel %vm188, %v385, 0
      %v413 = vsel %vm188, %v386, 0
      %v416 = vsel %vm188, %v387, 0
      %v419 = vsel %vm188, %v388, 0
      %v422 = vsel %vm188, %v389, 0
      %v425 = vsel %vm188, %v390, 0
      %v428 = vsel %vm188, %v391, 0
      %v431 = vsel %vm188, %v392, 0
      %v434 = vsel %vm188, %v393, 0
      %v437 = vsel %vm188, %v394, 0
      %v440 = vsel %vm188, %v395, 0
      %v443 = vsel %vm188, %v396, 0
      %v446 = vsel %vm188, %v397, 0
      %448 = vmatprep.subr.mxu0 0.0
      %449 = vmatpush1.msra.mxu0 %v399
      %450 = vmatprep.subr.mxu0 0.0
      %451 = vmatpush1.msra.mxu0 0.0
      %452 = vmatprep.subr.mxu0 0.0
      %453 = vmatpush1.msra.mxu0 0.0
      %454 = vmatprep.subr.mxu0 0.0
      %455 = vmatpush1.msra.mxu0 0.0
      %456 = vmatprep.subr.mxu0 0.0
      %457 = vmatpush1.msra.mxu0 0.0
      %458 = vmatprep.subr.mxu0 0.0
      %459 = vmatpush1.msra.mxu0 0.0
      %460 = vmatprep.subr.mxu0 0.0
      %461 = vmatpush1.msra.mxu0 0.0
      %462 = vmatprep.subr.mxu0 0.0
      %463 = vmatpush1.msra.mxu0 0.0
      %464 = vmatprep.subr.mxu0 0.0
      %465 = vmatpush1.msra.mxu0 0.0
      %466 = vmatprep.subr.mxu0 0.0
      %467 = vmatpush1.msra.mxu0 0.0
      %468 = vmatprep.subr.mxu0 0.0
      %469 = vmatpush1.msra.mxu0 0.0
      %470 = vmatprep.subr.mxu0 0.0
      %471 = vmatpush1.msra.mxu0 0.0
      %472 = vmatprep.subr.mxu0 0.0
      %473 = vmatpush1.msra.mxu0 0.0
      %474 = vmatprep.subr.mxu0 0.0
      %475 = vmatpush1.msra.mxu0 0.0
      %476 = vmatprep.subr.mxu0 0.0
      %477 = vmatpush1.msra.mxu0 0.0
      %478 = vmatprep.subr.mxu0 0.0
      %479 = vmatpush1.msra.mxu0 0.0
      %480 = vmatprep.subr.mxu0 0.0
      %481 = vmatpush1.msra.mxu0 0.0
      %482 = vmatprep.subr.mxu0 0.0
      %483 = vmatpush1.msra.mxu0 0.0
      %484 = vmatprep.subr.mxu0 0.0
      %485 = vmatpush1.msra.mxu0 0.0
      %486 = vmatprep.subr.mxu0 0.0
      %487 = vmatpush1.msra.mxu0 0.0
      %488 = vmatprep.subr.mxu0 0.0
      %489 = vmatpush1.msra.mxu0 0.0
      %490 = vmatprep.subr.mxu0 0.0
      %491 = vmatpush1.msra.mxu0 0.0
      %492 = vmatprep.subr.mxu0 0.0
      %493 = vmatpush1.msra.mxu0 0.0
      %494 = vmatprep.subr.mxu0 0.0
      %495 = vmatpush1.msra.mxu0 0.0
      %496 = vmatprep.subr.mxu0 0.0
      %497 = vmatpush1.msra.mxu0 0.0
      %498 = vmatprep.subr.mxu0 0.0
      %499 = vmatpush1.msra.mxu0 0.0
      %500 = vmatprep.subr.mxu0 0.0
      %501 = vmatpush1.msra.mxu0 0.0
      %502 = vmatprep.subr.mxu0 0.0
      %503 = vmatpush1.msra.mxu0 0.0
      %504 = vmatprep.subr.mxu0 0.0
      %505 = vmatpush1.msra.mxu0 0.0
      %506 = vmatprep.subr.mxu0 0.0
      %507 = vmatpush1.msra.mxu0 0.0
      %508 = vmatprep.subr.mxu0 0.0
      %509 = vmatpush1.msra.mxu0 0.0
      %510 = vmatprep.subr.mxu0 0.0
      %511 = vmatpush1.msra.mxu0 0.0
      %512 = vmatprep.mubr.f32.mxu0 0.0
      %513 = vmatmul.mubr.f32.gmra.mrb[0].mxu0 %v401
      %v514 = vpop.f32.mrb[0].mxu0
      %v515 = vadd.f32 0.0, %v514
      %v516 = vpop.f32.mrb[0].mxu0
      %517 = vmatprep.mubr.f32.mxu0 0.0
      %518 = vmatmul.mubr.f32.gmra.mrb[0].mxu0 %v404
      %v519 = vpop.f32.mrb[0].mxu0
      %v520 = vadd.f32 0.0, %v519
      %v521 = vpop.f32.mrb[0].mxu0
      %522 = vmatprep.mubr.f32.mxu0 0.0
      %523 = vmatmul.mubr.f32.gmra.mrb[0].mxu0 %v407
      %v524 = vpop.f32.mrb[0].mxu0
      %v525 = vadd.f32 0.0, %v524
      %v526 = vpop.f32.mrb[0].mxu0
      %527 = vmatprep.mubr.f32.mxu0 0.0
      %528 = vmatmul.mubr.f32.gmra.mrb[0].mxu0 %v410
      %v529 = vpop.f32.mrb[0].mxu0
      %v530 = vadd.f32 0.0, %v529
      %v531 = vpop.f32.mrb[0].mxu0
      %532 = vmatprep.mubr.f32.mxu0 0.0
      %533 = vmatmul.mubr.f32.gmra.mrb[0].mxu0 %v413
      %v534 = vpop.f32.mrb[0].mxu0
      %v535 = vadd.f32 0.0, %v534
      %v536 = vpop.f32.mrb[0].mxu0
      %537 = vmatprep.mubr.f32.mxu0 0.0
      %538 = vmatmul.mubr.f32.gmra.mrb[0].mxu0 %v416
      %v539 = vpop.f32.mrb[0].mxu0
      %v540 = vadd.f32 0.0, %v539
      %v541 = vpop.f32.mrb[0].mxu0
      %542 = vmatprep.mubr.f32.mxu0 0.0
      %543 = vmatmul.mubr.f32.gmra.mrb[0].mxu0 %v419
      %v544 = vpop.f32.mrb[0].mxu0
      %v545 = vadd.f32 0.0, %v544
      %v546 = vpop.f32.mrb[0].mxu0
      %547 = vmatprep.mubr.f32.mxu0 0.0
      %548 = vmatmul.mubr.f32.gmra.mrb[0].mxu0 %v422
      %v549 = vpop.f32.mrb[0].mxu0
      %v550 = vadd.f32 0.0, %v549
      %v551 = vpop.f32.mrb[0].mxu0
      %552 = vmatprep.mubr.f32.mxu0 0.0
      %553 = vmatmul.mubr.f32.gmra.mrb[0].mxu0 %v425
      %v554 = vpop.f32.mrb[0].mxu0
      %v555 = vadd.f32 0.0, %v554
      %v556 = vpop.f32.mrb[0].mxu0
      %557 = vmatprep.mubr.f32.mxu0 0.0
      %558 = vmatmul.mubr.f32.gmra.mrb[0].mxu0 %v428
      %v559 = vpop.f32.mrb[0].mxu0
      %v560 = vadd.f32 0.0, %v559
      %v561 = vpop.f32.mrb[0].mxu0
      %562 = vmatprep.mubr.f32.mxu0 0.0
      %563 = vmatmul.mubr.f32.gmra.mrb[0].mxu0 %v431
      %v564 = vpop.f32.mrb[0].mxu0
      %v565 = vadd.f32 0.0, %v564
      %v566 = vpop.f32.mrb[0].mxu0
      %567 = vmatprep.mubr.f32.mxu0 0.0
      %568 = vmatmul.mubr.f32.gmra.mrb[0].mxu0 %v434
      %v569 = vpop.f32.mrb[0].mxu0
      %v570 = vadd.f32 0.0, %v569
      %v571 = vpop.f32.mrb[0].mxu0
      %572 = vmatprep.mubr.f32.mxu0 0.0
      %573 = vmatmul.mubr.f32.gmra.mrb[0].mxu0 %v437
      %v574 = vpop.f32.mrb[0].mxu0
      %v575 = vadd.f32 0.0, %v574
      %v576 = vpop.f32.mrb[0].mxu0
      %577 = vmatprep.mubr.f32.mxu0 0.0
      %578 = vmatmul.mubr.f32.gmra.mrb[0].mxu0 %v440
      %v579 = vpop.f32.mrb[0].mxu0
      %v580 = vadd.f32 0.0, %v579
      %v581 = vpop.f32.mrb[0].mxu0
      %582 = vmatprep.mubr.f32.mxu0 0.0
      %583 = vmatmul.mubr.f32.gmra.mrb[0].mxu0 %v443
      %v584 = vpop.f32.mrb[0].mxu0
      %v585 = vadd.f32 0.0, %v584
      %v586 = vpop.f32.mrb[0].mxu0
      %587 = vmatprep.mubr.f32.mxu0 0.0
      %588 = vmatmul.mubr.f32.gmra.mrb[0].mxu0 %v446
      %v589 = vpop.f32.mrb[0].mxu0
      %v590 = vadd.f32 0.0, %v589
      %v591 = vpop.f32.mrb[0].mxu0
      %592 = vdwg.mxu0
      %v594 = vsel %vm188, %v348, 0
      %v597 = vsel %vm188, %v349, 0
      %v600 = vsel %vm188, %v350, 0
      %v603 = vsel %vm188, %v351, 0
      %v606 = vsel %vm188, %v352, 0
      %v609 = vsel %vm188, %v353, 0
      %v612 = vsel %vm188, %v354, 0
      %v615 = vsel %vm188, %v355, 0
      %v618 = vsel %vm188, %v356, 0
      %v621 = vsel %vm188, %v357, 0
      %v624 = vsel %vm188, %v358, 0
      %v627 = vsel %vm188, %v359, 0
      %v630 = vsel %vm188, %v360, 0
      %v633 = vsel %vm188, %v361, 0
      %v636 = vsel %vm188, %v362, 0
      %v639 = vsel %vm188, %v363, 0
      %641 = vmatprep.subr.mxu0 0.0
      %642 = vmatpush1.msra.mxu0 %v364
      %643 = vmatprep.subr.mxu0 0.0
      %644 = vmatpush1.msra.mxu0 0.0
      %645 = vmatprep.subr.mxu0 0.0
      %646 = vmatpush1.msra.mxu0 0.0
      %647 = vmatprep.subr.mxu0 0.0
      %648 = vmatpush1.msra.mxu0 0.0
      %649 = vmatprep.subr.mxu0 0.0
      %650 = vmatpush1.msra.mxu0 0.0
      %651 = vmatprep.subr.mxu0 0.0
      %652 = vmatpush1.msra.mxu0 0.0
      %653 = vmatprep.subr.mxu0 0.0
      %654 = vmatpush1.msra.mxu0 0.0
      %655 = vmatprep.subr.mxu0 0.0
      %656 = vmatpush1.msra.mxu0 0.0
      %657 = vmatprep.subr.mxu0 0.0
      %658 = vmatpush1.msra.mxu0 0.0
      %659 = vmatprep.subr.mxu0 0.0
      %660 = vmatpush1.msra.mxu0 0.0
      %661 = vmatprep.subr.mxu0 0.0
      %662 = vmatpush1.msra.mxu0 0.0
      %663 = vmatprep.subr.mxu0 0.0
      %664 = vmatpush1.msra.mxu0 0.0
      %665 = vmatprep.subr.mxu0 0.0
      %666 = vmatpush1.msra.mxu0 0.0
      %667 = vmatprep.subr.mxu0 0.0
      %668 = vmatpush1.msra.mxu0 0.0
      %669 = vmatprep.subr.mxu0 0.0
      %670 = vmatpush1.msra.mxu0 0.0
      %671 = vmatprep.subr.mxu0 0.0
      %672 = vmatpush1.msra.mxu0 0.0
      %673 = vmatprep.subr.mxu0 0.0
      %674 = vmatpush1.msra.mxu0 0.0
      %675 = vmatprep.subr.mxu0 0.0
      %676 = vmatpush1.msra.mxu0 0.0
      %677 = vmatprep.subr.mxu0 0.0
      %678 = vmatpush1.msra.mxu0 0.0
      %679 = vmatprep.subr.mxu0 0.0
      %680 = vmatpush1.msra.mxu0 0.0
      %681 = vmatprep.subr.mxu0 0.0
      %682 = vmatpush1.msra.mxu0 0.0
      %683 = vmatprep.subr.mxu0 0.0
      %684 = vmatpush1.msra.mxu0 0.0
      %685 = vmatprep.subr.mxu0 0.0
      %686 = vmatpush1.msra.mxu0 0.0
      %687 = vmatprep.subr.mxu0 0.0
      %688 = vmatpush1.msra.mxu0 0.0
      %689 = vmatprep.subr.mxu0 0.0
      %690 = vmatpush1.msra.mxu0 0.0
      %691 = vmatprep.subr.mxu0 0.0
      %692 = vmatpush1.msra.mxu0 0.0
      %693 = vmatprep.subr.mxu0 0.0
      %694 = vmatpush1.msra.mxu0 0.0
      %695 = vmatprep.subr.mxu0 0.0
      %696 = vmatpush1.msra.mxu0 0.0
      %697 = vmatprep.subr.mxu0 0.0
      %698 = vmatpush1.msra.mxu0 0.0
      %699 = vmatprep.subr.mxu0 0.0
      %700 = vmatpush1.msra.mxu0 0.0
      %701 = vmatprep.subr.mxu0 0.0
      %702 = vmatpush1.msra.mxu0 0.0
      %703 = vmatprep.subr.mxu0 0.0
      %704 = vmatpush1.msra.mxu0 0.0
      %705 = vmatprep.mubr.f32.mxu0 0.0
      %706 = vmatmul.mubr.f32.gmra.mrb[0].mxu0 %v594
      %v707 = vpop.f32.mrb[0].mxu0
      %v708 = vadd.f32 %v515, %v707
      %v709 = vpop.f32.mrb[0].mxu0
      %710 = vmatprep.mubr.f32.mxu0 0.0
      %711 = vmatmul.mubr.f32.gmra.mrb[0].mxu0 %v597
      %v712 = vpop.f32.mrb[0].mxu0
      %v713 = vadd.f32 %v520, %v712
      %v714 = vpop.f32.mrb[0].mxu0
      %715 = vmatprep.mubr.f32.mxu0 0.0
      %716 = vmatmul.mubr.f32.gmra.mrb[0].mxu0 %v600
      %v717 = vpop.f32.mrb[0].mxu0
      %v718 = vadd.f32 %v525, %v717
      %v719 = vpop.f32.mrb[0].mxu0
      %720 = vmatprep.mubr.f32.mxu0 0.0
      %721 = vmatmul.mubr.f32.gmra.mrb[0].mxu0 %v603
      %v722 = vpop.f32.mrb[0].mxu0
      %v723 = vadd.f32 %v530, %v722
      %v724 = vpop.f32.mrb[0].mxu0
      %725 = vmatprep.mubr.f32.mxu0 0.0
      %726 = vmatmul.mubr.f32.gmra.mrb[0].mxu0 %v606
      %v727 = vpop.f32.mrb[0].mxu0
      %v728 = vadd.f32 %v535, %v727
      %v729 = vpop.f32.mrb[0].mxu0
      %730 = vmatprep.mubr.f32.mxu0 0.0
      %731 = vmatmul.mubr.f32.gmra.mrb[0].mxu0 %v609
      %v732 = vpop.f32.mrb[0].mxu0
      %v733 = vadd.f32 %v540, %v732
      %v734 = vpop.f32.mrb[0].mxu0
      %735 = vmatprep.mubr.f32.mxu0 0.0
      %736 = vmatmul.mubr.f32.gmra.mrb[0].mxu0 %v612
      %v737 = vpop.f32.mrb[0].mxu0
      %v738 = vadd.f32 %v545, %v737
      %v739 = vpop.f32.mrb[0].mxu0
      %740 = vmatprep.mubr.f32.mxu0 0.0
      %741 = vmatmul.mubr.f32.gmra.mrb[0].mxu0 %v615
      %v742 = vpop.f32.mrb[0].mxu0
      %v743 = vadd.f32 %v550, %v742
      %v744 = vpop.f32.mrb[0].mxu0
      %745 = vmatprep.mubr.f32.mxu0 0.0
      %746 = vmatmul.mubr.f32.gmra.mrb[0].mxu0 %v618
      %v747 = vpop.f32.mrb[0].mxu0
      %v748 = vadd.f32 %v555, %v747
      %v749 = vpop.f32.mrb[0].mxu0
      %750 = vmatprep.mubr.f32.mxu0 0.0
      %751 = vmatmul.mubr.f32.gmra.mrb[0].mxu0 %v621
      %v752 = vpop.f32.mrb[0].mxu0
      %v753 = vadd.f32 %v560, %v752
      %v754 = vpop.f32.mrb[0].mxu0
      %755 = vmatprep.mubr.f32.mxu0 0.0
      %756 = vmatmul.mubr.f32.gmra.mrb[0].mxu0 %v624
      %v757 = vpop.f32.mrb[0].mxu0
      %v758 = vadd.f32 %v565, %v757
      %v759 = vpop.f32.mrb[0].mxu0
      %760 = vmatprep.mubr.f32.mxu0 0.0
      %761 = vmatmul.mubr.f32.gmra.mrb[0].mxu0 %v627
      %v762 = vpop.f32.mrb[0].mxu0
      %v763 = vadd.f32 %v570, %v762
      %v764 = vpop.f32.mrb[0].mxu0
      %765 = vmatprep.mubr.f32.mxu0 0.0
      %766 = vmatmul.mubr.f32.gmra.mrb[0].mxu0 %v630
      %v767 = vpop.f32.mrb[0].mxu0
      %v768 = vadd.f32 %v575, %v767
      %v769 = vpop.f32.mrb[0].mxu0
      %770 = vmatprep.mubr.f32.mxu0 0.0
      %771 = vmatmul.mubr.f32.gmra.mrb[0].mxu0 %v633
      %v772 = vpop.f32.mrb[0].mxu0
      %v773 = vadd.f32 %v580, %v772
      %v774 = vpop.f32.mrb[0].mxu0
      %775 = vmatprep.mubr.f32.mxu0 0.0
      %776 = vmatmul.mubr.f32.gmra.mrb[0].mxu0 %v636
      %v777 = vpop.f32.mrb[0].mxu0
      %v778 = vadd.f32 %v585, %v777
      %v779 = vpop.f32.mrb[0].mxu0
      %780 = vmatprep.mubr.f32.mxu0 0.0
      %781 = vmatmul.mubr.f32.gmra.mrb[0].mxu0 %v639
      %v782 = vpop.f32.mrb[0].mxu0
      %v783 = vadd.f32 %v590, %v782
      %v784 = vpop.f32.mrb[0].mxu0
      %785 = vdwg.mxu0
      %s786 = scalar_lea.vmem [#allocation2], 576
      %v787 = vld [vmem:[%s786] sm:$0xff]
      %v788 = vld [vmem:[%s786 + $0x8] sm:$0xff]
      %v789 = vld [vmem:[%s786 + $0x10] sm:$0xff]
      %v790 = vld [vmem:[%s786 + $0x18] sm:$0xff]
      %v791 = vld [vmem:[%s786 + $0x20] sm:$0xff]
      %v792 = vld [vmem:[%s786 + $0x28] sm:$0xff]
      %v793 = vld [vmem:[%s786 + $0x30] sm:$0xff]
      %v794 = vld [vmem:[%s786 + $0x38] sm:$0xff]
      %v795 = vld [vmem:[%s786 + $0x40] sm:$0xff]
      %v796 = vld [vmem:[%s786 + $0x48] sm:$0xff]
      %v797 = vld [vmem:[%s786 + $0x50] sm:$0xff]
      %v798 = vld [vmem:[%s786 + $0x58] sm:$0xff]
      %v799 = vld [vmem:[%s786 + $0x60] sm:$0xff]
      %v800 = vld [vmem:[%s786 + $0x68] sm:$0xff]
      %v801 = vld [vmem:[%s786 + $0x70] sm:$0xff]
      %v802 = vld [vmem:[%s786 + $0x78] sm:$0xff]
      %v803 = vsel %vm314, %v787, 0.0
      %v804 = vsel %vm315, %v788, 0.0
      %v805 = vsel %vm314, %v789, 0.0
      %v806 = vsel %vm315, %v790, 0.0
      %v807 = vsel %vm314, %v791, 0.0
      %v808 = vsel %vm315, %v792, 0.0
      %v809 = vsel %vm314, %v793, 0.0
      %v810 = vsel %vm315, %v794, 0.0
      %v811 = vsel %vm314, %v795, 0.0
      %v812 = vsel %vm315, %v796, 0.0
      %v813 = vsel %vm314, %v797, 0.0
      %v814 = vsel %vm315, %v798, 0.0
      %v815 = vsel %vm314, %v799, 0.0
      %v816 = vsel %vm315, %v800, 0.0
      %v817 = vsel %vm314, %v801, 0.0
      %v818 = vsel %vm315, %v802, 0.0
      %v819 = vsel 0, %v803, 0.0
      %v820 = vsel 0, %v804, 0.0
      %v821 = vsel 1, %v805, 0.0
      %v822 = vsel 1, %v806, 0.0
      %v823 = vsel 1, %v807, 0.0
      %v824 = vsel 1, %v808, 0.0
      %v825 = vsel 1, %v809, 0.0
      %v826 = vsel 1, %v810, 0.0
      %v827 = vsel 1, %v811, 0.0
      %v828 = vsel 1, %v812, 0.0
      %v829 = vsel 1, %v813, 0.0
      %v830 = vsel 1, %v814, 0.0
      %v831 = vsel 1, %v815, 0.0
      %v832 = vsel 1, %v816, 0.0
      %v833 = vsel 1, %v817, 0.0
      %v834 = vsel 1, %v818, 0.0
      %s835 = scalar_lea.vmem %s1, 16
      %v836 = vld [vmem:[%s835] sm:$0xff]
      %v838 = vsel %vm188, %v819, 0
      %v841 = vsel %vm188, %v820, 0
      %v844 = vsel %vm188, %v821, 0
      %v847 = vsel %vm188, %v822, 0
      %v850 = vsel %vm188, %v823, 0
      %v853 = vsel %vm188, %v824, 0
      %v856 = vsel %vm188, %v825, 0
      %v859 = vsel %vm188, %v826, 0
      %v862 = vsel %vm188, %v827, 0
      %v865 = vsel %vm188, %v828, 0
      %v868 = vsel %vm188, %v829, 0
      %v871 = vsel %vm188, %v830, 0
      %v874 = vsel %vm188, %v831, 0
      %v877 = vsel %vm188, %v832, 0
      %v880 = vsel %vm188, %v833, 0
      %v883 = vsel %vm188, %v834, 0
      %885 = vmatprep.subr.mxu0 0.0
      %886 = vmatpush1.msra.mxu0 %v836
      %887 = vmatprep.subr.mxu0 0.0
      %888 = vmatpush1.msra.mxu0 0.0
      %889 = vmatprep.subr.mxu0 0.0
      %890 = vmatpush1.msra.mxu0 0.0
      %891 = vmatprep.subr.mxu0 0.0
      %892 = vmatpush1.msra.mxu0 0.0
      %893 = vmatprep.subr.mxu0 0.0
      %894 = vmatpush1.msra.mxu0 0.0
      %895 = vmatprep.subr.mxu0 0.0
      %896 = vmatpush1.msra.mxu0 0.0
      %897 = vmatprep.subr.mxu0 0.0
      %898 = vmatpush1.msra.mxu0 0.0
      %899 = vmatprep.subr.mxu0 0.0
      %900 = vmatpush1.msra.mxu0 0.0
      %901 = vmatprep.subr.mxu0 0.0
      %902 = vmatpush1.msra.mxu0 0.0
      %903 = vmatprep.subr.mxu0 0.0
      %904 = vmatpush1.msra.mxu0 0.0
      %905 = vmatprep.subr.mxu0 0.0
      %906 = vmatpush1.msra.mxu0 0.0
      %907 = vmatprep.subr.mxu0 0.0
      %908 = vmatpush1.msra.mxu0 0.0
      %909 = vmatprep.subr.mxu0 0.0
      %910 = vmatpush1.msra.mxu0 0.0
      %911 = vmatprep.subr.mxu0 0.0
      %912 = vmatpush1.msra.mxu0 0.0
      %913 = vmatprep.subr.mxu0 0.0
      %914 = vmatpush1.msra.mxu0 0.0
      %915 = vmatprep.subr.mxu0 0.0
      %916 = vmatpush1.msra.mxu0 0.0
      %917 = vmatprep.subr.mxu0 0.0
      %918 = vmatpush1.msra.mxu0 0.0
      %919 = vmatprep.subr.mxu0 0.0
      %920 = vmatpush1.msra.mxu0 0.0
      %921 = vmatprep.subr.mxu0 0.0
      %922 = vmatpush1.msra.mxu0 0.0
      %923 = vmatprep.subr.mxu0 0.0
      %924 = vmatpush1.msra.mxu0 0.0
      %925 = vmatprep.subr.mxu0 0.0
      %926 = vmatpush1.msra.mxu0 0.0
      %927 = vmatprep.subr.mxu0 0.0
      %928 = vmatpush1.msra.mxu0 0.0
      %929 = vmatprep.subr.mxu0 0.0
      %930 = vmatpush1.msra.mxu0 0.0
      %931 = vmatprep.subr.mxu0 0.0
      %932 = vmatpush1.msra.mxu0 0.0
      %933 = vmatprep.subr.mxu0 0.0
      %934 = vmatpush1.msra.mxu0 0.0
      %935 = vmatprep.subr.mxu0 0.0
      %936 = vmatpush1.msra.mxu0 0.0
      %937 = vmatprep.subr.mxu0 0.0
      %938 = vmatpush1.msra.mxu0 0.0
      %939 = vmatprep.subr.mxu0 0.0
      %940 = vmatpush1.msra.mxu0 0.0
      %941 = vmatprep.subr.mxu0 0.0
      %942 = vmatpush1.msra.mxu0 0.0
      %943 = vmatprep.subr.mxu0 0.0
      %944 = vmatpush1.msra.mxu0 0.0
      %945 = vmatprep.subr.mxu0 0.0
      %946 = vmatpush1.msra.mxu0 0.0
      %947 = vmatprep.subr.mxu0 0.0
      %948 = vmatpush1.msra.mxu0 0.0
      %949 = vmatprep.mubr.f32.mxu0 0.0
      %950 = vmatmul.mubr.f32.gmra.mrb[0].mxu0 %v838
      %v951 = vpop.f32.mrb[0].mxu0
      %v952 = vadd.f32 0.0, %v951
      %v953 = vpop.f32.mrb[0].mxu0
      %954 = vmatprep.mubr.f32.mxu0 0.0
      %955 = vmatmul.mubr.f32.gmra.mrb[0].mxu0 %v841
      %v956 = vpop.f32.mrb[0].mxu0
      %v957 = vadd.f32 0.0, %v956
      %v958 = vpop.f32.mrb[0].mxu0
      %959 = vmatprep.mubr.f32.mxu0 0.0
      %960 = vmatmul.mubr.f32.gmra.mrb[0].mxu0 %v844
      %v961 = vpop.f32.mrb[0].mxu0
      %v962 = vadd.f32 0.0, %v961
      %v963 = vpop.f32.mrb[0].mxu0
      %964 = vmatprep.mubr.f32.mxu0 0.0
      %965 = vmatmul.mubr.f32.gmra.mrb[0].mxu0 %v847
      %v966 = vpop.f32.mrb[0].mxu0
      %v967 = vadd.f32 0.0, %v966
      %v968 = vpop.f32.mrb[0].mxu0
      %969 = vmatprep.mubr.f32.mxu0 0.0
      %970 = vmatmul.mubr.f32.gmra.mrb[0].mxu0 %v850
      %v971 = vpop.f32.mrb[0].mxu0
      %v972 = vadd.f32 0.0, %v971
      %v973 = vpop.f32.mrb[0].mxu0
      %974 = vmatprep.mubr.f32.mxu0 0.0
      %975 = vmatmul.mubr.f32.gmra.mrb[0].mxu0 %v853
      %v976 = vpop.f32.mrb[0].mxu0
      %v977 = vadd.f32 0.0, %v976
      %v978 = vpop.f32.mrb[0].mxu0
      %979 = vmatprep.mubr.f32.mxu0 0.0
      %980 = vmatmul.mubr.f32.gmra.mrb[0].mxu0 %v856
      %v981 = vpop.f32.mrb[0].mxu0
      %v982 = vadd.f32 0.0, %v981
      %v983 = vpop.f32.mrb[0].mxu0
      %984 = vmatprep.mubr.f32.mxu0 0.0
      %985 = vmatmul.mubr.f32.gmra.mrb[0].mxu0 %v859
      %v986 = vpop.f32.mrb[0].mxu0
      %v987 = vadd.f32 0.0, %v986
      %v988 = vpop.f32.mrb[0].mxu0
      %989 = vmatprep.mubr.f32.mxu0 0.0
      %990 = vmatmul.mubr.f32.gmra.mrb[0].mxu0 %v862
      %v991 = vpop.f32.mrb[0].mxu0
      %v992 = vadd.f32 0.0, %v991
      %v993 = vpop.f32.mrb[0].mxu0
      %994 = vmatprep.mubr.f32.mxu0 0.0
      %995 = vmatmul.mubr.f32.gmra.mrb[0].mxu0 %v865
      %v996 = vpop.f32.mrb[0].mxu0
      %v997 = vadd.f32 0.0, %v996
      %v998 = vpop.f32.mrb[0].mxu0
      %999 = vmatprep.mubr.f32.mxu0 0.0
      %1000 = vmatmul.mubr.f32.gmra.mrb[0].mxu0 %v868
      %v1001 = vpop.f32.mrb[0].mxu0
      %v1002 = vadd.f32 0.0, %v1001
      %v1003 = vpop.f32.mrb[0].mxu0
      %1004 = vmatprep.mubr.f32.mxu0 0.0
      %1005 = vmatmul.mubr.f32.gmra.mrb[0].mxu0 %v871
      %v1006 = vpop.f32.mrb[0].mxu0
      %v1007 = vadd.f32 0.0, %v1006
      %v1008 = vpop.f32.mrb[0].mxu0
      %1009 = vmatprep.mubr.f32.mxu0 0.0
      %1010 = vmatmul.mubr.f32.gmra.mrb[0].mxu0 %v874
      %v1011 = vpop.f32.mrb[0].mxu0
      %v1012 = vadd.f32 0.0, %v1011
      %v1013 = vpop.f32.mrb[0].mxu0
      %1014 = vmatprep.mubr.f32.mxu0 0.0
      %1015 = vmatmul.mubr.f32.gmra.mrb[0].mxu0 %v877
      %v1016 = vpop.f32.mrb[0].mxu0
      %v1017 = vadd.f32 0.0, %v1016
      %v1018 = vpop.f32.mrb[0].mxu0
      %1019 = vmatprep.mubr.f32.mxu0 0.0
      %1020 = vmatmul.mubr.f32.gmra.mrb[0].mxu0 %v880
      %v1021 = vpop.f32.mrb[0].mxu0
      %v1022 = vadd.f32 0.0, %v1021
      %v1023 = vpop.f32.mrb[0].mxu0
      %1024 = vmatprep.mubr.f32.mxu0 0.0
      %1025 = vmatmul.mubr.f32.gmra.mrb[0].mxu0 %v883
      %v1026 = vpop.f32.mrb[0].mxu0
      %v1027 = vadd.f32 0.0, %v1026
      %v1028 = vpop.f32.mrb[0].mxu0
      %1029 = vdwg.mxu0
      %v1030 = vadd.f32 %v708, %v952
      %v1031 = vadd.f32 %v713, %v957
      %v1032 = vadd.f32 %v718, %v962
      %v1033 = vadd.f32 %v723, %v967
      %v1034 = vadd.f32 %v728, %v972
      %v1035 = vadd.f32 %v733, %v977
      %v1036 = vadd.f32 %v738, %v982
      %v1037 = vadd.f32 %v743, %v987
      %v1038 = vadd.f32 %v748, %v992
      %v1039 = vadd.f32 %v753, %v997
      %v1040 = vadd.f32 %v758, %v1002
      %v1041 = vadd.f32 %v763, %v1007
      %v1042 = vadd.f32 %v768, %v1012
      %v1043 = vadd.f32 %v773, %v1017
      %v1044 = vadd.f32 %v778, %v1022
      %v1045 = vadd.f32 %v783, %v1027
      %v1046 = vld [vmem:[%s205] sm:$0xff]
      %v1047 = vld [vmem:[%s205 + $0x8] sm:$0xff]
      %v1048 = vld [vmem:[%s205 + $0x10] sm:$0xff]
      %v1049 = vld [vmem:[%s205 + $0x18] sm:$0xff]
      %v1050 = vld [vmem:[%s205 + $0x20] sm:$0xff]
      %v1051 = vld [vmem:[%s205 + $0x28] sm:$0xff]
      %v1052 = vld [vmem:[%s205 + $0x30] sm:$0xff]
      %v1053 = vld [vmem:[%s205 + $0x38] sm:$0xff]
      %v1054 = vld [vmem:[%s205 + $0x40] sm:$0xff]
      %v1055 = vld [vmem:[%s205 + $0x48] sm:$0xff]
      %v1056 = vld [vmem:[%s205 + $0x50] sm:$0xff]
      %v1057 = vld [vmem:[%s205 + $0x58] sm:$0xff]
      %v1058 = vld [vmem:[%s205 + $0x60] sm:$0xff]
      %v1059 = vld [vmem:[%s205 + $0x68] sm:$0xff]
      %v1060 = vld [vmem:[%s205 + $0x70] sm:$0xff]
      %v1061 = vld [vmem:[%s205 + $0x78] sm:$0xff]
      %v1062 = vsel %vm312, %v1046, 0.0
      %v1063 = vsel %vm313, %v1047, 0.0
      %v1064 = vsel %vm312, %v1048, 0.0
      %v1065 = vsel %vm313, %v1049, 0.0
      %v1066 = vsel %vm312, %v1050, 0.0
      %v1067 = vsel %vm313, %v1051, 0.0
      %v1068 = vsel %vm312, %v1052, 0.0
      %v1069 = vsel %vm313, %v1053, 0.0
      %v1070 = vsel %vm312, %v1054, 0.0
      %v1071 = vsel %vm313, %v1055, 0.0
      %v1072 = vsel %vm312, %v1056, 0.0
      %v1073 = vsel %vm313, %v1057, 0.0
      %v1074 = vsel %vm312, %v1058, 0.0
      %v1075 = vsel %vm313, %v1059, 0.0
      %v1076 = vsel %vm312, %v1060, 0.0
      %v1077 = vsel %vm313, %v1061, 0.0
      %s1078 = scalar_lea.vmem %s1, 24
      %v1079 = vld [vmem:[%s1078] sm:$0xff]
      %v1081 = vsel %vm188, %v1062, 0
      %v1084 = vsel %vm188, %v1063, 0
      %v1087 = vsel %vm188, %v1064, 0
      %v1090 = vsel %vm188, %v1065, 0
      %v1093 = vsel %vm188, %v1066, 0
      %v1096 = vsel %vm188, %v1067, 0
      %v1099 = vsel %vm188, %v1068, 0
      %v1102 = vsel %vm188, %v1069, 0
      %v1105 = vsel %vm188, %v1070, 0
      %v1108 = vsel %vm188, %v1071, 0
      %v1111 = vsel %vm188, %v1072, 0
      %v1114 = vsel %vm188, %v1073, 0
      %v1117 = vsel %vm188, %v1074, 0
      %v1120 = vsel %vm188, %v1075, 0
      %v1123 = vsel %vm188, %v1076, 0
      %v1126 = vsel %vm188, %v1077, 0
      %1128 = vmatprep.subr.mxu0 0.0
      %1129 = vmatpush1.msra.mxu0 %v1079
      %1130 = vmatprep.subr.mxu0 0.0
      %1131 = vmatpush1.msra.mxu0 0.0
      %1132 = vmatprep.subr.mxu0 0.0
      %1133 = vmatpush1.msra.mxu0 0.0
      %1134 = vmatprep.subr.mxu0 0.0
      %1135 = vmatpush1.msra.mxu0 0.0
      %1136 = vmatprep.subr.mxu0 0.0
      %1137 = vmatpush1.msra.mxu0 0.0
      %1138 = vmatprep.subr.mxu0 0.0
      %1139 = vmatpush1.msra.mxu0 0.0
      %1140 = vmatprep.subr.mxu0 0.0
      %1141 = vmatpush1.msra.mxu0 0.0
      %1142 = vmatprep.subr.mxu0 0.0
      %1143 = vmatpush1.msra.mxu0 0.0
      %1144 = vmatprep.subr.mxu0 0.0
      %1145 = vmatpush1.msra.mxu0 0.0
      %1146 = vmatprep.subr.mxu0 0.0
      %1147 = vmatpush1.msra.mxu0 0.0
      %1148 = vmatprep.subr.mxu0 0.0
      %1149 = vmatpush1.msra.mxu0 0.0
      %1150 = vmatprep.subr.mxu0 0.0
      %1151 = vmatpush1.msra.mxu0 0.0
      %1152 = vmatprep.subr.mxu0 0.0
      %1153 = vmatpush1.msra.mxu0 0.0
      %1154 = vmatprep.subr.mxu0 0.0
      %1155 = vmatpush1.msra.mxu0 0.0
      %1156 = vmatprep.subr.mxu0 0.0
      %1157 = vmatpush1.msra.mxu0 0.0
      %1158 = vmatprep.subr.mxu0 0.0
      %1159 = vmatpush1.msra.mxu0 0.0
      %1160 = vmatprep.subr.mxu0 0.0
      %1161 = vmatpush1.msra.mxu0 0.0
      %1162 = vmatprep.subr.mxu0 0.0
      %1163 = vmatpush1.msra.mxu0 0.0
      %1164 = vmatprep.subr.mxu0 0.0
      %1165 = vmatpush1.msra.mxu0 0.0
      %1166 = vmatprep.subr.mxu0 0.0
      %1167 = vmatpush1.msra.mxu0 0.0
      %1168 = vmatprep.subr.mxu0 0.0
      %1169 = vmatpush1.msra.mxu0 0.0
      %1170 = vmatprep.subr.mxu0 0.0
      %1171 = vmatpush1.msra.mxu0 0.0
      %1172 = vmatprep.subr.mxu0 0.0
      %1173 = vmatpush1.msra.mxu0 0.0
      %1174 = vmatprep.subr.mxu0 0.0
      %1175 = vmatpush1.msra.mxu0 0.0
      %1176 = vmatprep.subr.mxu0 0.0
      %1177 = vmatpush1.msra.mxu0 0.0
      %1178 = vmatprep.subr.mxu0 0.0
      %1179 = vmatpush1.msra.mxu0 0.0
      %1180 = vmatprep.subr.mxu0 0.0
      %1181 = vmatpush1.msra.mxu0 0.0
      %1182 = vmatprep.subr.mxu0 0.0
      %1183 = vmatpush1.msra.mxu0 0.0
      %1184 = vmatprep.subr.mxu0 0.0
      %1185 = vmatpush1.msra.mxu0 0.0
      %1186 = vmatprep.subr.mxu0 0.0
      %1187 = vmatpush1.msra.mxu0 0.0
      %1188 = vmatprep.subr.mxu0 0.0
      %1189 = vmatpush1.msra.mxu0 0.0
      %1190 = vmatprep.subr.mxu0 0.0
      %1191 = vmatpush1.msra.mxu0 0.0
      %1192 = vmatprep.mubr.f32.mxu0 0.0
      %1193 = vmatmul.mubr.f32.gmra.mrb[0].mxu0 %v1081
      %v1194 = vpop.f32.mrb[0].mxu0
      %v1195 = vadd.f32 0.0, %v1194
      %v1196 = vpop.f32.mrb[0].mxu0
      %1197 = vmatprep.mubr.f32.mxu0 0.0
      %1198 = vmatmul.mubr.f32.gmra.mrb[0].mxu0 %v1084
      %v1199 = vpop.f32.mrb[0].mxu0
      %v1200 = vadd.f32 0.0, %v1199
      %v1201 = vpop.f32.mrb[0].mxu0
      %1202 = vmatprep.mubr.f32.mxu0 0.0
      %1203 = vmatmul.mubr.f32.gmra.mrb[0].mxu0 %v1087
      %v1204 = vpop.f32.mrb[0].mxu0
      %v1205 = vadd.f32 0.0, %v1204
      %v1206 = vpop.f32.mrb[0].mxu0
      %1207 = vmatprep.mubr.f32.mxu0 0.0
      %1208 = vmatmul.mubr.f32.gmra.mrb[0].mxu0 %v1090
      %v1209 = vpop.f32.mrb[0].mxu0
      %v1210 = vadd.f32 0.0, %v1209
      %v1211 = vpop.f32.mrb[0].mxu0
      %1212 = vmatprep.mubr.f32.mxu0 0.0
      %1213 = vmatmul.mubr.f32.gmra.mrb[0].mxu0 %v1093
      %v1214 = vpop.f32.mrb[0].mxu0
      %v1215 = vadd.f32 0.0, %v1214
      %v1216 = vpop.f32.mrb[0].mxu0
      %1217 = vmatprep.mubr.f32.mxu0 0.0
      %1218 = vmatmul.mubr.f32.gmra.mrb[0].mxu0 %v1096
      %v1219 = vpop.f32.mrb[0].mxu0
      %v1220 = vadd.f32 0.0, %v1219
      %v1221 = vpop.f32.mrb[0].mxu0
      %1222 = vmatprep.mubr.f32.mxu0 0.0
      %1223 = vmatmul.mubr.f32.gmra.mrb[0].mxu0 %v1099
      %v1224 = vpop.f32.mrb[0].mxu0
      %v1225 = vadd.f32 0.0, %v1224
      %v1226 = vpop.f32.mrb[0].mxu0
      %1227 = vmatprep.mubr.f32.mxu0 0.0
      %1228 = vmatmul.mubr.f32.gmra.mrb[0].mxu0 %v1102
      %v1229 = vpop.f32.mrb[0].mxu0
      %v1230 = vadd.f32 0.0, %v1229
      %v1231 = vpop.f32.mrb[0].mxu0
      %1232 = vmatprep.mubr.f32.mxu0 0.0
      %1233 = vmatmul.mubr.f32.gmra.mrb[0].mxu0 %v1105
      %v1234 = vpop.f32.mrb[0].mxu0
      %v1235 = vadd.f32 0.0, %v1234
      %v1236 = vpop.f32.mrb[0].mxu0
      %1237 = vmatprep.mubr.f32.mxu0 0.0
      %1238 = vmatmul.mubr.f32.gmra.mrb[0].mxu0 %v1108
      %v1239 = vpop.f32.mrb[0].mxu0
      %v1240 = vadd.f32 0.0, %v1239
      %v1241 = vpop.f32.mrb[0].mxu0
      %1242 = vmatprep.mubr.f32.mxu0 0.0
      %1243 = vmatmul.mubr.f32.gmra.mrb[0].mxu0 %v1111
      %v1244 = vpop.f32.mrb[0].mxu0
      %v1245 = vadd.f32 0.0, %v1244
      %v1246 = vpop.f32.mrb[0].mxu0
      %1247 = vmatprep.mubr.f32.mxu0 0.0
      %1248 = vmatmul.mubr.f32.gmra.mrb[0].mxu0 %v1114
      %v1249 = vpop.f32.mrb[0].mxu0
      %v1250 = vadd.f32 0.0, %v1249
      %v1251 = vpop.f32.mrb[0].mxu0
      %1252 = vmatprep.mubr.f32.mxu0 0.0
      %1253 = vmatmul.mubr.f32.gmra.mrb[0].mxu0 %v1117
      %v1254 = vpop.f32.mrb[0].mxu0
      %v1255 = vadd.f32 0.0, %v1254
      %v1256 = vpop.f32.mrb[0].mxu0
      %1257 = vmatprep.mubr.f32.mxu0 0.0
      %1258 = vmatmul.mubr.f32.gmra.mrb[0].mxu0 %v1120
      %v1259 = vpop.f32.mrb[0].mxu0
      %v1260 = vadd.f32 0.0, %v1259
      %v1261 = vpop.f32.mrb[0].mxu0
      %1262 = vmatprep.mubr.f32.mxu0 0.0
      %1263 = vmatmul.mubr.f32.gmra.mrb[0].mxu0 %v1123
      %v1264 = vpop.f32.mrb[0].mxu0
      %v1265 = vadd.f32 0.0, %v1264
      %v1266 = vpop.f32.mrb[0].mxu0
      %1267 = vmatprep.mubr.f32.mxu0 0.0
      %1268 = vmatmul.mubr.f32.gmra.mrb[0].mxu0 %v1126
      %v1269 = vpop.f32.mrb[0].mxu0
      %v1270 = vadd.f32 0.0, %v1269
      %v1271 = vpop.f32.mrb[0].mxu0
      %1272 = vdwg.mxu0
      %v1273 = vadd.f32 %v1030, %v1195
      %v1274 = vadd.f32 %v1031, %v1200
      %v1275 = vadd.f32 %v1032, %v1205
      %v1276 = vadd.f32 %v1033, %v1210
      %v1277 = vadd.f32 %v1034, %v1215
      %v1278 = vadd.f32 %v1035, %v1220
      %v1279 = vadd.f32 %v1036, %v1225
      %v1280 = vadd.f32 %v1037, %v1230
      %v1281 = vadd.f32 %v1038, %v1235
      %v1282 = vadd.f32 %v1039, %v1240
      %v1283 = vadd.f32 %v1040, %v1245
      %v1284 = vadd.f32 %v1041, %v1250
      %v1285 = vadd.f32 %v1042, %v1255
      %v1286 = vadd.f32 %v1043, %v1260
      %v1287 = vadd.f32 %v1044, %v1265
      %v1288 = vadd.f32 %v1045, %v1270
      %v1289 = vld [vmem:[%s187] sm:$0xff]
      %v1290 = vld [vmem:[%s187 + $0x8] sm:$0xff]
      %v1291 = vld [vmem:[%s187 + $0x10] sm:$0xff]
      %v1292 = vld [vmem:[%s187 + $0x18] sm:$0xff]
      %v1293 = vld [vmem:[%s187 + $0x20] sm:$0xff]
      %v1294 = vld [vmem:[%s187 + $0x28] sm:$0xff]
      %v1295 = vld [vmem:[%s187 + $0x30] sm:$0xff]
      %v1296 = vld [vmem:[%s187 + $0x38] sm:$0xff]
      %v1297 = vld [vmem:[%s187 + $0x40] sm:$0xff]
      %v1298 = vld [vmem:[%s187 + $0x48] sm:$0xff]
      %v1299 = vld [vmem:[%s187 + $0x50] sm:$0xff]
      %v1300 = vld [vmem:[%s187 + $0x58] sm:$0xff]
      %v1301 = vld [vmem:[%s187 + $0x60] sm:$0xff]
      %v1302 = vld [vmem:[%s187 + $0x68] sm:$0xff]
      %v1303 = vld [vmem:[%s187 + $0x70] sm:$0xff]
      %v1304 = vld [vmem:[%s187 + $0x78] sm:$0xff]
      %s1305 = scalar_lea.vmem %s1, 32
      %v1306 = vld [vmem:[%s1305] sm:$0xff]
      %v1308 = vsel %vm188, %v1289, 0
      %v1311 = vsel %vm188, %v1290, 0
      %v1314 = vsel %vm188, %v1291, 0
      %v1317 = vsel %vm188, %v1292, 0
      %v1320 = vsel %vm188, %v1293, 0
      %v1323 = vsel %vm188, %v1294, 0
      %v1326 = vsel %vm188, %v1295, 0
      %v1329 = vsel %vm188, %v1296, 0
      %v1332 = vsel %vm188, %v1297, 0
      %v1335 = vsel %vm188, %v1298, 0
      %v1338 = vsel %vm188, %v1299, 0
      %v1341 = vsel %vm188, %v1300, 0
      %v1344 = vsel %vm188, %v1301, 0
      %v1347 = vsel %vm188, %v1302, 0
      %v1350 = vsel %vm188, %v1303, 0
      %v1353 = vsel %vm188, %v1304, 0
      %1355 = vmatprep.subr.mxu0 0.0
      %1356 = vmatpush1.msra.mxu0 %v1306
      %1357 = vmatprep.subr.mxu0 0.0
      %1358 = vmatpush1.msra.mxu0 0.0
      %1359 = vmatprep.subr.mxu0 0.0
      %1360 = vmatpush1.msra.mxu0 0.0
      %1361 = vmatprep.subr.mxu0 0.0
      %1362 = vmatpush1.msra.mxu0 0.0
      %1363 = vmatprep.subr.mxu0 0.0
      %1364 = vmatpush1.msra.mxu0 0.0
      %1365 = vmatprep.subr.mxu0 0.0
      %1366 = vmatpush1.msra.mxu0 0.0
      %1367 = vmatprep.subr.mxu0 0.0
      %1368 = vmatpush1.msra.mxu0 0.0
      %1369 = vmatprep.subr.mxu0 0.0
      %1370 = vmatpush1.msra.mxu0 0.0
      %1371 = vmatprep.subr.mxu0 0.0
      %1372 = vmatpush1.msra.mxu0 0.0
      %1373 = vmatprep.subr.mxu0 0.0
      %1374 = vmatpush1.msra.mxu0 0.0
      %1375 = vmatprep.subr.mxu0 0.0
      %1376 = vmatpush1.msra.mxu0 0.0
      %1377 = vmatprep.subr.mxu0 0.0
      %1378 = vmatpush1.msra.mxu0 0.0
      %1379 = vmatprep.subr.mxu0 0.0
      %1380 = vmatpush1.msra.mxu0 0.0
      %1381 = vmatprep.subr.mxu0 0.0
      %1382 = vmatpush1.msra.mxu0 0.0
      %1383 = vmatprep.subr.mxu0 0.0
      %1384 = vmatpush1.msra.mxu0 0.0
      %1385 = vmatprep.subr.mxu0 0.0
      %1386 = vmatpush1.msra.mxu0 0.0
      %1387 = vmatprep.subr.mxu0 0.0
      %1388 = vmatpush1.msra.mxu0 0.0
      %1389 = vmatprep.subr.mxu0 0.0
      %1390 = vmatpush1.msra.mxu0 0.0
      %1391 = vmatprep.subr.mxu0 0.0
      %1392 = vmatpush1.msra.mxu0 0.0
      %1393 = vmatprep.subr.mxu0 0.0
      %1394 = vmatpush1.msra.mxu0 0.0
      %1395 = vmatprep.subr.mxu0 0.0
      %1396 = vmatpush1.msra.mxu0 0.0
      %1397 = vmatprep.subr.mxu0 0.0
      %1398 = vmatpush1.msra.mxu0 0.0
      %1399 = vmatprep.subr.mxu0 0.0
      %1400 = vmatpush1.msra.mxu0 0.0
      %1401 = vmatprep.subr.mxu0 0.0
      %1402 = vmatpush1.msra.mxu0 0.0
      %1403 = vmatprep.subr.mxu0 0.0
      %1404 = vmatpush1.msra.mxu0 0.0
      %1405 = vmatprep.subr.mxu0 0.0
      %1406 = vmatpush1.msra.mxu0 0.0
      %1407 = vmatprep.subr.mxu0 0.0
      %1408 = vmatpush1.msra.mxu0 0.0
      %1409 = vmatprep.subr.mxu0 0.0
      %1410 = vmatpush1.msra.mxu0 0.0
      %1411 = vmatprep.subr.mxu0 0.0
      %1412 = vmatpush1.msra.mxu0 0.0
      %1413 = vmatprep.subr.mxu0 0.0
      %1414 = vmatpush1.msra.mxu0 0.0
      %1415 = vmatprep.subr.mxu0 0.0
      %1416 = vmatpush1.msra.mxu0 0.0
      %1417 = vmatprep.subr.mxu0 0.0
      %1418 = vmatpush1.msra.mxu0 0.0
      %1419 = vmatprep.mubr.f32.mxu0 0.0
      %1420 = vmatmul.mubr.f32.gmra.mrb[0].mxu0 %v1308
      %v1421 = vpop.f32.mrb[0].mxu0
      %v1422 = vadd.f32 0.0, %v1421
      %v1423 = vpop.f32.mrb[0].mxu0
      %1424 = vmatprep.mubr.f32.mxu0 0.0
      %1425 = vmatmul.mubr.f32.gmra.mrb[0].mxu0 %v1311
      %v1426 = vpop.f32.mrb[0].mxu0
      %v1427 = vadd.f32 0.0, %v1426
      %v1428 = vpop.f32.mrb[0].mxu0
      %1429 = vmatprep.mubr.f32.mxu0 0.0
      %1430 = vmatmul.mubr.f32.gmra.mrb[0].mxu0 %v1314
      %v1431 = vpop.f32.mrb[0].mxu0
      %v1432 = vadd.f32 0.0, %v1431
      %v1433 = vpop.f32.mrb[0].mxu0
      %1434 = vmatprep.mubr.f32.mxu0 0.0
      %1435 = vmatmul.mubr.f32.gmra.mrb[0].mxu0 %v1317
      %v1436 = vpop.f32.mrb[0].mxu0
      %v1437 = vadd.f32 0.0, %v1436
      %v1438 = vpop.f32.mrb[0].mxu0
      %1439 = vmatprep.mubr.f32.mxu0 0.0
      %1440 = vmatmul.mubr.f32.gmra.mrb[0].mxu0 %v1320
      %v1441 = vpop.f32.mrb[0].mxu0
      %v1442 = vadd.f32 0.0, %v1441
      %v1443 = vpop.f32.mrb[0].mxu0
      %1444 = vmatprep.mubr.f32.mxu0 0.0
      %1445 = vmatmul.mubr.f32.gmra.mrb[0].mxu0 %v1323
      %v1446 = vpop.f32.mrb[0].mxu0
      %v1447 = vadd.f32 0.0, %v1446
      %v1448 = vpop.f32.mrb[0].mxu0
      %1449 = vmatprep.mubr.f32.mxu0 0.0
      %1450 = vmatmul.mubr.f32.gmra.mrb[0].mxu0 %v1326
      %v1451 = vpop.f32.mrb[0].mxu0
      %v1452 = vadd.f32 0.0, %v1451
      %v1453 = vpop.f32.mrb[0].mxu0
      %1454 = vmatprep.mubr.f32.mxu0 0.0
      %1455 = vmatmul.mubr.f32.gmra.mrb[0].mxu0 %v1329
      %v1456 = vpop.f32.mrb[0].mxu0
      %v1457 = vadd.f32 0.0, %v1456
      %v1458 = vpop.f32.mrb[0].mxu0
      %1459 = vmatprep.mubr.f32.mxu0 0.0
      %1460 = vmatmul.mubr.f32.gmra.mrb[0].mxu0 %v1332
      %v1461 = vpop.f32.mrb[0].mxu0
      %v1462 = vadd.f32 0.0, %v1461
      %v1463 = vpop.f32.mrb[0].mxu0
      %1464 = vmatprep.mubr.f32.mxu0 0.0
      %1465 = vmatmul.mubr.f32.gmra.mrb[0].mxu0 %v1335
      %v1466 = vpop.f32.mrb[0].mxu0
      %v1467 = vadd.f32 0.0, %v1466
      %v1468 = vpop.f32.mrb[0].mxu0
      %1469 = vmatprep.mubr.f32.mxu0 0.0
      %1470 = vmatmul.mubr.f32.gmra.mrb[0].mxu0 %v1338
      %v1471 = vpop.f32.mrb[0].mxu0
      %v1472 = vadd.f32 0.0, %v1471
      %v1473 = vpop.f32.mrb[0].mxu0
      %1474 = vmatprep.mubr.f32.mxu0 0.0
      %1475 = vmatmul.mubr.f32.gmra.mrb[0].mxu0 %v1341
      %v1476 = vpop.f32.mrb[0].mxu0
      %v1477 = vadd.f32 0.0, %v1476
      %v1478 = vpop.f32.mrb[0].mxu0
      %1479 = vmatprep.mubr.f32.mxu0 0.0
      %1480 = vmatmul.mubr.f32.gmra.mrb[0].mxu0 %v1344
      %v1481 = vpop.f32.mrb[0].mxu0
      %v1482 = vadd.f32 0.0, %v1481
      %v1483 = vpop.f32.mrb[0].mxu0
      %1484 = vmatprep.mubr.f32.mxu0 0.0
      %1485 = vmatmul.mubr.f32.gmra.mrb[0].mxu0 %v1347
      %v1486 = vpop.f32.mrb[0].mxu0
      %v1487 = vadd.f32 0.0, %v1486
      %v1488 = vpop.f32.mrb[0].mxu0
      %1489 = vmatprep.mubr.f32.mxu0 0.0
      %1490 = vmatmul.mubr.f32.gmra.mrb[0].mxu0 %v1350
      %v1491 = vpop.f32.mrb[0].mxu0
      %v1492 = vadd.f32 0.0, %v1491
      %v1493 = vpop.f32.mrb[0].mxu0
      %1494 = vmatprep.mubr.f32.mxu0 0.0
      %1495 = vmatmul.mubr.f32.gmra.mrb[0].mxu0 %v1353
      %v1496 = vpop.f32.mrb[0].mxu0
      %v1497 = vadd.f32 0.0, %v1496
      %v1498 = vpop.f32.mrb[0].mxu0
      %1499 = vdwg.mxu0
      %v1500 = vadd.f32 %v1273, %v1422
      %v1501 = vadd.f32 %v1274, %v1427
      %v1502 = vadd.f32 %v1275, %v1432
      %v1503 = vadd.f32 %v1276, %v1437
      %v1504 = vadd.f32 %v1277, %v1442
      %v1505 = vadd.f32 %v1278, %v1447
      %v1506 = vadd.f32 %v1279, %v1452
      %v1507 = vadd.f32 %v1280, %v1457
      %v1508 = vadd.f32 %v1281, %v1462
      %v1509 = vadd.f32 %v1282, %v1467
      %v1510 = vadd.f32 %v1283, %v1472
      %v1511 = vadd.f32 %v1284, %v1477
      %v1512 = vadd.f32 %v1285, %v1482
      %v1513 = vadd.f32 %v1286, %v1487
      %v1514 = vadd.f32 %v1287, %v1492
      %v1515 = vadd.f32 %v1288, %v1497
      %v1516 = vld [vmem:[%s223] sm:$0xff]
      %v1517 = vld [vmem:[%s223 + $0x8] sm:$0xff]
      %v1518 = vld [vmem:[%s223 + $0x10] sm:$0xff]
      %v1519 = vld [vmem:[%s223 + $0x18] sm:$0xff]
      %v1520 = vld [vmem:[%s223 + $0x20] sm:$0xff]
      %v1521 = vld [vmem:[%s223 + $0x28] sm:$0xff]
      %v1522 = vld [vmem:[%s223 + $0x30] sm:$0xff]
      %v1523 = vld [vmem:[%s223 + $0x38] sm:$0xff]
      %v1524 = vld [vmem:[%s223 + $0x40] sm:$0xff]
      %v1525 = vld [vmem:[%s223 + $0x48] sm:$0xff]
      %v1526 = vld [vmem:[%s223 + $0x50] sm:$0xff]
      %v1527 = vld [vmem:[%s223 + $0x58] sm:$0xff]
      %v1528 = vld [vmem:[%s223 + $0x60] sm:$0xff]
      %v1529 = vld [vmem:[%s223 + $0x68] sm:$0xff]
      %v1530 = vld [vmem:[%s223 + $0x70] sm:$0xff]
      %v1531 = vld [vmem:[%s223 + $0x78] sm:$0xff]
      %v1532 = vsel %vm314, %v1516, 0.0
      %v1533 = vsel %vm315, %v1517, 0.0
      %v1534 = vsel %vm314, %v1518, 0.0
      %v1535 = vsel %vm315, %v1519, 0.0
      %v1536 = vsel %vm314, %v1520, 0.0
      %v1537 = vsel %vm315, %v1521, 0.0
      %v1538 = vsel %vm314, %v1522, 0.0
      %v1539 = vsel %vm315, %v1523, 0.0
      %v1540 = vsel %vm314, %v1524, 0.0
      %v1541 = vsel %vm315, %v1525, 0.0
      %v1542 = vsel %vm314, %v1526, 0.0
      %v1543 = vsel %vm315, %v1527, 0.0
      %v1544 = vsel %vm314, %v1528, 0.0
      %v1545 = vsel %vm315, %v1529, 0.0
      %v1546 = vsel %vm314, %v1530, 0.0
      %v1547 = vsel %vm315, %v1531, 0.0
      %s1548 = scalar_lea.vmem %s1, 40
      %v1549 = vld [vmem:[%s1548] sm:$0xff]
      %v1551 = vsel %vm188, %v1532, 0
      %v1554 = vsel %vm188, %v1533, 0
      %v1557 = vsel %vm188, %v1534, 0
      %v1560 = vsel %vm188, %v1535, 0
      %v1563 = vsel %vm188, %v1536, 0
      %v1566 = vsel %vm188, %v1537, 0
      %v1569 = vsel %vm188, %v1538, 0
      %v1572 = vsel %vm188, %v1539, 0
      %v1575 = vsel %vm188, %v1540, 0
      %v1578 = vsel %vm188, %v1541, 0
      %v1581 = vsel %vm188, %v1542, 0
      %v1584 = vsel %vm188, %v1543, 0
      %v1587 = vsel %vm188, %v1544, 0
      %v1590 = vsel %vm188, %v1545, 0
      %v1593 = vsel %vm188, %v1546, 0
      %v1596 = vsel %vm188, %v1547, 0
      %1598 = vmatprep.subr.mxu0 0.0
      %1599 = vmatpush1.msra.mxu0 %v1549
      %1600 = vmatprep.subr.mxu0 0.0
      %1601 = vmatpush1.msra.mxu0 0.0
      %1602 = vmatprep.subr.mxu0 0.0
      %1603 = vmatpush1.msra.mxu0 0.0
      %1604 = vmatprep.subr.mxu0 0.0
      %1605 = vmatpush1.msra.mxu0 0.0
      %1606 = vmatprep.subr.mxu0 0.0
      %1607 = vmatpush1.msra.mxu0 0.0
      %1608 = vmatprep.subr.mxu0 0.0
      %1609 = vmatpush1.msra.mxu0 0.0
      %1610 = vmatprep.subr.mxu0 0.0
      %1611 = vmatpush1.msra.mxu0 0.0
      %1612 = vmatprep.subr.mxu0 0.0
      %1613 = vmatpush1.msra.mxu0 0.0
      %1614 = vmatprep.subr.mxu0 0.0
      %1615 = vmatpush1.msra.mxu0 0.0
      %1616 = vmatprep.subr.mxu0 0.0
      %1617 = vmatpush1.msra.mxu0 0.0
      %1618 = vmatprep.subr.mxu0 0.0
      %1619 = vmatpush1.msra.mxu0 0.0
      %1620 = vmatprep.subr.mxu0 0.0
      %1621 = vmatpush1.msra.mxu0 0.0
      %1622 = vmatprep.subr.mxu0 0.0
      %1623 = vmatpush1.msra.mxu0 0.0
      %1624 = vmatprep.subr.mxu0 0.0
      %1625 = vmatpush1.msra.mxu0 0.0
      %1626 = vmatprep.subr.mxu0 0.0
      %1627 = vmatpush1.msra.mxu0 0.0
      %1628 = vmatprep.subr.mxu0 0.0
      %1629 = vmatpush1.msra.mxu0 0.0
      %1630 = vmatprep.subr.mxu0 0.0
      %1631 = vmatpush1.msra.mxu0 0.0
      %1632 = vmatprep.subr.mxu0 0.0
      %1633 = vmatpush1.msra.mxu0 0.0
      %1634 = vmatprep.subr.mxu0 0.0
      %1635 = vmatpush1.msra.mxu0 0.0
      %1636 = vmatprep.subr.mxu0 0.0
      %1637 = vmatpush1.msra.mxu0 0.0
      %1638 = vmatprep.subr.mxu0 0.0
      %1639 = vmatpush1.msra.mxu0 0.0
      %1640 = vmatprep.subr.mxu0 0.0
      %1641 = vmatpush1.msra.mxu0 0.0
      %1642 = vmatprep.subr.mxu0 0.0
      %1643 = vmatpush1.msra.mxu0 0.0
      %1644 = vmatprep.subr.mxu0 0.0
      %1645 = vmatpush1.msra.mxu0 0.0
      %1646 = vmatprep.subr.mxu0 0.0
      %1647 = vmatpush1.msra.mxu0 0.0
      %1648 = vmatprep.subr.mxu0 0.0
      %1649 = vmatpush1.msra.mxu0 0.0
      %1650 = vmatprep.subr.mxu0 0.0
      %1651 = vmatpush1.msra.mxu0 0.0
      %1652 = vmatprep.subr.mxu0 0.0
      %1653 = vmatpush1.msra.mxu0 0.0
      %1654 = vmatprep.subr.mxu0 0.0
      %1655 = vmatpush1.msra.mxu0 0.0
      %1656 = vmatprep.subr.mxu0 0.0
      %1657 = vmatpush1.msra.mxu0 0.0
      %1658 = vmatprep.subr.mxu0 0.0
      %1659 = vmatpush1.msra.mxu0 0.0
      %1660 = vmatprep.subr.mxu0 0.0
      %1661 = vmatpush1.msra.mxu0 0.0
      %1662 = vmatprep.mubr.f32.mxu0 0.0
      %1663 = vmatmul.mubr.f32.gmra.mrb[0].mxu0 %v1551
      %v1664 = vpop.f32.mrb[0].mxu0
      %v1665 = vadd.f32 0.0, %v1664
      %v1666 = vpop.f32.mrb[0].mxu0
      %1667 = vmatprep.mubr.f32.mxu0 0.0
      %1668 = vmatmul.mubr.f32.gmra.mrb[0].mxu0 %v1554
      %v1669 = vpop.f32.mrb[0].mxu0
      %v1670 = vadd.f32 0.0, %v1669
      %v1671 = vpop.f32.mrb[0].mxu0
      %1672 = vmatprep.mubr.f32.mxu0 0.0
      %1673 = vmatmul.mubr.f32.gmra.mrb[0].mxu0 %v1557
      %v1674 = vpop.f32.mrb[0].mxu0
      %v1675 = vadd.f32 0.0, %v1674
      %v1676 = vpop.f32.mrb[0].mxu0
      %1677 = vmatprep.mubr.f32.mxu0 0.0
      %1678 = vmatmul.mubr.f32.gmra.mrb[0].mxu0 %v1560
      %v1679 = vpop.f32.mrb[0].mxu0
      %v1680 = vadd.f32 0.0, %v1679
      %v1681 = vpop.f32.mrb[0].mxu0
      %1682 = vmatprep.mubr.f32.mxu0 0.0
      %1683 = vmatmul.mubr.f32.gmra.mrb[0].mxu0 %v1563
      %v1684 = vpop.f32.mrb[0].mxu0
      %v1685 = vadd.f32 0.0, %v1684
      %v1686 = vpop.f32.mrb[0].mxu0
      %1687 = vmatprep.mubr.f32.mxu0 0.0
      %1688 = vmatmul.mubr.f32.gmra.mrb[0].mxu0 %v1566
      %v1689 = vpop.f32.mrb[0].mxu0
      %v1690 = vadd.f32 0.0, %v1689
      %v1691 = vpop.f32.mrb[0].mxu0
      %1692 = vmatprep.mubr.f32.mxu0 0.0
      %1693 = vmatmul.mubr.f32.gmra.mrb[0].mxu0 %v1569
      %v1694 = vpop.f32.mrb[0].mxu0
      %v1695 = vadd.f32 0.0, %v1694
      %v1696 = vpop.f32.mrb[0].mxu0
      %1697 = vmatprep.mubr.f32.mxu0 0.0
      %1698 = vmatmul.mubr.f32.gmra.mrb[0].mxu0 %v1572
      %v1699 = vpop.f32.mrb[0].mxu0
      %v1700 = vadd.f32 0.0, %v1699
      %v1701 = vpop.f32.mrb[0].mxu0
      %1702 = vmatprep.mubr.f32.mxu0 0.0
      %1703 = vmatmul.mubr.f32.gmra.mrb[0].mxu0 %v1575
      %v1704 = vpop.f32.mrb[0].mxu0
      %v1705 = vadd.f32 0.0, %v1704
      %v1706 = vpop.f32.mrb[0].mxu0
      %1707 = vmatprep.mubr.f32.mxu0 0.0
      %1708 = vmatmul.mubr.f32.gmra.mrb[0].mxu0 %v1578
      %v1709 = vpop.f32.mrb[0].mxu0
      %v1710 = vadd.f32 0.0, %v1709
      %v1711 = vpop.f32.mrb[0].mxu0
      %1712 = vmatprep.mubr.f32.mxu0 0.0
      %1713 = vmatmul.mubr.f32.gmra.mrb[0].mxu0 %v1581
      %v1714 = vpop.f32.mrb[0].mxu0
      %v1715 = vadd.f32 0.0, %v1714
      %v1716 = vpop.f32.mrb[0].mxu0
      %1717 = vmatprep.mubr.f32.mxu0 0.0
      %1718 = vmatmul.mubr.f32.gmra.mrb[0].mxu0 %v1584
      %v1719 = vpop.f32.mrb[0].mxu0
      %v1720 = vadd.f32 0.0, %v1719
      %v1721 = vpop.f32.mrb[0].mxu0
      %1722 = vmatprep.mubr.f32.mxu0 0.0
      %1723 = vmatmul.mubr.f32.gmra.mrb[0].mxu0 %v1587
      %v1724 = vpop.f32.mrb[0].mxu0
      %v1725 = vadd.f32 0.0, %v1724
      %v1726 = vpop.f32.mrb[0].mxu0
      %1727 = vmatprep.mubr.f32.mxu0 0.0
      %1728 = vmatmul.mubr.f32.gmra.mrb[0].mxu0 %v1590
      %v1729 = vpop.f32.mrb[0].mxu0
      %v1730 = vadd.f32 0.0, %v1729
      %v1731 = vpop.f32.mrb[0].mxu0
      %1732 = vmatprep.mubr.f32.mxu0 0.0
      %1733 = vmatmul.mubr.f32.gmra.mrb[0].mxu0 %v1593
      %v1734 = vpop.f32.mrb[0].mxu0
      %v1735 = vadd.f32 0.0, %v1734
      %v1736 = vpop.f32.mrb[0].mxu0
      %1737 = vmatprep.mubr.f32.mxu0 0.0
      %1738 = vmatmul.mubr.f32.gmra.mrb[0].mxu0 %v1596
      %v1739 = vpop.f32.mrb[0].mxu0
      %v1740 = vadd.f32 0.0, %v1739
      %v1741 = vpop.f32.mrb[0].mxu0
      %1742 = vdwg.mxu0
      %v1743 = vadd.f32 %v1500, %v1665
      %v1744 = vadd.f32 %v1501, %v1670
      %v1745 = vadd.f32 %v1502, %v1675
      %v1746 = vadd.f32 %v1503, %v1680
      %v1747 = vadd.f32 %v1504, %v1685
      %v1748 = vadd.f32 %v1505, %v1690
      %v1749 = vadd.f32 %v1506, %v1695
      %v1750 = vadd.f32 %v1507, %v1700
      %v1751 = vadd.f32 %v1508, %v1705
      %v1752 = vadd.f32 %v1509, %v1710
      %v1753 = vadd.f32 %v1510, %v1715
      %v1754 = vadd.f32 %v1511, %v1720
      %v1755 = vadd.f32 %v1512, %v1725
      %v1756 = vadd.f32 %v1513, %v1730
      %v1757 = vadd.f32 %v1514, %v1735
      %v1758 = vadd.f32 %v1515, %v1740
      %s1759 = scalar_lea.vmem [#allocation2], 32
      %v1760 = vld [vmem:[%s1759] sm:$0xff]
      %v1761 = vld [vmem:[%s1759 + $0x8] sm:$0xff]
      %v1762 = vld [vmem:[%s1759 + $0x10] sm:$0xff]
      %v1763 = vld [vmem:[%s1759 + $0x18] sm:$0xff]
      %v1764 = vld [vmem:[%s1759 + $0x20] sm:$0xff]
      %v1765 = vld [vmem:[%s1759 + $0x28] sm:$0xff]
      %v1766 = vld [vmem:[%s1759 + $0x30] sm:$0xff]
      %v1767 = vld [vmem:[%s1759 + $0x38] sm:$0xff]
      %v1768 = vld [vmem:[%s1759 + $0x40] sm:$0xff]
      %v1769 = vld [vmem:[%s1759 + $0x48] sm:$0xff]
      %v1770 = vld [vmem:[%s1759 + $0x50] sm:$0xff]
      %v1771 = vld [vmem:[%s1759 + $0x58] sm:$0xff]
      %v1772 = vld [vmem:[%s1759 + $0x60] sm:$0xff]
      %v1773 = vld [vmem:[%s1759 + $0x68] sm:$0xff]
      %v1774 = vld [vmem:[%s1759 + $0x70] sm:$0xff]
      %v1775 = vld [vmem:[%s1759 + $0x78] sm:$0xff]
      %v1776 = vsel %vm312, %v1760, 0.0
      %v1777 = vsel %vm313, %v1761, 0.0
      %v1778 = vsel %vm312, %v1762, 0.0
      %v1779 = vsel %vm313, %v1763, 0.0
      %v1780 = vsel %vm312, %v1764, 0.0
      %v1781 = vsel %vm313, %v1765, 0.0
      %v1782 = vsel %vm312, %v1766, 0.0
      %v1783 = vsel %vm313, %v1767, 0.0
      %v1784 = vsel %vm312, %v1768, 0.0
      %v1785 = vsel %vm313, %v1769, 0.0
      %v1786 = vsel %vm312, %v1770, 0.0
      %v1787 = vsel %vm313, %v1771, 0.0
      %v1788 = vsel %vm312, %v1772, 0.0
      %v1789 = vsel %vm313, %v1773, 0.0
      %v1790 = vsel %vm312, %v1774, 0.0
      %v1791 = vsel %vm313, %v1775, 0.0
      %s1792 = scalar_lea.vmem %s1, 48
      %v1793 = vld [vmem:[%s1792] sm:$0xff]
      %v1795 = vsel %vm188, %v1776, 0
      %v1798 = vsel %vm188, %v1777, 0
      %v1801 = vsel %vm188, %v1778, 0
      %v1804 = vsel %vm188, %v1779, 0
      %v1807 = vsel %vm188, %v1780, 0
      %v1810 = vsel %vm188, %v1781, 0
      %v1813 = vsel %vm188, %v1782, 0
      %v1816 = vsel %vm188, %v1783, 0
      %v1819 = vsel %vm188, %v1784, 0
      %v1822 = vsel %vm188, %v1785, 0
      %v1825 = vsel %vm188, %v1786, 0
      %v1828 = vsel %vm188, %v1787, 0
      %v1831 = vsel %vm188, %v1788, 0
      %v1834 = vsel %vm188, %v1789, 0
      %v1837 = vsel %vm188, %v1790, 0
      %v1840 = vsel %vm188, %v1791, 0
      %1842 = vmatprep.subr.mxu0 0.0
      %1843 = vmatpush1.msra.mxu0 %v1793
      %1844 = vmatprep.subr.mxu0 0.0
      %1845 = vmatpush1.msra.mxu0 0.0
      %1846 = vmatprep.subr.mxu0 0.0
      %1847 = vmatpush1.msra.mxu0 0.0
      %1848 = vmatprep.subr.mxu0 0.0
      %1849 = vmatpush1.msra.mxu0 0.0
      %1850 = vmatprep.subr.mxu0 0.0
      %1851 = vmatpush1.msra.mxu0 0.0
      %1852 = vmatprep.subr.mxu0 0.0
      %1853 = vmatpush1.msra.mxu0 0.0
      %1854 = vmatprep.subr.mxu0 0.0
      %1855 = vmatpush1.msra.mxu0 0.0
      %1856 = vmatprep.subr.mxu0 0.0
      %1857 = vmatpush1.msra.mxu0 0.0
      %1858 = vmatprep.subr.mxu0 0.0
      %1859 = vmatpush1.msra.mxu0 0.0
      %1860 = vmatprep.subr.mxu0 0.0
      %1861 = vmatpush1.msra.mxu0 0.0
      %1862 = vmatprep.subr.mxu0 0.0
      %1863 = vmatpush1.msra.mxu0 0.0
      %1864 = vmatprep.subr.mxu0 0.0
      %1865 = vmatpush1.msra.mxu0 0.0
      %1866 = vmatprep.subr.mxu0 0.0
      %1867 = vmatpush1.msra.mxu0 0.0
      %1868 = vmatprep.subr.mxu0 0.0
      %1869 = vmatpush1.msra.mxu0 0.0
      %1870 = vmatprep.subr.mxu0 0.0
      %1871 = vmatpush1.msra.mxu0 0.0
      %1872 = vmatprep.subr.mxu0 0.0
      %1873 = vmatpush1.msra.mxu0 0.0
      %1874 = vmatprep.subr.mxu0 0.0
      %1875 = vmatpush1.msra.mxu0 0.0
      %1876 = vmatprep.subr.mxu0 0.0
      %1877 = vmatpush1.msra.mxu0 0.0
      %1878 = vmatprep.subr.mxu0 0.0
      %1879 = vmatpush1.msra.mxu0 0.0
      %1880 = vmatprep.subr.mxu0 0.0
      %1881 = vmatpush1.msra.mxu0 0.0
      %1882 = vmatprep.subr.mxu0 0.0
      %1883 = vmatpush1.msra.mxu0 0.0
      %1884 = vmatprep.subr.mxu0 0.0
      %1885 = vmatpush1.msra.mxu0 0.0
      %1886 = vmatprep.subr.mxu0 0.0
      %1887 = vmatpush1.msra.mxu0 0.0
      %1888 = vmatprep.subr.mxu0 0.0
      %1889 = vmatpush1.msra.mxu0 0.0
      %1890 = vmatprep.subr.mxu0 0.0
      %1891 = vmatpush1.msra.mxu0 0.0
      %1892 = vmatprep.subr.mxu0 0.0
      %1893 = vmatpush1.msra.mxu0 0.0
      %1894 = vmatprep.subr.mxu0 0.0
      %1895 = vmatpush1.msra.mxu0 0.0
      %1896 = vmatprep.subr.mxu0 0.0
      %1897 = vmatpush1.msra.mxu0 0.0
      %1898 = vmatprep.subr.mxu0 0.0
      %1899 = vmatpush1.msra.mxu0 0.0
      %1900 = vmatprep.subr.mxu0 0.0
      %1901 = vmatpush1.msra.mxu0 0.0
      %1902 = vmatprep.subr.mxu0 0.0
      %1903 = vmatpush1.msra.mxu0 0.0
      %1904 = vmatprep.subr.mxu0 0.0
      %1905 = vmatpush1.msra.mxu0 0.0
      %1906 = vmatprep.mubr.f32.mxu0 0.0
      %1907 = vmatmul.mubr.f32.gmra.mrb[0].mxu0 %v1795
      %v1908 = vpop.f32.mrb[0].mxu0
      %v1909 = vadd.f32 0.0, %v1908
      %v1910 = vpop.f32.mrb[0].mxu0
      %1911 = vmatprep.mubr.f32.mxu0 0.0
      %1912 = vmatmul.mubr.f32.gmra.mrb[0].mxu0 %v1798
      %v1913 = vpop.f32.mrb[0].mxu0
      %v1914 = vadd.f32 0.0, %v1913
      %v1915 = vpop.f32.mrb[0].mxu0
      %1916 = vmatprep.mubr.f32.mxu0 0.0
      %1917 = vmatmul.mubr.f32.gmra.mrb[0].mxu0 %v1801
      %v1918 = vpop.f32.mrb[0].mxu0
      %v1919 = vadd.f32 0.0, %v1918
      %v1920 = vpop.f32.mrb[0].mxu0
      %1921 = vmatprep.mubr.f32.mxu0 0.0
      %1922 = vmatmul.mubr.f32.gmra.mrb[0].mxu0 %v1804
      %v1923 = vpop.f32.mrb[0].mxu0
      %v1924 = vadd.f32 0.0, %v1923
      %v1925 = vpop.f32.mrb[0].mxu0
      %1926 = vmatprep.mubr.f32.mxu0 0.0
      %1927 = vmatmul.mubr.f32.gmra.mrb[0].mxu0 %v1807
      %v1928 = vpop.f32.mrb[0].mxu0
      %v1929 = vadd.f32 0.0, %v1928
      %v1930 = vpop.f32.mrb[0].mxu0
      %1931 = vmatprep.mubr.f32.mxu0 0.0
      %1932 = vmatmul.mubr.f32.gmra.mrb[0].mxu0 %v1810
      %v1933 = vpop.f32.mrb[0].mxu0
      %v1934 = vadd.f32 0.0, %v1933
      %v1935 = vpop.f32.mrb[0].mxu0
      %1936 = vmatprep.mubr.f32.mxu0 0.0
      %1937 = vmatmul.mubr.f32.gmra.mrb[0].mxu0 %v1813
      %v1938 = vpop.f32.mrb[0].mxu0
      %v1939 = vadd.f32 0.0, %v1938
      %v1940 = vpop.f32.mrb[0].mxu0
      %1941 = vmatprep.mubr.f32.mxu0 0.0
      %1942 = vmatmul.mubr.f32.gmra.mrb[0].mxu0 %v1816
      %v1943 = vpop.f32.mrb[0].mxu0
      %v1944 = vadd.f32 0.0, %v1943
      %v1945 = vpop.f32.mrb[0].mxu0
      %1946 = vmatprep.mubr.f32.mxu0 0.0
      %1947 = vmatmul.mubr.f32.gmra.mrb[0].mxu0 %v1819
      %v1948 = vpop.f32.mrb[0].mxu0
      %v1949 = vadd.f32 0.0, %v1948
      %v1950 = vpop.f32.mrb[0].mxu0
      %1951 = vmatprep.mubr.f32.mxu0 0.0
      %1952 = vmatmul.mubr.f32.gmra.mrb[0].mxu0 %v1822
      %v1953 = vpop.f32.mrb[0].mxu0
      %v1954 = vadd.f32 0.0, %v1953
      %v1955 = vpop.f32.mrb[0].mxu0
      %1956 = vmatprep.mubr.f32.mxu0 0.0
      %1957 = vmatmul.mubr.f32.gmra.mrb[0].mxu0 %v1825
      %v1958 = vpop.f32.mrb[0].mxu0
      %v1959 = vadd.f32 0.0, %v1958
      %v1960 = vpop.f32.mrb[0].mxu0
      %1961 = vmatprep.mubr.f32.mxu0 0.0
      %1962 = vmatmul.mubr.f32.gmra.mrb[0].mxu0 %v1828
      %v1963 = vpop.f32.mrb[0].mxu0
      %v1964 = vadd.f32 0.0, %v1963
      %v1965 = vpop.f32.mrb[0].mxu0
      %1966 = vmatprep.mubr.f32.mxu0 0.0
      %1967 = vmatmul.mubr.f32.gmra.mrb[0].mxu0 %v1831
      %v1968 = vpop.f32.mrb[0].mxu0
      %v1969 = vadd.f32 0.0, %v1968
      %v1970 = vpop.f32.mrb[0].mxu0
      %1971 = vmatprep.mubr.f32.mxu0 0.0
      %1972 = vmatmul.mubr.f32.gmra.mrb[0].mxu0 %v1834
      %v1973 = vpop.f32.mrb[0].mxu0
      %v1974 = vadd.f32 0.0, %v1973
      %v1975 = vpop.f32.mrb[0].mxu0
      %1976 = vmatprep.mubr.f32.mxu0 0.0
      %1977 = vmatmul.mubr.f32.gmra.mrb[0].mxu0 %v1837
      %v1978 = vpop.f32.mrb[0].mxu0
      %v1979 = vadd.f32 0.0, %v1978
      %v1980 = vpop.f32.mrb[0].mxu0
      %1981 = vmatprep.mubr.f32.mxu0 0.0
      %1982 = vmatmul.mubr.f32.gmra.mrb[0].mxu0 %v1840
      %v1983 = vpop.f32.mrb[0].mxu0
      %v1984 = vadd.f32 0.0, %v1983
      %v1985 = vpop.f32.mrb[0].mxu0
      %1986 = vdwg.mxu0
      %v1987 = vadd.f32 %v1743, %v1909
      %v1988 = vadd.f32 %v1744, %v1914
      %v1989 = vadd.f32 %v1745, %v1919
      %v1990 = vadd.f32 %v1746, %v1924
      %v1991 = vadd.f32 %v1747, %v1929
      %v1992 = vadd.f32 %v1748, %v1934
      %v1993 = vadd.f32 %v1749, %v1939
      %v1994 = vadd.f32 %v1750, %v1944
      %v1995 = vadd.f32 %v1751, %v1949
      %v1996 = vadd.f32 %v1752, %v1954
      %v1997 = vadd.f32 %v1753, %v1959
      %v1998 = vadd.f32 %v1754, %v1964
      %v1999 = vadd.f32 %v1755, %v1969
      %v2000 = vadd.f32 %v1756, %v1974
      %v2001 = vadd.f32 %v1757, %v1979
      %v2002 = vadd.f32 %v1758, %v1984
      %s2003 = scalar_lea.vmem [#allocation2], 320
      %v2004 = vld [vmem:[%s2003] sm:$0xff]
      %v2005 = vld [vmem:[%s2003 + $0x8] sm:$0xff]
      %v2006 = vld [vmem:[%s2003 + $0x10] sm:$0xff]
      %v2007 = vld [vmem:[%s2003 + $0x18] sm:$0xff]
      %v2008 = vld [vmem:[%s2003 + $0x20] sm:$0xff]
      %v2009 = vld [vmem:[%s2003 + $0x28] sm:$0xff]
      %v2010 = vld [vmem:[%s2003 + $0x30] sm:$0xff]
      %v2011 = vld [vmem:[%s2003 + $0x38] sm:$0xff]
      %v2012 = vld [vmem:[%s2003 + $0x40] sm:$0xff]
      %v2013 = vld [vmem:[%s2003 + $0x48] sm:$0xff]
      %v2014 = vld [vmem:[%s2003 + $0x50] sm:$0xff]
      %v2015 = vld [vmem:[%s2003 + $0x58] sm:$0xff]
      %v2016 = vld [vmem:[%s2003 + $0x60] sm:$0xff]
      %v2017 = vld [vmem:[%s2003 + $0x68] sm:$0xff]
      %v2018 = vld [vmem:[%s2003 + $0x70] sm:$0xff]
      %v2019 = vld [vmem:[%s2003 + $0x78] sm:$0xff]
      %s2020 = scalar_lea.vmem %s1, 56
      %v2021 = vld [vmem:[%s2020] sm:$0xff]
      %v2023 = vsel %vm188, %v2004, 0
      %v2026 = vsel %vm188, %v2005, 0
      %v2029 = vsel %vm188, %v2006, 0
      %v2032 = vsel %vm188, %v2007, 0
      %v2035 = vsel %vm188, %v2008, 0
      %v2038 = vsel %vm188, %v2009, 0
      %v2041 = vsel %vm188, %v2010, 0
      %v2044 = vsel %vm188, %v2011, 0
      %v2047 = vsel %vm188, %v2012, 0
      %v2050 = vsel %vm188, %v2013, 0
      %v2053 = vsel %vm188, %v2014, 0
      %v2056 = vsel %vm188, %v2015, 0
      %v2059 = vsel %vm188, %v2016, 0
      %v2062 = vsel %vm188, %v2017, 0
      %v2065 = vsel %vm188, %v2018, 0
      %v2068 = vsel %vm188, %v2019, 0
      %2070 = vmatprep.subr.mxu0 0.0
      %2071 = vmatpush1.msra.mxu0 %v2021
      %2072 = vmatprep.subr.mxu0 0.0
      %2073 = vmatpush1.msra.mxu0 0.0
      %2074 = vmatprep.subr.mxu0 0.0
      %2075 = vmatpush1.msra.mxu0 0.0
      %2076 = vmatprep.subr.mxu0 0.0
      %2077 = vmatpush1.msra.mxu0 0.0
      %2078 = vmatprep.subr.mxu0 0.0
      %2079 = vmatpush1.msra.mxu0 0.0
      %2080 = vmatprep.subr.mxu0 0.0
      %2081 = vmatpush1.msra.mxu0 0.0
      %2082 = vmatprep.subr.mxu0 0.0
      %2083 = vmatpush1.msra.mxu0 0.0
      %2084 = vmatprep.subr.mxu0 0.0
      %2085 = vmatpush1.msra.mxu0 0.0
      %2086 = vmatprep.subr.mxu0 0.0
      %2087 = vmatpush1.msra.mxu0 0.0
      %2088 = vmatprep.subr.mxu0 0.0
      %2089 = vmatpush1.msra.mxu0 0.0
      %2090 = vmatprep.subr.mxu0 0.0
      %2091 = vmatpush1.msra.mxu0 0.0
      %2092 = vmatprep.subr.mxu0 0.0
      %2093 = vmatpush1.msra.mxu0 0.0
      %2094 = vmatprep.subr.mxu0 0.0
      %2095 = vmatpush1.msra.mxu0 0.0
      %2096 = vmatprep.subr.mxu0 0.0
      %2097 = vmatpush1.msra.mxu0 0.0
      %2098 = vmatprep.subr.mxu0 0.0
      %2099 = vmatpush1.msra.mxu0 0.0
      %2100 = vmatprep.subr.mxu0 0.0
      %2101 = vmatpush1.msra.mxu0 0.0
      %2102 = vmatprep.subr.mxu0 0.0
      %2103 = vmatpush1.msra.mxu0 0.0
      %2104 = vmatprep.subr.mxu0 0.0
      %2105 = vmatpush1.msra.mxu0 0.0
      %2106 = vmatprep.subr.mxu0 0.0
      %2107 = vmatpush1.msra.mxu0 0.0
      %2108 = vmatprep.subr.mxu0 0.0
      %2109 = vmatpush1.msra.mxu0 0.0
      %2110 = vmatprep.subr.mxu0 0.0
      %2111 = vmatpush1.msra.mxu0 0.0
      %2112 = vmatprep.subr.mxu0 0.0
      %2113 = vmatpush1.msra.mxu0 0.0
      %2114 = vmatprep.subr.mxu0 0.0
      %2115 = vmatpush1.msra.mxu0 0.0
      %2116 = vmatprep.subr.mxu0 0.0
      %2117 = vmatpush1.msra.mxu0 0.0
      %2118 = vmatprep.subr.mxu0 0.0
      %2119 = vmatpush1.msra.mxu0 0.0
      %2120 = vmatprep.subr.mxu0 0.0
      %2121 = vmatpush1.msra.mxu0 0.0
      %2122 = vmatprep.subr.mxu0 0.0
      %2123 = vmatpush1.msra.mxu0 0.0
      %2124 = vmatprep.subr.mxu0 0.0
      %2125 = vmatpush1.msra.mxu0 0.0
      %2126 = vmatprep.subr.mxu0 0.0
      %2127 = vmatpush1.msra.mxu0 0.0
      %2128 = vmatprep.subr.mxu0 0.0
      %2129 = vmatpush1.msra.mxu0 0.0
      %2130 = vmatprep.subr.mxu0 0.0
      %2131 = vmatpush1.msra.mxu0 0.0
      %2132 = vmatprep.subr.mxu0 0.0
      %2133 = vmatpush1.msra.mxu0 0.0
      %2134 = vmatprep.mubr.f32.mxu0 0.0
      %2135 = vmatmul.mubr.f32.gmra.mrb[0].mxu0 %v2023
      %v2136 = vpop.f32.mrb[0].mxu0
      %v2137 = vadd.f32 0.0, %v2136
      %v2138 = vpop.f32.mrb[0].mxu0
      %2139 = vmatprep.mubr.f32.mxu0 0.0
      %2140 = vmatmul.mubr.f32.gmra.mrb[0].mxu0 %v2026
      %v2141 = vpop.f32.mrb[0].mxu0
      %v2142 = vadd.f32 0.0, %v2141
      %v2143 = vpop.f32.mrb[0].mxu0
      %2144 = vmatprep.mubr.f32.mxu0 0.0
      %2145 = vmatmul.mubr.f32.gmra.mrb[0].mxu0 %v2029
      %v2146 = vpop.f32.mrb[0].mxu0
      %v2147 = vadd.f32 0.0, %v2146
      %v2148 = vpop.f32.mrb[0].mxu0
      %2149 = vmatprep.mubr.f32.mxu0 0.0
      %2150 = vmatmul.mubr.f32.gmra.mrb[0].mxu0 %v2032
      %v2151 = vpop.f32.mrb[0].mxu0
      %v2152 = vadd.f32 0.0, %v2151
      %v2153 = vpop.f32.mrb[0].mxu0
      %2154 = vmatprep.mubr.f32.mxu0 0.0
      %2155 = vmatmul.mubr.f32.gmra.mrb[0].mxu0 %v2035
      %v2156 = vpop.f32.mrb[0].mxu0
      %v2157 = vadd.f32 0.0, %v2156
      %v2158 = vpop.f32.mrb[0].mxu0
      %2159 = vmatprep.mubr.f32.mxu0 0.0
      %2160 = vmatmul.mubr.f32.gmra.mrb[0].mxu0 %v2038
      %v2161 = vpop.f32.mrb[0].mxu0
      %v2162 = vadd.f32 0.0, %v2161
      %v2163 = vpop.f32.mrb[0].mxu0
      %2164 = vmatprep.mubr.f32.mxu0 0.0
      %2165 = vmatmul.mubr.f32.gmra.mrb[0].mxu0 %v2041
      %v2166 = vpop.f32.mrb[0].mxu0
      %v2167 = vadd.f32 0.0, %v2166
      %v2168 = vpop.f32.mrb[0].mxu0
      %2169 = vmatprep.mubr.f32.mxu0 0.0
      %2170 = vmatmul.mubr.f32.gmra.mrb[0].mxu0 %v2044
      %v2171 = vpop.f32.mrb[0].mxu0
      %v2172 = vadd.f32 0.0, %v2171
      %v2173 = vpop.f32.mrb[0].mxu0
      %2174 = vmatprep.mubr.f32.mxu0 0.0
      %2175 = vmatmul.mubr.f32.gmra.mrb[0].mxu0 %v2047
      %v2176 = vpop.f32.mrb[0].mxu0
      %v2177 = vadd.f32 0.0, %v2176
      %v2178 = vpop.f32.mrb[0].mxu0
      %2179 = vmatprep.mubr.f32.mxu0 0.0
      %2180 = vmatmul.mubr.f32.gmra.mrb[0].mxu0 %v2050
      %v2181 = vpop.f32.mrb[0].mxu0
      %v2182 = vadd.f32 0.0, %v2181
      %v2183 = vpop.f32.mrb[0].mxu0
      %2184 = vmatprep.mubr.f32.mxu0 0.0
      %2185 = vmatmul.mubr.f32.gmra.mrb[0].mxu0 %v2053
      %v2186 = vpop.f32.mrb[0].mxu0
      %v2187 = vadd.f32 0.0, %v2186
      %v2188 = vpop.f32.mrb[0].mxu0
      %2189 = vmatprep.mubr.f32.mxu0 0.0
      %2190 = vmatmul.mubr.f32.gmra.mrb[0].mxu0 %v2056
      %v2191 = vpop.f32.mrb[0].mxu0
      %v2192 = vadd.f32 0.0, %v2191
      %v2193 = vpop.f32.mrb[0].mxu0
      %2194 = vmatprep.mubr.f32.mxu0 0.0
      %2195 = vmatmul.mubr.f32.gmra.mrb[0].mxu0 %v2059
      %v2196 = vpop.f32.mrb[0].mxu0
      %v2197 = vadd.f32 0.0, %v2196
      %v2198 = vpop.f32.mrb[0].mxu0
      %2199 = vmatprep.mubr.f32.mxu0 0.0
      %2200 = vmatmul.mubr.f32.gmra.mrb[0].mxu0 %v2062
      %v2201 = vpop.f32.mrb[0].mxu0
      %v2202 = vadd.f32 0.0, %v2201
      %v2203 = vpop.f32.mrb[0].mxu0
      %2204 = vmatprep.mubr.f32.mxu0 0.0
      %2205 = vmatmul.mubr.f32.gmra.mrb[0].mxu0 %v2065
      %v2206 = vpop.f32.mrb[0].mxu0
      %v2207 = vadd.f32 0.0, %v2206
      %v2208 = vpop.f32.mrb[0].mxu0
      %2209 = vmatprep.mubr.f32.mxu0 0.0
      %2210 = vmatmul.mubr.f32.gmra.mrb[0].mxu0 %v2068
      %v2211 = vpop.f32.mrb[0].mxu0
      %v2212 = vadd.f32 0.0, %v2211
      %v2213 = vpop.f32.mrb[0].mxu0
      %2214 = vdwg.mxu0
      %v2215 = vadd.f32 %v1987, %v2137
      %v2216 = vadd.f32 %v1988, %v2142
      %v2217 = vadd.f32 %v1989, %v2147
      %v2218 = vadd.f32 %v1990, %v2152
      %v2219 = vadd.f32 %v1991, %v2157
      %v2220 = vadd.f32 %v1992, %v2162
      %v2221 = vadd.f32 %v1993, %v2167
      %v2222 = vadd.f32 %v1994, %v2172
      %v2223 = vadd.f32 %v1995, %v2177
      %v2224 = vadd.f32 %v1996, %v2182
      %v2225 = vadd.f32 %v1997, %v2187
      %v2226 = vadd.f32 %v1998, %v2192
      %v2227 = vadd.f32 %v1999, %v2197
      %v2228 = vadd.f32 %v2000, %v2202
      %v2229 = vadd.f32 %v2001, %v2207
      %v2230 = vadd.f32 %v2002, %v2212
      %s2231 = scalar_lea.vmem [#allocation2], 608
      %v2232 = vld [vmem:[%s2231] sm:$0xff]
      %v2233 = vld [vmem:[%s2231 + $0x8] sm:$0xff]
      %v2234 = vld [vmem:[%s2231 + $0x10] sm:$0xff]
      %v2235 = vld [vmem:[%s2231 + $0x18] sm:$0xff]
      %v2236 = vld [vmem:[%s2231 + $0x20] sm:$0xff]
      %v2237 = vld [vmem:[%s2231 + $0x28] sm:$0xff]
      %v2238 = vld [vmem:[%s2231 + $0x30] sm:$0xff]
      %v2239 = vld [vmem:[%s2231 + $0x38] sm:$0xff]
      %v2240 = vld [vmem:[%s2231 + $0x40] sm:$0xff]
      %v2241 = vld [vmem:[%s2231 + $0x48] sm:$0xff]
      %v2242 = vld [vmem:[%s2231 + $0x50] sm:$0xff]
      %v2243 = vld [vmem:[%s2231 + $0x58] sm:$0xff]
      %v2244 = vld [vmem:[%s2231 + $0x60] sm:$0xff]
      %v2245 = vld [vmem:[%s2231 + $0x68] sm:$0xff]
      %v2246 = vld [vmem:[%s2231 + $0x70] sm:$0xff]
      %v2247 = vld [vmem:[%s2231 + $0x78] sm:$0xff]
      %v2248 = vsel %vm314, %v2232, 0.0
      %v2249 = vsel %vm315, %v2233, 0.0
      %v2250 = vsel %vm314, %v2234, 0.0
      %v2251 = vsel %vm315, %v2235, 0.0
      %v2252 = vsel %vm314, %v2236, 0.0
      %v2253 = vsel %vm315, %v2237, 0.0
      %v2254 = vsel %vm314, %v2238, 0.0
      %v2255 = vsel %vm315, %v2239, 0.0
      %v2256 = vsel %vm314, %v2240, 0.0
      %v2257 = vsel %vm315, %v2241, 0.0
      %v2258 = vsel %vm314, %v2242, 0.0
      %v2259 = vsel %vm315, %v2243, 0.0
      %v2260 = vsel %vm314, %v2244, 0.0
      %v2261 = vsel %vm315, %v2245, 0.0
      %v2262 = vsel %vm314, %v2246, 0.0
      %v2263 = vsel %vm315, %v2247, 0.0
      %s2264 = scalar_lea.vmem %s1, 64
      %v2265 = vld [vmem:[%s2264] sm:$0xff]
      %v2267 = vsel %vm188, %v2248, 0
      %v2270 = vsel %vm188, %v2249, 0
      %v2273 = vsel %vm188, %v2250, 0
      %v2276 = vsel %vm188, %v2251, 0
      %v2279 = vsel %vm188, %v2252, 0
      %v2282 = vsel %vm188, %v2253, 0
      %v2285 = vsel %vm188, %v2254, 0
      %v2288 = vsel %vm188, %v2255, 0
      %v2291 = vsel %vm188, %v2256, 0
      %v2294 = vsel %vm188, %v2257, 0
      %v2297 = vsel %vm188, %v2258, 0
      %v2300 = vsel %vm188, %v2259, 0
      %v2303 = vsel %vm188, %v2260, 0
      %v2306 = vsel %vm188, %v2261, 0
      %v2309 = vsel %vm188, %v2262, 0
      %v2312 = vsel %vm188, %v2263, 0
      %2314 = vmatprep.subr.mxu0 0.0
      %2315 = vmatpush1.msra.mxu0 %v2265
      %2316 = vmatprep.subr.mxu0 0.0
      %2317 = vmatpush1.msra.mxu0 0.0
      %2318 = vmatprep.subr.mxu0 0.0
      %2319 = vmatpush1.msra.mxu0 0.0
      %2320 = vmatprep.subr.mxu0 0.0
      %2321 = vmatpush1.msra.mxu0 0.0
      %2322 = vmatprep.subr.mxu0 0.0
      %2323 = vmatpush1.msra.mxu0 0.0
      %2324 = vmatprep.subr.mxu0 0.0
      %2325 = vmatpush1.msra.mxu0 0.0
      %2326 = vmatprep.subr.mxu0 0.0
      %2327 = vmatpush1.msra.mxu0 0.0
      %2328 = vmatprep.subr.mxu0 0.0
      %2329 = vmatpush1.msra.mxu0 0.0
      %2330 = vmatprep.subr.mxu0 0.0
      %2331 = vmatpush1.msra.mxu0 0.0
      %2332 = vmatprep.subr.mxu0 0.0
      %2333 = vmatpush1.msra.mxu0 0.0
      %2334 = vmatprep.subr.mxu0 0.0
      %2335 = vmatpush1.msra.mxu0 0.0
      %2336 = vmatprep.subr.mxu0 0.0
      %2337 = vmatpush1.msra.mxu0 0.0
      %2338 = vmatprep.subr.mxu0 0.0
      %2339 = vmatpush1.msra.mxu0 0.0
      %2340 = vmatprep.subr.mxu0 0.0
      %2341 = vmatpush1.msra.mxu0 0.0
      %2342 = vmatprep.subr.mxu0 0.0
      %2343 = vmatpush1.msra.mxu0 0.0
      %2344 = vmatprep.subr.mxu0 0.0
      %2345 = vmatpush1.msra.mxu0 0.0
      %2346 = vmatprep.subr.mxu0 0.0
      %2347 = vmatpush1.msra.mxu0 0.0
      %2348 = vmatprep.subr.mxu0 0.0
      %2349 = vmatpush1.msra.mxu0 0.0
      %2350 = vmatprep.subr.mxu0 0.0
      %2351 = vmatpush1.msra.mxu0 0.0
      %2352 = vmatprep.subr.mxu0 0.0
      %2353 = vmatpush1.msra.mxu0 0.0
      %2354 = vmatprep.subr.mxu0 0.0
      %2355 = vmatpush1.msra.mxu0 0.0
      %2356 = vmatprep.subr.mxu0 0.0
      %2357 = vmatpush1.msra.mxu0 0.0
      %2358 = vmatprep.subr.mxu0 0.0
      %2359 = vmatpush1.msra.mxu0 0.0
      %2360 = vmatprep.subr.mxu0 0.0
      %2361 = vmatpush1.msra.mxu0 0.0
      %2362 = vmatprep.subr.mxu0 0.0
      %2363 = vmatpush1.msra.mxu0 0.0
      %2364 = vmatprep.subr.mxu0 0.0
      %2365 = vmatpush1.msra.mxu0 0.0
      %2366 = vmatprep.subr.mxu0 0.0
      %2367 = vmatpush1.msra.mxu0 0.0
      %2368 = vmatprep.subr.mxu0 0.0
      %2369 = vmatpush1.msra.mxu0 0.0
      %2370 = vmatprep.subr.mxu0 0.0
      %2371 = vmatpush1.msra.mxu0 0.0
      %2372 = vmatprep.subr.mxu0 0.0
      %2373 = vmatpush1.msra.mxu0 0.0
      %2374 = vmatprep.subr.mxu0 0.0
      %2375 = vmatpush1.msra.mxu0 0.0
      %2376 = vmatprep.subr.mxu0 0.0
      %2377 = vmatpush1.msra.mxu0 0.0
      %2378 = vmatprep.mubr.f32.mxu0 0.0
      %2379 = vmatmul.mubr.f32.gmra.mrb[0].mxu0 %v2267
      %v2380 = vpop.f32.mrb[0].mxu0
      %v2381 = vadd.f32 0.0, %v2380
      %v2382 = vpop.f32.mrb[0].mxu0
      %2383 = vmatprep.mubr.f32.mxu0 0.0
      %2384 = vmatmul.mubr.f32.gmra.mrb[0].mxu0 %v2270
      %v2385 = vpop.f32.mrb[0].mxu0
      %v2386 = vadd.f32 0.0, %v2385
      %v2387 = vpop.f32.mrb[0].mxu0
      %2388 = vmatprep.mubr.f32.mxu0 0.0
      %2389 = vmatmul.mubr.f32.gmra.mrb[0].mxu0 %v2273
      %v2390 = vpop.f32.mrb[0].mxu0
      %v2391 = vadd.f32 0.0, %v2390
      %v2392 = vpop.f32.mrb[0].mxu0
      %2393 = vmatprep.mubr.f32.mxu0 0.0
      %2394 = vmatmul.mubr.f32.gmra.mrb[0].mxu0 %v2276
      %v2395 = vpop.f32.mrb[0].mxu0
      %v2396 = vadd.f32 0.0, %v2395
      %v2397 = vpop.f32.mrb[0].mxu0
      %2398 = vmatprep.mubr.f32.mxu0 0.0
      %2399 = vmatmul.mubr.f32.gmra.mrb[0].mxu0 %v2279
      %v2400 = vpop.f32.mrb[0].mxu0
      %v2401 = vadd.f32 0.0, %v2400
      %v2402 = vpop.f32.mrb[0].mxu0
      %2403 = vmatprep.mubr.f32.mxu0 0.0
      %2404 = vmatmul.mubr.f32.gmra.mrb[0].mxu0 %v2282
      %v2405 = vpop.f32.mrb[0].mxu0
      %v2406 = vadd.f32 0.0, %v2405
      %v2407 = vpop.f32.mrb[0].mxu0
      %2408 = vmatprep.mubr.f32.mxu0 0.0
      %2409 = vmatmul.mubr.f32.gmra.mrb[0].mxu0 %v2285
      %v2410 = vpop.f32.mrb[0].mxu0
      %v2411 = vadd.f32 0.0, %v2410
      %v2412 = vpop.f32.mrb[0].mxu0
      %2413 = vmatprep.mubr.f32.mxu0 0.0
      %2414 = vmatmul.mubr.f32.gmra.mrb[0].mxu0 %v2288
      %v2415 = vpop.f32.mrb[0].mxu0
      %v2416 = vadd.f32 0.0, %v2415
      %v2417 = vpop.f32.mrb[0].mxu0
      %2418 = vmatprep.mubr.f32.mxu0 0.0
      %2419 = vmatmul.mubr.f32.gmra.mrb[0].mxu0 %v2291
      %v2420 = vpop.f32.mrb[0].mxu0
      %v2421 = vadd.f32 0.0, %v2420
      %v2422 = vpop.f32.mrb[0].mxu0
      %2423 = vmatprep.mubr.f32.mxu0 0.0
      %2424 = vmatmul.mubr.f32.gmra.mrb[0].mxu0 %v2294
      %v2425 = vpop.f32.mrb[0].mxu0
      %v2426 = vadd.f32 0.0, %v2425
      %v2427 = vpop.f32.mrb[0].mxu0
      %2428 = vmatprep.mubr.f32.mxu0 0.0
      %2429 = vmatmul.mubr.f32.gmra.mrb[0].mxu0 %v2297
      %v2430 = vpop.f32.mrb[0].mxu0
      %v2431 = vadd.f32 0.0, %v2430
      %v2432 = vpop.f32.mrb[0].mxu0
      %2433 = vmatprep.mubr.f32.mxu0 0.0
      %2434 = vmatmul.mubr.f32.gmra.mrb[0].mxu0 %v2300
      %v2435 = vpop.f32.mrb[0].mxu0
      %v2436 = vadd.f32 0.0, %v2435
      %v2437 = vpop.f32.mrb[0].mxu0
      %2438 = vmatprep.mubr.f32.mxu0 0.0
      %2439 = vmatmul.mubr.f32.gmra.mrb[0].mxu0 %v2303
      %v2440 = vpop.f32.mrb[0].mxu0
      %v2441 = vadd.f32 0.0, %v2440
      %v2442 = vpop.f32.mrb[0].mxu0
      %2443 = vmatprep.mubr.f32.mxu0 0.0
      %2444 = vmatmul.mubr.f32.gmra.mrb[0].mxu0 %v2306
      %v2445 = vpop.f32.mrb[0].mxu0
      %v2446 = vadd.f32 0.0, %v2445
      %v2447 = vpop.f32.mrb[0].mxu0
      %2448 = vmatprep.mubr.f32.mxu0 0.0
      %2449 = vmatmul.mubr.f32.gmra.mrb[0].mxu0 %v2309
      %v2450 = vpop.f32.mrb[0].mxu0
      %v2451 = vadd.f32 0.0, %v2450
      %v2452 = vpop.f32.mrb[0].mxu0
      %2453 = vmatprep.mubr.f32.mxu0 0.0
      %2454 = vmatmul.mubr.f32.gmra.mrb[0].mxu0 %v2312
      %v2455 = vpop.f32.mrb[0].mxu0
      %v2456 = vadd.f32 0.0, %v2455
      %v2457 = vpop.f32.mrb[0].mxu0
      %2458 = vdwg.mxu0
      %v2459 = vadd.f32 %v2215, %v2381
      %v2460 = vadd.f32 %v2216, %v2386
      %v2461 = vadd.f32 %v2217, %v2391
      %v2462 = vadd.f32 %v2218, %v2396
      %v2463 = vadd.f32 %v2219, %v2401
      %v2464 = vadd.f32 %v2220, %v2406
      %v2465 = vadd.f32 %v2221, %v2411
      %v2466 = vadd.f32 %v2222, %v2416
      %v2467 = vadd.f32 %v2223, %v2421
      %v2468 = vadd.f32 %v2224, %v2426
      %v2469 = vadd.f32 %v2225, %v2431
      %v2470 = vadd.f32 %v2226, %v2436
      %v2471 = vadd.f32 %v2227, %v2441
      %v2472 = vadd.f32 %v2228, %v2446
      %v2473 = vadd.f32 %v2229, %v2451
      %v2474 = vadd.f32 %v2230, %v2456
      %v2475 = vmax.f32 %v2459, 0.0
      %v2476 = vmax.f32 %v2460, 0.0
      %v2477 = vmax.f32 %v2461, 0.0
      %v2478 = vmax.f32 %v2462, 0.0
      %v2479 = vmax.f32 %v2463, 0.0
      %v2480 = vmax.f32 %v2464, 0.0
      %v2481 = vmax.f32 %v2465, 0.0
      %v2482 = vmax.f32 %v2466, 0.0
      %v2483 = vmax.f32 %v2467, 0.0
      %v2484 = vmax.f32 %v2468, 0.0
      %v2485 = vmax.f32 %v2469, 0.0
      %v2486 = vmax.f32 %v2470, 0.0
      %v2487 = vmax.f32 %v2471, 0.0
      %v2488 = vmax.f32 %v2472, 0.0
      %v2489 = vmax.f32 %v2473, 0.0
      %v2490 = vmax.f32 %v2474, 0.0
      %s2491 = scalar_lea.vmem [#allocation3], 304
      %2492 = vst.msk [vmem:[%s2491] sm:$0xff] %vm188, %v2475
      %2493 = vst.msk [vmem:[%s2491 + $0x8] sm:$0xff] %vm188, %v2476
      %2494 = vst.msk [vmem:[%s2491 + $0x10] sm:$0xff] %vm188, %v2477
      %2495 = vst.msk [vmem:[%s2491 + $0x18] sm:$0xff] %vm188, %v2478
      %2496 = vst.msk [vmem:[%s2491 + $0x20] sm:$0xff] %vm188, %v2479
      %2497 = vst.msk [vmem:[%s2491 + $0x28] sm:$0xff] %vm188, %v2480
      %2498 = vst.msk [vmem:[%s2491 + $0x30] sm:$0xff] %vm188, %v2481
      %2499 = vst.msk [vmem:[%s2491 + $0x38] sm:$0xff] %vm188, %v2482
      %2500 = vst.msk [vmem:[%s2491 + $0x40] sm:$0xff] %vm188, %v2483
      %2501 = vst.msk [vmem:[%s2491 + $0x48] sm:$0xff] %vm188, %v2484
      %2502 = vst.msk [vmem:[%s2491 + $0x50] sm:$0xff] %vm188, %v2485
      %2503 = vst.msk [vmem:[%s2491 + $0x58] sm:$0xff] %vm188, %v2486
      %2504 = vst.msk [vmem:[%s2491 + $0x60] sm:$0xff] %vm188, %v2487
      %2505 = vst.msk [vmem:[%s2491 + $0x68] sm:$0xff] %vm188, %v2488
      %2506 = vst.msk [vmem:[%s2491 + $0x70] sm:$0xff] %vm188, %v2489
      %2507 = vst.msk [vmem:[%s2491 + $0x78] sm:$0xff] %vm188, %v2490
      %s2508 = scalar_lea.vmem [#allocation3], 16
      %2509 = vst.msk [vmem:[%s2508 + $0x1] sm:$0xff] %vm188, %v2475
      %2510 = vst.msk [vmem:[%s2508 + $0x9] sm:$0x7f] %vm207, %v2476
      %2511 = vst.msk [vmem:[%s2508 + $0x11] sm:$0xff] %vm188, %v2477
      %2512 = vst.msk [vmem:[%s2508 + $0x19] sm:$0x7f] %vm207, %v2478
      %2513 = vst.msk [vmem:[%s2508 + $0x21] sm:$0xff] %vm188, %v2479
      %2514 = vst.msk [vmem:[%s2508 + $0x29] sm:$0x7f] %vm207, %v2480
      %2515 = vst.msk [vmem:[%s2508 + $0x31] sm:$0xff] %vm188, %v2481
      %2516 = vst.msk [vmem:[%s2508 + $0x39] sm:$0x7f] %vm207, %v2482
      %2517 = vst.msk [vmem:[%s2508 + $0x41] sm:$0xff] %vm188, %v2483
      %2518 = vst.msk [vmem:[%s2508 + $0x49] sm:$0x7f] %vm207, %v2484
      %2519 = vst.msk [vmem:[%s2508 + $0x51] sm:$0xff] %vm188, %v2485
      %2520 = vst.msk [vmem:[%s2508 + $0x59] sm:$0x7f] %vm207, %v2486
      %2521 = vst.msk [vmem:[%s2508 + $0x61] sm:$0xff] %vm188, %v2487
      %2522 = vst.msk [vmem:[%s2508 + $0x69] sm:$0x7f] %vm207, %v2488
      %2523 = vst.msk [vmem:[%s2508 + $0x71] sm:$0xff] %vm188, %v2489
      %2524 = vst.msk [vmem:[%s2508 + $0x79] sm:$0x7f] %vm207, %v2490
      %s2525 = scalar_lea.vmem [#allocation3], 592
      %2526 = vst.msk [vmem:[%s2525 - $0x1] sm:$0xfe] %vm224, %v2475
      %2527 = vst.msk [vmem:[%s2525 + $0x7] sm:$0xff] %vm188, %v2476
      %2528 = vst.msk [vmem:[%s2525 + $0xf] sm:$0xfe] %vm224, %v2477
      %2529 = vst.msk [vmem:[%s2525 + $0x17] sm:$0xff] %vm188, %v2478
      %2530 = vst.msk [vmem:[%s2525 + $0x1f] sm:$0xfe] %vm224, %v2479
      %2531 = vst.msk [vmem:[%s2525 + $0x27] sm:$0xff] %vm188, %v2480
      %2532 = vst.msk [vmem:[%s2525 + $0x2f] sm:$0xfe] %vm224, %v2481
      %2533 = vst.msk [vmem:[%s2525 + $0x37] sm:$0xff] %vm188, %v2482
      %2534 = vst.msk [vmem:[%s2525 + $0x3f] sm:$0xfe] %vm224, %v2483
      %2535 = vst.msk [vmem:[%s2525 + $0x47] sm:$0xff] %vm188, %v2484
      %2536 = vst.msk [vmem:[%s2525 + $0x4f] sm:$0xfe] %vm224, %v2485
      %2537 = vst.msk [vmem:[%s2525 + $0x57] sm:$0xff] %vm188, %v2486
      %2538 = vst.msk [vmem:[%s2525 + $0x5f] sm:$0xfe] %vm224, %v2487
      %2539 = vst.msk [vmem:[%s2525 + $0x67] sm:$0xff] %vm188, %v2488
      %2540 = vst.msk [vmem:[%s2525 + $0x6f] sm:$0xfe] %vm224, %v2489
      %2541 = vst.msk [vmem:[%s2525 + $0x77] sm:$0xff] %vm188, %v2490
      %s2542 = scalar_lea.vmem [#allocation2], 128
      %v2543 = vld [vmem:[%s2542] sm:$0xff]
      %v2544 = vld [vmem:[%s2542 + $0x8] sm:$0xff]
      %v2545 = vld [vmem:[%s2542 + $0x10] sm:$0xff]
      %v2546 = vld [vmem:[%s2542 + $0x18] sm:$0xff]
      %v2547 = vld [vmem:[%s2542 + $0x20] sm:$0xff]
      %v2548 = vld [vmem:[%s2542 + $0x28] sm:$0xff]
      %v2549 = vld [vmem:[%s2542 + $0x30] sm:$0xff]
      %v2550 = vld [vmem:[%s2542 + $0x38] sm:$0xff]
      %v2551 = vld [vmem:[%s2542 + $0x40] sm:$0xff]
      %v2552 = vld [vmem:[%s2542 + $0x48] sm:$0xff]
      %v2553 = vld [vmem:[%s2542 + $0x50] sm:$0xff]
      %v2554 = vld [vmem:[%s2542 + $0x58] sm:$0xff]
      %v2555 = vld [vmem:[%s2542 + $0x60] sm:$0xff]
      %v2556 = vld [vmem:[%s2542 + $0x68] sm:$0xff]
      %v2557 = vld [vmem:[%s2542 + $0x70] sm:$0xff]
      %v2558 = vld [vmem:[%s2542 + $0x78] sm:$0xff]
      %v2559 = vsel %vm312, %v2543, 0.0
      %v2560 = vsel %vm313, %v2544, 0.0
      %v2561 = vsel %vm312, %v2545, 0.0
      %v2562 = vsel %vm313, %v2546, 0.0
      %v2563 = vsel %vm312, %v2547, 0.0
      %v2564 = vsel %vm313, %v2548, 0.0
      %v2565 = vsel %vm312, %v2549, 0.0
      %v2566 = vsel %vm313, %v2550, 0.0
      %v2567 = vsel %vm312, %v2551, 0.0
      %v2568 = vsel %vm313, %v2552, 0.0
      %v2569 = vsel %vm312, %v2553, 0.0
      %v2570 = vsel %vm313, %v2554, 0.0
      %v2571 = vsel %vm312, %v2555, 0.0
      %v2572 = vsel %vm313, %v2556, 0.0
      %v2573 = vsel %vm312, %v2557, 0.0
      %v2574 = vsel %vm313, %v2558, 0.0
      %v2575 = vld [vmem:[%s1] sm:$0xff]
      %s2576 = scalar_lea.vmem [#allocation2], 416
      %v2577 = vld [vmem:[%s2576] sm:$0xff]
      %v2578 = vld [vmem:[%s2576 + $0x8] sm:$0xff]
      %v2579 = vld [vmem:[%s2576 + $0x10] sm:$0xff]
      %v2580 = vld [vmem:[%s2576 + $0x18] sm:$0xff]
      %v2581 = vld [vmem:[%s2576 + $0x20] sm:$0xff]
      %v2582 = vld [vmem:[%s2576 + $0x28] sm:$0xff]
      %v2583 = vld [vmem:[%s2576 + $0x30] sm:$0xff]
      %v2584 = vld [vmem:[%s2576 + $0x38] sm:$0xff]
      %v2585 = vld [vmem:[%s2576 + $0x40] sm:$0xff]
      %v2586 = vld [vmem:[%s2576 + $0x48] sm:$0xff]
      %v2587 = vld [vmem:[%s2576 + $0x50] sm:$0xff]
      %v2588 = vld [vmem:[%s2576 + $0x58] sm:$0xff]
      %v2589 = vld [vmem:[%s2576 + $0x60] sm:$0xff]
      %v2590 = vld [vmem:[%s2576 + $0x68] sm:$0xff]
      %v2591 = vld [vmem:[%s2576 + $0x70] sm:$0xff]
      %v2592 = vld [vmem:[%s2576 + $0x78] sm:$0xff]
      %v2593 = vld [vmem:[%s398] sm:$0xff]
      %v2595 = vsel %vm188, %v2577, 0
      %v2598 = vsel %vm188, %v2578, 0
      %v2601 = vsel %vm188, %v2579, 0
      %v2604 = vsel %vm188, %v2580, 0
      %v2607 = vsel %vm188, %v2581, 0
      %v2610 = vsel %vm188, %v2582, 0
      %v2613 = vsel %vm188, %v2583, 0
      %v2616 = vsel %vm188, %v2584, 0
      %v2619 = vsel %vm188, %v2585, 0
      %v2622 = vsel %vm188, %v2586, 0
      %v2625 = vsel %vm188, %v2587, 0
      %v2628 = vsel %vm188, %v2588, 0
      %v2631 = vsel %vm188, %v2589, 0
      %v2634 = vsel %vm188, %v2590, 0
      %v2637 = vsel %vm188, %v2591, 0
      %v2640 = vsel %vm188, %v2592, 0
      %2642 = vmatprep.subr.mxu0 0.0
      %2643 = vmatpush1.msra.mxu0 %v2593
      %2644 = vmatprep.subr.mxu0 0.0
      %2645 = vmatpush1.msra.mxu0 0.0
      %2646 = vmatprep.subr.mxu0 0.0
      %2647 = vmatpush1.msra.mxu0 0.0
      %2648 = vmatprep.subr.mxu0 0.0
      %2649 = vmatpush1.msra.mxu0 0.0
      %2650 = vmatprep.subr.mxu0 0.0
      %2651 = vmatpush1.msra.mxu0 0.0
      %2652 = vmatprep.subr.mxu0 0.0
      %2653 = vmatpush1.msra.mxu0 0.0
      %2654 = vmatprep.subr.mxu0 0.0
      %2655 = vmatpush1.msra.mxu0 0.0
      %2656 = vmatprep.subr.mxu0 0.0
      %2657 = vmatpush1.msra.mxu0 0.0
      %2658 = vmatprep.subr.mxu0 0.0
      %2659 = vmatpush1.msra.mxu0 0.0
      %2660 = vmatprep.subr.mxu0 0.0
      %2661 = vmatpush1.msra.mxu0 0.0
      %2662 = vmatprep.subr.mxu0 0.0
      %2663 = vmatpush1.msra.mxu0 0.0
      %2664 = vmatprep.subr.mxu0 0.0
      %2665 = vmatpush1.msra.mxu0 0.0
      %2666 = vmatprep.subr.mxu0 0.0
      %2667 = vmatpush1.msra.mxu0 0.0
      %2668 = vmatprep.subr.mxu0 0.0
      %2669 = vmatpush1.msra.mxu0 0.0
      %2670 = vmatprep.subr.mxu0 0.0
      %2671 = vmatpush1.msra.mxu0 0.0
      %2672 = vmatprep.subr.mxu0 0.0
      %2673 = vmatpush1.msra.mxu0 0.0
      %2674 = vmatprep.subr.mxu0 0.0
      %2675 = vmatpush1.msra.mxu0 0.0
      %2676 = vmatprep.subr.mxu0 0.0
      %2677 = vmatpush1.msra.mxu0 0.0
      %2678 = vmatprep.subr.mxu0 0.0
      %2679 = vmatpush1.msra.mxu0 0.0
      %2680 = vmatprep.subr.mxu0 0.0
      %2681 = vmatpush1.msra.mxu0 0.0
      %2682 = vmatprep.subr.mxu0 0.0
      %2683 = vmatpush1.msra.mxu0 0.0
      %2684 = vmatprep.subr.mxu0 0.0
      %2685 = vmatpush1.msra.mxu0 0.0
      %2686 = vmatprep.subr.mxu0 0.0
      %2687 = vmatpush1.msra.mxu0 0.0
      %2688 = vmatprep.subr.mxu0 0.0
      %2689 = vmatpush1.msra.mxu0 0.0
      %2690 = vmatprep.subr.mxu0 0.0
      %2691 = vmatpush1.msra.mxu0 0.0
      %2692 = vmatprep.subr.mxu0 0.0
      %2693 = vmatpush1.msra.mxu0 0.0
      %2694 = vmatprep.subr.mxu0 0.0
      %2695 = vmatpush1.msra.mxu0 0.0
      %2696 = vmatprep.subr.mxu0 0.0
      %2697 = vmatpush1.msra.mxu0 0.0
      %2698 = vmatprep.subr.mxu0 0.0
      %2699 = vmatpush1.msra.mxu0 0.0
      %2700 = vmatprep.subr.mxu0 0.0
      %2701 = vmatpush1.msra.mxu0 0.0
      %2702 = vmatprep.subr.mxu0 0.0
      %2703 = vmatpush1.msra.mxu0 0.0
      %2704 = vmatprep.subr.mxu0 0.0
      %2705 = vmatpush1.msra.mxu0 0.0
      %2706 = vmatprep.mubr.f32.mxu0 0.0
      %2707 = vmatmul.mubr.f32.gmra.mrb[0].mxu0 %v2595
      %v2708 = vpop.f32.mrb[0].mxu0
      %v2709 = vadd.f32 0.0, %v2708
      %v2710 = vpop.f32.mrb[0].mxu0
      %2711 = vmatprep.mubr.f32.mxu0 0.0
      %2712 = vmatmul.mubr.f32.gmra.mrb[0].mxu0 %v2598
      %v2713 = vpop.f32.mrb[0].mxu0
      %v2714 = vadd.f32 0.0, %v2713
      %v2715 = vpop.f32.mrb[0].mxu0
      %2716 = vmatprep.mubr.f32.mxu0 0.0
      %2717 = vmatmul.mubr.f32.gmra.mrb[0].mxu0 %v2601
      %v2718 = vpop.f32.mrb[0].mxu0
      %v2719 = vadd.f32 0.0, %v2718
      %v2720 = vpop.f32.mrb[0].mxu0
      %2721 = vmatprep.mubr.f32.mxu0 0.0
      %2722 = vmatmul.mubr.f32.gmra.mrb[0].mxu0 %v2604
      %v2723 = vpop.f32.mrb[0].mxu0
      %v2724 = vadd.f32 0.0, %v2723
      %v2725 = vpop.f32.mrb[0].mxu0
      %2726 = vmatprep.mubr.f32.mxu0 0.0
      %2727 = vmatmul.mubr.f32.gmra.mrb[0].mxu0 %v2607
      %v2728 = vpop.f32.mrb[0].mxu0
      %v2729 = vadd.f32 0.0, %v2728
      %v2730 = vpop.f32.mrb[0].mxu0
      %2731 = vmatprep.mubr.f32.mxu0 0.0
      %2732 = vmatmul.mubr.f32.gmra.mrb[0].mxu0 %v2610
      %v2733 = vpop.f32.mrb[0].mxu0
      %v2734 = vadd.f32 0.0, %v2733
      %v2735 = vpop.f32.mrb[0].mxu0
      %2736 = vmatprep.mubr.f32.mxu0 0.0
      %2737 = vmatmul.mubr.f32.gmra.mrb[0].mxu0 %v2613
      %v2738 = vpop.f32.mrb[0].mxu0
      %v2739 = vadd.f32 0.0, %v2738
      %v2740 = vpop.f32.mrb[0].mxu0
      %2741 = vmatprep.mubr.f32.mxu0 0.0
      %2742 = vmatmul.mubr.f32.gmra.mrb[0].mxu0 %v2616
      %v2743 = vpop.f32.mrb[0].mxu0
      %v2744 = vadd.f32 0.0, %v2743
      %v2745 = vpop.f32.mrb[0].mxu0
      %2746 = vmatprep.mubr.f32.mxu0 0.0
      %2747 = vmatmul.mubr.f32.gmra.mrb[0].mxu0 %v2619
      %v2748 = vpop.f32.mrb[0].mxu0
      %v2749 = vadd.f32 0.0, %v2748
      %v2750 = vpop.f32.mrb[0].mxu0
      %2751 = vmatprep.mubr.f32.mxu0 0.0
      %2752 = vmatmul.mubr.f32.gmra.mrb[0].mxu0 %v2622
      %v2753 = vpop.f32.mrb[0].mxu0
      %v2754 = vadd.f32 0.0, %v2753
      %v2755 = vpop.f32.mrb[0].mxu0
      %2756 = vmatprep.mubr.f32.mxu0 0.0
      %2757 = vmatmul.mubr.f32.gmra.mrb[0].mxu0 %v2625
      %v2758 = vpop.f32.mrb[0].mxu0
      %v2759 = vadd.f32 0.0, %v2758
      %v2760 = vpop.f32.mrb[0].mxu0
      %2761 = vmatprep.mubr.f32.mxu0 0.0
      %2762 = vmatmul.mubr.f32.gmra.mrb[0].mxu0 %v2628
      %v2763 = vpop.f32.mrb[0].mxu0
      %v2764 = vadd.f32 0.0, %v2763
      %v2765 = vpop.f32.mrb[0].mxu0
      %2766 = vmatprep.mubr.f32.mxu0 0.0
      %2767 = vmatmul.mubr.f32.gmra.mrb[0].mxu0 %v2631
      %v2768 = vpop.f32.mrb[0].mxu0
      %v2769 = vadd.f32 0.0, %v2768
      %v2770 = vpop.f32.mrb[0].mxu0
      %2771 = vmatprep.mubr.f32.mxu0 0.0
      %2772 = vmatmul.mubr.f32.gmra.mrb[0].mxu0 %v2634
      %v2773 = vpop.f32.mrb[0].mxu0
      %v2774 = vadd.f32 0.0, %v2773
      %v2775 = vpop.f32.mrb[0].mxu0
      %2776 = vmatprep.mubr.f32.mxu0 0.0
      %2777 = vmatmul.mubr.f32.gmra.mrb[0].mxu0 %v2637
      %v2778 = vpop.f32.mrb[0].mxu0
      %v2779 = vadd.f32 0.0, %v2778
      %v2780 = vpop.f32.mrb[0].mxu0
      %2781 = vmatprep.mubr.f32.mxu0 0.0
      %2782 = vmatmul.mubr.f32.gmra.mrb[0].mxu0 %v2640
      %v2783 = vpop.f32.mrb[0].mxu0
      %v2784 = vadd.f32 0.0, %v2783
      %v2785 = vpop.f32.mrb[0].mxu0
      %2786 = vdwg.mxu0
      %v2788 = vsel %vm188, %v2559, 0
      %v2791 = vsel %vm188, %v2560, 0
      %v2794 = vsel %vm188, %v2561, 0
      %v2797 = vsel %vm188, %v2562, 0
      %v2800 = vsel %vm188, %v2563, 0
      %v2803 = vsel %vm188, %v2564, 0
      %v2806 = vsel %vm188, %v2565, 0
      %v2809 = vsel %vm188, %v2566, 0
      %v2812 = vsel %vm188, %v2567, 0
      %v2815 = vsel %vm188, %v2568, 0
      %v2818 = vsel %vm188, %v2569, 0
      %v2821 = vsel %vm188, %v2570, 0
      %v2824 = vsel %vm188, %v2571, 0
      %v2827 = vsel %vm188, %v2572, 0
      %v2830 = vsel %vm188, %v2573, 0
      %v2833 = vsel %vm188, %v2574, 0
      %2835 = vmatprep.subr.mxu0 0.0
      %2836 = vmatpush1.msra.mxu0 %v2575
      %2837 = vmatprep.subr.mxu0 0.0
      %2838 = vmatpush1.msra.mxu0 0.0
      %2839 = vmatprep.subr.mxu0 0.0
      %2840 = vmatpush1.msra.mxu0 0.0
      %2841 = vmatprep.subr.mxu0 0.0
      %2842 = vmatpush1.msra.mxu0 0.0
      %2843 = vmatprep.subr.mxu0 0.0
      %2844 = vmatpush1.msra.mxu0 0.0
      %2845 = vmatprep.subr.mxu0 0.0
      %2846 = vmatpush1.msra.mxu0 0.0
      %2847 = vmatprep.subr.mxu0 0.0
      %2848 = vmatpush1.msra.mxu0 0.0
      %2849 = vmatprep.subr.mxu0 0.0
      %2850 = vmatpush1.msra.mxu0 0.0
      %2851 = vmatprep.subr.mxu0 0.0
      %2852 = vmatpush1.msra.mxu0 0.0
      %2853 = vmatprep.subr.mxu0 0.0
      %2854 = vmatpush1.msra.mxu0 0.0
      %2855 = vmatprep.subr.mxu0 0.0
      %2856 = vmatpush1.msra.mxu0 0.0
      %2857 = vmatprep.subr.mxu0 0.0
      %2858 = vmatpush1.msra.mxu0 0.0
      %2859 = vmatprep.subr.mxu0 0.0
      %2860 = vmatpush1.msra.mxu0 0.0
      %2861 = vmatprep.subr.mxu0 0.0
      %2862 = vmatpush1.msra.mxu0 0.0
      %2863 = vmatprep.subr.mxu0 0.0
      %2864 = vmatpush1.msra.mxu0 0.0
      %2865 = vmatprep.subr.mxu0 0.0
      %2866 = vmatpush1.msra.mxu0 0.0
      %2867 = vmatprep.subr.mxu0 0.0
      %2868 = vmatpush1.msra.mxu0 0.0
      %2869 = vmatprep.subr.mxu0 0.0
      %2870 = vmatpush1.msra.mxu0 0.0
      %2871 = vmatprep.subr.mxu0 0.0
      %2872 = vmatpush1.msra.mxu0 0.0
      %2873 = vmatprep.subr.mxu0 0.0
      %2874 = vmatpush1.msra.mxu0 0.0
      %2875 = vmatprep.subr.mxu0 0.0
      %2876 = vmatpush1.msra.mxu0 0.0
      %2877 = vmatprep.subr.mxu0 0.0
      %2878 = vmatpush1.msra.mxu0 0.0
      %2879 = vmatprep.subr.mxu0 0.0
      %2880 = vmatpush1.msra.mxu0 0.0
      %2881 = vmatprep.subr.mxu0 0.0
      %2882 = vmatpush1.msra.mxu0 0.0
      %2883 = vmatprep.subr.mxu0 0.0
      %2884 = vmatpush1.msra.mxu0 0.0
      %2885 = vmatprep.subr.mxu0 0.0
      %2886 = vmatpush1.msra.mxu0 0.0
      %2887 = vmatprep.subr.mxu0 0.0
      %2888 = vmatpush1.msra.mxu0 0.0
      %2889 = vmatprep.subr.mxu0 0.0
      %2890 = vmatpush1.msra.mxu0 0.0
      %2891 = vmatprep.subr.mxu0 0.0
      %2892 = vmatpush1.msra.mxu0 0.0
      %2893 = vmatprep.subr.mxu0 0.0
      %2894 = vmatpush1.msra.mxu0 0.0
      %2895 = vmatprep.subr.mxu0 0.0
      %2896 = vmatpush1.msra.mxu0 0.0
      %2897 = vmatprep.subr.mxu0 0.0
      %2898 = vmatpush1.msra.mxu0 0.0
      %2899 = vmatprep.mubr.f32.mxu0 0.0
      %2900 = vmatmul.mubr.f32.gmra.mrb[0].mxu0 %v2788
      %v2901 = vpop.f32.mrb[0].mxu0
      %v2902 = vadd.f32 %v2709, %v2901
      %v2903 = vpop.f32.mrb[0].mxu0
      %2904 = vmatprep.mubr.f32.mxu0 0.0
      %2905 = vmatmul.mubr.f32.gmra.mrb[0].mxu0 %v2791
      %v2906 = vpop.f32.mrb[0].mxu0
      %v2907 = vadd.f32 %v2714, %v2906
      %v2908 = vpop.f32.mrb[0].mxu0
      %2909 = vmatprep.mubr.f32.mxu0 0.0
      %2910 = vmatmul.mubr.f32.gmra.mrb[0].mxu0 %v2794
      %v2911 = vpop.f32.mrb[0].mxu0
      %v2912 = vadd.f32 %v2719, %v2911
      %v2913 = vpop.f32.mrb[0].mxu0
      %2914 = vmatprep.mubr.f32.mxu0 0.0
      %2915 = vmatmul.mubr.f32.gmra.mrb[0].mxu0 %v2797
      %v2916 = vpop.f32.mrb[0].mxu0
      %v2917 = vadd.f32 %v2724, %v2916
      %v2918 = vpop.f32.mrb[0].mxu0
      %2919 = vmatprep.mubr.f32.mxu0 0.0
      %2920 = vmatmul.mubr.f32.gmra.mrb[0].mxu0 %v2800
      %v2921 = vpop.f32.mrb[0].mxu0
      %v2922 = vadd.f32 %v2729, %v2921
      %v2923 = vpop.f32.mrb[0].mxu0
      %2924 = vmatprep.mubr.f32.mxu0 0.0
      %2925 = vmatmul.mubr.f32.gmra.mrb[0].mxu0 %v2803
      %v2926 = vpop.f32.mrb[0].mxu0
      %v2927 = vadd.f32 %v2734, %v2926
      %v2928 = vpop.f32.mrb[0].mxu0
      %2929 = vmatprep.mubr.f32.mxu0 0.0
      %2930 = vmatmul.mubr.f32.gmra.mrb[0].mxu0 %v2806
      %v2931 = vpop.f32.mrb[0].mxu0
      %v2932 = vadd.f32 %v2739, %v2931
      %v2933 = vpop.f32.mrb[0].mxu0
      %2934 = vmatprep.mubr.f32.mxu0 0.0
      %2935 = vmatmul.mubr.f32.gmra.mrb[0].mxu0 %v2809
      %v2936 = vpop.f32.mrb[0].mxu0
      %v2937 = vadd.f32 %v2744, %v2936
      %v2938 = vpop.f32.mrb[0].mxu0
      %2939 = vmatprep.mubr.f32.mxu0 0.0
      %2940 = vmatmul.mubr.f32.gmra.mrb[0].mxu0 %v2812
      %v2941 = vpop.f32.mrb[0].mxu0
      %v2942 = vadd.f32 %v2749, %v2941
      %v2943 = vpop.f32.mrb[0].mxu0
      %2944 = vmatprep.mubr.f32.mxu0 0.0
      %2945 = vmatmul.mubr.f32.gmra.mrb[0].mxu0 %v2815
      %v2946 = vpop.f32.mrb[0].mxu0
      %v2947 = vadd.f32 %v2754, %v2946
      %v2948 = vpop.f32.mrb[0].mxu0
      %2949 = vmatprep.mubr.f32.mxu0 0.0
      %2950 = vmatmul.mubr.f32.gmra.mrb[0].mxu0 %v2818
      %v2951 = vpop.f32.mrb[0].mxu0
      %v2952 = vadd.f32 %v2759, %v2951
      %v2953 = vpop.f32.mrb[0].mxu0
      %2954 = vmatprep.mubr.f32.mxu0 0.0
      %2955 = vmatmul.mubr.f32.gmra.mrb[0].mxu0 %v2821
      %v2956 = vpop.f32.mrb[0].mxu0
      %v2957 = vadd.f32 %v2764, %v2956
      %v2958 = vpop.f32.mrb[0].mxu0
      %2959 = vmatprep.mubr.f32.mxu0 0.0
      %2960 = vmatmul.mubr.f32.gmra.mrb[0].mxu0 %v2824
      %v2961 = vpop.f32.mrb[0].mxu0
      %v2962 = vadd.f32 %v2769, %v2961
      %v2963 = vpop.f32.mrb[0].mxu0
      %2964 = vmatprep.mubr.f32.mxu0 0.0
      %2965 = vmatmul.mubr.f32.gmra.mrb[0].mxu0 %v2827
      %v2966 = vpop.f32.mrb[0].mxu0
      %v2967 = vadd.f32 %v2774, %v2966
      %v2968 = vpop.f32.mrb[0].mxu0
      %2969 = vmatprep.mubr.f32.mxu0 0.0
      %2970 = vmatmul.mubr.f32.gmra.mrb[0].mxu0 %v2830
      %v2971 = vpop.f32.mrb[0].mxu0
      %v2972 = vadd.f32 %v2779, %v2971
      %v2973 = vpop.f32.mrb[0].mxu0
      %2974 = vmatprep.mubr.f32.mxu0 0.0
      %2975 = vmatmul.mubr.f32.gmra.mrb[0].mxu0 %v2833
      %v2976 = vpop.f32.mrb[0].mxu0
      %v2977 = vadd.f32 %v2784, %v2976
      %v2978 = vpop.f32.mrb[0].mxu0
      %2979 = vdwg.mxu0
      %s2980 = scalar_lea.vmem [#allocation2], 704
      %v2981 = vld [vmem:[%s2980] sm:$0xff]
      %v2982 = vld [vmem:[%s2980 + $0x8] sm:$0xff]
      %v2983 = vld [vmem:[%s2980 + $0x10] sm:$0xff]
      %v2984 = vld [vmem:[%s2980 + $0x18] sm:$0xff]
      %v2985 = vld [vmem:[%s2980 + $0x20] sm:$0xff]
      %v2986 = vld [vmem:[%s2980 + $0x28] sm:$0xff]
      %v2987 = vld [vmem:[%s2980 + $0x30] sm:$0xff]
      %v2988 = vld [vmem:[%s2980 + $0x38] sm:$0xff]
      %v2989 = vld [vmem:[%s2980 + $0x40] sm:$0xff]
      %v2990 = vld [vmem:[%s2980 + $0x48] sm:$0xff]
      %v2991 = vld [vmem:[%s2980 + $0x50] sm:$0xff]
      %v2992 = vld [vmem:[%s2980 + $0x58] sm:$0xff]
      %v2993 = vld [vmem:[%s2980 + $0x60] sm:$0xff]
      %v2994 = vld [vmem:[%s2980 + $0x68] sm:$0xff]
      %v2995 = vld [vmem:[%s2980 + $0x70] sm:$0xff]
      %v2996 = vld [vmem:[%s2980 + $0x78] sm:$0xff]
      %v2997 = vsel %vm314, %v2981, 0.0
      %v2998 = vsel %vm315, %v2982, 0.0
      %v2999 = vsel %vm314, %v2983, 0.0
      %v3000 = vsel %vm315, %v2984, 0.0
      %v3001 = vsel %vm314, %v2985, 0.0
      %v3002 = vsel %vm315, %v2986, 0.0
      %v3003 = vsel %vm314, %v2987, 0.0
      %v3004 = vsel %vm315, %v2988, 0.0
      %v3005 = vsel %vm314, %v2989, 0.0
      %v3006 = vsel %vm315, %v2990, 0.0
      %v3007 = vsel %vm314, %v2991, 0.0
      %v3008 = vsel %vm315, %v2992, 0.0
      %v3009 = vsel %vm314, %v2993, 0.0
      %v3010 = vsel %vm315, %v2994, 0.0
      %v3011 = vsel %vm314, %v2995, 0.0
      %v3012 = vsel %vm315, %v2996, 0.0
      %v3013 = vld [vmem:[%s835] sm:$0xff]
      %v3015 = vsel %vm188, %v2997, 0
      %v3018 = vsel %vm188, %v2998, 0
      %v3021 = vsel %vm188, %v2999, 0
      %v3024 = vsel %vm188, %v3000, 0
      %v3027 = vsel %vm188, %v3001, 0
      %v3030 = vsel %vm188, %v3002, 0
      %v3033 = vsel %vm188, %v3003, 0
      %v3036 = vsel %vm188, %v3004, 0
      %v3039 = vsel %vm188, %v3005, 0
      %v3042 = vsel %vm188, %v3006, 0
      %v3045 = vsel %vm188, %v3007, 0
      %v3048 = vsel %vm188, %v3008, 0
      %v3051 = vsel %vm188, %v3009, 0
      %v3054 = vsel %vm188, %v3010, 0
      %v3057 = vsel %vm188, %v3011, 0
      %v3060 = vsel %vm188, %v3012, 0
      %3062 = vmatprep.subr.mxu0 0.0
      %3063 = vmatpush1.msra.mxu0 %v3013
      %3064 = vmatprep.subr.mxu0 0.0
      %3065 = vmatpush1.msra.mxu0 0.0
      %3066 = vmatprep.subr.mxu0 0.0
      %3067 = vmatpush1.msra.mxu0 0.0
      %3068 = vmatprep.subr.mxu0 0.0
      %3069 = vmatpush1.msra.mxu0 0.0
      %3070 = vmatprep.subr.mxu0 0.0
      %3071 = vmatpush1.msra.mxu0 0.0
      %3072 = vmatprep.subr.mxu0 0.0
      %3073 = vmatpush1.msra.mxu0 0.0
      %3074 = vmatprep.subr.mxu0 0.0
      %3075 = vmatpush1.msra.mxu0 0.0
      %3076 = vmatprep.subr.mxu0 0.0
      %3077 = vmatpush1.msra.mxu0 0.0
      %3078 = vmatprep.subr.mxu0 0.0
      %3079 = vmatpush1.msra.mxu0 0.0
      %3080 = vmatprep.subr.mxu0 0.0
      %3081 = vmatpush1.msra.mxu0 0.0
      %3082 = vmatprep.subr.mxu0 0.0
      %3083 = vmatpush1.msra.mxu0 0.0
      %3084 = vmatprep.subr.mxu0 0.0
      %3085 = vmatpush1.msra.mxu0 0.0
      %3086 = vmatprep.subr.mxu0 0.0
      %3087 = vmatpush1.msra.mxu0 0.0
      %3088 = vmatprep.subr.mxu0 0.0
      %3089 = vmatpush1.msra.mxu0 0.0
      %3090 = vmatprep.subr.mxu0 0.0
      %3091 = vmatpush1.msra.mxu0 0.0
      %3092 = vmatprep.subr.mxu0 0.0
      %3093 = vmatpush1.msra.mxu0 0.0
      %3094 = vmatprep.subr.mxu0 0.0
      %3095 = vmatpush1.msra.mxu0 0.0
      %3096 = vmatprep.subr.mxu0 0.0
      %3097 = vmatpush1.msra.mxu0 0.0
      %3098 = vmatprep.subr.mxu0 0.0
      %3099 = vmatpush1.msra.mxu0 0.0
      %3100 = vmatprep.subr.mxu0 0.0
      %3101 = vmatpush1.msra.mxu0 0.0
      %3102 = vmatprep.subr.mxu0 0.0
      %3103 = vmatpush1.msra.mxu0 0.0
      %3104 = vmatprep.subr.mxu0 0.0
      %3105 = vmatpush1.msra.mxu0 0.0
      %3106 = vmatprep.subr.mxu0 0.0
      %3107 = vmatpush1.msra.mxu0 0.0
      %3108 = vmatprep.subr.mxu0 0.0
      %3109 = vmatpush1.msra.mxu0 0.0
      %3110 = vmatprep.subr.mxu0 0.0
      %3111 = vmatpush1.msra.mxu0 0.0
      %3112 = vmatprep.subr.mxu0 0.0
      %3113 = vmatpush1.msra.mxu0 0.0
      %3114 = vmatprep.subr.mxu0 0.0
      %3115 = vmatpush1.msra.mxu0 0.0
      %3116 = vmatprep.subr.mxu0 0.0
      %3117 = vmatpush1.msra.mxu0 0.0
      %3118 = vmatprep.subr.mxu0 0.0
      %3119 = vmatpush1.msra.mxu0 0.0
      %3120 = vmatprep.subr.mxu0 0.0
      %3121 = vmatpush1.msra.mxu0 0.0
      %3122 = vmatprep.subr.mxu0 0.0
      %3123 = vmatpush1.msra.mxu0 0.0
      %3124 = vmatprep.subr.mxu0 0.0
      %3125 = vmatpush1.msra.mxu0 0.0
      %3126 = vmatprep.mubr.f32.mxu0 0.0
      %3127 = vmatmul.mubr.f32.gmra.mrb[0].mxu0 %v3015
      %v3128 = vpop.f32.mrb[0].mxu0
      %v3129 = vadd.f32 0.0, %v3128
      %v3130 = vpop.f32.mrb[0].mxu0
      %3131 = vmatprep.mubr.f32.mxu0 0.0
      %3132 = vmatmul.mubr.f32.gmra.mrb[0].mxu0 %v3018
      %v3133 = vpop.f32.mrb[0].mxu0
      %v3134 = vadd.f32 0.0, %v3133
      %v3135 = vpop.f32.mrb[0].mxu0
      %3136 = vmatprep.mubr.f32.mxu0 0.0
      %3137 = vmatmul.mubr.f32.gmra.mrb[0].mxu0 %v3021
      %v3138 = vpop.f32.mrb[0].mxu0
      %v3139 = vadd.f32 0.0, %v3138
      %v3140 = vpop.f32.mrb[0].mxu0
      %3141 = vmatprep.mubr.f32.mxu0 0.0
      %3142 = vmatmul.mubr.f32.gmra.mrb[0].mxu0 %v3024
      %v3143 = vpop.f32.mrb[0].mxu0
      %v3144 = vadd.f32 0.0, %v3143
      %v3145 = vpop.f32.mrb[0].mxu0
      %3146 = vmatprep.mubr.f32.mxu0 0.0
      %3147 = vmatmul.mubr.f32.gmra.mrb[0].mxu0 %v3027
      %v3148 = vpop.f32.mrb[0].mxu0
      %v3149 = vadd.f32 0.0, %v3148
      %v3150 = vpop.f32.mrb[0].mxu0
      %3151 = vmatprep.mubr.f32.mxu0 0.0
      %3152 = vmatmul.mubr.f32.gmra.mrb[0].mxu0 %v3030
      %v3153 = vpop.f32.mrb[0].mxu0
      %v3154 = vadd.f32 0.0, %v3153
      %v3155 = vpop.f32.mrb[0].mxu0
      %3156 = vmatprep.mubr.f32.mxu0 0.0
      %3157 = vmatmul.mubr.f32.gmra.mrb[0].mxu0 %v3033
      %v3158 = vpop.f32.mrb[0].mxu0
      %v3159 = vadd.f32 0.0, %v3158
      %v3160 = vpop.f32.mrb[0].mxu0
      %3161 = vmatprep.mubr.f32.mxu0 0.0
      %3162 = vmatmul.mubr.f32.gmra.mrb[0].mxu0 %v3036
      %v3163 = vpop.f32.mrb[0].mxu0
      %v3164 = vadd.f32 0.0, %v3163
      %v3165 = vpop.f32.mrb[0].mxu0
      %3166 = vmatprep.mubr.f32.mxu0 0.0
      %3167 = vmatmul.mubr.f32.gmra.mrb[0].mxu0 %v3039
      %v3168 = vpop.f32.mrb[0].mxu0
      %v3169 = vadd.f32 0.0, %v3168
      %v3170 = vpop.f32.mrb[0].mxu0
      %3171 = vmatprep.mubr.f32.mxu0 0.0
      %3172 = vmatmul.mubr.f32.gmra.mrb[0].mxu0 %v3042
      %v3173 = vpop.f32.mrb[0].mxu0
      %v3174 = vadd.f32 0.0, %v3173
      %v3175 = vpop.f32.mrb[0].mxu0
      %3176 = vmatprep.mubr.f32.mxu0 0.0
      %3177 = vmatmul.mubr.f32.gmra.mrb[0].mxu0 %v3045
      %v3178 = vpop.f32.mrb[0].mxu0
      %v3179 = vadd.f32 0.0, %v3178
      %v3180 = vpop.f32.mrb[0].mxu0
      %3181 = vmatprep.mubr.f32.mxu0 0.0
      %3182 = vmatmul.mubr.f32.gmra.mrb[0].mxu0 %v3048
      %v3183 = vpop.f32.mrb[0].mxu0
      %v3184 = vadd.f32 0.0, %v3183
      %v3185 = vpop.f32.mrb[0].mxu0
      %3186 = vmatprep.mubr.f32.mxu0 0.0
      %3187 = vmatmul.mubr.f32.gmra.mrb[0].mxu0 %v3051
      %v3188 = vpop.f32.mrb[0].mxu0
      %v3189 = vadd.f32 0.0, %v3188
      %v3190 = vpop.f32.mrb[0].mxu0
      %3191 = vmatprep.mubr.f32.mxu0 0.0
      %3192 = vmatmul.mubr.f32.gmra.mrb[0].mxu0 %v3054
      %v3193 = vpop.f32.mrb[0].mxu0
      %v3194 = vadd.f32 0.0, %v3193
      %v3195 = vpop.f32.mrb[0].mxu0
      %3196 = vmatprep.mubr.f32.mxu0 0.0
      %3197 = vmatmul.mubr.f32.gmra.mrb[0].mxu0 %v3057
      %v3198 = vpop.f32.mrb[0].mxu0
      %v3199 = vadd.f32 0.0, %v3198
      %v3200 = vpop.f32.mrb[0].mxu0
      %3201 = vmatprep.mubr.f32.mxu0 0.0
      %3202 = vmatmul.mubr.f32.gmra.mrb[0].mxu0 %v3060
      %v3203 = vpop.f32.mrb[0].mxu0
      %v3204 = vadd.f32 0.0, %v3203
      %v3205 = vpop.f32.mrb[0].mxu0
      %3206 = vdwg.mxu0
      %v3207 = vadd.f32 %v2902, %v3129
      %v3208 = vadd.f32 %v2907, %v3134
      %v3209 = vadd.f32 %v2912, %v3139
      %v3210 = vadd.f32 %v2917, %v3144
      %v3211 = vadd.f32 %v2922, %v3149
      %v3212 = vadd.f32 %v2927, %v3154
      %v3213 = vadd.f32 %v2932, %v3159
      %v3214 = vadd.f32 %v2937, %v3164
      %v3215 = vadd.f32 %v2942, %v3169
      %v3216 = vadd.f32 %v2947, %v3174
      %v3217 = vadd.f32 %v2952, %v3179
      %v3218 = vadd.f32 %v2957, %v3184
      %v3219 = vadd.f32 %v2962, %v3189
      %v3220 = vadd.f32 %v2967, %v3194
      %v3221 = vadd.f32 %v2972, %v3199
      %v3222 = vadd.f32 %v2977, %v3204
      %v3223 = vld [vmem:[%s275] sm:$0xff]
      %v3224 = vld [vmem:[%s275 + $0x8] sm:$0xff]
      %v3225 = vld [vmem:[%s275 + $0x10] sm:$0xff]
      %v3226 = vld [vmem:[%s275 + $0x18] sm:$0xff]
      %v3227 = vld [vmem:[%s275 + $0x20] sm:$0xff]
      %v3228 = vld [vmem:[%s275 + $0x28] sm:$0xff]
      %v3229 = vld [vmem:[%s275 + $0x30] sm:$0xff]
      %v3230 = vld [vmem:[%s275 + $0x38] sm:$0xff]
      %v3231 = vld [vmem:[%s275 + $0x40] sm:$0xff]
      %v3232 = vld [vmem:[%s275 + $0x48] sm:$0xff]
      %v3233 = vld [vmem:[%s275 + $0x50] sm:$0xff]
      %v3234 = vld [vmem:[%s275 + $0x58] sm:$0xff]
      %v3235 = vld [vmem:[%s275 + $0x60] sm:$0xff]
      %v3236 = vld [vmem:[%s275 + $0x68] sm:$0xff]
      %v3237 = vld [vmem:[%s275 + $0x70] sm:$0xff]
      %v3238 = vld [vmem:[%s275 + $0x78] sm:$0xff]
      %v3239 = vsel %vm312, %v3223, 0.0
      %v3240 = vsel %vm313, %v3224, 0.0
      %v3241 = vsel %vm312, %v3225, 0.0
      %v3242 = vsel %vm313, %v3226, 0.0
      %v3243 = vsel %vm312, %v3227, 0.0
      %v3244 = vsel %vm313, %v3228, 0.0
      %v3245 = vsel %vm312, %v3229, 0.0
      %v3246 = vsel %vm313, %v3230, 0.0
      %v3247 = vsel %vm312, %v3231, 0.0
      %v3248 = vsel %vm313, %v3232, 0.0
      %v3249 = vsel %vm312, %v3233, 0.0
      %v3250 = vsel %vm313, %v3234, 0.0
      %v3251 = vsel %vm312, %v3235, 0.0
      %v3252 = vsel %vm313, %v3236, 0.0
      %v3253 = vsel %vm312, %v3237, 0.0
      %v3254 = vsel %vm313, %v3238, 0.0
      %v3255 = vld [vmem:[%s1078] sm:$0xff]
      %v3257 = vsel %vm188, %v3239, 0
      %v3260 = vsel %vm188, %v3240, 0
      %v3263 = vsel %vm188, %v3241, 0
      %v3266 = vsel %vm188, %v3242, 0
      %v3269 = vsel %vm188, %v3243, 0
      %v3272 = vsel %vm188, %v3244, 0
      %v3275 = vsel %vm188, %v3245, 0
      %v3278 = vsel %vm188, %v3246, 0
      %v3281 = vsel %vm188, %v3247, 0
      %v3284 = vsel %vm188, %v3248, 0
      %v3287 = vsel %vm188, %v3249, 0
      %v3290 = vsel %vm188, %v3250, 0
      %v3293 = vsel %vm188, %v3251, 0
      %v3296 = vsel %vm188, %v3252, 0
      %v3299 = vsel %vm188, %v3253, 0
      %v3302 = vsel %vm188, %v3254, 0
      %3304 = vmatprep.subr.mxu0 0.0
      %3305 = vmatpush1.msra.mxu0 %v3255
      %3306 = vmatprep.subr.mxu0 0.0
      %3307 = vmatpush1.msra.mxu0 0.0
      %3308 = vmatprep.subr.mxu0 0.0
      %3309 = vmatpush1.msra.mxu0 0.0
      %3310 = vmatprep.subr.mxu0 0.0
      %3311 = vmatpush1.msra.mxu0 0.0
      %3312 = vmatprep.subr.mxu0 0.0
      %3313 = vmatpush1.msra.mxu0 0.0
      %3314 = vmatprep.subr.mxu0 0.0
      %3315 = vmatpush1.msra.mxu0 0.0
      %3316 = vmatprep.subr.mxu0 0.0
      %3317 = vmatpush1.msra.mxu0 0.0
      %3318 = vmatprep.subr.mxu0 0.0
      %3319 = vmatpush1.msra.mxu0 0.0
      %3320 = vmatprep.subr.mxu0 0.0
      %3321 = vmatpush1.msra.mxu0 0.0
      %3322 = vmatprep.subr.mxu0 0.0
      %3323 = vmatpush1.msra.mxu0 0.0
      %3324 = vmatprep.subr.mxu0 0.0
      %3325 = vmatpush1.msra.mxu0 0.0
      %3326 = vmatprep.subr.mxu0 0.0
      %3327 = vmatpush1.msra.mxu0 0.0
      %3328 = vmatprep.subr.mxu0 0.0
      %3329 = vmatpush1.msra.mxu0 0.0
      %3330 = vmatprep.subr.mxu0 0.0
      %3331 = vmatpush1.msra.mxu0 0.0
      %3332 = vmatprep.subr.mxu0 0.0
      %3333 = vmatpush1.msra.mxu0 0.0
      %3334 = vmatprep.subr.mxu0 0.0
      %3335 = vmatpush1.msra.mxu0 0.0
      %3336 = vmatprep.subr.mxu0 0.0
      %3337 = vmatpush1.msra.mxu0 0.0
      %3338 = vmatprep.subr.mxu0 0.0
      %3339 = vmatpush1.msra.mxu0 0.0
      %3340 = vmatprep.subr.mxu0 0.0
      %3341 = vmatpush1.msra.mxu0 0.0
      %3342 = vmatprep.subr.mxu0 0.0
      %3343 = vmatpush1.msra.mxu0 0.0
      %3344 = vmatprep.subr.mxu0 0.0
      %3345 = vmatpush1.msra.mxu0 0.0
      %3346 = vmatprep.subr.mxu0 0.0
      %3347 = vmatpush1.msra.mxu0 0.0
      %3348 = vmatprep.subr.mxu0 0.0
      %3349 = vmatpush1.msra.mxu0 0.0
      %3350 = vmatprep.subr.mxu0 0.0
      %3351 = vmatpush1.msra.mxu0 0.0
      %3352 = vmatprep.subr.mxu0 0.0
      %3353 = vmatpush1.msra.mxu0 0.0
      %3354 = vmatprep.subr.mxu0 0.0
      %3355 = vmatpush1.msra.mxu0 0.0
      %3356 = vmatprep.subr.mxu0 0.0
      %3357 = vmatpush1.msra.mxu0 0.0
      %3358 = vmatprep.subr.mxu0 0.0
      %3359 = vmatpush1.msra.mxu0 0.0
      %3360 = vmatprep.subr.mxu0 0.0
      %3361 = vmatpush1.msra.mxu0 0.0
      %3362 = vmatprep.subr.mxu0 0.0
      %3363 = vmatpush1.msra.mxu0 0.0
      %3364 = vmatprep.subr.mxu0 0.0
      %3365 = vmatpush1.msra.mxu0 0.0
      %3366 = vmatprep.subr.mxu0 0.0
      %3367 = vmatpush1.msra.mxu0 0.0
      %3368 = vmatprep.mubr.f32.mxu0 0.0
      %3369 = vmatmul.mubr.f32.gmra.mrb[0].mxu0 %v3257
      %v3370 = vpop.f32.mrb[0].mxu0
      %v3371 = vadd.f32 0.0, %v3370
      %v3372 = vpop.f32.mrb[0].mxu0
      %3373 = vmatprep.mubr.f32.mxu0 0.0
      %3374 = vmatmul.mubr.f32.gmra.mrb[0].mxu0 %v3260
      %v3375 = vpop.f32.mrb[0].mxu0
      %v3376 = vadd.f32 0.0, %v3375
      %v3377 = vpop.f32.mrb[0].mxu0
      %3378 = vmatprep.mubr.f32.mxu0 0.0
      %3379 = vmatmul.mubr.f32.gmra.mrb[0].mxu0 %v3263
      %v3380 = vpop.f32.mrb[0].mxu0
      %v3381 = vadd.f32 0.0, %v3380
      %v3382 = vpop.f32.mrb[0].mxu0
      %3383 = vmatprep.mubr.f32.mxu0 0.0
      %3384 = vmatmul.mubr.f32.gmra.mrb[0].mxu0 %v3266
      %v3385 = vpop.f32.mrb[0].mxu0
      %v3386 = vadd.f32 0.0, %v3385
      %v3387 = vpop.f32.mrb[0].mxu0
      %3388 = vmatprep.mubr.f32.mxu0 0.0
      %3389 = vmatmul.mubr.f32.gmra.mrb[0].mxu0 %v3269
      %v3390 = vpop.f32.mrb[0].mxu0
      %v3391 = vadd.f32 0.0, %v3390
      %v3392 = vpop.f32.mrb[0].mxu0
      %3393 = vmatprep.mubr.f32.mxu0 0.0
      %3394 = vmatmul.mubr.f32.gmra.mrb[0].mxu0 %v3272
      %v3395 = vpop.f32.mrb[0].mxu0
      %v3396 = vadd.f32 0.0, %v3395
      %v3397 = vpop.f32.mrb[0].mxu0
      %3398 = vmatprep.mubr.f32.mxu0 0.0
      %3399 = vmatmul.mubr.f32.gmra.mrb[0].mxu0 %v3275
      %v3400 = vpop.f32.mrb[0].mxu0
      %v3401 = vadd.f32 0.0, %v3400
      %v3402 = vpop.f32.mrb[0].mxu0
      %3403 = vmatprep.mubr.f32.mxu0 0.0
      %3404 = vmatmul.mubr.f32.gmra.mrb[0].mxu0 %v3278
      %v3405 = vpop.f32.mrb[0].mxu0
      %v3406 = vadd.f32 0.0, %v3405
      %v3407 = vpop.f32.mrb[0].mxu0
      %3408 = vmatprep.mubr.f32.mxu0 0.0
      %3409 = vmatmul.mubr.f32.gmra.mrb[0].mxu0 %v3281
      %v3410 = vpop.f32.mrb[0].mxu0
      %v3411 = vadd.f32 0.0, %v3410
      %v3412 = vpop.f32.mrb[0].mxu0
      %3413 = vmatprep.mubr.f32.mxu0 0.0
      %3414 = vmatmul.mubr.f32.gmra.mrb[0].mxu0 %v3284
      %v3415 = vpop.f32.mrb[0].mxu0
      %v3416 = vadd.f32 0.0, %v3415
      %v3417 = vpop.f32.mrb[0].mxu0
      %3418 = vmatprep.mubr.f32.mxu0 0.0
      %3419 = vmatmul.mubr.f32.gmra.mrb[0].mxu0 %v3287
      %v3420 = vpop.f32.mrb[0].mxu0
      %v3421 = vadd.f32 0.0, %v3420
      %v3422 = vpop.f32.mrb[0].mxu0
      %3423 = vmatprep.mubr.f32.mxu0 0.0
      %3424 = vmatmul.mubr.f32.gmra.mrb[0].mxu0 %v3290
      %v3425 = vpop.f32.mrb[0].mxu0
      %v3426 = vadd.f32 0.0, %v3425
      %v3427 = vpop.f32.mrb[0].mxu0
      %3428 = vmatprep.mubr.f32.mxu0 0.0
      %3429 = vmatmul.mubr.f32.gmra.mrb[0].mxu0 %v3293
      %v3430 = vpop.f32.mrb[0].mxu0
      %v3431 = vadd.f32 0.0, %v3430
      %v3432 = vpop.f32.mrb[0].mxu0
      %3433 = vmatprep.mubr.f32.mxu0 0.0
      %3434 = vmatmul.mubr.f32.gmra.mrb[0].mxu0 %v3296
      %v3435 = vpop.f32.mrb[0].mxu0
      %v3436 = vadd.f32 0.0, %v3435
      %v3437 = vpop.f32.mrb[0].mxu0
      %3438 = vmatprep.mubr.f32.mxu0 0.0
      %3439 = vmatmul.mubr.f32.gmra.mrb[0].mxu0 %v3299
      %v3440 = vpop.f32.mrb[0].mxu0
      %v3441 = vadd.f32 0.0, %v3440
      %v3442 = vpop.f32.mrb[0].mxu0
      %3443 = vmatprep.mubr.f32.mxu0 0.0
      %3444 = vmatmul.mubr.f32.gmra.mrb[0].mxu0 %v3302
      %v3445 = vpop.f32.mrb[0].mxu0
      %v3446 = vadd.f32 0.0, %v3445
      %v3447 = vpop.f32.mrb[0].mxu0
      %3448 = vdwg.mxu0
      %v3449 = vadd.f32 %v3207, %v3371
      %v3450 = vadd.f32 %v3208, %v3376
      %v3451 = vadd.f32 %v3209, %v3381
      %v3452 = vadd.f32 %v3210, %v3386
      %v3453 = vadd.f32 %v3211, %v3391
      %v3454 = vadd.f32 %v3212, %v3396
      %v3455 = vadd.f32 %v3213, %v3401
      %v3456 = vadd.f32 %v3214, %v3406
      %v3457 = vadd.f32 %v3215, %v3411
      %v3458 = vadd.f32 %v3216, %v3416
      %v3459 = vadd.f32 %v3217, %v3421
      %v3460 = vadd.f32 %v3218, %v3426
      %v3461 = vadd.f32 %v3219, %v3431
      %v3462 = vadd.f32 %v3220, %v3436
      %v3463 = vadd.f32 %v3221, %v3441
      %v3464 = vadd.f32 %v3222, %v3446
      %v3465 = vld [vmem:[%s258] sm:$0xff]
      %v3466 = vld [vmem:[%s258 + $0x8] sm:$0xff]
      %v3467 = vld [vmem:[%s258 + $0x10] sm:$0xff]
      %v3468 = vld [vmem:[%s258 + $0x18] sm:$0xff]
      %v3469 = vld [vmem:[%s258 + $0x20] sm:$0xff]
      %v3470 = vld [vmem:[%s258 + $0x28] sm:$0xff]
      %v3471 = vld [vmem:[%s258 + $0x30] sm:$0xff]
      %v3472 = vld [vmem:[%s258 + $0x38] sm:$0xff]
      %v3473 = vld [vmem:[%s258 + $0x40] sm:$0xff]
      %v3474 = vld [vmem:[%s258 + $0x48] sm:$0xff]
      %v3475 = vld [vmem:[%s258 + $0x50] sm:$0xff]
      %v3476 = vld [vmem:[%s258 + $0x58] sm:$0xff]
      %v3477 = vld [vmem:[%s258 + $0x60] sm:$0xff]
      %v3478 = vld [vmem:[%s258 + $0x68] sm:$0xff]
      %v3479 = vld [vmem:[%s258 + $0x70] sm:$0xff]
      %v3480 = vld [vmem:[%s258 + $0x78] sm:$0xff]
      %v3481 = vld [vmem:[%s1305] sm:$0xff]
      %v3483 = vsel %vm188, %v3465, 0
      %v3486 = vsel %vm188, %v3466, 0
      %v3489 = vsel %vm188, %v3467, 0
      %v3492 = vsel %vm188, %v3468, 0
      %v3495 = vsel %vm188, %v3469, 0
      %v3498 = vsel %vm188, %v3470, 0
      %v3501 = vsel %vm188, %v3471, 0
      %v3504 = vsel %vm188, %v3472, 0
      %v3507 = vsel %vm188, %v3473, 0
      %v3510 = vsel %vm188, %v3474, 0
      %v3513 = vsel %vm188, %v3475, 0
      %v3516 = vsel %vm188, %v3476, 0
      %v3519 = vsel %vm188, %v3477, 0
      %v3522 = vsel %vm188, %v3478, 0
      %v3525 = vsel %vm188, %v3479, 0
      %v3528 = vsel %vm188, %v3480, 0
      %3530 = vmatprep.subr.mxu0 0.0
      %3531 = vmatpush1.msra.mxu0 %v3481
      %3532 = vmatprep.subr.mxu0 0.0
      %3533 = vmatpush1.msra.mxu0 0.0
      %3534 = vmatprep.subr.mxu0 0.0
      %3535 = vmatpush1.msra.mxu0 0.0
      %3536 = vmatprep.subr.mxu0 0.0
      %3537 = vmatpush1.msra.mxu0 0.0
      %3538 = vmatprep.subr.mxu0 0.0
      %3539 = vmatpush1.msra.mxu0 0.0
      %3540 = vmatprep.subr.mxu0 0.0
      %3541 = vmatpush1.msra.mxu0 0.0
      %3542 = vmatprep.subr.mxu0 0.0
      %3543 = vmatpush1.msra.mxu0 0.0
      %3544 = vmatprep.subr.mxu0 0.0
      %3545 = vmatpush1.msra.mxu0 0.0
      %3546 = vmatprep.subr.mxu0 0.0
      %3547 = vmatpush1.msra.mxu0 0.0
      %3548 = vmatprep.subr.mxu0 0.0
      %3549 = vmatpush1.msra.mxu0 0.0
      %3550 = vmatprep.subr.mxu0 0.0
      %3551 = vmatpush1.msra.mxu0 0.0
      %3552 = vmatprep.subr.mxu0 0.0
      %3553 = vmatpush1.msra.mxu0 0.0
      %3554 = vmatprep.subr.mxu0 0.0
      %3555 = vmatpush1.msra.mxu0 0.0
      %3556 = vmatprep.subr.mxu0 0.0
      %3557 = vmatpush1.msra.mxu0 0.0
      %3558 = vmatprep.subr.mxu0 0.0
      %3559 = vmatpush1.msra.mxu0 0.0
      %3560 = vmatprep.subr.mxu0 0.0
      %3561 = vmatpush1.msra.mxu0 0.0
      %3562 = vmatprep.subr.mxu0 0.0
      %3563 = vmatpush1.msra.mxu0 0.0
      %3564 = vmatprep.subr.mxu0 0.0
      %3565 = vmatpush1.msra.mxu0 0.0
      %3566 = vmatprep.subr.mxu0 0.0
      %3567 = vmatpush1.msra.mxu0 0.0
      %3568 = vmatprep.subr.mxu0 0.0
      %3569 = vmatpush1.msra.mxu0 0.0
      %3570 = vmatprep.subr.mxu0 0.0
      %3571 = vmatpush1.msra.mxu0 0.0
      %3572 = vmatprep.subr.mxu0 0.0
      %3573 = vmatpush1.msra.mxu0 0.0
      %3574 = vmatprep.subr.mxu0 0.0
      %3575 = vmatpush1.msra.mxu0 0.0
      %3576 = vmatprep.subr.mxu0 0.0
      %3577 = vmatpush1.msra.mxu0 0.0
      %3578 = vmatprep.subr.mxu0 0.0
      %3579 = vmatpush1.msra.mxu0 0.0
      %3580 = vmatprep.subr.mxu0 0.0
      %3581 = vmatpush1.msra.mxu0 0.0
      %3582 = vmatprep.subr.mxu0 0.0
      %3583 = vmatpush1.msra.mxu0 0.0
      %3584 = vmatprep.subr.mxu0 0.0
      %3585 = vmatpush1.msra.mxu0 0.0
      %3586 = vmatprep.subr.mxu0 0.0
      %3587 = vmatpush1.msra.mxu0 0.0
      %3588 = vmatprep.subr.mxu0 0.0
      %3589 = vmatpush1.msra.mxu0 0.0
      %3590 = vmatprep.subr.mxu0 0.0
      %3591 = vmatpush1.msra.mxu0 0.0
      %3592 = vmatprep.subr.mxu0 0.0
      %3593 = vmatpush1.msra.mxu0 0.0
      %3594 = vmatprep.mubr.f32.mxu0 0.0
      %3595 = vmatmul.mubr.f32.gmra.mrb[0].mxu0 %v3483
      %v3596 = vpop.f32.mrb[0].mxu0
      %v3597 = vadd.f32 0.0, %v3596
      %v3598 = vpop.f32.mrb[0].mxu0
      %3599 = vmatprep.mubr.f32.mxu0 0.0
      %3600 = vmatmul.mubr.f32.gmra.mrb[0].mxu0 %v3486
      %v3601 = vpop.f32.mrb[0].mxu0
      %v3602 = vadd.f32 0.0, %v3601
      %v3603 = vpop.f32.mrb[0].mxu0
      %3604 = vmatprep.mubr.f32.mxu0 0.0
      %3605 = vmatmul.mubr.f32.gmra.mrb[0].mxu0 %v3489
      %v3606 = vpop.f32.mrb[0].mxu0
      %v3607 = vadd.f32 0.0, %v3606
      %v3608 = vpop.f32.mrb[0].mxu0
      %3609 = vmatprep.mubr.f32.mxu0 0.0
      %3610 = vmatmul.mubr.f32.gmra.mrb[0].mxu0 %v3492
      %v3611 = vpop.f32.mrb[0].mxu0
      %v3612 = vadd.f32 0.0, %v3611
      %v3613 = vpop.f32.mrb[0].mxu0
      %3614 = vmatprep.mubr.f32.mxu0 0.0
      %3615 = vmatmul.mubr.f32.gmra.mrb[0].mxu0 %v3495
      %v3616 = vpop.f32.mrb[0].mxu0
      %v3617 = vadd.f32 0.0, %v3616
      %v3618 = vpop.f32.mrb[0].mxu0
      %3619 = vmatprep.mubr.f32.mxu0 0.0
      %3620 = vmatmul.mubr.f32.gmra.mrb[0].mxu0 %v3498
      %v3621 = vpop.f32.mrb[0].mxu0
      %v3622 = vadd.f32 0.0, %v3621
      %v3623 = vpop.f32.mrb[0].mxu0
      %3624 = vmatprep.mubr.f32.mxu0 0.0
      %3625 = vmatmul.mubr.f32.gmra.mrb[0].mxu0 %v3501
      %v3626 = vpop.f32.mrb[0].mxu0
      %v3627 = vadd.f32 0.0, %v3626
      %v3628 = vpop.f32.mrb[0].mxu0
      %3629 = vmatprep.mubr.f32.mxu0 0.0
      %3630 = vmatmul.mubr.f32.gmra.mrb[0].mxu0 %v3504
      %v3631 = vpop.f32.mrb[0].mxu0
      %v3632 = vadd.f32 0.0, %v3631
      %v3633 = vpop.f32.mrb[0].mxu0
      %3634 = vmatprep.mubr.f32.mxu0 0.0
      %3635 = vmatmul.mubr.f32.gmra.mrb[0].mxu0 %v3507
      %v3636 = vpop.f32.mrb[0].mxu0
      %v3637 = vadd.f32 0.0, %v3636
      %v3638 = vpop.f32.mrb[0].mxu0
      %3639 = vmatprep.mubr.f32.mxu0 0.0
      %3640 = vmatmul.mubr.f32.gmra.mrb[0].mxu0 %v3510
      %v3641 = vpop.f32.mrb[0].mxu0
      %v3642 = vadd.f32 0.0, %v3641
      %v3643 = vpop.f32.mrb[0].mxu0
      %3644 = vmatprep.mubr.f32.mxu0 0.0
      %3645 = vmatmul.mubr.f32.gmra.mrb[0].mxu0 %v3513
      %v3646 = vpop.f32.mrb[0].mxu0
      %v3647 = vadd.f32 0.0, %v3646
      %v3648 = vpop.f32.mrb[0].mxu0
      %3649 = vmatprep.mubr.f32.mxu0 0.0
      %3650 = vmatmul.mubr.f32.gmra.mrb[0].mxu0 %v3516
      %v3651 = vpop.f32.mrb[0].mxu0
      %v3652 = vadd.f32 0.0, %v3651
      %v3653 = vpop.f32.mrb[0].mxu0
      %3654 = vmatprep.mubr.f32.mxu0 0.0
      %3655 = vmatmul.mubr.f32.gmra.mrb[0].mxu0 %v3519
      %v3656 = vpop.f32.mrb[0].mxu0
      %v3657 = vadd.f32 0.0, %v3656
      %v3658 = vpop.f32.mrb[0].mxu0
      %3659 = vmatprep.mubr.f32.mxu0 0.0
      %3660 = vmatmul.mubr.f32.gmra.mrb[0].mxu0 %v3522
      %v3661 = vpop.f32.mrb[0].mxu0
      %v3662 = vadd.f32 0.0, %v3661
      %v3663 = vpop.f32.mrb[0].mxu0
      %3664 = vmatprep.mubr.f32.mxu0 0.0
      %3665 = vmatmul.mubr.f32.gmra.mrb[0].mxu0 %v3525
      %v3666 = vpop.f32.mrb[0].mxu0
      %v3667 = vadd.f32 0.0, %v3666
      %v3668 = vpop.f32.mrb[0].mxu0
      %3669 = vmatprep.mubr.f32.mxu0 0.0
      %3670 = vmatmul.mubr.f32.gmra.mrb[0].mxu0 %v3528
      %v3671 = vpop.f32.mrb[0].mxu0
      %v3672 = vadd.f32 0.0, %v3671
      %v3673 = vpop.f32.mrb[0].mxu0
      %3674 = vdwg.mxu0
      %v3675 = vadd.f32 %v3449, %v3597
      %v3676 = vadd.f32 %v3450, %v3602
      %v3677 = vadd.f32 %v3451, %v3607
      %v3678 = vadd.f32 %v3452, %v3612
      %v3679 = vadd.f32 %v3453, %v3617
      %v3680 = vadd.f32 %v3454, %v3622
      %v3681 = vadd.f32 %v3455, %v3627
      %v3682 = vadd.f32 %v3456, %v3632
      %v3683 = vadd.f32 %v3457, %v3637
      %v3684 = vadd.f32 %v3458, %v3642
      %v3685 = vadd.f32 %v3459, %v3647
      %v3686 = vadd.f32 %v3460, %v3652
      %v3687 = vadd.f32 %v3461, %v3657
      %v3688 = vadd.f32 %v3462, %v3662
      %v3689 = vadd.f32 %v3463, %v3667
      %v3690 = vadd.f32 %v3464, %v3672
      %v3691 = vld [vmem:[%s292] sm:$0xff]
      %v3692 = vld [vmem:[%s292 + $0x8] sm:$0xff]
      %v3693 = vld [vmem:[%s292 + $0x10] sm:$0xff]
      %v3694 = vld [vmem:[%s292 + $0x18] sm:$0xff]
      %v3695 = vld [vmem:[%s292 + $0x20] sm:$0xff]
      %v3696 = vld [vmem:[%s292 + $0x28] sm:$0xff]
      %v3697 = vld [vmem:[%s292 + $0x30] sm:$0xff]
      %v3698 = vld [vmem:[%s292 + $0x38] sm:$0xff]
      %v3699 = vld [vmem:[%s292 + $0x40] sm:$0xff]
      %v3700 = vld [vmem:[%s292 + $0x48] sm:$0xff]
      %v3701 = vld [vmem:[%s292 + $0x50] sm:$0xff]
      %v3702 = vld [vmem:[%s292 + $0x58] sm:$0xff]
      %v3703 = vld [vmem:[%s292 + $0x60] sm:$0xff]
      %v3704 = vld [vmem:[%s292 + $0x68] sm:$0xff]
      %v3705 = vld [vmem:[%s292 + $0x70] sm:$0xff]
      %v3706 = vld [vmem:[%s292 + $0x78] sm:$0xff]
      %v3707 = vsel %vm314, %v3691, 0.0
      %v3708 = vsel %vm315, %v3692, 0.0
      %v3709 = vsel %vm314, %v3693, 0.0
      %v3710 = vsel %vm315, %v3694, 0.0
      %v3711 = vsel %vm314, %v3695, 0.0
      %v3712 = vsel %vm315, %v3696, 0.0
      %v3713 = vsel %vm314, %v3697, 0.0
      %v3714 = vsel %vm315, %v3698, 0.0
      %v3715 = vsel %vm314, %v3699, 0.0
      %v3716 = vsel %vm315, %v3700, 0.0
      %v3717 = vsel %vm314, %v3701, 0.0
      %v3718 = vsel %vm315, %v3702, 0.0
      %v3719 = vsel %vm314, %v3703, 0.0
      %v3720 = vsel %vm315, %v3704, 0.0
      %v3721 = vsel %vm314, %v3705, 0.0
      %v3722 = vsel %vm315, %v3706, 0.0
      %v3723 = vld [vmem:[%s1548] sm:$0xff]
      %v3725 = vsel %vm188, %v3707, 0
      %v3728 = vsel %vm188, %v3708, 0
      %v3731 = vsel %vm188, %v3709, 0
      %v3734 = vsel %vm188, %v3710, 0
      %v3737 = vsel %vm188, %v3711, 0
      %v3740 = vsel %vm188, %v3712, 0
      %v3743 = vsel %vm188, %v3713, 0
      %v3746 = vsel %vm188, %v3714, 0
      %v3749 = vsel %vm188, %v3715, 0
      %v3752 = vsel %vm188, %v3716, 0
      %v3755 = vsel %vm188, %v3717, 0
      %v3758 = vsel %vm188, %v3718, 0
      %v3761 = vsel %vm188, %v3719, 0
      %v3764 = vsel %vm188, %v3720, 0
      %v3767 = vsel %vm188, %v3721, 0
      %v3770 = vsel %vm188, %v3722, 0
      %3772 = vmatprep.subr.mxu0 0.0
      %3773 = vmatpush1.msra.mxu0 %v3723
      %3774 = vmatprep.subr.mxu0 0.0
      %3775 = vmatpush1.msra.mxu0 0.0
      %3776 = vmatprep.subr.mxu0 0.0
      %3777 = vmatpush1.msra.mxu0 0.0
      %3778 = vmatprep.subr.mxu0 0.0
      %3779 = vmatpush1.msra.mxu0 0.0
      %3780 = vmatprep.subr.mxu0 0.0
      %3781 = vmatpush1.msra.mxu0 0.0
      %3782 = vmatprep.subr.mxu0 0.0
      %3783 = vmatpush1.msra.mxu0 0.0
      %3784 = vmatprep.subr.mxu0 0.0
      %3785 = vmatpush1.msra.mxu0 0.0
      %3786 = vmatprep.subr.mxu0 0.0
      %3787 = vmatpush1.msra.mxu0 0.0
      %3788 = vmatprep.subr.mxu0 0.0
      %3789 = vmatpush1.msra.mxu0 0.0
      %3790 = vmatprep.subr.mxu0 0.0
      %3791 = vmatpush1.msra.mxu0 0.0
      %3792 = vmatprep.subr.mxu0 0.0
      %3793 = vmatpush1.msra.mxu0 0.0
      %3794 = vmatprep.subr.mxu0 0.0
      %3795 = vmatpush1.msra.mxu0 0.0
      %3796 = vmatprep.subr.mxu0 0.0
      %3797 = vmatpush1.msra.mxu0 0.0
      %3798 = vmatprep.subr.mxu0 0.0
      %3799 = vmatpush1.msra.mxu0 0.0
      %3800 = vmatprep.subr.mxu0 0.0
      %3801 = vmatpush1.msra.mxu0 0.0
      %3802 = vmatprep.subr.mxu0 0.0
      %3803 = vmatpush1.msra.mxu0 0.0
      %3804 = vmatprep.subr.mxu0 0.0
      %3805 = vmatpush1.msra.mxu0 0.0
      %3806 = vmatprep.subr.mxu0 0.0
      %3807 = vmatpush1.msra.mxu0 0.0
      %3808 = vmatprep.subr.mxu0 0.0
      %3809 = vmatpush1.msra.mxu0 0.0
      %3810 = vmatprep.subr.mxu0 0.0
      %3811 = vmatpush1.msra.mxu0 0.0
      %3812 = vmatprep.subr.mxu0 0.0
      %3813 = vmatpush1.msra.mxu0 0.0
      %3814 = vmatprep.subr.mxu0 0.0
      %3815 = vmatpush1.msra.mxu0 0.0
      %3816 = vmatprep.subr.mxu0 0.0
      %3817 = vmatpush1.msra.mxu0 0.0
      %3818 = vmatprep.subr.mxu0 0.0
      %3819 = vmatpush1.msra.mxu0 0.0
      %3820 = vmatprep.subr.mxu0 0.0
      %3821 = vmatpush1.msra.mxu0 0.0
      %3822 = vmatprep.subr.mxu0 0.0
      %3823 = vmatpush1.msra.mxu0 0.0
      %3824 = vmatprep.subr.mxu0 0.0
      %3825 = vmatpush1.msra.mxu0 0.0
      %3826 = vmatprep.subr.mxu0 0.0
      %3827 = vmatpush1.msra.mxu0 0.0
      %3828 = vmatprep.subr.mxu0 0.0
      %3829 = vmatpush1.msra.mxu0 0.0
      %3830 = vmatprep.subr.mxu0 0.0
      %3831 = vmatpush1.msra.mxu0 0.0
      %3832 = vmatprep.subr.mxu0 0.0
      %3833 = vmatpush1.msra.mxu0 0.0
      %3834 = vmatprep.subr.mxu0 0.0
      %3835 = vmatpush1.msra.mxu0 0.0
      %3836 = vmatprep.mubr.f32.mxu0 0.0
      %3837 = vmatmul.mubr.f32.gmra.mrb[0].mxu0 %v3725
      %v3838 = vpop.f32.mrb[0].mxu0
      %v3839 = vadd.f32 0.0, %v3838
      %v3840 = vpop.f32.mrb[0].mxu0
      %3841 = vmatprep.mubr.f32.mxu0 0.0
      %3842 = vmatmul.mubr.f32.gmra.mrb[0].mxu0 %v3728
      %v3843 = vpop.f32.mrb[0].mxu0
      %v3844 = vadd.f32 0.0, %v3843
      %v3845 = vpop.f32.mrb[0].mxu0
      %3846 = vmatprep.mubr.f32.mxu0 0.0
      %3847 = vmatmul.mubr.f32.gmra.mrb[0].mxu0 %v3731
      %v3848 = vpop.f32.mrb[0].mxu0
      %v3849 = vadd.f32 0.0, %v3848
      %v3850 = vpop.f32.mrb[0].mxu0
      %3851 = vmatprep.mubr.f32.mxu0 0.0
      %3852 = vmatmul.mubr.f32.gmra.mrb[0].mxu0 %v3734
      %v3853 = vpop.f32.mrb[0].mxu0
      %v3854 = vadd.f32 0.0, %v3853
      %v3855 = vpop.f32.mrb[0].mxu0
      %3856 = vmatprep.mubr.f32.mxu0 0.0
      %3857 = vmatmul.mubr.f32.gmra.mrb[0].mxu0 %v3737
      %v3858 = vpop.f32.mrb[0].mxu0
      %v3859 = vadd.f32 0.0, %v3858
      %v3860 = vpop.f32.mrb[0].mxu0
      %3861 = vmatprep.mubr.f32.mxu0 0.0
      %3862 = vmatmul.mubr.f32.gmra.mrb[0].mxu0 %v3740
      %v3863 = vpop.f32.mrb[0].mxu0
      %v3864 = vadd.f32 0.0, %v3863
      %v3865 = vpop.f32.mrb[0].mxu0
      %3866 = vmatprep.mubr.f32.mxu0 0.0
      %3867 = vmatmul.mubr.f32.gmra.mrb[0].mxu0 %v3743
      %v3868 = vpop.f32.mrb[0].mxu0
      %v3869 = vadd.f32 0.0, %v3868
      %v3870 = vpop.f32.mrb[0].mxu0
      %3871 = vmatprep.mubr.f32.mxu0 0.0
      %3872 = vmatmul.mubr.f32.gmra.mrb[0].mxu0 %v3746
      %v3873 = vpop.f32.mrb[0].mxu0
      %v3874 = vadd.f32 0.0, %v3873
      %v3875 = vpop.f32.mrb[0].mxu0
      %3876 = vmatprep.mubr.f32.mxu0 0.0
      %3877 = vmatmul.mubr.f32.gmra.mrb[0].mxu0 %v3749
      %v3878 = vpop.f32.mrb[0].mxu0
      %v3879 = vadd.f32 0.0, %v3878
      %v3880 = vpop.f32.mrb[0].mxu0
      %3881 = vmatprep.mubr.f32.mxu0 0.0
      %3882 = vmatmul.mubr.f32.gmra.mrb[0].mxu0 %v3752
      %v3883 = vpop.f32.mrb[0].mxu0
      %v3884 = vadd.f32 0.0, %v3883
      %v3885 = vpop.f32.mrb[0].mxu0
      %3886 = vmatprep.mubr.f32.mxu0 0.0
      %3887 = vmatmul.mubr.f32.gmra.mrb[0].mxu0 %v3755
      %v3888 = vpop.f32.mrb[0].mxu0
      %v3889 = vadd.f32 0.0, %v3888
      %v3890 = vpop.f32.mrb[0].mxu0
      %3891 = vmatprep.mubr.f32.mxu0 0.0
      %3892 = vmatmul.mubr.f32.gmra.mrb[0].mxu0 %v3758
      %v3893 = vpop.f32.mrb[0].mxu0
      %v3894 = vadd.f32 0.0, %v3893
      %v3895 = vpop.f32.mrb[0].mxu0
      %3896 = vmatprep.mubr.f32.mxu0 0.0
      %3897 = vmatmul.mubr.f32.gmra.mrb[0].mxu0 %v3761
      %v3898 = vpop.f32.mrb[0].mxu0
      %v3899 = vadd.f32 0.0, %v3898
      %v3900 = vpop.f32.mrb[0].mxu0
      %3901 = vmatprep.mubr.f32.mxu0 0.0
      %3902 = vmatmul.mubr.f32.gmra.mrb[0].mxu0 %v3764
      %v3903 = vpop.f32.mrb[0].mxu0
      %v3904 = vadd.f32 0.0, %v3903
      %v3905 = vpop.f32.mrb[0].mxu0
      %3906 = vmatprep.mubr.f32.mxu0 0.0
      %3907 = vmatmul.mubr.f32.gmra.mrb[0].mxu0 %v3767
      %v3908 = vpop.f32.mrb[0].mxu0
      %v3909 = vadd.f32 0.0, %v3908
      %v3910 = vpop.f32.mrb[0].mxu0
      %3911 = vmatprep.mubr.f32.mxu0 0.0
      %3912 = vmatmul.mubr.f32.gmra.mrb[0].mxu0 %v3770
      %v3913 = vpop.f32.mrb[0].mxu0
      %v3914 = vadd.f32 0.0, %v3913
      %v3915 = vpop.f32.mrb[0].mxu0
      %3916 = vdwg.mxu0
      %v3917 = vadd.f32 %v3675, %v3839
      %v3918 = vadd.f32 %v3676, %v3844
      %v3919 = vadd.f32 %v3677, %v3849
      %v3920 = vadd.f32 %v3678, %v3854
      %v3921 = vadd.f32 %v3679, %v3859
      %v3922 = vadd.f32 %v3680, %v3864
      %v3923 = vadd.f32 %v3681, %v3869
      %v3924 = vadd.f32 %v3682, %v3874
      %v3925 = vadd.f32 %v3683, %v3879
      %v3926 = vadd.f32 %v3684, %v3884
      %v3927 = vadd.f32 %v3685, %v3889
      %v3928 = vadd.f32 %v3686, %v3894
      %v3929 = vadd.f32 %v3687, %v3899
      %v3930 = vadd.f32 %v3688, %v3904
      %v3931 = vadd.f32 %v3689, %v3909
      %v3932 = vadd.f32 %v3690, %v3914
      %s3933 = scalar_lea.vmem [#allocation2], 160
      %v3934 = vld [vmem:[%s3933] sm:$0xff]
      %v3935 = vld [vmem:[%s3933 + $0x8] sm:$0xff]
      %v3936 = vld [vmem:[%s3933 + $0x10] sm:$0xff]
      %v3937 = vld [vmem:[%s3933 + $0x18] sm:$0xff]
      %v3938 = vld [vmem:[%s3933 + $0x20] sm:$0xff]
      %v3939 = vld [vmem:[%s3933 + $0x28] sm:$0xff]
      %v3940 = vld [vmem:[%s3933 + $0x30] sm:$0xff]
      %v3941 = vld [vmem:[%s3933 + $0x38] sm:$0xff]
      %v3942 = vld [vmem:[%s3933 + $0x40] sm:$0xff]
      %v3943 = vld [vmem:[%s3933 + $0x48] sm:$0xff]
      %v3944 = vld [vmem:[%s3933 + $0x50] sm:$0xff]
      %v3945 = vld [vmem:[%s3933 + $0x58] sm:$0xff]
      %v3946 = vld [vmem:[%s3933 + $0x60] sm:$0xff]
      %v3947 = vld [vmem:[%s3933 + $0x68] sm:$0xff]
      %v3948 = vld [vmem:[%s3933 + $0x70] sm:$0xff]
      %v3949 = vld [vmem:[%s3933 + $0x78] sm:$0xff]
      %v3950 = vsel %vm312, %v3934, 0.0
      %v3951 = vsel %vm313, %v3935, 0.0
      %v3952 = vsel %vm312, %v3936, 0.0
      %v3953 = vsel %vm313, %v3937, 0.0
      %v3954 = vsel %vm312, %v3938, 0.0
      %v3955 = vsel %vm313, %v3939, 0.0
      %v3956 = vsel %vm312, %v3940, 0.0
      %v3957 = vsel %vm313, %v3941, 0.0
      %v3958 = vsel %vm312, %v3942, 0.0
      %v3959 = vsel %vm313, %v3943, 0.0
      %v3960 = vsel %vm312, %v3944, 0.0
      %v3961 = vsel %vm313, %v3945, 0.0
      %v3962 = vsel %vm312, %v3946, 0.0
      %v3963 = vsel %vm313, %v3947, 0.0
      %v3964 = vsel %vm312, %v3948, 0.0
      %v3965 = vsel %vm313, %v3949, 0.0
      %v3966 = vsel 1, %v3950, 0.0
      %v3967 = vsel 1, %v3951, 0.0
      %v3968 = vsel 1, %v3952, 0.0
      %v3969 = vsel 1, %v3953, 0.0
      %v3970 = vsel 1, %v3954, 0.0
      %v3971 = vsel 1, %v3955, 0.0
      %v3972 = vsel 1, %v3956, 0.0
      %v3973 = vsel 1, %v3957, 0.0
      %v3974 = vsel 1, %v3958, 0.0
      %v3975 = vsel 1, %v3959, 0.0
      %v3976 = vsel 1, %v3960, 0.0
      %v3977 = vsel 1, %v3961, 0.0
      %v3978 = vsel 1, %v3962, 0.0
      %v3979 = vsel 1, %v3963, 0.0
      %v3980 = vsel 0, %v3964, 0.0
      %v3981 = vsel 0, %v3965, 0.0
      %v3982 = vld [vmem:[%s1792] sm:$0xff]
      %v3984 = vsel %vm188, %v3966, 0
      %v3987 = vsel %vm188, %v3967, 0
      %v3990 = vsel %vm188, %v3968, 0
      %v3993 = vsel %vm188, %v3969, 0
      %v3996 = vsel %vm188, %v3970, 0
      %v3999 = vsel %vm188, %v3971, 0
      %v4002 = vsel %vm188, %v3972, 0
      %v4005 = vsel %vm188, %v3973, 0
      %v4008 = vsel %vm188, %v3974, 0
      %v4011 = vsel %vm188, %v3975, 0
      %v4014 = vsel %vm188, %v3976, 0
      %v4017 = vsel %vm188, %v3977, 0
      %v4020 = vsel %vm188, %v3978, 0
      %v4023 = vsel %vm188, %v3979, 0
      %v4026 = vsel %vm188, %v3980, 0
      %v4029 = vsel %vm188, %v3981, 0
      %4031 = vmatprep.subr.mxu0 0.0
      %4032 = vmatpush1.msra.mxu0 %v3982
      %4033 = vmatprep.subr.mxu0 0.0
      %4034 = vmatpush1.msra.mxu0 0.0
      %4035 = vmatprep.subr.mxu0 0.0
      %4036 = vmatpush1.msra.mxu0 0.0
      %4037 = vmatprep.subr.mxu0 0.0
      %4038 = vmatpush1.msra.mxu0 0.0
      %4039 = vmatprep.subr.mxu0 0.0
      %4040 = vmatpush1.msra.mxu0 0.0
      %4041 = vmatprep.subr.mxu0 0.0
      %4042 = vmatpush1.msra.mxu0 0.0
      %4043 = vmatprep.subr.mxu0 0.0
      %4044 = vmatpush1.msra.mxu0 0.0
      %4045 = vmatprep.subr.mxu0 0.0
      %4046 = vmatpush1.msra.mxu0 0.0
      %4047 = vmatprep.subr.mxu0 0.0
      %4048 = vmatpush1.msra.mxu0 0.0
      %4049 = vmatprep.subr.mxu0 0.0
      %4050 = vmatpush1.msra.mxu0 0.0
      %4051 = vmatprep.subr.mxu0 0.0
      %4052 = vmatpush1.msra.mxu0 0.0
      %4053 = vmatprep.subr.mxu0 0.0
      %4054 = vmatpush1.msra.mxu0 0.0
      %4055 = vmatprep.subr.mxu0 0.0
      %4056 = vmatpush1.msra.mxu0 0.0
      %4057 = vmatprep.subr.mxu0 0.0
      %4058 = vmatpush1.msra.mxu0 0.0
      %4059 = vmatprep.subr.mxu0 0.0
      %4060 = vmatpush1.msra.mxu0 0.0
      %4061 = vmatprep.subr.mxu0 0.0
      %4062 = vmatpush1.msra.mxu0 0.0
      %4063 = vmatprep.subr.mxu0 0.0
      %4064 = vmatpush1.msra.mxu0 0.0
      %4065 = vmatprep.subr.mxu0 0.0
      %4066 = vmatpush1.msra.mxu0 0.0
      %4067 = vmatprep.subr.mxu0 0.0
      %4068 = vmatpush1.msra.mxu0 0.0
      %4069 = vmatprep.subr.mxu0 0.0
      %4070 = vmatpush1.msra.mxu0 0.0
      %4071 = vmatprep.subr.mxu0 0.0
      %4072 = vmatpush1.msra.mxu0 0.0
      %4073 = vmatprep.subr.mxu0 0.0
      %4074 = vmatpush1.msra.mxu0 0.0
      %4075 = vmatprep.subr.mxu0 0.0
      %4076 = vmatpush1.msra.mxu0 0.0
      %4077 = vmatprep.subr.mxu0 0.0
      %4078 = vmatpush1.msra.mxu0 0.0
      %4079 = vmatprep.subr.mxu0 0.0
      %4080 = vmatpush1.msra.mxu0 0.0
      %4081 = vmatprep.subr.mxu0 0.0
      %4082 = vmatpush1.msra.mxu0 0.0
      %4083 = vmatprep.subr.mxu0 0.0
      %4084 = vmatpush1.msra.mxu0 0.0
      %4085 = vmatprep.subr.mxu0 0.0
      %4086 = vmatpush1.msra.mxu0 0.0
      %4087 = vmatprep.subr.mxu0 0.0
      %4088 = vmatpush1.msra.mxu0 0.0
      %4089 = vmatprep.subr.mxu0 0.0
      %4090 = vmatpush1.msra.mxu0 0.0
      %4091 = vmatprep.subr.mxu0 0.0
      %4092 = vmatpush1.msra.mxu0 0.0
      %4093 = vmatprep.subr.mxu0 0.0
      %4094 = vmatpush1.msra.mxu0 0.0
      %4095 = vmatprep.mubr.f32.mxu0 0.0
      %4096 = vmatmul.mubr.f32.gmra.mrb[0].mxu0 %v3984
      %v4097 = vpop.f32.mrb[0].mxu0
      %v4098 = vadd.f32 0.0, %v4097
      %v4099 = vpop.f32.mrb[0].mxu0
      %4100 = vmatprep.mubr.f32.mxu0 0.0
      %4101 = vmatmul.mubr.f32.gmra.mrb[0].mxu0 %v3987
      %v4102 = vpop.f32.mrb[0].mxu0
      %v4103 = vadd.f32 0.0, %v4102
      %v4104 = vpop.f32.mrb[0].mxu0
      %4105 = vmatprep.mubr.f32.mxu0 0.0
      %4106 = vmatmul.mubr.f32.gmra.mrb[0].mxu0 %v3990
      %v4107 = vpop.f32.mrb[0].mxu0
      %v4108 = vadd.f32 0.0, %v4107
      %v4109 = vpop.f32.mrb[0].mxu0
      %4110 = vmatprep.mubr.f32.mxu0 0.0
      %4111 = vmatmul.mubr.f32.gmra.mrb[0].mxu0 %v3993
      %v4112 = vpop.f32.mrb[0].mxu0
      %v4113 = vadd.f32 0.0, %v4112
      %v4114 = vpop.f32.mrb[0].mxu0
      %4115 = vmatprep.mubr.f32.mxu0 0.0
      %4116 = vmatmul.mubr.f32.gmra.mrb[0].mxu0 %v3996
      %v4117 = vpop.f32.mrb[0].mxu0
      %v4118 = vadd.f32 0.0, %v4117
      %v4119 = vpop.f32.mrb[0].mxu0
      %4120 = vmatprep.mubr.f32.mxu0 0.0
      %4121 = vmatmul.mubr.f32.gmra.mrb[0].mxu0 %v3999
      %v4122 = vpop.f32.mrb[0].mxu0
      %v4123 = vadd.f32 0.0, %v4122
      %v4124 = vpop.f32.mrb[0].mxu0
      %4125 = vmatprep.mubr.f32.mxu0 0.0
      %4126 = vmatmul.mubr.f32.gmra.mrb[0].mxu0 %v4002
      %v4127 = vpop.f32.mrb[0].mxu0
      %v4128 = vadd.f32 0.0, %v4127
      %v4129 = vpop.f32.mrb[0].mxu0
      %4130 = vmatprep.mubr.f32.mxu0 0.0
      %4131 = vmatmul.mubr.f32.gmra.mrb[0].mxu0 %v4005
      %v4132 = vpop.f32.mrb[0].mxu0
      %v4133 = vadd.f32 0.0, %v4132
      %v4134 = vpop.f32.mrb[0].mxu0
      %4135 = vmatprep.mubr.f32.mxu0 0.0
      %4136 = vmatmul.mubr.f32.gmra.mrb[0].mxu0 %v4008
      %v4137 = vpop.f32.mrb[0].mxu0
      %v4138 = vadd.f32 0.0, %v4137
      %v4139 = vpop.f32.mrb[0].mxu0
      %4140 = vmatprep.mubr.f32.mxu0 0.0
      %4141 = vmatmul.mubr.f32.gmra.mrb[0].mxu0 %v4011
      %v4142 = vpop.f32.mrb[0].mxu0
      %v4143 = vadd.f32 0.0, %v4142
      %v4144 = vpop.f32.mrb[0].mxu0
      %4145 = vmatprep.mubr.f32.mxu0 0.0
      %4146 = vmatmul.mubr.f32.gmra.mrb[0].mxu0 %v4014
      %v4147 = vpop.f32.mrb[0].mxu0
      %v4148 = vadd.f32 0.0, %v4147
      %v4149 = vpop.f32.mrb[0].mxu0
      %4150 = vmatprep.mubr.f32.mxu0 0.0
      %4151 = vmatmul.mubr.f32.gmra.mrb[0].mxu0 %v4017
      %v4152 = vpop.f32.mrb[0].mxu0
      %v4153 = vadd.f32 0.0, %v4152
      %v4154 = vpop.f32.mrb[0].mxu0
      %4155 = vmatprep.mubr.f32.mxu0 0.0
      %4156 = vmatmul.mubr.f32.gmra.mrb[0].mxu0 %v4020
      %v4157 = vpop.f32.mrb[0].mxu0
      %v4158 = vadd.f32 0.0, %v4157
      %v4159 = vpop.f32.mrb[0].mxu0
      %4160 = vmatprep.mubr.f32.mxu0 0.0
      %4161 = vmatmul.mubr.f32.gmra.mrb[0].mxu0 %v4023
      %v4162 = vpop.f32.mrb[0].mxu0
      %v4163 = vadd.f32 0.0, %v4162
      %v4164 = vpop.f32.mrb[0].mxu0
      %4165 = vmatprep.mubr.f32.mxu0 0.0
      %4166 = vmatmul.mubr.f32.gmra.mrb[0].mxu0 %v4026
      %v4167 = vpop.f32.mrb[0].mxu0
      %v4168 = vadd.f32 0.0, %v4167
      %v4169 = vpop.f32.mrb[0].mxu0
      %4170 = vmatprep.mubr.f32.mxu0 0.0
      %4171 = vmatmul.mubr.f32.gmra.mrb[0].mxu0 %v4029
      %v4172 = vpop.f32.mrb[0].mxu0
      %v4173 = vadd.f32 0.0, %v4172
      %v4174 = vpop.f32.mrb[0].mxu0
      %4175 = vdwg.mxu0
      %v4176 = vadd.f32 %v3917, %v4098
      %v4177 = vadd.f32 %v3918, %v4103
      %v4178 = vadd.f32 %v3919, %v4108
      %v4179 = vadd.f32 %v3920, %v4113
      %v4180 = vadd.f32 %v3921, %v4118
      %v4181 = vadd.f32 %v3922, %v4123
      %v4182 = vadd.f32 %v3923, %v4128
      %v4183 = vadd.f32 %v3924, %v4133
      %v4184 = vadd.f32 %v3925, %v4138
      %v4185 = vadd.f32 %v3926, %v4143
      %v4186 = vadd.f32 %v3927, %v4148
      %v4187 = vadd.f32 %v3928, %v4153
      %v4188 = vadd.f32 %v3929, %v4158
      %v4189 = vadd.f32 %v3930, %v4163
      %v4190 = vadd.f32 %v3931, %v4168
      %v4191 = vadd.f32 %v3932, %v4173
      %s4192 = scalar_lea.vmem [#allocation2], 448
      %v4193 = vld [vmem:[%s4192] sm:$0xff]
      %v4194 = vld [vmem:[%s4192 + $0x8] sm:$0xff]
      %v4195 = vld [vmem:[%s4192 + $0x10] sm:$0xff]
      %v4196 = vld [vmem:[%s4192 + $0x18] sm:$0xff]
      %v4197 = vld [vmem:[%s4192 + $0x20] sm:$0xff]
      %v4198 = vld [vmem:[%s4192 + $0x28] sm:$0xff]
      %v4199 = vld [vmem:[%s4192 + $0x30] sm:$0xff]
      %v4200 = vld [vmem:[%s4192 + $0x38] sm:$0xff]
      %v4201 = vld [vmem:[%s4192 + $0x40] sm:$0xff]
      %v4202 = vld [vmem:[%s4192 + $0x48] sm:$0xff]
      %v4203 = vld [vmem:[%s4192 + $0x50] sm:$0xff]
      %v4204 = vld [vmem:[%s4192 + $0x58] sm:$0xff]
      %v4205 = vld [vmem:[%s4192 + $0x60] sm:$0xff]
      %v4206 = vld [vmem:[%s4192 + $0x68] sm:$0xff]
      %v4207 = vld [vmem:[%s4192 + $0x70] sm:$0xff]
      %v4208 = vld [vmem:[%s4192 + $0x78] sm:$0xff]
      %v4209 = vsel 1, %v4193, 0.0
      %v4210 = vsel 1, %v4194, 0.0
      %v4211 = vsel 1, %v4195, 0.0
      %v4212 = vsel 1, %v4196, 0.0
      %v4213 = vsel 1, %v4197, 0.0
      %v4214 = vsel 1, %v4198, 0.0
      %v4215 = vsel 1, %v4199, 0.0
      %v4216 = vsel 1, %v4200, 0.0
      %v4217 = vsel 1, %v4201, 0.0
      %v4218 = vsel 1, %v4202, 0.0
      %v4219 = vsel 1, %v4203, 0.0
      %v4220 = vsel 1, %v4204, 0.0
      %v4221 = vsel 1, %v4205, 0.0
      %v4222 = vsel 1, %v4206, 0.0
      %v4223 = vsel 0, %v4207, 0.0
      %v4224 = vsel 0, %v4208, 0.0
      %v4225 = vld [vmem:[%s2020] sm:$0xff]
      %v4227 = vsel %vm188, %v4209, 0
      %v4230 = vsel %vm188, %v4210, 0
      %v4233 = vsel %vm188, %v4211, 0
      %v4236 = vsel %vm188, %v4212, 0
      %v4239 = vsel %vm188, %v4213, 0
      %v4242 = vsel %vm188, %v4214, 0
      %v4245 = vsel %vm188, %v4215, 0
      %v4248 = vsel %vm188, %v4216, 0
      %v4251 = vsel %vm188, %v4217, 0
      %v4254 = vsel %vm188, %v4218, 0
      %v4257 = vsel %vm188, %v4219, 0
      %v4260 = vsel %vm188, %v4220, 0
      %v4263 = vsel %vm188, %v4221, 0
      %v4266 = vsel %vm188, %v4222, 0
      %v4269 = vsel %vm188, %v4223, 0
      %v4272 = vsel %vm188, %v4224, 0
      %4274 = vmatprep.subr.mxu0 0.0
      %4275 = vmatpush1.msra.mxu0 %v4225
      %4276 = vmatprep.subr.mxu0 0.0
      %4277 = vmatpush1.msra.mxu0 0.0
      %4278 = vmatprep.subr.mxu0 0.0
      %4279 = vmatpush1.msra.mxu0 0.0
      %4280 = vmatprep.subr.mxu0 0.0
      %4281 = vmatpush1.msra.mxu0 0.0
      %4282 = vmatprep.subr.mxu0 0.0
      %4283 = vmatpush1.msra.mxu0 0.0
      %4284 = vmatprep.subr.mxu0 0.0
      %4285 = vmatpush1.msra.mxu0 0.0
      %4286 = vmatprep.subr.mxu0 0.0
      %4287 = vmatpush1.msra.mxu0 0.0
      %4288 = vmatprep.subr.mxu0 0.0
      %4289 = vmatpush1.msra.mxu0 0.0
      %4290 = vmatprep.subr.mxu0 0.0
      %4291 = vmatpush1.msra.mxu0 0.0
      %4292 = vmatprep.subr.mxu0 0.0
      %4293 = vmatpush1.msra.mxu0 0.0
      %4294 = vmatprep.subr.mxu0 0.0
      %4295 = vmatpush1.msra.mxu0 0.0
      %4296 = vmatprep.subr.mxu0 0.0
      %4297 = vmatpush1.msra.mxu0 0.0
      %4298 = vmatprep.subr.mxu0 0.0
      %4299 = vmatpush1.msra.mxu0 0.0
      %4300 = vmatprep.subr.mxu0 0.0
      %4301 = vmatpush1.msra.mxu0 0.0
      %4302 = vmatprep.subr.mxu0 0.0
      %4303 = vmatpush1.msra.mxu0 0.0
      %4304 = vmatprep.subr.mxu0 0.0
      %4305 = vmatpush1.msra.mxu0 0.0
      %4306 = vmatprep.subr.mxu0 0.0
      %4307 = vmatpush1.msra.mxu0 0.0
      %4308 = vmatprep.subr.mxu0 0.0
      %4309 = vmatpush1.msra.mxu0 0.0
      %4310 = vmatprep.subr.mxu0 0.0
      %4311 = vmatpush1.msra.mxu0 0.0
      %4312 = vmatprep.subr.mxu0 0.0
      %4313 = vmatpush1.msra.mxu0 0.0
      %4314 = vmatprep.subr.mxu0 0.0
      %4315 = vmatpush1.msra.mxu0 0.0
      %4316 = vmatprep.subr.mxu0 0.0
      %4317 = vmatpush1.msra.mxu0 0.0
      %4318 = vmatprep.subr.mxu0 0.0
      %4319 = vmatpush1.msra.mxu0 0.0
      %4320 = vmatprep.subr.mxu0 0.0
      %4321 = vmatpush1.msra.mxu0 0.0
      %4322 = vmatprep.subr.mxu0 0.0
      %4323 = vmatpush1.msra.mxu0 0.0
      %4324 = vmatprep.subr.mxu0 0.0
      %4325 = vmatpush1.msra.mxu0 0.0
      %4326 = vmatprep.subr.mxu0 0.0
      %4327 = vmatpush1.msra.mxu0 0.0
      %4328 = vmatprep.subr.mxu0 0.0
      %4329 = vmatpush1.msra.mxu0 0.0
      %4330 = vmatprep.subr.mxu0 0.0
      %4331 = vmatpush1.msra.mxu0 0.0
      %4332 = vmatprep.subr.mxu0 0.0
      %4333 = vmatpush1.msra.mxu0 0.0
      %4334 = vmatprep.subr.mxu0 0.0
      %4335 = vmatpush1.msra.mxu0 0.0
      %4336 = vmatprep.subr.mxu0 0.0
      %4337 = vmatpush1.msra.mxu0 0.0
      %4338 = vmatprep.mubr.f32.mxu0 0.0
      %4339 = vmatmul.mubr.f32.gmra.mrb[0].mxu0 %v4227
      %v4340 = vpop.f32.mrb[0].mxu0
      %v4341 = vadd.f32 0.0, %v4340
      %v4342 = vpop.f32.mrb[0].mxu0
      %4343 = vmatprep.mubr.f32.mxu0 0.0
      %4344 = vmatmul.mubr.f32.gmra.mrb[0].mxu0 %v4230
      %v4345 = vpop.f32.mrb[0].mxu0
      %v4346 = vadd.f32 0.0, %v4345
      %v4347 = vpop.f32.mrb[0].mxu0
      %4348 = vmatprep.mubr.f32.mxu0 0.0
      %4349 = vmatmul.mubr.f32.gmra.mrb[0].mxu0 %v4233
      %v4350 = vpop.f32.mrb[0].mxu0
      %v4351 = vadd.f32 0.0, %v4350
      %v4352 = vpop.f32.mrb[0].mxu0
      %4353 = vmatprep.mubr.f32.mxu0 0.0
      %4354 = vmatmul.mubr.f32.gmra.mrb[0].mxu0 %v4236
      %v4355 = vpop.f32.mrb[0].mxu0
      %v4356 = vadd.f32 0.0, %v4355
      %v4357 = vpop.f32.mrb[0].mxu0
      %4358 = vmatprep.mubr.f32.mxu0 0.0
      %4359 = vmatmul.mubr.f32.gmra.mrb[0].mxu0 %v4239
      %v4360 = vpop.f32.mrb[0].mxu0
      %v4361 = vadd.f32 0.0, %v4360
      %v4362 = vpop.f32.mrb[0].mxu0
      %4363 = vmatprep.mubr.f32.mxu0 0.0
      %4364 = vmatmul.mubr.f32.gmra.mrb[0].mxu0 %v4242
      %v4365 = vpop.f32.mrb[0].mxu0
      %v4366 = vadd.f32 0.0, %v4365
      %v4367 = vpop.f32.mrb[0].mxu0
      %4368 = vmatprep.mubr.f32.mxu0 0.0
      %4369 = vmatmul.mubr.f32.gmra.mrb[0].mxu0 %v4245
      %v4370 = vpop.f32.mrb[0].mxu0
      %v4371 = vadd.f32 0.0, %v4370
      %v4372 = vpop.f32.mrb[0].mxu0
      %4373 = vmatprep.mubr.f32.mxu0 0.0
      %4374 = vmatmul.mubr.f32.gmra.mrb[0].mxu0 %v4248
      %v4375 = vpop.f32.mrb[0].mxu0
      %v4376 = vadd.f32 0.0, %v4375
      %v4377 = vpop.f32.mrb[0].mxu0
      %4378 = vmatprep.mubr.f32.mxu0 0.0
      %4379 = vmatmul.mubr.f32.gmra.mrb[0].mxu0 %v4251
      %v4380 = vpop.f32.mrb[0].mxu0
      %v4381 = vadd.f32 0.0, %v4380
      %v4382 = vpop.f32.mrb[0].mxu0
      %4383 = vmatprep.mubr.f32.mxu0 0.0
      %4384 = vmatmul.mubr.f32.gmra.mrb[0].mxu0 %v4254
      %v4385 = vpop.f32.mrb[0].mxu0
      %v4386 = vadd.f32 0.0, %v4385
      %v4387 = vpop.f32.mrb[0].mxu0
      %4388 = vmatprep.mubr.f32.mxu0 0.0
      %4389 = vmatmul.mubr.f32.gmra.mrb[0].mxu0 %v4257
      %v4390 = vpop.f32.mrb[0].mxu0
      %v4391 = vadd.f32 0.0, %v4390
      %v4392 = vpop.f32.mrb[0].mxu0
      %4393 = vmatprep.mubr.f32.mxu0 0.0
      %4394 = vmatmul.mubr.f32.gmra.mrb[0].mxu0 %v4260
      %v4395 = vpop.f32.mrb[0].mxu0
      %v4396 = vadd.f32 0.0, %v4395
      %v4397 = vpop.f32.mrb[0].mxu0
      %4398 = vmatprep.mubr.f32.mxu0 0.0
      %4399 = vmatmul.mubr.f32.gmra.mrb[0].mxu0 %v4263
      %v4400 = vpop.f32.mrb[0].mxu0
      %v4401 = vadd.f32 0.0, %v4400
      %v4402 = vpop.f32.mrb[0].mxu0
      %4403 = vmatprep.mubr.f32.mxu0 0.0
      %4404 = vmatmul.mubr.f32.gmra.mrb[0].mxu0 %v4266
      %v4405 = vpop.f32.mrb[0].mxu0
      %v4406 = vadd.f32 0.0, %v4405
      %v4407 = vpop.f32.mrb[0].mxu0
      %4408 = vmatprep.mubr.f32.mxu0 0.0
      %4409 = vmatmul.mubr.f32.gmra.mrb[0].mxu0 %v4269
      %v4410 = vpop.f32.mrb[0].mxu0
      %v4411 = vadd.f32 0.0, %v4410
      %v4412 = vpop.f32.mrb[0].mxu0
      %4413 = vmatprep.mubr.f32.mxu0 0.0
      %4414 = vmatmul.mubr.f32.gmra.mrb[0].mxu0 %v4272
      %v4415 = vpop.f32.mrb[0].mxu0
      %v4416 = vadd.f32 0.0, %v4415
      %v4417 = vpop.f32.mrb[0].mxu0
      %4418 = vdwg.mxu0
      %v4419 = vadd.f32 %v4176, %v4341
      %v4420 = vadd.f32 %v4177, %v4346
      %v4421 = vadd.f32 %v4178, %v4351
      %v4422 = vadd.f32 %v4179, %v4356
      %v4423 = vadd.f32 %v4180, %v4361
      %v4424 = vadd.f32 %v4181, %v4366
      %v4425 = vadd.f32 %v4182, %v4371
      %v4426 = vadd.f32 %v4183, %v4376
      %v4427 = vadd.f32 %v4184, %v4381
      %v4428 = vadd.f32 %v4185, %v4386
      %v4429 = vadd.f32 %v4186, %v4391
      %v4430 = vadd.f32 %v4187, %v4396
      %v4431 = vadd.f32 %v4188, %v4401
      %v4432 = vadd.f32 %v4189, %v4406
      %v4433 = vadd.f32 %v4190, %v4411
      %v4434 = vadd.f32 %v4191, %v4416
      %s4435 = scalar_lea.vmem [#allocation2], 736
      %v4436 = vld [vmem:[%s4435] sm:$0xff]
      %v4437 = vld [vmem:[%s4435 + $0x8] sm:$0xff]
      %v4438 = vld [vmem:[%s4435 + $0x10] sm:$0xff]
      %v4439 = vld [vmem:[%s4435 + $0x18] sm:$0xff]
      %v4440 = vld [vmem:[%s4435 + $0x20] sm:$0xff]
      %v4441 = vld [vmem:[%s4435 + $0x28] sm:$0xff]
      %v4442 = vld [vmem:[%s4435 + $0x30] sm:$0xff]
      %v4443 = vld [vmem:[%s4435 + $0x38] sm:$0xff]
      %v4444 = vld [vmem:[%s4435 + $0x40] sm:$0xff]
      %v4445 = vld [vmem:[%s4435 + $0x48] sm:$0xff]
      %v4446 = vld [vmem:[%s4435 + $0x50] sm:$0xff]
      %v4447 = vld [vmem:[%s4435 + $0x58] sm:$0xff]
      %v4448 = vld [vmem:[%s4435 + $0x60] sm:$0xff]
      %v4449 = vld [vmem:[%s4435 + $0x68] sm:$0xff]
      %v4450 = vld [vmem:[%s4435 + $0x70] sm:$0xff]
      %v4451 = vld [vmem:[%s4435 + $0x78] sm:$0xff]
      %v4452 = vsel %vm314, %v4436, 0.0
      %v4453 = vsel %vm315, %v4437, 0.0
      %v4454 = vsel %vm314, %v4438, 0.0
      %v4455 = vsel %vm315, %v4439, 0.0
      %v4456 = vsel %vm314, %v4440, 0.0
      %v4457 = vsel %vm315, %v4441, 0.0
      %v4458 = vsel %vm314, %v4442, 0.0
      %v4459 = vsel %vm315, %v4443, 0.0
      %v4460 = vsel %vm314, %v4444, 0.0
      %v4461 = vsel %vm315, %v4445, 0.0
      %v4462 = vsel %vm314, %v4446, 0.0
      %v4463 = vsel %vm315, %v4447, 0.0
      %v4464 = vsel %vm314, %v4448, 0.0
      %v4465 = vsel %vm315, %v4449, 0.0
      %v4466 = vsel %vm314, %v4450, 0.0
      %v4467 = vsel %vm315, %v4451, 0.0
      %v4468 = vsel 1, %v4452, 0.0
      %v4469 = vsel 1, %v4453, 0.0
      %v4470 = vsel 1, %v4454, 0.0
      %v4471 = vsel 1, %v4455, 0.0
      %v4472 = vsel 1, %v4456, 0.0
      %v4473 = vsel 1, %v4457, 0.0
      %v4474 = vsel 1, %v4458, 0.0
      %v4475 = vsel 1, %v4459, 0.0
      %v4476 = vsel 1, %v4460, 0.0
      %v4477 = vsel 1, %v4461, 0.0
      %v4478 = vsel 1, %v4462, 0.0
      %v4479 = vsel 1, %v4463, 0.0
      %v4480 = vsel 1, %v4464, 0.0
      %v4481 = vsel 1, %v4465, 0.0
      %v4482 = vsel 0, %v4466, 0.0
      %v4483 = vsel 0, %v4467, 0.0
      %v4484 = vld [vmem:[%s2264] sm:$0xff]
      %v4486 = vsel %vm188, %v4468, 0
      %v4489 = vsel %vm188, %v4469, 0
      %v4492 = vsel %vm188, %v4470, 0
      %v4495 = vsel %vm188, %v4471, 0
      %v4498 = vsel %vm188, %v4472, 0
      %v4501 = vsel %vm188, %v4473, 0
      %v4504 = vsel %vm188, %v4474, 0
      %v4507 = vsel %vm188, %v4475, 0
      %v4510 = vsel %vm188, %v4476, 0
      %v4513 = vsel %vm188, %v4477, 0
      %v4516 = vsel %vm188, %v4478, 0
      %v4519 = vsel %vm188, %v4479, 0
      %v4522 = vsel %vm188, %v4480, 0
      %v4525 = vsel %vm188, %v4481, 0
      %v4528 = vsel %vm188, %v4482, 0
      %v4531 = vsel %vm188, %v4483, 0
      %4533 = vmatprep.subr.mxu0 0.0
      %4534 = vmatpush1.msra.mxu0 %v4484
      %4535 = vmatprep.subr.mxu0 0.0
      %4536 = vmatpush1.msra.mxu0 0.0
      %4537 = vmatprep.subr.mxu0 0.0
      %4538 = vmatpush1.msra.mxu0 0.0
      %4539 = vmatprep.subr.mxu0 0.0
      %4540 = vmatpush1.msra.mxu0 0.0
      %4541 = vmatprep.subr.mxu0 0.0
      %4542 = vmatpush1.msra.mxu0 0.0
      %4543 = vmatprep.subr.mxu0 0.0
      %4544 = vmatpush1.msra.mxu0 0.0
      %4545 = vmatprep.subr.mxu0 0.0
      %4546 = vmatpush1.msra.mxu0 0.0
      %4547 = vmatprep.subr.mxu0 0.0
      %4548 = vmatpush1.msra.mxu0 0.0
      %4549 = vmatprep.subr.mxu0 0.0
      %4550 = vmatpush1.msra.mxu0 0.0
      %4551 = vmatprep.subr.mxu0 0.0
      %4552 = vmatpush1.msra.mxu0 0.0
      %4553 = vmatprep.subr.mxu0 0.0
      %4554 = vmatpush1.msra.mxu0 0.0
      %4555 = vmatprep.subr.mxu0 0.0
      %4556 = vmatpush1.msra.mxu0 0.0
      %4557 = vmatprep.subr.mxu0 0.0
      %4558 = vmatpush1.msra.mxu0 0.0
      %4559 = vmatprep.subr.mxu0 0.0
      %4560 = vmatpush1.msra.mxu0 0.0
      %4561 = vmatprep.subr.mxu0 0.0
      %4562 = vmatpush1.msra.mxu0 0.0
      %4563 = vmatprep.subr.mxu0 0.0
      %4564 = vmatpush1.msra.mxu0 0.0
      %4565 = vmatprep.subr.mxu0 0.0
      %4566 = vmatpush1.msra.mxu0 0.0
      %4567 = vmatprep.subr.mxu0 0.0
      %4568 = vmatpush1.msra.mxu0 0.0
      %4569 = vmatprep.subr.mxu0 0.0
      %4570 = vmatpush1.msra.mxu0 0.0
      %4571 = vmatprep.subr.mxu0 0.0
      %4572 = vmatpush1.msra.mxu0 0.0
      %4573 = vmatprep.subr.mxu0 0.0
      %4574 = vmatpush1.msra.mxu0 0.0
      %4575 = vmatprep.subr.mxu0 0.0
      %4576 = vmatpush1.msra.mxu0 0.0
      %4577 = vmatprep.subr.mxu0 0.0
      %4578 = vmatpush1.msra.mxu0 0.0
      %4579 = vmatprep.subr.mxu0 0.0
      %4580 = vmatpush1.msra.mxu0 0.0
      %4581 = vmatprep.subr.mxu0 0.0
      %4582 = vmatpush1.msra.mxu0 0.0
      %4583 = vmatprep.subr.mxu0 0.0
      %4584 = vmatpush1.msra.mxu0 0.0
      %4585 = vmatprep.subr.mxu0 0.0
      %4586 = vmatpush1.msra.mxu0 0.0
      %4587 = vmatprep.subr.mxu0 0.0
      %4588 = vmatpush1.msra.mxu0 0.0
      %4589 = vmatprep.subr.mxu0 0.0
      %4590 = vmatpush1.msra.mxu0 0.0
      %4591 = vmatprep.subr.mxu0 0.0
      %4592 = vmatpush1.msra.mxu0 0.0
      %4593 = vmatprep.subr.mxu0 0.0
      %4594 = vmatpush1.msra.mxu0 0.0
      %4595 = vmatprep.subr.mxu0 0.0
      %4596 = vmatpush1.msra.mxu0 0.0
      %4597 = vmatprep.mubr.f32.mxu0 0.0
      %4598 = vmatmul.mubr.f32.gmra.mrb[0].mxu0 %v4486
      %v4599 = vpop.f32.mrb[0].mxu0
      %v4600 = vadd.f32 0.0, %v4599
      %v4601 = vpop.f32.mrb[0].mxu0
      %4602 = vmatprep.mubr.f32.mxu0 0.0
      %4603 = vmatmul.mubr.f32.gmra.mrb[0].mxu0 %v4489
      %v4604 = vpop.f32.mrb[0].mxu0
      %v4605 = vadd.f32 0.0, %v4604
      %v4606 = vpop.f32.mrb[0].mxu0
      %4607 = vmatprep.mubr.f32.mxu0 0.0
      %4608 = vmatmul.mubr.f32.gmra.mrb[0].mxu0 %v4492
      %v4609 = vpop.f32.mrb[0].mxu0
      %v4610 = vadd.f32 0.0, %v4609
      %v4611 = vpop.f32.mrb[0].mxu0
      %4612 = vmatprep.mubr.f32.mxu0 0.0
      %4613 = vmatmul.mubr.f32.gmra.mrb[0].mxu0 %v4495
      %v4614 = vpop.f32.mrb[0].mxu0
      %v4615 = vadd.f32 0.0, %v4614
      %v4616 = vpop.f32.mrb[0].mxu0
      %4617 = vmatprep.mubr.f32.mxu0 0.0
      %4618 = vmatmul.mubr.f32.gmra.mrb[0].mxu0 %v4498
      %v4619 = vpop.f32.mrb[0].mxu0
      %v4620 = vadd.f32 0.0, %v4619
      %v4621 = vpop.f32.mrb[0].mxu0
      %4622 = vmatprep.mubr.f32.mxu0 0.0
      %4623 = vmatmul.mubr.f32.gmra.mrb[0].mxu0 %v4501
      %v4624 = vpop.f32.mrb[0].mxu0
      %v4625 = vadd.f32 0.0, %v4624
      %v4626 = vpop.f32.mrb[0].mxu0
      %4627 = vmatprep.mubr.f32.mxu0 0.0
      %4628 = vmatmul.mubr.f32.gmra.mrb[0].mxu0 %v4504
      %v4629 = vpop.f32.mrb[0].mxu0
      %v4630 = vadd.f32 0.0, %v4629
      %v4631 = vpop.f32.mrb[0].mxu0
      %4632 = vmatprep.mubr.f32.mxu0 0.0
      %4633 = vmatmul.mubr.f32.gmra.mrb[0].mxu0 %v4507
      %v4634 = vpop.f32.mrb[0].mxu0
      %v4635 = vadd.f32 0.0, %v4634
      %v4636 = vpop.f32.mrb[0].mxu0
      %4637 = vmatprep.mubr.f32.mxu0 0.0
      %4638 = vmatmul.mubr.f32.gmra.mrb[0].mxu0 %v4510
      %v4639 = vpop.f32.mrb[0].mxu0
      %v4640 = vadd.f32 0.0, %v4639
      %v4641 = vpop.f32.mrb[0].mxu0
      %4642 = vmatprep.mubr.f32.mxu0 0.0
      %4643 = vmatmul.mubr.f32.gmra.mrb[0].mxu0 %v4513
      %v4644 = vpop.f32.mrb[0].mxu0
      %v4645 = vadd.f32 0.0, %v4644
      %v4646 = vpop.f32.mrb[0].mxu0
      %4647 = vmatprep.mubr.f32.mxu0 0.0
      %4648 = vmatmul.mubr.f32.gmra.mrb[0].mxu0 %v4516
      %v4649 = vpop.f32.mrb[0].mxu0
      %v4650 = vadd.f32 0.0, %v4649
      %v4651 = vpop.f32.mrb[0].mxu0
      %4652 = vmatprep.mubr.f32.mxu0 0.0
      %4653 = vmatmul.mubr.f32.gmra.mrb[0].mxu0 %v4519
      %v4654 = vpop.f32.mrb[0].mxu0
      %v4655 = vadd.f32 0.0, %v4654
      %v4656 = vpop.f32.mrb[0].mxu0
      %4657 = vmatprep.mubr.f32.mxu0 0.0
      %4658 = vmatmul.mubr.f32.gmra.mrb[0].mxu0 %v4522
      %v4659 = vpop.f32.mrb[0].mxu0
      %v4660 = vadd.f32 0.0, %v4659
      %v4661 = vpop.f32.mrb[0].mxu0
      %4662 = vmatprep.mubr.f32.mxu0 0.0
      %4663 = vmatmul.mubr.f32.gmra.mrb[0].mxu0 %v4525
      %v4664 = vpop.f32.mrb[0].mxu0
      %v4665 = vadd.f32 0.0, %v4664
      %v4666 = vpop.f32.mrb[0].mxu0
      %4667 = vmatprep.mubr.f32.mxu0 0.0
      %4668 = vmatmul.mubr.f32.gmra.mrb[0].mxu0 %v4528
      %v4669 = vpop.f32.mrb[0].mxu0
      %v4670 = vadd.f32 0.0, %v4669
      %v4671 = vpop.f32.mrb[0].mxu0
      %4672 = vmatprep.mubr.f32.mxu0 0.0
      %4673 = vmatmul.mubr.f32.gmra.mrb[0].mxu0 %v4531
      %v4674 = vpop.f32.mrb[0].mxu0
      %v4675 = vadd.f32 0.0, %v4674
      %v4676 = vpop.f32.mrb[0].mxu0
      %4677 = vdwg.mxu0
      %v4678 = vadd.f32 %v4419, %v4600
      %v4679 = vadd.f32 %v4420, %v4605
      %v4680 = vadd.f32 %v4421, %v4610
      %v4681 = vadd.f32 %v4422, %v4615
      %v4682 = vadd.f32 %v4423, %v4620
      %v4683 = vadd.f32 %v4424, %v4625
      %v4684 = vadd.f32 %v4425, %v4630
      %v4685 = vadd.f32 %v4426, %v4635
      %v4686 = vadd.f32 %v4427, %v4640
      %v4687 = vadd.f32 %v4428, %v4645
      %v4688 = vadd.f32 %v4429, %v4650
      %v4689 = vadd.f32 %v4430, %v4655
      %v4690 = vadd.f32 %v4431, %v4660
      %v4691 = vadd.f32 %v4432, %v4665
      %v4692 = vadd.f32 %v4433, %v4670
      %v4693 = vadd.f32 %v4434, %v4675
      %v4694 = vmax.f32 %v4678, 0.0
      %v4695 = vmax.f32 %v4679, 0.0
      %v4696 = vmax.f32 %v4680, 0.0
      %v4697 = vmax.f32 %v4681, 0.0
      %v4698 = vmax.f32 %v4682, 0.0
      %v4699 = vmax.f32 %v4683, 0.0
      %v4700 = vmax.f32 %v4684, 0.0
      %v4701 = vmax.f32 %v4685, 0.0
      %v4702 = vmax.f32 %v4686, 0.0
      %v4703 = vmax.f32 %v4687, 0.0
      %v4704 = vmax.f32 %v4688, 0.0
      %v4705 = vmax.f32 %v4689, 0.0
      %v4706 = vmax.f32 %v4690, 0.0
      %v4707 = vmax.f32 %v4691, 0.0
      %v4708 = vmax.f32 %v4692, 0.0
      %v4709 = vmax.f32 %v4693, 0.0
      %s4710 = scalar_lea.vmem [#allocation3], 432
      %4711 = vst.msk [vmem:[%s4710] sm:$0xff] %vm188, %v4694
      %4712 = vst.msk [vmem:[%s4710 + $0x8] sm:$0xff] %vm188, %v4695
      %4713 = vst.msk [vmem:[%s4710 + $0x10] sm:$0xff] %vm188, %v4696
      %4714 = vst.msk [vmem:[%s4710 + $0x18] sm:$0xff] %vm188, %v4697
      %4715 = vst.msk [vmem:[%s4710 + $0x20] sm:$0xff] %vm188, %v4698
      %4716 = vst.msk [vmem:[%s4710 + $0x28] sm:$0xff] %vm188, %v4699
      %4717 = vst.msk [vmem:[%s4710 + $0x30] sm:$0xff] %vm188, %v4700
      %4718 = vst.msk [vmem:[%s4710 + $0x38] sm:$0xff] %vm188, %v4701
      %4719 = vst.msk [vmem:[%s4710 + $0x40] sm:$0xff] %vm188, %v4702
      %4720 = vst.msk [vmem:[%s4710 + $0x48] sm:$0xff] %vm188, %v4703
      %4721 = vst.msk [vmem:[%s4710 + $0x50] sm:$0xff] %vm188, %v4704
      %4722 = vst.msk [vmem:[%s4710 + $0x58] sm:$0xff] %vm188, %v4705
      %4723 = vst.msk [vmem:[%s4710 + $0x60] sm:$0xff] %vm188, %v4706
      %4724 = vst.msk [vmem:[%s4710 + $0x68] sm:$0xff] %vm188, %v4707
      %4725 = vst.msk [vmem:[%s4710 + $0x70] sm:$0xff] %vm188, %v4708
      %4726 = vst.msk [vmem:[%s4710 + $0x78] sm:$0xff] %vm188, %v4709
      %s4727 = scalar_lea.vmem [#allocation3], 144
      %4728 = vst.msk [vmem:[%s4727 + $0x1] sm:$0xff] %vm188, %v4694
      %4729 = vst.msk [vmem:[%s4727 + $0x9] sm:$0x7f] %vm207, %v4695
      %4730 = vst.msk [vmem:[%s4727 + $0x11] sm:$0xff] %vm188, %v4696
      %4731 = vst.msk [vmem:[%s4727 + $0x19] sm:$0x7f] %vm207, %v4697
      %4732 = vst.msk [vmem:[%s4727 + $0x21] sm:$0xff] %vm188, %v4698
      %4733 = vst.msk [vmem:[%s4727 + $0x29] sm:$0x7f] %vm207, %v4699
      %4734 = vst.msk [vmem:[%s4727 + $0x31] sm:$0xff] %vm188, %v4700
      %4735 = vst.msk [vmem:[%s4727 + $0x39] sm:$0x7f] %vm207, %v4701
      %4736 = vst.msk [vmem:[%s4727 + $0x41] sm:$0xff] %vm188, %v4702
      %4737 = vst.msk [vmem:[%s4727 + $0x49] sm:$0x7f] %vm207, %v4703
      %4738 = vst.msk [vmem:[%s4727 + $0x51] sm:$0xff] %vm188, %v4704
      %4739 = vst.msk [vmem:[%s4727 + $0x59] sm:$0x7f] %vm207, %v4705
      %4740 = vst.msk [vmem:[%s4727 + $0x61] sm:$0xff] %vm188, %v4706
      %4741 = vst.msk [vmem:[%s4727 + $0x69] sm:$0x7f] %vm207, %v4707
      %4742 = vst.msk [vmem:[%s4727 + $0x71] sm:$0xff] %vm188, %v4708
      %4743 = vst.msk [vmem:[%s4727 + $0x79] sm:$0x7f] %vm207, %v4709
      %s4744 = scalar_lea.vmem [#allocation3], 720
      %4745 = vst.msk [vmem:[%s4744 - $0x1] sm:$0xfe] %vm224, %v4694
      %4746 = vst.msk [vmem:[%s4744 + $0x7] sm:$0xff] %vm188, %v4695
      %4747 = vst.msk [vmem:[%s4744 + $0xf] sm:$0xfe] %vm224, %v4696
      %4748 = vst.msk [vmem:[%s4744 + $0x17] sm:$0xff] %vm188, %v4697
      %4749 = vst.msk [vmem:[%s4744 + $0x1f] sm:$0xfe] %vm224, %v4698
      %4750 = vst.msk [vmem:[%s4744 + $0x27] sm:$0xff] %vm188, %v4699
      %4751 = vst.msk [vmem:[%s4744 + $0x2f] sm:$0xfe] %vm224, %v4700
      %4752 = vst.msk [vmem:[%s4744 + $0x37] sm:$0xff] %vm188, %v4701
      %4753 = vst.msk [vmem:[%s4744 + $0x3f] sm:$0xfe] %vm224, %v4702
      %4754 = vst.msk [vmem:[%s4744 + $0x47] sm:$0xff] %vm188, %v4703
      %4755 = vst.msk [vmem:[%s4744 + $0x4f] sm:$0xfe] %vm224, %v4704
      %4756 = vst.msk [vmem:[%s4744 + $0x57] sm:$0xff] %vm188, %v4705
      %4757 = vst.msk [vmem:[%s4744 + $0x5f] sm:$0xfe] %vm224, %v4706
      %4758 = vst.msk [vmem:[%s4744 + $0x67] sm:$0xff] %vm188, %v4707
      %4759 = vst.msk [vmem:[%s4744 + $0x6f] sm:$0xfe] %vm224, %v4708
      %4760 = vst.msk [vmem:[%s4744 + $0x77] sm:$0xff] %vm188, %v4709
      %v4761 = vld [vmem:[#allocation3] sm:$0xff]
      %v4762 = vld [vmem:[#allocation3 + $0x8] sm:$0xff]
      %v4763 = vld [vmem:[#allocation3 + $0x10] sm:$0xff]
      %v4764 = vld [vmem:[#allocation3 + $0x18] sm:$0xff]
      %v4765 = vld [vmem:[#allocation3 + $0x20] sm:$0xff]
      %v4766 = vld [vmem:[#allocation3 + $0x28] sm:$0xff]
      %v4767 = vld [vmem:[#allocation3 + $0x30] sm:$0xff]
      %v4768 = vld [vmem:[#allocation3 + $0x38] sm:$0xff]
      %v4769 = vld [vmem:[#allocation3 + $0x40] sm:$0xff]
      %v4770 = vld [vmem:[#allocation3 + $0x48] sm:$0xff]
      %v4771 = vld [vmem:[#allocation3 + $0x50] sm:$0xff]
      %v4772 = vld [vmem:[#allocation3 + $0x58] sm:$0xff]
      %v4773 = vld [vmem:[#allocation3 + $0x60] sm:$0xff]
      %v4774 = vld [vmem:[#allocation3 + $0x68] sm:$0xff]
      %v4775 = vld [vmem:[#allocation3 + $0x70] sm:$0xff]
      %v4776 = vld [vmem:[#allocation3 + $0x78] sm:$0xff]
      %v4777 = vsel %vm312, %v4761, 0.0
      %v4778 = vsel %vm313, %v4762, 0.0
      %v4779 = vsel %vm312, %v4763, 0.0
      %v4780 = vsel %vm313, %v4764, 0.0
      %v4781 = vsel %vm312, %v4765, 0.0
      %v4782 = vsel %vm313, %v4766, 0.0
      %v4783 = vsel %vm312, %v4767, 0.0
      %v4784 = vsel %vm313, %v4768, 0.0
      %v4785 = vsel %vm312, %v4769, 0.0
      %v4786 = vsel %vm313, %v4770, 0.0
      %v4787 = vsel %vm312, %v4771, 0.0
      %v4788 = vsel %vm313, %v4772, 0.0
      %v4789 = vsel %vm312, %v4773, 0.0
      %v4790 = vsel %vm313, %v4774, 0.0
      %v4791 = vsel %vm312, %v4775, 0.0
      %v4792 = vsel %vm313, %v4776, 0.0
      %v4793 = vsel 0, %v4777, 0.0
      %v4794 = vsel 0, %v4778, 0.0
      %v4795 = vsel 1, %v4779, 0.0
      %v4796 = vsel 1, %v4780, 0.0
      %v4797 = vsel 1, %v4781, 0.0
      %v4798 = vsel 1, %v4782, 0.0
      %v4799 = vsel 1, %v4783, 0.0
      %v4800 = vsel 1, %v4784, 0.0
      %v4801 = vsel 1, %v4785, 0.0
      %v4802 = vsel 1, %v4786, 0.0
      %v4803 = vsel 1, %v4787, 0.0
      %v4804 = vsel 1, %v4788, 0.0
      %v4805 = vsel 1, %v4789, 0.0
      %v4806 = vsel 1, %v4790, 0.0
      %v4807 = vsel 1, %v4791, 0.0
      %v4808 = vsel 1, %v4792, 0.0
      %v4809 = vld [vmem:[%s2] sm:$0xff]
      %s4810 = scalar_lea.vmem [#allocation3], 288
      %v4811 = vld [vmem:[%s4810] sm:$0xff]
      %v4812 = vld [vmem:[%s4810 + $0x8] sm:$0xff]
      %v4813 = vld [vmem:[%s4810 + $0x10] sm:$0xff]
      %v4814 = vld [vmem:[%s4810 + $0x18] sm:$0xff]
      %v4815 = vld [vmem:[%s4810 + $0x20] sm:$0xff]
      %v4816 = vld [vmem:[%s4810 + $0x28] sm:$0xff]
      %v4817 = vld [vmem:[%s4810 + $0x30] sm:$0xff]
      %v4818 = vld [vmem:[%s4810 + $0x38] sm:$0xff]
      %v4819 = vld [vmem:[%s4810 + $0x40] sm:$0xff]
      %v4820 = vld [vmem:[%s4810 + $0x48] sm:$0xff]
      %v4821 = vld [vmem:[%s4810 + $0x50] sm:$0xff]
      %v4822 = vld [vmem:[%s4810 + $0x58] sm:$0xff]
      %v4823 = vld [vmem:[%s4810 + $0x60] sm:$0xff]
      %v4824 = vld [vmem:[%s4810 + $0x68] sm:$0xff]
      %v4825 = vld [vmem:[%s4810 + $0x70] sm:$0xff]
      %v4826 = vld [vmem:[%s4810 + $0x78] sm:$0xff]
      %v4827 = vsel 0, %v4811, 0.0
      %v4828 = vsel 0, %v4812, 0.0
      %v4829 = vsel 1, %v4813, 0.0
      %v4830 = vsel 1, %v4814, 0.0
      %v4831 = vsel 1, %v4815, 0.0
      %v4832 = vsel 1, %v4816, 0.0
      %v4833 = vsel 1, %v4817, 0.0
      %v4834 = vsel 1, %v4818, 0.0
      %v4835 = vsel 1, %v4819, 0.0
      %v4836 = vsel 1, %v4820, 0.0
      %v4837 = vsel 1, %v4821, 0.0
      %v4838 = vsel 1, %v4822, 0.0
      %v4839 = vsel 1, %v4823, 0.0
      %v4840 = vsel 1, %v4824, 0.0
      %v4841 = vsel 1, %v4825, 0.0
      %v4842 = vsel 1, %v4826, 0.0
      %s4843 = scalar_lea.vmem %s2, 8
      %v4844 = vld [vmem:[%s4843] sm:$0xff]
      %v4846 = vsel %vm188, %v4827, 0
      %v4849 = vsel %vm188, %v4828, 0
      %v4852 = vsel %vm188, %v4829, 0
      %v4855 = vsel %vm188, %v4830, 0
      %v4858 = vsel %vm188, %v4831, 0
      %v4861 = vsel %vm188, %v4832, 0
      %v4864 = vsel %vm188, %v4833, 0
      %v4867 = vsel %vm188, %v4834, 0
      %v4870 = vsel %vm188, %v4835, 0
      %v4873 = vsel %vm188, %v4836, 0
      %v4876 = vsel %vm188, %v4837, 0
      %v4879 = vsel %vm188, %v4838, 0
      %v4882 = vsel %vm188, %v4839, 0
      %v4885 = vsel %vm188, %v4840, 0
      %v4888 = vsel %vm188, %v4841, 0
      %v4891 = vsel %vm188, %v4842, 0
      %4893 = vmatprep.subr.mxu0 0.0
      %4894 = vmatpush1.msra.mxu0 %v4844
      %4895 = vmatprep.subr.mxu0 0.0
      %4896 = vmatpush1.msra.mxu0 0.0
      %4897 = vmatprep.subr.mxu0 0.0
      %4898 = vmatpush1.msra.mxu0 0.0
      %4899 = vmatprep.subr.mxu0 0.0
      %4900 = vmatpush1.msra.mxu0 0.0
      %4901 = vmatprep.subr.mxu0 0.0
      %4902 = vmatpush1.msra.mxu0 0.0
      %4903 = vmatprep.subr.mxu0 0.0
      %4904 = vmatpush1.msra.mxu0 0.0
      %4905 = vmatprep.subr.mxu0 0.0
      %4906 = vmatpush1.msra.mxu0 0.0
      %4907 = vmatprep.subr.mxu0 0.0
      %4908 = vmatpush1.msra.mxu0 0.0
      %4909 = vmatprep.subr.mxu0 0.0
      %4910 = vmatpush1.msra.mxu0 0.0
      %4911 = vmatprep.subr.mxu0 0.0
      %4912 = vmatpush1.msra.mxu0 0.0
      %4913 = vmatprep.subr.mxu0 0.0
      %4914 = vmatpush1.msra.mxu0 0.0
      %4915 = vmatprep.subr.mxu0 0.0
      %4916 = vmatpush1.msra.mxu0 0.0
      %4917 = vmatprep.subr.mxu0 0.0
      %4918 = vmatpush1.msra.mxu0 0.0
      %4919 = vmatprep.subr.mxu0 0.0
      %4920 = vmatpush1.msra.mxu0 0.0
      %4921 = vmatprep.subr.mxu0 0.0
      %4922 = vmatpush1.msra.mxu0 0.0
      %4923 = vmatprep.subr.mxu0 0.0
      %4924 = vmatpush1.msra.mxu0 0.0
      %4925 = vmatprep.subr.mxu0 0.0
      %4926 = vmatpush1.msra.mxu0 0.0
      %4927 = vmatprep.subr.mxu0 0.0
      %4928 = vmatpush1.msra.mxu0 0.0
      %4929 = vmatprep.subr.mxu0 0.0
      %4930 = vmatpush1.msra.mxu0 0.0
      %4931 = vmatprep.subr.mxu0 0.0
      %4932 = vmatpush1.msra.mxu0 0.0
      %4933 = vmatprep.subr.mxu0 0.0
      %4934 = vmatpush1.msra.mxu0 0.0
      %4935 = vmatprep.subr.mxu0 0.0
      %4936 = vmatpush1.msra.mxu0 0.0
      %4937 = vmatprep.subr.mxu0 0.0
      %4938 = vmatpush1.msra.mxu0 0.0
      %4939 = vmatprep.subr.mxu0 0.0
      %4940 = vmatpush1.msra.mxu0 0.0
      %4941 = vmatprep.subr.mxu0 0.0
      %4942 = vmatpush1.msra.mxu0 0.0
      %4943 = vmatprep.subr.mxu0 0.0
      %4944 = vmatpush1.msra.mxu0 0.0
      %4945 = vmatprep.subr.mxu0 0.0
      %4946 = vmatpush1.msra.mxu0 0.0
      %4947 = vmatprep.subr.mxu0 0.0
      %4948 = vmatpush1.msra.mxu0 0.0
      %4949 = vmatprep.subr.mxu0 0.0
      %4950 = vmatpush1.msra.mxu0 0.0
      %4951 = vmatprep.subr.mxu0 0.0
      %4952 = vmatpush1.msra.mxu0 0.0
      %4953 = vmatprep.subr.mxu0 0.0
      %4954 = vmatpush1.msra.mxu0 0.0
      %4955 = vmatprep.subr.mxu0 0.0
      %4956 = vmatpush1.msra.mxu0 0.0
      %4957 = vmatprep.mubr.f32.mxu0 0.0
      %4958 = vmatmul.mubr.f32.gmra.mrb[0].mxu0 %v4846
      %v4959 = vpop.f32.mrb[0].mxu0
      %v4960 = vadd.f32 0.0, %v4959
      %v4961 = vpop.f32.mrb[0].mxu0
      %4962 = vmatprep.mubr.f32.mxu0 0.0
      %4963 = vmatmul.mubr.f32.gmra.mrb[0].mxu0 %v4849
      %v4964 = vpop.f32.mrb[0].mxu0
      %v4965 = vadd.f32 0.0, %v4964
      %v4966 = vpop.f32.mrb[0].mxu0
      %4967 = vmatprep.mubr.f32.mxu0 0.0
      %4968 = vmatmul.mubr.f32.gmra.mrb[0].mxu0 %v4852
      %v4969 = vpop.f32.mrb[0].mxu0
      %v4970 = vadd.f32 0.0, %v4969
      %v4971 = vpop.f32.mrb[0].mxu0
      %4972 = vmatprep.mubr.f32.mxu0 0.0
      %4973 = vmatmul.mubr.f32.gmra.mrb[0].mxu0 %v4855
      %v4974 = vpop.f32.mrb[0].mxu0
      %v4975 = vadd.f32 0.0, %v4974
      %v4976 = vpop.f32.mrb[0].mxu0
      %4977 = vmatprep.mubr.f32.mxu0 0.0
      %4978 = vmatmul.mubr.f32.gmra.mrb[0].mxu0 %v4858
      %v4979 = vpop.f32.mrb[0].mxu0
      %v4980 = vadd.f32 0.0, %v4979
      %v4981 = vpop.f32.mrb[0].mxu0
      %4982 = vmatprep.mubr.f32.mxu0 0.0
      %4983 = vmatmul.mubr.f32.gmra.mrb[0].mxu0 %v4861
      %v4984 = vpop.f32.mrb[0].mxu0
      %v4985 = vadd.f32 0.0, %v4984
      %v4986 = vpop.f32.mrb[0].mxu0
      %4987 = vmatprep.mubr.f32.mxu0 0.0
      %4988 = vmatmul.mubr.f32.gmra.mrb[0].mxu0 %v4864
      %v4989 = vpop.f32.mrb[0].mxu0
      %v4990 = vadd.f32 0.0, %v4989
      %v4991 = vpop.f32.mrb[0].mxu0
      %4992 = vmatprep.mubr.f32.mxu0 0.0
      %4993 = vmatmul.mubr.f32.gmra.mrb[0].mxu0 %v4867
      %v4994 = vpop.f32.mrb[0].mxu0
      %v4995 = vadd.f32 0.0, %v4994
      %v4996 = vpop.f32.mrb[0].mxu0
      %4997 = vmatprep.mubr.f32.mxu0 0.0
      %4998 = vmatmul.mubr.f32.gmra.mrb[0].mxu0 %v4870
      %v4999 = vpop.f32.mrb[0].mxu0
      %v5000 = vadd.f32 0.0, %v4999
      %v5001 = vpop.f32.mrb[0].mxu0
      %5002 = vmatprep.mubr.f32.mxu0 0.0
      %5003 = vmatmul.mubr.f32.gmra.mrb[0].mxu0 %v4873
      %v5004 = vpop.f32.mrb[0].mxu0
      %v5005 = vadd.f32 0.0, %v5004
      %v5006 = vpop.f32.mrb[0].mxu0
      %5007 = vmatprep.mubr.f32.mxu0 0.0
      %5008 = vmatmul.mubr.f32.gmra.mrb[0].mxu0 %v4876
      %v5009 = vpop.f32.mrb[0].mxu0
      %v5010 = vadd.f32 0.0, %v5009
      %v5011 = vpop.f32.mrb[0].mxu0
      %5012 = vmatprep.mubr.f32.mxu0 0.0
      %5013 = vmatmul.mubr.f32.gmra.mrb[0].mxu0 %v4879
      %v5014 = vpop.f32.mrb[0].mxu0
      %v5015 = vadd.f32 0.0, %v5014
      %v5016 = vpop.f32.mrb[0].mxu0
      %5017 = vmatprep.mubr.f32.mxu0 0.0
      %5018 = vmatmul.mubr.f32.gmra.mrb[0].mxu0 %v4882
      %v5019 = vpop.f32.mrb[0].mxu0
      %v5020 = vadd.f32 0.0, %v5019
      %v5021 = vpop.f32.mrb[0].mxu0
      %5022 = vmatprep.mubr.f32.mxu0 0.0
      %5023 = vmatmul.mubr.f32.gmra.mrb[0].mxu0 %v4885
      %v5024 = vpop.f32.mrb[0].mxu0
      %v5025 = vadd.f32 0.0, %v5024
      %v5026 = vpop.f32.mrb[0].mxu0
      %5027 = vmatprep.mubr.f32.mxu0 0.0
      %5028 = vmatmul.mubr.f32.gmra.mrb[0].mxu0 %v4888
      %v5029 = vpop.f32.mrb[0].mxu0
      %v5030 = vadd.f32 0.0, %v5029
      %v5031 = vpop.f32.mrb[0].mxu0
      %5032 = vmatprep.mubr.f32.mxu0 0.0
      %5033 = vmatmul.mubr.f32.gmra.mrb[0].mxu0 %v4891
      %v5034 = vpop.f32.mrb[0].mxu0
      %v5035 = vadd.f32 0.0, %v5034
      %v5036 = vpop.f32.mrb[0].mxu0
      %5037 = vdwg.mxu0
      %v5039 = vsel %vm188, %v4793, 0
      %v5042 = vsel %vm188, %v4794, 0
      %v5045 = vsel %vm188, %v4795, 0
      %v5048 = vsel %vm188, %v4796, 0
      %v5051 = vsel %vm188, %v4797, 0
      %v5054 = vsel %vm188, %v4798, 0
      %v5057 = vsel %vm188, %v4799, 0
      %v5060 = vsel %vm188, %v4800, 0
      %v5063 = vsel %vm188, %v4801, 0
      %v5066 = vsel %vm188, %v4802, 0
      %v5069 = vsel %vm188, %v4803, 0
      %v5072 = vsel %vm188, %v4804, 0
      %v5075 = vsel %vm188, %v4805, 0
      %v5078 = vsel %vm188, %v4806, 0
      %v5081 = vsel %vm188, %v4807, 0
      %v5084 = vsel %vm188, %v4808, 0
      %5086 = vmatprep.subr.mxu0 0.0
      %5087 = vmatpush1.msra.mxu0 %v4809
      %5088 = vmatprep.subr.mxu0 0.0
      %5089 = vmatpush1.msra.mxu0 0.0
      %5090 = vmatprep.subr.mxu0 0.0
      %5091 = vmatpush1.msra.mxu0 0.0
      %5092 = vmatprep.subr.mxu0 0.0
      %5093 = vmatpush1.msra.mxu0 0.0
      %5094 = vmatprep.subr.mxu0 0.0
      %5095 = vmatpush1.msra.mxu0 0.0
      %5096 = vmatprep.subr.mxu0 0.0
      %5097 = vmatpush1.msra.mxu0 0.0
      %5098 = vmatprep.subr.mxu0 0.0
      %5099 = vmatpush1.msra.mxu0 0.0
      %5100 = vmatprep.subr.mxu0 0.0
      %5101 = vmatpush1.msra.mxu0 0.0
      %5102 = vmatprep.subr.mxu0 0.0
      %5103 = vmatpush1.msra.mxu0 0.0
      %5104 = vmatprep.subr.mxu0 0.0
      %5105 = vmatpush1.msra.mxu0 0.0
      %5106 = vmatprep.subr.mxu0 0.0
      %5107 = vmatpush1.msra.mxu0 0.0
      %5108 = vmatprep.subr.mxu0 0.0
      %5109 = vmatpush1.msra.mxu0 0.0
      %5110 = vmatprep.subr.mxu0 0.0
      %5111 = vmatpush1.msra.mxu0 0.0
      %5112 = vmatprep.subr.mxu0 0.0
      %5113 = vmatpush1.msra.mxu0 0.0
      %5114 = vmatprep.subr.mxu0 0.0
      %5115 = vmatpush1.msra.mxu0 0.0
      %5116 = vmatprep.subr.mxu0 0.0
      %5117 = vmatpush1.msra.mxu0 0.0
      %5118 = vmatprep.subr.mxu0 0.0
      %5119 = vmatpush1.msra.mxu0 0.0
      %5120 = vmatprep.subr.mxu0 0.0
      %5121 = vmatpush1.msra.mxu0 0.0
      %5122 = vmatprep.subr.mxu0 0.0
      %5123 = vmatpush1.msra.mxu0 0.0
      %5124 = vmatprep.subr.mxu0 0.0
      %5125 = vmatpush1.msra.mxu0 0.0
      %5126 = vmatprep.subr.mxu0 0.0
      %5127 = vmatpush1.msra.mxu0 0.0
      %5128 = vmatprep.subr.mxu0 0.0
      %5129 = vmatpush1.msra.mxu0 0.0
      %5130 = vmatprep.subr.mxu0 0.0
      %5131 = vmatpush1.msra.mxu0 0.0
      %5132 = vmatprep.subr.mxu0 0.0
      %5133 = vmatpush1.msra.mxu0 0.0
      %5134 = vmatprep.subr.mxu0 0.0
      %5135 = vmatpush1.msra.mxu0 0.0
      %5136 = vmatprep.subr.mxu0 0.0
      %5137 = vmatpush1.msra.mxu0 0.0
      %5138 = vmatprep.subr.mxu0 0.0
      %5139 = vmatpush1.msra.mxu0 0.0
      %5140 = vmatprep.subr.mxu0 0.0
      %5141 = vmatpush1.msra.mxu0 0.0
      %5142 = vmatprep.subr.mxu0 0.0
      %5143 = vmatpush1.msra.mxu0 0.0
      %5144 = vmatprep.subr.mxu0 0.0
      %5145 = vmatpush1.msra.mxu0 0.0
      %5146 = vmatprep.subr.mxu0 0.0
      %5147 = vmatpush1.msra.mxu0 0.0
      %5148 = vmatprep.subr.mxu0 0.0
      %5149 = vmatpush1.msra.mxu0 0.0
      %5150 = vmatprep.mubr.f32.mxu0 0.0
      %5151 = vmatmul.mubr.f32.gmra.mrb[0].mxu0 %v5039
      %v5152 = vpop.f32.mrb[0].mxu0
      %v5153 = vadd.f32 %v4960, %v5152
      %v5154 = vpop.f32.mrb[0].mxu0
      %5155 = vmatprep.mubr.f32.mxu0 0.0
      %5156 = vmatmul.mubr.f32.gmra.mrb[0].mxu0 %v5042
      %v5157 = vpop.f32.mrb[0].mxu0
      %v5158 = vadd.f32 %v4965, %v5157
      %v5159 = vpop.f32.mrb[0].mxu0
      %5160 = vmatprep.mubr.f32.mxu0 0.0
      %5161 = vmatmul.mubr.f32.gmra.mrb[0].mxu0 %v5045
      %v5162 = vpop.f32.mrb[0].mxu0
      %v5163 = vadd.f32 %v4970, %v5162
      %v5164 = vpop.f32.mrb[0].mxu0
      %5165 = vmatprep.mubr.f32.mxu0 0.0
      %5166 = vmatmul.mubr.f32.gmra.mrb[0].mxu0 %v5048
      %v5167 = vpop.f32.mrb[0].mxu0
      %v5168 = vadd.f32 %v4975, %v5167
      %v5169 = vpop.f32.mrb[0].mxu0
      %5170 = vmatprep.mubr.f32.mxu0 0.0
      %5171 = vmatmul.mubr.f32.gmra.mrb[0].mxu0 %v5051
      %v5172 = vpop.f32.mrb[0].mxu0
      %v5173 = vadd.f32 %v4980, %v5172
      %v5174 = vpop.f32.mrb[0].mxu0
      %5175 = vmatprep.mubr.f32.mxu0 0.0
      %5176 = vmatmul.mubr.f32.gmra.mrb[0].mxu0 %v5054
      %v5177 = vpop.f32.mrb[0].mxu0
      %v5178 = vadd.f32 %v4985, %v5177
      %v5179 = vpop.f32.mrb[0].mxu0
      %5180 = vmatprep.mubr.f32.mxu0 0.0
      %5181 = vmatmul.mubr.f32.gmra.mrb[0].mxu0 %v5057
      %v5182 = vpop.f32.mrb[0].mxu0
      %v5183 = vadd.f32 %v4990, %v5182
      %v5184 = vpop.f32.mrb[0].mxu0
      %5185 = vmatprep.mubr.f32.mxu0 0.0
      %5186 = vmatmul.mubr.f32.gmra.mrb[0].mxu0 %v5060
      %v5187 = vpop.f32.mrb[0].mxu0
      %v5188 = vadd.f32 %v4995, %v5187
      %v5189 = vpop.f32.mrb[0].mxu0
      %5190 = vmatprep.mubr.f32.mxu0 0.0
      %5191 = vmatmul.mubr.f32.gmra.mrb[0].mxu0 %v5063
      %v5192 = vpop.f32.mrb[0].mxu0
      %v5193 = vadd.f32 %v5000, %v5192
      %v5194 = vpop.f32.mrb[0].mxu0
      %5195 = vmatprep.mubr.f32.mxu0 0.0
      %5196 = vmatmul.mubr.f32.gmra.mrb[0].mxu0 %v5066
      %v5197 = vpop.f32.mrb[0].mxu0
      %v5198 = vadd.f32 %v5005, %v5197
      %v5199 = vpop.f32.mrb[0].mxu0
      %5200 = vmatprep.mubr.f32.mxu0 0.0
      %5201 = vmatmul.mubr.f32.gmra.mrb[0].mxu0 %v5069
      %v5202 = vpop.f32.mrb[0].mxu0
      %v5203 = vadd.f32 %v5010, %v5202
      %v5204 = vpop.f32.mrb[0].mxu0
      %5205 = vmatprep.mubr.f32.mxu0 0.0
      %5206 = vmatmul.mubr.f32.gmra.mrb[0].mxu0 %v5072
      %v5207 = vpop.f32.mrb[0].mxu0
      %v5208 = vadd.f32 %v5015, %v5207
      %v5209 = vpop.f32.mrb[0].mxu0
      %5210 = vmatprep.mubr.f32.mxu0 0.0
      %5211 = vmatmul.mubr.f32.gmra.mrb[0].mxu0 %v5075
      %v5212 = vpop.f32.mrb[0].mxu0
      %v5213 = vadd.f32 %v5020, %v5212
      %v5214 = vpop.f32.mrb[0].mxu0
      %5215 = vmatprep.mubr.f32.mxu0 0.0
      %5216 = vmatmul.mubr.f32.gmra.mrb[0].mxu0 %v5078
      %v5217 = vpop.f32.mrb[0].mxu0
      %v5218 = vadd.f32 %v5025, %v5217
      %v5219 = vpop.f32.mrb[0].mxu0
      %5220 = vmatprep.mubr.f32.mxu0 0.0
      %5221 = vmatmul.mubr.f32.gmra.mrb[0].mxu0 %v5081
      %v5222 = vpop.f32.mrb[0].mxu0
      %v5223 = vadd.f32 %v5030, %v5222
      %v5224 = vpop.f32.mrb[0].mxu0
      %5225 = vmatprep.mubr.f32.mxu0 0.0
      %5226 = vmatmul.mubr.f32.gmra.mrb[0].mxu0 %v5084
      %v5227 = vpop.f32.mrb[0].mxu0
      %v5228 = vadd.f32 %v5035, %v5227
      %v5229 = vpop.f32.mrb[0].mxu0
      %5230 = vdwg.mxu0
      %s5231 = scalar_lea.vmem [#allocation3], 576
      %v5232 = vld [vmem:[%s5231] sm:$0xff]
      %v5233 = vld [vmem:[%s5231 + $0x8] sm:$0xff]
      %v5234 = vld [vmem:[%s5231 + $0x10] sm:$0xff]
      %v5235 = vld [vmem:[%s5231 + $0x18] sm:$0xff]
      %v5236 = vld [vmem:[%s5231 + $0x20] sm:$0xff]
      %v5237 = vld [vmem:[%s5231 + $0x28] sm:$0xff]
      %v5238 = vld [vmem:[%s5231 + $0x30] sm:$0xff]
      %v5239 = vld [vmem:[%s5231 + $0x38] sm:$0xff]
      %v5240 = vld [vmem:[%s5231 + $0x40] sm:$0xff]
      %v5241 = vld [vmem:[%s5231 + $0x48] sm:$0xff]
      %v5242 = vld [vmem:[%s5231 + $0x50] sm:$0xff]
      %v5243 = vld [vmem:[%s5231 + $0x58] sm:$0xff]
      %v5244 = vld [vmem:[%s5231 + $0x60] sm:$0xff]
      %v5245 = vld [vmem:[%s5231 + $0x68] sm:$0xff]
      %v5246 = vld [vmem:[%s5231 + $0x70] sm:$0xff]
      %v5247 = vld [vmem:[%s5231 + $0x78] sm:$0xff]
      %v5248 = vsel %vm314, %v5232, 0.0
      %v5249 = vsel %vm315, %v5233, 0.0
      %v5250 = vsel %vm314, %v5234, 0.0
      %v5251 = vsel %vm315, %v5235, 0.0
      %v5252 = vsel %vm314, %v5236, 0.0
      %v5253 = vsel %vm315, %v5237, 0.0
      %v5254 = vsel %vm314, %v5238, 0.0
      %v5255 = vsel %vm315, %v5239, 0.0
      %v5256 = vsel %vm314, %v5240, 0.0
      %v5257 = vsel %vm315, %v5241, 0.0
      %v5258 = vsel %vm314, %v5242, 0.0
      %v5259 = vsel %vm315, %v5243, 0.0
      %v5260 = vsel %vm314, %v5244, 0.0
      %v5261 = vsel %vm315, %v5245, 0.0
      %v5262 = vsel %vm314, %v5246, 0.0
      %v5263 = vsel %vm315, %v5247, 0.0
      %v5264 = vsel 0, %v5248, 0.0
      %v5265 = vsel 0, %v5249, 0.0
      %v5266 = vsel 1, %v5250, 0.0
      %v5267 = vsel 1, %v5251, 0.0
      %v5268 = vsel 1, %v5252, 0.0
      %v5269 = vsel 1, %v5253, 0.0
      %v5270 = vsel 1, %v5254, 0.0
      %v5271 = vsel 1, %v5255, 0.0
      %v5272 = vsel 1, %v5256, 0.0
      %v5273 = vsel 1, %v5257, 0.0
      %v5274 = vsel 1, %v5258, 0.0
      %v5275 = vsel 1, %v5259, 0.0
      %v5276 = vsel 1, %v5260, 0.0
      %v5277 = vsel 1, %v5261, 0.0
      %v5278 = vsel 1, %v5262, 0.0
      %v5279 = vsel 1, %v5263, 0.0
      %s5280 = scalar_lea.vmem %s2, 16
      %v5281 = vld [vmem:[%s5280] sm:$0xff]
      %v5283 = vsel %vm188, %v5264, 0
      %v5286 = vsel %vm188, %v5265, 0
      %v5289 = vsel %vm188, %v5266, 0
      %v5292 = vsel %vm188, %v5267, 0
      %v5295 = vsel %vm188, %v5268, 0
      %v5298 = vsel %vm188, %v5269, 0
      %v5301 = vsel %vm188, %v5270, 0
      %v5304 = vsel %vm188, %v5271, 0
      %v5307 = vsel %vm188, %v5272, 0
      %v5310 = vsel %vm188, %v5273, 0
      %v5313 = vsel %vm188, %v5274, 0
      %v5316 = vsel %vm188, %v5275, 0
      %v5319 = vsel %vm188, %v5276, 0
      %v5322 = vsel %vm188, %v5277, 0
      %v5325 = vsel %vm188, %v5278, 0
      %v5328 = vsel %vm188, %v5279, 0
      %5330 = vmatprep.subr.mxu0 0.0
      %5331 = vmatpush1.msra.mxu0 %v5281
      %5332 = vmatprep.subr.mxu0 0.0
      %5333 = vmatpush1.msra.mxu0 0.0
      %5334 = vmatprep.subr.mxu0 0.0
      %5335 = vmatpush1.msra.mxu0 0.0
      %5336 = vmatprep.subr.mxu0 0.0
      %5337 = vmatpush1.msra.mxu0 0.0
      %5338 = vmatprep.subr.mxu0 0.0
      %5339 = vmatpush1.msra.mxu0 0.0
      %5340 = vmatprep.subr.mxu0 0.0
      %5341 = vmatpush1.msra.mxu0 0.0
      %5342 = vmatprep.subr.mxu0 0.0
      %5343 = vmatpush1.msra.mxu0 0.0
      %5344 = vmatprep.subr.mxu0 0.0
      %5345 = vmatpush1.msra.mxu0 0.0
      %5346 = vmatprep.subr.mxu0 0.0
      %5347 = vmatpush1.msra.mxu0 0.0
      %5348 = vmatprep.subr.mxu0 0.0
      %5349 = vmatpush1.msra.mxu0 0.0
      %5350 = vmatprep.subr.mxu0 0.0
      %5351 = vmatpush1.msra.mxu0 0.0
      %5352 = vmatprep.subr.mxu0 0.0
      %5353 = vmatpush1.msra.mxu0 0.0
      %5354 = vmatprep.subr.mxu0 0.0
      %5355 = vmatpush1.msra.mxu0 0.0
      %5356 = vmatprep.subr.mxu0 0.0
      %5357 = vmatpush1.msra.mxu0 0.0
      %5358 = vmatprep.subr.mxu0 0.0
      %5359 = vmatpush1.msra.mxu0 0.0
      %5360 = vmatprep.subr.mxu0 0.0
      %5361 = vmatpush1.msra.mxu0 0.0
      %5362 = vmatprep.subr.mxu0 0.0
      %5363 = vmatpush1.msra.mxu0 0.0
      %5364 = vmatprep.subr.mxu0 0.0
      %5365 = vmatpush1.msra.mxu0 0.0
      %5366 = vmatprep.subr.mxu0 0.0
      %5367 = vmatpush1.msra.mxu0 0.0
      %5368 = vmatprep.subr.mxu0 0.0
      %5369 = vmatpush1.msra.mxu0 0.0
      %5370 = vmatprep.subr.mxu0 0.0
      %5371 = vmatpush1.msra.mxu0 0.0
      %5372 = vmatprep.subr.mxu0 0.0
      %5373 = vmatpush1.msra.mxu0 0.0
      %5374 = vmatprep.subr.mxu0 0.0
      %5375 = vmatpush1.msra.mxu0 0.0
      %5376 = vmatprep.subr.mxu0 0.0
      %5377 = vmatpush1.msra.mxu0 0.0
      %5378 = vmatprep.subr.mxu0 0.0
      %5379 = vmatpush1.msra.mxu0 0.0
      %5380 = vmatprep.subr.mxu0 0.0
      %5381 = vmatpush1.msra.mxu0 0.0
      %5382 = vmatprep.subr.mxu0 0.0
      %5383 = vmatpush1.msra.mxu0 0.0
      %5384 = vmatprep.subr.mxu0 0.0
      %5385 = vmatpush1.msra.mxu0 0.0
      %5386 = vmatprep.subr.mxu0 0.0
      %5387 = vmatpush1.msra.mxu0 0.0
      %5388 = vmatprep.subr.mxu0 0.0
      %5389 = vmatpush1.msra.mxu0 0.0
      %5390 = vmatprep.subr.mxu0 0.0
      %5391 = vmatpush1.msra.mxu0 0.0
      %5392 = vmatprep.subr.mxu0 0.0
      %5393 = vmatpush1.msra.mxu0 0.0
      %5394 = vmatprep.mubr.f32.mxu0 0.0
      %5395 = vmatmul.mubr.f32.gmra.mrb[0].mxu0 %v5283
      %v5396 = vpop.f32.mrb[0].mxu0
      %v5397 = vadd.f32 0.0, %v5396
      %v5398 = vpop.f32.mrb[0].mxu0
      %5399 = vmatprep.mubr.f32.mxu0 0.0
      %5400 = vmatmul.mubr.f32.gmra.mrb[0].mxu0 %v5286
      %v5401 = vpop.f32.mrb[0].mxu0
      %v5402 = vadd.f32 0.0, %v5401
      %v5403 = vpop.f32.mrb[0].mxu0
      %5404 = vmatprep.mubr.f32.mxu0 0.0
      %5405 = vmatmul.mubr.f32.gmra.mrb[0].mxu0 %v5289
      %v5406 = vpop.f32.mrb[0].mxu0
      %v5407 = vadd.f32 0.0, %v5406
      %v5408 = vpop.f32.mrb[0].mxu0
      %5409 = vmatprep.mubr.f32.mxu0 0.0
      %5410 = vmatmul.mubr.f32.gmra.mrb[0].mxu0 %v5292
      %v5411 = vpop.f32.mrb[0].mxu0
      %v5412 = vadd.f32 0.0, %v5411
      %v5413 = vpop.f32.mrb[0].mxu0
      %5414 = vmatprep.mubr.f32.mxu0 0.0
      %5415 = vmatmul.mubr.f32.gmra.mrb[0].mxu0 %v5295
      %v5416 = vpop.f32.mrb[0].mxu0
      %v5417 = vadd.f32 0.0, %v5416
      %v5418 = vpop.f32.mrb[0].mxu0
      %5419 = vmatprep.mubr.f32.mxu0 0.0
      %5420 = vmatmul.mubr.f32.gmra.mrb[0].mxu0 %v5298
      %v5421 = vpop.f32.mrb[0].mxu0
      %v5422 = vadd.f32 0.0, %v5421
      %v5423 = vpop.f32.mrb[0].mxu0
      %5424 = vmatprep.mubr.f32.mxu0 0.0
      %5425 = vmatmul.mubr.f32.gmra.mrb[0].mxu0 %v5301
      %v5426 = vpop.f32.mrb[0].mxu0
      %v5427 = vadd.f32 0.0, %v5426
      %v5428 = vpop.f32.mrb[0].mxu0
      %5429 = vmatprep.mubr.f32.mxu0 0.0
      %5430 = vmatmul.mubr.f32.gmra.mrb[0].mxu0 %v5304
      %v5431 = vpop.f32.mrb[0].mxu0
      %v5432 = vadd.f32 0.0, %v5431
      %v5433 = vpop.f32.mrb[0].mxu0
      %5434 = vmatprep.mubr.f32.mxu0 0.0
      %5435 = vmatmul.mubr.f32.gmra.mrb[0].mxu0 %v5307
      %v5436 = vpop.f32.mrb[0].mxu0
      %v5437 = vadd.f32 0.0, %v5436
      %v5438 = vpop.f32.mrb[0].mxu0
      %5439 = vmatprep.mubr.f32.mxu0 0.0
      %5440 = vmatmul.mubr.f32.gmra.mrb[0].mxu0 %v5310
      %v5441 = vpop.f32.mrb[0].mxu0
      %v5442 = vadd.f32 0.0, %v5441
      %v5443 = vpop.f32.mrb[0].mxu0
      %5444 = vmatprep.mubr.f32.mxu0 0.0
      %5445 = vmatmul.mubr.f32.gmra.mrb[0].mxu0 %v5313
      %v5446 = vpop.f32.mrb[0].mxu0
      %v5447 = vadd.f32 0.0, %v5446
      %v5448 = vpop.f32.mrb[0].mxu0
      %5449 = vmatprep.mubr.f32.mxu0 0.0
      %5450 = vmatmul.mubr.f32.gmra.mrb[0].mxu0 %v5316
      %v5451 = vpop.f32.mrb[0].mxu0
      %v5452 = vadd.f32 0.0, %v5451
      %v5453 = vpop.f32.mrb[0].mxu0
      %5454 = vmatprep.mubr.f32.mxu0 0.0
      %5455 = vmatmul.mubr.f32.gmra.mrb[0].mxu0 %v5319
      %v5456 = vpop.f32.mrb[0].mxu0
      %v5457 = vadd.f32 0.0, %v5456
      %v5458 = vpop.f32.mrb[0].mxu0
      %5459 = vmatprep.mubr.f32.mxu0 0.0
      %5460 = vmatmul.mubr.f32.gmra.mrb[0].mxu0 %v5322
      %v5461 = vpop.f32.mrb[0].mxu0
      %v5462 = vadd.f32 0.0, %v5461
      %v5463 = vpop.f32.mrb[0].mxu0
      %5464 = vmatprep.mubr.f32.mxu0 0.0
      %5465 = vmatmul.mubr.f32.gmra.mrb[0].mxu0 %v5325
      %v5466 = vpop.f32.mrb[0].mxu0
      %v5467 = vadd.f32 0.0, %v5466
      %v5468 = vpop.f32.mrb[0].mxu0
      %5469 = vmatprep.mubr.f32.mxu0 0.0
      %5470 = vmatmul.mubr.f32.gmra.mrb[0].mxu0 %v5328
      %v5471 = vpop.f32.mrb[0].mxu0
      %v5472 = vadd.f32 0.0, %v5471
      %v5473 = vpop.f32.mrb[0].mxu0
      %5474 = vdwg.mxu0
      %v5475 = vadd.f32 %v5153, %v5397
      %v5476 = vadd.f32 %v5158, %v5402
      %v5477 = vadd.f32 %v5163, %v5407
      %v5478 = vadd.f32 %v5168, %v5412
      %v5479 = vadd.f32 %v5173, %v5417
      %v5480 = vadd.f32 %v5178, %v5422
      %v5481 = vadd.f32 %v5183, %v5427
      %v5482 = vadd.f32 %v5188, %v5432
      %v5483 = vadd.f32 %v5193, %v5437
      %v5484 = vadd.f32 %v5198, %v5442
      %v5485 = vadd.f32 %v5203, %v5447
      %v5486 = vadd.f32 %v5208, %v5452
      %v5487 = vadd.f32 %v5213, %v5457
      %v5488 = vadd.f32 %v5218, %v5462
      %v5489 = vadd.f32 %v5223, %v5467
      %v5490 = vadd.f32 %v5228, %v5472
      %v5491 = vld [vmem:[%s2508] sm:$0xff]
      %v5492 = vld [vmem:[%s2508 + $0x8] sm:$0xff]
      %v5493 = vld [vmem:[%s2508 + $0x10] sm:$0xff]
      %v5494 = vld [vmem:[%s2508 + $0x18] sm:$0xff]
      %v5495 = vld [vmem:[%s2508 + $0x20] sm:$0xff]
      %v5496 = vld [vmem:[%s2508 + $0x28] sm:$0xff]
      %v5497 = vld [vmem:[%s2508 + $0x30] sm:$0xff]
      %v5498 = vld [vmem:[%s2508 + $0x38] sm:$0xff]
      %v5499 = vld [vmem:[%s2508 + $0x40] sm:$0xff]
      %v5500 = vld [vmem:[%s2508 + $0x48] sm:$0xff]
      %v5501 = vld [vmem:[%s2508 + $0x50] sm:$0xff]
      %v5502 = vld [vmem:[%s2508 + $0x58] sm:$0xff]
      %v5503 = vld [vmem:[%s2508 + $0x60] sm:$0xff]
      %v5504 = vld [vmem:[%s2508 + $0x68] sm:$0xff]
      %v5505 = vld [vmem:[%s2508 + $0x70] sm:$0xff]
      %v5506 = vld [vmem:[%s2508 + $0x78] sm:$0xff]
      %v5507 = vsel %vm312, %v5491, 0.0
      %v5508 = vsel %vm313, %v5492, 0.0
      %v5509 = vsel %vm312, %v5493, 0.0
      %v5510 = vsel %vm313, %v5494, 0.0
      %v5511 = vsel %vm312, %v5495, 0.0
      %v5512 = vsel %vm313, %v5496, 0.0
      %v5513 = vsel %vm312, %v5497, 0.0
      %v5514 = vsel %vm313, %v5498, 0.0
      %v5515 = vsel %vm312, %v5499, 0.0
      %v5516 = vsel %vm313, %v5500, 0.0
      %v5517 = vsel %vm312, %v5501, 0.0
      %v5518 = vsel %vm313, %v5502, 0.0
      %v5519 = vsel %vm312, %v5503, 0.0
      %v5520 = vsel %vm313, %v5504, 0.0
      %v5521 = vsel %vm312, %v5505, 0.0
      %v5522 = vsel %vm313, %v5506, 0.0
      %s5523 = scalar_lea.vmem %s2, 24
      %v5524 = vld [vmem:[%s5523] sm:$0xff]
      %v5526 = vsel %vm188, %v5507, 0
      %v5529 = vsel %vm188, %v5508, 0
      %v5532 = vsel %vm188, %v5509, 0
      %v5535 = vsel %vm188, %v5510, 0
      %v5538 = vsel %vm188, %v5511, 0
      %v5541 = vsel %vm188, %v5512, 0
      %v5544 = vsel %vm188, %v5513, 0
      %v5547 = vsel %vm188, %v5514, 0
      %v5550 = vsel %vm188, %v5515, 0
      %v5553 = vsel %vm188, %v5516, 0
      %v5556 = vsel %vm188, %v5517, 0
      %v5559 = vsel %vm188, %v5518, 0
      %v5562 = vsel %vm188, %v5519, 0
      %v5565 = vsel %vm188, %v5520, 0
      %v5568 = vsel %vm188, %v5521, 0
      %v5571 = vsel %vm188, %v5522, 0
      %5573 = vmatprep.subr.mxu0 0.0
      %5574 = vmatpush1.msra.mxu0 %v5524
      %5575 = vmatprep.subr.mxu0 0.0
      %5576 = vmatpush1.msra.mxu0 0.0
      %5577 = vmatprep.subr.mxu0 0.0
      %5578 = vmatpush1.msra.mxu0 0.0
      %5579 = vmatprep.subr.mxu0 0.0
      %5580 = vmatpush1.msra.mxu0 0.0
      %5581 = vmatprep.subr.mxu0 0.0
      %5582 = vmatpush1.msra.mxu0 0.0
      %5583 = vmatprep.subr.mxu0 0.0
      %5584 = vmatpush1.msra.mxu0 0.0
      %5585 = vmatprep.subr.mxu0 0.0
      %5586 = vmatpush1.msra.mxu0 0.0
      %5587 = vmatprep.subr.mxu0 0.0
      %5588 = vmatpush1.msra.mxu0 0.0
      %5589 = vmatprep.subr.mxu0 0.0
      %5590 = vmatpush1.msra.mxu0 0.0
      %5591 = vmatprep.subr.mxu0 0.0
      %5592 = vmatpush1.msra.mxu0 0.0
      %5593 = vmatprep.subr.mxu0 0.0
      %5594 = vmatpush1.msra.mxu0 0.0
      %5595 = vmatprep.subr.mxu0 0.0
      %5596 = vmatpush1.msra.mxu0 0.0
      %5597 = vmatprep.subr.mxu0 0.0
      %5598 = vmatpush1.msra.mxu0 0.0
      %5599 = vmatprep.subr.mxu0 0.0
      %5600 = vmatpush1.msra.mxu0 0.0
      %5601 = vmatprep.subr.mxu0 0.0
      %5602 = vmatpush1.msra.mxu0 0.0
      %5603 = vmatprep.subr.mxu0 0.0
      %5604 = vmatpush1.msra.mxu0 0.0
      %5605 = vmatprep.subr.mxu0 0.0
      %5606 = vmatpush1.msra.mxu0 0.0
      %5607 = vmatprep.subr.mxu0 0.0
      %5608 = vmatpush1.msra.mxu0 0.0
      %5609 = vmatprep.subr.mxu0 0.0
      %5610 = vmatpush1.msra.mxu0 0.0
      %5611 = vmatprep.subr.mxu0 0.0
      %5612 = vmatpush1.msra.mxu0 0.0
      %5613 = vmatprep.subr.mxu0 0.0
      %5614 = vmatpush1.msra.mxu0 0.0
      %5615 = vmatprep.subr.mxu0 0.0
      %5616 = vmatpush1.msra.mxu0 0.0
      %5617 = vmatprep.subr.mxu0 0.0
      %5618 = vmatpush1.msra.mxu0 0.0
      %5619 = vmatprep.subr.mxu0 0.0
      %5620 = vmatpush1.msra.mxu0 0.0
      %5621 = vmatprep.subr.mxu0 0.0
      %5622 = vmatpush1.msra.mxu0 0.0
      %5623 = vmatprep.subr.mxu0 0.0
      %5624 = vmatpush1.msra.mxu0 0.0
      %5625 = vmatprep.subr.mxu0 0.0
      %5626 = vmatpush1.msra.mxu0 0.0
      %5627 = vmatprep.subr.mxu0 0.0
      %5628 = vmatpush1.msra.mxu0 0.0
      %5629 = vmatprep.subr.mxu0 0.0
      %5630 = vmatpush1.msra.mxu0 0.0
      %5631 = vmatprep.subr.mxu0 0.0
      %5632 = vmatpush1.msra.mxu0 0.0
      %5633 = vmatprep.subr.mxu0 0.0
      %5634 = vmatpush1.msra.mxu0 0.0
      %5635 = vmatprep.subr.mxu0 0.0
      %5636 = vmatpush1.msra.mxu0 0.0
      %5637 = vmatprep.mubr.f32.mxu0 0.0
      %5638 = vmatmul.mubr.f32.gmra.mrb[0].mxu0 %v5526
      %v5639 = vpop.f32.mrb[0].mxu0
      %v5640 = vadd.f32 0.0, %v5639
      %v5641 = vpop.f32.mrb[0].mxu0
      %5642 = vmatprep.mubr.f32.mxu0 0.0
      %5643 = vmatmul.mubr.f32.gmra.mrb[0].mxu0 %v5529
      %v5644 = vpop.f32.mrb[0].mxu0
      %v5645 = vadd.f32 0.0, %v5644
      %v5646 = vpop.f32.mrb[0].mxu0
      %5647 = vmatprep.mubr.f32.mxu0 0.0
      %5648 = vmatmul.mubr.f32.gmra.mrb[0].mxu0 %v5532
      %v5649 = vpop.f32.mrb[0].mxu0
      %v5650 = vadd.f32 0.0, %v5649
      %v5651 = vpop.f32.mrb[0].mxu0
      %5652 = vmatprep.mubr.f32.mxu0 0.0
      %5653 = vmatmul.mubr.f32.gmra.mrb[0].mxu0 %v5535
      %v5654 = vpop.f32.mrb[0].mxu0
      %v5655 = vadd.f32 0.0, %v5654
      %v5656 = vpop.f32.mrb[0].mxu0
      %5657 = vmatprep.mubr.f32.mxu0 0.0
      %5658 = vmatmul.mubr.f32.gmra.mrb[0].mxu0 %v5538
      %v5659 = vpop.f32.mrb[0].mxu0
      %v5660 = vadd.f32 0.0, %v5659
      %v5661 = vpop.f32.mrb[0].mxu0
      %5662 = vmatprep.mubr.f32.mxu0 0.0
      %5663 = vmatmul.mubr.f32.gmra.mrb[0].mxu0 %v5541
      %v5664 = vpop.f32.mrb[0].mxu0
      %v5665 = vadd.f32 0.0, %v5664
      %v5666 = vpop.f32.mrb[0].mxu0
      %5667 = vmatprep.mubr.f32.mxu0 0.0
      %5668 = vmatmul.mubr.f32.gmra.mrb[0].mxu0 %v5544
      %v5669 = vpop.f32.mrb[0].mxu0
      %v5670 = vadd.f32 0.0, %v5669
      %v5671 = vpop.f32.mrb[0].mxu0
      %5672 = vmatprep.mubr.f32.mxu0 0.0
      %5673 = vmatmul.mubr.f32.gmra.mrb[0].mxu0 %v5547
      %v5674 = vpop.f32.mrb[0].mxu0
      %v5675 = vadd.f32 0.0, %v5674
      %v5676 = vpop.f32.mrb[0].mxu0
      %5677 = vmatprep.mubr.f32.mxu0 0.0
      %5678 = vmatmul.mubr.f32.gmra.mrb[0].mxu0 %v5550
      %v5679 = vpop.f32.mrb[0].mxu0
      %v5680 = vadd.f32 0.0, %v5679
      %v5681 = vpop.f32.mrb[0].mxu0
      %5682 = vmatprep.mubr.f32.mxu0 0.0
      %5683 = vmatmul.mubr.f32.gmra.mrb[0].mxu0 %v5553
      %v5684 = vpop.f32.mrb[0].mxu0
      %v5685 = vadd.f32 0.0, %v5684
      %v5686 = vpop.f32.mrb[0].mxu0
      %5687 = vmatprep.mubr.f32.mxu0 0.0
      %5688 = vmatmul.mubr.f32.gmra.mrb[0].mxu0 %v5556
      %v5689 = vpop.f32.mrb[0].mxu0
      %v5690 = vadd.f32 0.0, %v5689
      %v5691 = vpop.f32.mrb[0].mxu0
      %5692 = vmatprep.mubr.f32.mxu0 0.0
      %5693 = vmatmul.mubr.f32.gmra.mrb[0].mxu0 %v5559
      %v5694 = vpop.f32.mrb[0].mxu0
      %v5695 = vadd.f32 0.0, %v5694
      %v5696 = vpop.f32.mrb[0].mxu0
      %5697 = vmatprep.mubr.f32.mxu0 0.0
      %5698 = vmatmul.mubr.f32.gmra.mrb[0].mxu0 %v5562
      %v5699 = vpop.f32.mrb[0].mxu0
      %v5700 = vadd.f32 0.0, %v5699
      %v5701 = vpop.f32.mrb[0].mxu0
      %5702 = vmatprep.mubr.f32.mxu0 0.0
      %5703 = vmatmul.mubr.f32.gmra.mrb[0].mxu0 %v5565
      %v5704 = vpop.f32.mrb[0].mxu0
      %v5705 = vadd.f32 0.0, %v5704
      %v5706 = vpop.f32.mrb[0].mxu0
      %5707 = vmatprep.mubr.f32.mxu0 0.0
      %5708 = vmatmul.mubr.f32.gmra.mrb[0].mxu0 %v5568
      %v5709 = vpop.f32.mrb[0].mxu0
      %v5710 = vadd.f32 0.0, %v5709
      %v5711 = vpop.f32.mrb[0].mxu0
      %5712 = vmatprep.mubr.f32.mxu0 0.0
      %5713 = vmatmul.mubr.f32.gmra.mrb[0].mxu0 %v5571
      %v5714 = vpop.f32.mrb[0].mxu0
      %v5715 = vadd.f32 0.0, %v5714
      %v5716 = vpop.f32.mrb[0].mxu0
      %5717 = vdwg.mxu0
      %v5718 = vadd.f32 %v5475, %v5640
      %v5719 = vadd.f32 %v5476, %v5645
      %v5720 = vadd.f32 %v5477, %v5650
      %v5721 = vadd.f32 %v5478, %v5655
      %v5722 = vadd.f32 %v5479, %v5660
      %v5723 = vadd.f32 %v5480, %v5665
      %v5724 = vadd.f32 %v5481, %v5670
      %v5725 = vadd.f32 %v5482, %v5675
      %v5726 = vadd.f32 %v5483, %v5680
      %v5727 = vadd.f32 %v5484, %v5685
      %v5728 = vadd.f32 %v5485, %v5690
      %v5729 = vadd.f32 %v5486, %v5695
      %v5730 = vadd.f32 %v5487, %v5700
      %v5731 = vadd.f32 %v5488, %v5705
      %v5732 = vadd.f32 %v5489, %v5710
      %v5733 = vadd.f32 %v5490, %v5715
      %v5734 = vld [vmem:[%s2491] sm:$0xff]
      %v5735 = vld [vmem:[%s2491 + $0x8] sm:$0xff]
      %v5736 = vld [vmem:[%s2491 + $0x10] sm:$0xff]
      %v5737 = vld [vmem:[%s2491 + $0x18] sm:$0xff]
      %v5738 = vld [vmem:[%s2491 + $0x20] sm:$0xff]
      %v5739 = vld [vmem:[%s2491 + $0x28] sm:$0xff]
      %v5740 = vld [vmem:[%s2491 + $0x30] sm:$0xff]
      %v5741 = vld [vmem:[%s2491 + $0x38] sm:$0xff]
      %v5742 = vld [vmem:[%s2491 + $0x40] sm:$0xff]
      %v5743 = vld [vmem:[%s2491 + $0x48] sm:$0xff]
      %v5744 = vld [vmem:[%s2491 + $0x50] sm:$0xff]
      %v5745 = vld [vmem:[%s2491 + $0x58] sm:$0xff]
      %v5746 = vld [vmem:[%s2491 + $0x60] sm:$0xff]
      %v5747 = vld [vmem:[%s2491 + $0x68] sm:$0xff]
      %v5748 = vld [vmem:[%s2491 + $0x70] sm:$0xff]
      %v5749 = vld [vmem:[%s2491 + $0x78] sm:$0xff]
      %s5750 = scalar_lea.vmem %s2, 32
      %v5751 = vld [vmem:[%s5750] sm:$0xff]
      %v5753 = vsel %vm188, %v5734, 0
      %v5756 = vsel %vm188, %v5735, 0
      %v5759 = vsel %vm188, %v5736, 0
      %v5762 = vsel %vm188, %v5737, 0
      %v5765 = vsel %vm188, %v5738, 0
      %v5768 = vsel %vm188, %v5739, 0
      %v5771 = vsel %vm188, %v5740, 0
      %v5774 = vsel %vm188, %v5741, 0
      %v5777 = vsel %vm188, %v5742, 0
      %v5780 = vsel %vm188, %v5743, 0
      %v5783 = vsel %vm188, %v5744, 0
      %v5786 = vsel %vm188, %v5745, 0
      %v5789 = vsel %vm188, %v5746, 0
      %v5792 = vsel %vm188, %v5747, 0
      %v5795 = vsel %vm188, %v5748, 0
      %v5798 = vsel %vm188, %v5749, 0
      %5800 = vmatprep.subr.mxu0 0.0
      %5801 = vmatpush1.msra.mxu0 %v5751
      %5802 = vmatprep.subr.mxu0 0.0
      %5803 = vmatpush1.msra.mxu0 0.0
      %5804 = vmatprep.subr.mxu0 0.0
      %5805 = vmatpush1.msra.mxu0 0.0
      %5806 = vmatprep.subr.mxu0 0.0
      %5807 = vmatpush1.msra.mxu0 0.0
      %5808 = vmatprep.subr.mxu0 0.0
      %5809 = vmatpush1.msra.mxu0 0.0
      %5810 = vmatprep.subr.mxu0 0.0
      %5811 = vmatpush1.msra.mxu0 0.0
      %5812 = vmatprep.subr.mxu0 0.0
      %5813 = vmatpush1.msra.mxu0 0.0
      %5814 = vmatprep.subr.mxu0 0.0
      %5815 = vmatpush1.msra.mxu0 0.0
      %5816 = vmatprep.subr.mxu0 0.0
      %5817 = vmatpush1.msra.mxu0 0.0
      %5818 = vmatprep.subr.mxu0 0.0
      %5819 = vmatpush1.msra.mxu0 0.0
      %5820 = vmatprep.subr.mxu0 0.0
      %5821 = vmatpush1.msra.mxu0 0.0
      %5822 = vmatprep.subr.mxu0 0.0
      %5823 = vmatpush1.msra.mxu0 0.0
      %5824 = vmatprep.subr.mxu0 0.0
      %5825 = vmatpush1.msra.mxu0 0.0
      %5826 = vmatprep.subr.mxu0 0.0
      %5827 = vmatpush1.msra.mxu0 0.0
      %5828 = vmatprep.subr.mxu0 0.0
      %5829 = vmatpush1.msra.mxu0 0.0
      %5830 = vmatprep.subr.mxu0 0.0
      %5831 = vmatpush1.msra.mxu0 0.0
      %5832 = vmatprep.subr.mxu0 0.0
      %5833 = vmatpush1.msra.mxu0 0.0
      %5834 = vmatprep.subr.mxu0 0.0
      %5835 = vmatpush1.msra.mxu0 0.0
      %5836 = vmatprep.subr.mxu0 0.0
      %5837 = vmatpush1.msra.mxu0 0.0
      %5838 = vmatprep.subr.mxu0 0.0
      %5839 = vmatpush1.msra.mxu0 0.0
      %5840 = vmatprep.subr.mxu0 0.0
      %5841 = vmatpush1.msra.mxu0 0.0
      %5842 = vmatprep.subr.mxu0 0.0
      %5843 = vmatpush1.msra.mxu0 0.0
      %5844 = vmatprep.subr.mxu0 0.0
      %5845 = vmatpush1.msra.mxu0 0.0
      %5846 = vmatprep.subr.mxu0 0.0
      %5847 = vmatpush1.msra.mxu0 0.0
      %5848 = vmatprep.subr.mxu0 0.0
      %5849 = vmatpush1.msra.mxu0 0.0
      %5850 = vmatprep.subr.mxu0 0.0
      %5851 = vmatpush1.msra.mxu0 0.0
      %5852 = vmatprep.subr.mxu0 0.0
      %5853 = vmatpush1.msra.mxu0 0.0
      %5854 = vmatprep.subr.mxu0 0.0
      %5855 = vmatpush1.msra.mxu0 0.0
      %5856 = vmatprep.subr.mxu0 0.0
      %5857 = vmatpush1.msra.mxu0 0.0
      %5858 = vmatprep.subr.mxu0 0.0
      %5859 = vmatpush1.msra.mxu0 0.0
      %5860 = vmatprep.subr.mxu0 0.0
      %5861 = vmatpush1.msra.mxu0 0.0
      %5862 = vmatprep.subr.mxu0 0.0
      %5863 = vmatpush1.msra.mxu0 0.0
      %5864 = vmatprep.mubr.f32.mxu0 0.0
      %5865 = vmatmul.mubr.f32.gmra.mrb[0].mxu0 %v5753
      %v5866 = vpop.f32.mrb[0].mxu0
      %v5867 = vadd.f32 0.0, %v5866
      %v5868 = vpop.f32.mrb[0].mxu0
      %5869 = vmatprep.mubr.f32.mxu0 0.0
      %5870 = vmatmul.mubr.f32.gmra.mrb[0].mxu0 %v5756
      %v5871 = vpop.f32.mrb[0].mxu0
      %v5872 = vadd.f32 0.0, %v5871
      %v5873 = vpop.f32.mrb[0].mxu0
      %5874 = vmatprep.mubr.f32.mxu0 0.0
      %5875 = vmatmul.mubr.f32.gmra.mrb[0].mxu0 %v5759
      %v5876 = vpop.f32.mrb[0].mxu0
      %v5877 = vadd.f32 0.0, %v5876
      %v5878 = vpop.f32.mrb[0].mxu0
      %5879 = vmatprep.mubr.f32.mxu0 0.0
      %5880 = vmatmul.mubr.f32.gmra.mrb[0].mxu0 %v5762
      %v5881 = vpop.f32.mrb[0].mxu0
      %v5882 = vadd.f32 0.0, %v5881
      %v5883 = vpop.f32.mrb[0].mxu0
      %5884 = vmatprep.mubr.f32.mxu0 0.0
      %5885 = vmatmul.mubr.f32.gmra.mrb[0].mxu0 %v5765
      %v5886 = vpop.f32.mrb[0].mxu0
      %v5887 = vadd.f32 0.0, %v5886
      %v5888 = vpop.f32.mrb[0].mxu0
      %5889 = vmatprep.mubr.f32.mxu0 0.0
      %5890 = vmatmul.mubr.f32.gmra.mrb[0].mxu0 %v5768
      %v5891 = vpop.f32.mrb[0].mxu0
      %v5892 = vadd.f32 0.0, %v5891
      %v5893 = vpop.f32.mrb[0].mxu0
      %5894 = vmatprep.mubr.f32.mxu0 0.0
      %5895 = vmatmul.mubr.f32.gmra.mrb[0].mxu0 %v5771
      %v5896 = vpop.f32.mrb[0].mxu0
      %v5897 = vadd.f32 0.0, %v5896
      %v5898 = vpop.f32.mrb[0].mxu0
      %5899 = vmatprep.mubr.f32.mxu0 0.0
      %5900 = vmatmul.mubr.f32.gmra.mrb[0].mxu0 %v5774
      %v5901 = vpop.f32.mrb[0].mxu0
      %v5902 = vadd.f32 0.0, %v5901
      %v5903 = vpop.f32.mrb[0].mxu0
      %5904 = vmatprep.mubr.f32.mxu0 0.0
      %5905 = vmatmul.mubr.f32.gmra.mrb[0].mxu0 %v5777
      %v5906 = vpop.f32.mrb[0].mxu0
      %v5907 = vadd.f32 0.0, %v5906
      %v5908 = vpop.f32.mrb[0].mxu0
      %5909 = vmatprep.mubr.f32.mxu0 0.0
      %5910 = vmatmul.mubr.f32.gmra.mrb[0].mxu0 %v5780
      %v5911 = vpop.f32.mrb[0].mxu0
      %v5912 = vadd.f32 0.0, %v5911
      %v5913 = vpop.f32.mrb[0].mxu0
      %5914 = vmatprep.mubr.f32.mxu0 0.0
      %5915 = vmatmul.mubr.f32.gmra.mrb[0].mxu0 %v5783
      %v5916 = vpop.f32.mrb[0].mxu0
      %v5917 = vadd.f32 0.0, %v5916
      %v5918 = vpop.f32.mrb[0].mxu0
      %5919 = vmatprep.mubr.f32.mxu0 0.0
      %5920 = vmatmul.mubr.f32.gmra.mrb[0].mxu0 %v5786
      %v5921 = vpop.f32.mrb[0].mxu0
      %v5922 = vadd.f32 0.0, %v5921
      %v5923 = vpop.f32.mrb[0].mxu0
      %5924 = vmatprep.mubr.f32.mxu0 0.0
      %5925 = vmatmul.mubr.f32.gmra.mrb[0].mxu0 %v5789
      %v5926 = vpop.f32.mrb[0].mxu0
      %v5927 = vadd.f32 0.0, %v5926
      %v5928 = vpop.f32.mrb[0].mxu0
      %5929 = vmatprep.mubr.f32.mxu0 0.0
      %5930 = vmatmul.mubr.f32.gmra.mrb[0].mxu0 %v5792
      %v5931 = vpop.f32.mrb[0].mxu0
      %v5932 = vadd.f32 0.0, %v5931
      %v5933 = vpop.f32.mrb[0].mxu0
      %5934 = vmatprep.mubr.f32.mxu0 0.0
      %5935 = vmatmul.mubr.f32.gmra.mrb[0].mxu0 %v5795
      %v5936 = vpop.f32.mrb[0].mxu0
      %v5937 = vadd.f32 0.0, %v5936
      %v5938 = vpop.f32.mrb[0].mxu0
      %5939 = vmatprep.mubr.f32.mxu0 0.0
      %5940 = vmatmul.mubr.f32.gmra.mrb[0].mxu0 %v5798
      %v5941 = vpop.f32.mrb[0].mxu0
      %v5942 = vadd.f32 0.0, %v5941
      %v5943 = vpop.f32.mrb[0].mxu0
      %5944 = vdwg.mxu0
      %v5945 = vadd.f32 %v5718, %v5867
      %v5946 = vadd.f32 %v5719, %v5872
      %v5947 = vadd.f32 %v5720, %v5877
      %v5948 = vadd.f32 %v5721, %v5882
      %v5949 = vadd.f32 %v5722, %v5887
      %v5950 = vadd.f32 %v5723, %v5892
      %v5951 = vadd.f32 %v5724, %v5897
      %v5952 = vadd.f32 %v5725, %v5902
      %v5953 = vadd.f32 %v5726, %v5907
      %v5954 = vadd.f32 %v5727, %v5912
      %v5955 = vadd.f32 %v5728, %v5917
      %v5956 = vadd.f32 %v5729, %v5922
      %v5957 = vadd.f32 %v5730, %v5927
      %v5958 = vadd.f32 %v5731, %v5932
      %v5959 = vadd.f32 %v5732, %v5937
      %v5960 = vadd.f32 %v5733, %v5942
      %v5961 = vld [vmem:[%s2525] sm:$0xff]
      %v5962 = vld [vmem:[%s2525 + $0x8] sm:$0xff]
      %v5963 = vld [vmem:[%s2525 + $0x10] sm:$0xff]
      %v5964 = vld [vmem:[%s2525 + $0x18] sm:$0xff]
      %v5965 = vld [vmem:[%s2525 + $0x20] sm:$0xff]
      %v5966 = vld [vmem:[%s2525 + $0x28] sm:$0xff]
      %v5967 = vld [vmem:[%s2525 + $0x30] sm:$0xff]
      %v5968 = vld [vmem:[%s2525 + $0x38] sm:$0xff]
      %v5969 = vld [vmem:[%s2525 + $0x40] sm:$0xff]
      %v5970 = vld [vmem:[%s2525 + $0x48] sm:$0xff]
      %v5971 = vld [vmem:[%s2525 + $0x50] sm:$0xff]
      %v5972 = vld [vmem:[%s2525 + $0x58] sm:$0xff]
      %v5973 = vld [vmem:[%s2525 + $0x60] sm:$0xff]
      %v5974 = vld [vmem:[%s2525 + $0x68] sm:$0xff]
      %v5975 = vld [vmem:[%s2525 + $0x70] sm:$0xff]
      %v5976 = vld [vmem:[%s2525 + $0x78] sm:$0xff]
      %v5977 = vsel %vm314, %v5961, 0.0
      %v5978 = vsel %vm315, %v5962, 0.0
      %v5979 = vsel %vm314, %v5963, 0.0
      %v5980 = vsel %vm315, %v5964, 0.0
      %v5981 = vsel %vm314, %v5965, 0.0
      %v5982 = vsel %vm315, %v5966, 0.0
      %v5983 = vsel %vm314, %v5967, 0.0
      %v5984 = vsel %vm315, %v5968, 0.0
      %v5985 = vsel %vm314, %v5969, 0.0
      %v5986 = vsel %vm315, %v5970, 0.0
      %v5987 = vsel %vm314, %v5971, 0.0
      %v5988 = vsel %vm315, %v5972, 0.0
      %v5989 = vsel %vm314, %v5973, 0.0
      %v5990 = vsel %vm315, %v5974, 0.0
      %v5991 = vsel %vm314, %v5975, 0.0
      %v5992 = vsel %vm315, %v5976, 0.0
      %s5993 = scalar_lea.vmem %s2, 40
      %v5994 = vld [vmem:[%s5993] sm:$0xff]
      %v5996 = vsel %vm188, %v5977, 0
      %v5999 = vsel %vm188, %v5978, 0
      %v6002 = vsel %vm188, %v5979, 0
      %v6005 = vsel %vm188, %v5980, 0
      %v6008 = vsel %vm188, %v5981, 0
      %v6011 = vsel %vm188, %v5982, 0
      %v6014 = vsel %vm188, %v5983, 0
      %v6017 = vsel %vm188, %v5984, 0
      %v6020 = vsel %vm188, %v5985, 0
      %v6023 = vsel %vm188, %v5986, 0
      %v6026 = vsel %vm188, %v5987, 0
      %v6029 = vsel %vm188, %v5988, 0
      %v6032 = vsel %vm188, %v5989, 0
      %v6035 = vsel %vm188, %v5990, 0
      %v6038 = vsel %vm188, %v5991, 0
      %v6041 = vsel %vm188, %v5992, 0
      %6043 = vmatprep.subr.mxu0 0.0
      %6044 = vmatpush1.msra.mxu0 %v5994
      %6045 = vmatprep.subr.mxu0 0.0
      %6046 = vmatpush1.msra.mxu0 0.0
      %6047 = vmatprep.subr.mxu0 0.0
      %6048 = vmatpush1.msra.mxu0 0.0
      %6049 = vmatprep.subr.mxu0 0.0
      %6050 = vmatpush1.msra.mxu0 0.0
      %6051 = vmatprep.subr.mxu0 0.0
      %6052 = vmatpush1.msra.mxu0 0.0
      %6053 = vmatprep.subr.mxu0 0.0
      %6054 = vmatpush1.msra.mxu0 0.0
      %6055 = vmatprep.subr.mxu0 0.0
      %6056 = vmatpush1.msra.mxu0 0.0
      %6057 = vmatprep.subr.mxu0 0.0
      %6058 = vmatpush1.msra.mxu0 0.0
      %6059 = vmatprep.subr.mxu0 0.0
      %6060 = vmatpush1.msra.mxu0 0.0
      %6061 = vmatprep.subr.mxu0 0.0
      %6062 = vmatpush1.msra.mxu0 0.0
      %6063 = vmatprep.subr.mxu0 0.0
      %6064 = vmatpush1.msra.mxu0 0.0
      %6065 = vmatprep.subr.mxu0 0.0
      %6066 = vmatpush1.msra.mxu0 0.0
      %6067 = vmatprep.subr.mxu0 0.0
      %6068 = vmatpush1.msra.mxu0 0.0
      %6069 = vmatprep.subr.mxu0 0.0
      %6070 = vmatpush1.msra.mxu0 0.0
      %6071 = vmatprep.subr.mxu0 0.0
      %6072 = vmatpush1.msra.mxu0 0.0
      %6073 = vmatprep.subr.mxu0 0.0
      %6074 = vmatpush1.msra.mxu0 0.0
      %6075 = vmatprep.subr.mxu0 0.0
      %6076 = vmatpush1.msra.mxu0 0.0
      %6077 = vmatprep.subr.mxu0 0.0
      %6078 = vmatpush1.msra.mxu0 0.0
      %6079 = vmatprep.subr.mxu0 0.0
      %6080 = vmatpush1.msra.mxu0 0.0
      %6081 = vmatprep.subr.mxu0 0.0
      %6082 = vmatpush1.msra.mxu0 0.0
      %6083 = vmatprep.subr.mxu0 0.0
      %6084 = vmatpush1.msra.mxu0 0.0
      %6085 = vmatprep.subr.mxu0 0.0
      %6086 = vmatpush1.msra.mxu0 0.0
      %6087 = vmatprep.subr.mxu0 0.0
      %6088 = vmatpush1.msra.mxu0 0.0
      %6089 = vmatprep.subr.mxu0 0.0
      %6090 = vmatpush1.msra.mxu0 0.0
      %6091 = vmatprep.subr.mxu0 0.0
      %6092 = vmatpush1.msra.mxu0 0.0
      %6093 = vmatprep.subr.mxu0 0.0
      %6094 = vmatpush1.msra.mxu0 0.0
      %6095 = vmatprep.subr.mxu0 0.0
      %6096 = vmatpush1.msra.mxu0 0.0
      %6097 = vmatprep.subr.mxu0 0.0
      %6098 = vmatpush1.msra.mxu0 0.0
      %6099 = vmatprep.subr.mxu0 0.0
      %6100 = vmatpush1.msra.mxu0 0.0
      %6101 = vmatprep.subr.mxu0 0.0
      %6102 = vmatpush1.msra.mxu0 0.0
      %6103 = vmatprep.subr.mxu0 0.0
      %6104 = vmatpush1.msra.mxu0 0.0
      %6105 = vmatprep.subr.mxu0 0.0
      %6106 = vmatpush1.msra.mxu0 0.0
      %6107 = vmatprep.mubr.f32.mxu0 0.0
      %6108 = vmatmul.mubr.f32.gmra.mrb[0].mxu0 %v5996
      %v6109 = vpop.f32.mrb[0].mxu0
      %v6110 = vadd.f32 0.0, %v6109
      %v6111 = vpop.f32.mrb[0].mxu0
      %6112 = vmatprep.mubr.f32.mxu0 0.0
      %6113 = vmatmul.mubr.f32.gmra.mrb[0].mxu0 %v5999
      %v6114 = vpop.f32.mrb[0].mxu0
      %v6115 = vadd.f32 0.0, %v6114
      %v6116 = vpop.f32.mrb[0].mxu0
      %6117 = vmatprep.mubr.f32.mxu0 0.0
      %6118 = vmatmul.mubr.f32.gmra.mrb[0].mxu0 %v6002
      %v6119 = vpop.f32.mrb[0].mxu0
      %v6120 = vadd.f32 0.0, %v6119
      %v6121 = vpop.f32.mrb[0].mxu0
      %6122 = vmatprep.mubr.f32.mxu0 0.0
      %6123 = vmatmul.mubr.f32.gmra.mrb[0].mxu0 %v6005
      %v6124 = vpop.f32.mrb[0].mxu0
      %v6125 = vadd.f32 0.0, %v6124
      %v6126 = vpop.f32.mrb[0].mxu0
      %6127 = vmatprep.mubr.f32.mxu0 0.0
      %6128 = vmatmul.mubr.f32.gmra.mrb[0].mxu0 %v6008
      %v6129 = vpop.f32.mrb[0].mxu0
      %v6130 = vadd.f32 0.0, %v6129
      %v6131 = vpop.f32.mrb[0].mxu0
      %6132 = vmatprep.mubr.f32.mxu0 0.0
      %6133 = vmatmul.mubr.f32.gmra.mrb[0].mxu0 %v6011
      %v6134 = vpop.f32.mrb[0].mxu0
      %v6135 = vadd.f32 0.0, %v6134
      %v6136 = vpop.f32.mrb[0].mxu0
      %6137 = vmatprep.mubr.f32.mxu0 0.0
      %6138 = vmatmul.mubr.f32.gmra.mrb[0].mxu0 %v6014
      %v6139 = vpop.f32.mrb[0].mxu0
      %v6140 = vadd.f32 0.0, %v6139
      %v6141 = vpop.f32.mrb[0].mxu0
      %6142 = vmatprep.mubr.f32.mxu0 0.0
      %6143 = vmatmul.mubr.f32.gmra.mrb[0].mxu0 %v6017
      %v6144 = vpop.f32.mrb[0].mxu0
      %v6145 = vadd.f32 0.0, %v6144
      %v6146 = vpop.f32.mrb[0].mxu0
      %6147 = vmatprep.mubr.f32.mxu0 0.0
      %6148 = vmatmul.mubr.f32.gmra.mrb[0].mxu0 %v6020
      %v6149 = vpop.f32.mrb[0].mxu0
      %v6150 = vadd.f32 0.0, %v6149
      %v6151 = vpop.f32.mrb[0].mxu0
      %6152 = vmatprep.mubr.f32.mxu0 0.0
      %6153 = vmatmul.mubr.f32.gmra.mrb[0].mxu0 %v6023
      %v6154 = vpop.f32.mrb[0].mxu0
      %v6155 = vadd.f32 0.0, %v6154
      %v6156 = vpop.f32.mrb[0].mxu0
      %6157 = vmatprep.mubr.f32.mxu0 0.0
      %6158 = vmatmul.mubr.f32.gmra.mrb[0].mxu0 %v6026
      %v6159 = vpop.f32.mrb[0].mxu0
      %v6160 = vadd.f32 0.0, %v6159
      %v6161 = vpop.f32.mrb[0].mxu0
      %6162 = vmatprep.mubr.f32.mxu0 0.0
      %6163 = vmatmul.mubr.f32.gmra.mrb[0].mxu0 %v6029
      %v6164 = vpop.f32.mrb[0].mxu0
      %v6165 = vadd.f32 0.0, %v6164
      %v6166 = vpop.f32.mrb[0].mxu0
      %6167 = vmatprep.mubr.f32.mxu0 0.0
      %6168 = vmatmul.mubr.f32.gmra.mrb[0].mxu0 %v6032
      %v6169 = vpop.f32.mrb[0].mxu0
      %v6170 = vadd.f32 0.0, %v6169
      %v6171 = vpop.f32.mrb[0].mxu0
      %6172 = vmatprep.mubr.f32.mxu0 0.0
      %6173 = vmatmul.mubr.f32.gmra.mrb[0].mxu0 %v6035
      %v6174 = vpop.f32.mrb[0].mxu0
      %v6175 = vadd.f32 0.0, %v6174
      %v6176 = vpop.f32.mrb[0].mxu0
      %6177 = vmatprep.mubr.f32.mxu0 0.0
      %6178 = vmatmul.mubr.f32.gmra.mrb[0].mxu0 %v6038
      %v6179 = vpop.f32.mrb[0].mxu0
      %v6180 = vadd.f32 0.0, %v6179
      %v6181 = vpop.f32.mrb[0].mxu0
      %6182 = vmatprep.mubr.f32.mxu0 0.0
      %6183 = vmatmul.mubr.f32.gmra.mrb[0].mxu0 %v6041
      %v6184 = vpop.f32.mrb[0].mxu0
      %v6185 = vadd.f32 0.0, %v6184
      %v6186 = vpop.f32.mrb[0].mxu0
      %6187 = vdwg.mxu0
      %v6188 = vadd.f32 %v5945, %v6110
      %v6189 = vadd.f32 %v5946, %v6115
      %v6190 = vadd.f32 %v5947, %v6120
      %v6191 = vadd.f32 %v5948, %v6125
      %v6192 = vadd.f32 %v5949, %v6130
      %v6193 = vadd.f32 %v5950, %v6135
      %v6194 = vadd.f32 %v5951, %v6140
      %v6195 = vadd.f32 %v5952, %v6145
      %v6196 = vadd.f32 %v5953, %v6150
      %v6197 = vadd.f32 %v5954, %v6155
      %v6198 = vadd.f32 %v5955, %v6160
      %v6199 = vadd.f32 %v5956, %v6165
      %v6200 = vadd.f32 %v5957, %v6170
      %v6201 = vadd.f32 %v5958, %v6175
      %v6202 = vadd.f32 %v5959, %v6180
      %v6203 = vadd.f32 %v5960, %v6185
      %s6204 = scalar_lea.vmem [#allocation3], 32
      %v6205 = vld [vmem:[%s6204] sm:$0xff]
      %v6206 = vld [vmem:[%s6204 + $0x8] sm:$0xff]
      %v6207 = vld [vmem:[%s6204 + $0x10] sm:$0xff]
      %v6208 = vld [vmem:[%s6204 + $0x18] sm:$0xff]
      %v6209 = vld [vmem:[%s6204 + $0x20] sm:$0xff]
      %v6210 = vld [vmem:[%s6204 + $0x28] sm:$0xff]
      %v6211 = vld [vmem:[%s6204 + $0x30] sm:$0xff]
      %v6212 = vld [vmem:[%s6204 + $0x38] sm:$0xff]
      %v6213 = vld [vmem:[%s6204 + $0x40] sm:$0xff]
      %v6214 = vld [vmem:[%s6204 + $0x48] sm:$0xff]
      %v6215 = vld [vmem:[%s6204 + $0x50] sm:$0xff]
      %v6216 = vld [vmem:[%s6204 + $0x58] sm:$0xff]
      %v6217 = vld [vmem:[%s6204 + $0x60] sm:$0xff]
      %v6218 = vld [vmem:[%s6204 + $0x68] sm:$0xff]
      %v6219 = vld [vmem:[%s6204 + $0x70] sm:$0xff]
      %v6220 = vld [vmem:[%s6204 + $0x78] sm:$0xff]
      %v6221 = vsel %vm312, %v6205, 0.0
      %v6222 = vsel %vm313, %v6206, 0.0
      %v6223 = vsel %vm312, %v6207, 0.0
      %v6224 = vsel %vm313, %v6208, 0.0
      %v6225 = vsel %vm312, %v6209, 0.0
      %v6226 = vsel %vm313, %v6210, 0.0
      %v6227 = vsel %vm312, %v6211, 0.0
      %v6228 = vsel %vm313, %v6212, 0.0
      %v6229 = vsel %vm312, %v6213, 0.0
      %v6230 = vsel %vm313, %v6214, 0.0
      %v6231 = vsel %vm312, %v6215, 0.0
      %v6232 = vsel %vm313, %v6216, 0.0
      %v6233 = vsel %vm312, %v6217, 0.0
      %v6234 = vsel %vm313, %v6218, 0.0
      %v6235 = vsel %vm312, %v6219, 0.0
      %v6236 = vsel %vm313, %v6220, 0.0
      %s6237 = scalar_lea.vmem %s2, 48
      %v6238 = vld [vmem:[%s6237] sm:$0xff]
      %v6240 = vsel %vm188, %v6221, 0
      %v6243 = vsel %vm188, %v6222, 0
      %v6246 = vsel %vm188, %v6223, 0
      %v6249 = vsel %vm188, %v6224, 0
      %v6252 = vsel %vm188, %v6225, 0
      %v6255 = vsel %vm188, %v6226, 0
      %v6258 = vsel %vm188, %v6227, 0
      %v6261 = vsel %vm188, %v6228, 0
      %v6264 = vsel %vm188, %v6229, 0
      %v6267 = vsel %vm188, %v6230, 0
      %v6270 = vsel %vm188, %v6231, 0
      %v6273 = vsel %vm188, %v6232, 0
      %v6276 = vsel %vm188, %v6233, 0
      %v6279 = vsel %vm188, %v6234, 0
      %v6282 = vsel %vm188, %v6235, 0
      %v6285 = vsel %vm188, %v6236, 0
      %6287 = vmatprep.subr.mxu0 0.0
      %6288 = vmatpush1.msra.mxu0 %v6238
      %6289 = vmatprep.subr.mxu0 0.0
      %6290 = vmatpush1.msra.mxu0 0.0
      %6291 = vmatprep.subr.mxu0 0.0
      %6292 = vmatpush1.msra.mxu0 0.0
      %6293 = vmatprep.subr.mxu0 0.0
      %6294 = vmatpush1.msra.mxu0 0.0
      %6295 = vmatprep.subr.mxu0 0.0
      %6296 = vmatpush1.msra.mxu0 0.0
      %6297 = vmatprep.subr.mxu0 0.0
      %6298 = vmatpush1.msra.mxu0 0.0
      %6299 = vmatprep.subr.mxu0 0.0
      %6300 = vmatpush1.msra.mxu0 0.0
      %6301 = vmatprep.subr.mxu0 0.0
      %6302 = vmatpush1.msra.mxu0 0.0
      %6303 = vmatprep.subr.mxu0 0.0
      %6304 = vmatpush1.msra.mxu0 0.0
      %6305 = vmatprep.subr.mxu0 0.0
      %6306 = vmatpush1.msra.mxu0 0.0
      %6307 = vmatprep.subr.mxu0 0.0
      %6308 = vmatpush1.msra.mxu0 0.0
      %6309 = vmatprep.subr.mxu0 0.0
      %6310 = vmatpush1.msra.mxu0 0.0
      %6311 = vmatprep.subr.mxu0 0.0
      %6312 = vmatpush1.msra.mxu0 0.0
      %6313 = vmatprep.subr.mxu0 0.0
      %6314 = vmatpush1.msra.mxu0 0.0
      %6315 = vmatprep.subr.mxu0 0.0
      %6316 = vmatpush1.msra.mxu0 0.0
      %6317 = vmatprep.subr.mxu0 0.0
      %6318 = vmatpush1.msra.mxu0 0.0
      %6319 = vmatprep.subr.mxu0 0.0
      %6320 = vmatpush1.msra.mxu0 0.0
      %6321 = vmatprep.subr.mxu0 0.0
      %6322 = vmatpush1.msra.mxu0 0.0
      %6323 = vmatprep.subr.mxu0 0.0
      %6324 = vmatpush1.msra.mxu0 0.0
      %6325 = vmatprep.subr.mxu0 0.0
      %6326 = vmatpush1.msra.mxu0 0.0
      %6327 = vmatprep.subr.mxu0 0.0
      %6328 = vmatpush1.msra.mxu0 0.0
      %6329 = vmatprep.subr.mxu0 0.0
      %6330 = vmatpush1.msra.mxu0 0.0
      %6331 = vmatprep.subr.mxu0 0.0
      %6332 = vmatpush1.msra.mxu0 0.0
      %6333 = vmatprep.subr.mxu0 0.0
      %6334 = vmatpush1.msra.mxu0 0.0
      %6335 = vmatprep.subr.mxu0 0.0
      %6336 = vmatpush1.msra.mxu0 0.0
      %6337 = vmatprep.subr.mxu0 0.0
      %6338 = vmatpush1.msra.mxu0 0.0
      %6339 = vmatprep.subr.mxu0 0.0
      %6340 = vmatpush1.msra.mxu0 0.0
      %6341 = vmatprep.subr.mxu0 0.0
      %6342 = vmatpush1.msra.mxu0 0.0
      %6343 = vmatprep.subr.mxu0 0.0
      %6344 = vmatpush1.msra.mxu0 0.0
      %6345 = vmatprep.subr.mxu0 0.0
      %6346 = vmatpush1.msra.mxu0 0.0
      %6347 = vmatprep.subr.mxu0 0.0
      %6348 = vmatpush1.msra.mxu0 0.0
      %6349 = vmatprep.subr.mxu0 0.0
      %6350 = vmatpush1.msra.mxu0 0.0
      %6351 = vmatprep.mubr.f32.mxu0 0.0
      %6352 = vmatmul.mubr.f32.gmra.mrb[0].mxu0 %v6240
      %v6353 = vpop.f32.mrb[0].mxu0
      %v6354 = vadd.f32 0.0, %v6353
      %v6355 = vpop.f32.mrb[0].mxu0
      %6356 = vmatprep.mubr.f32.mxu0 0.0
      %6357 = vmatmul.mubr.f32.gmra.mrb[0].mxu0 %v6243
      %v6358 = vpop.f32.mrb[0].mxu0
      %v6359 = vadd.f32 0.0, %v6358
      %v6360 = vpop.f32.mrb[0].mxu0
      %6361 = vmatprep.mubr.f32.mxu0 0.0
      %6362 = vmatmul.mubr.f32.gmra.mrb[0].mxu0 %v6246
      %v6363 = vpop.f32.mrb[0].mxu0
      %v6364 = vadd.f32 0.0, %v6363
      %v6365 = vpop.f32.mrb[0].mxu0
      %6366 = vmatprep.mubr.f32.mxu0 0.0
      %6367 = vmatmul.mubr.f32.gmra.mrb[0].mxu0 %v6249
      %v6368 = vpop.f32.mrb[0].mxu0
      %v6369 = vadd.f32 0.0, %v6368
      %v6370 = vpop.f32.mrb[0].mxu0
      %6371 = vmatprep.mubr.f32.mxu0 0.0
      %6372 = vmatmul.mubr.f32.gmra.mrb[0].mxu0 %v6252
      %v6373 = vpop.f32.mrb[0].mxu0
      %v6374 = vadd.f32 0.0, %v6373
      %v6375 = vpop.f32.mrb[0].mxu0
      %6376 = vmatprep.mubr.f32.mxu0 0.0
      %6377 = vmatmul.mubr.f32.gmra.mrb[0].mxu0 %v6255
      %v6378 = vpop.f32.mrb[0].mxu0
      %v6379 = vadd.f32 0.0, %v6378
      %v6380 = vpop.f32.mrb[0].mxu0
      %6381 = vmatprep.mubr.f32.mxu0 0.0
      %6382 = vmatmul.mubr.f32.gmra.mrb[0].mxu0 %v6258
      %v6383 = vpop.f32.mrb[0].mxu0
      %v6384 = vadd.f32 0.0, %v6383
      %v6385 = vpop.f32.mrb[0].mxu0
      %6386 = vmatprep.mubr.f32.mxu0 0.0
      %6387 = vmatmul.mubr.f32.gmra.mrb[0].mxu0 %v6261
      %v6388 = vpop.f32.mrb[0].mxu0
      %v6389 = vadd.f32 0.0, %v6388
      %v6390 = vpop.f32.mrb[0].mxu0
      %6391 = vmatprep.mubr.f32.mxu0 0.0
      %6392 = vmatmul.mubr.f32.gmra.mrb[0].mxu0 %v6264
      %v6393 = vpop.f32.mrb[0].mxu0
      %v6394 = vadd.f32 0.0, %v6393
      %v6395 = vpop.f32.mrb[0].mxu0
      %6396 = vmatprep.mubr.f32.mxu0 0.0
      %6397 = vmatmul.mubr.f32.gmra.mrb[0].mxu0 %v6267
      %v6398 = vpop.f32.mrb[0].mxu0
      %v6399 = vadd.f32 0.0, %v6398
      %v6400 = vpop.f32.mrb[0].mxu0
      %6401 = vmatprep.mubr.f32.mxu0 0.0
      %6402 = vmatmul.mubr.f32.gmra.mrb[0].mxu0 %v6270
      %v6403 = vpop.f32.mrb[0].mxu0
      %v6404 = vadd.f32 0.0, %v6403
      %v6405 = vpop.f32.mrb[0].mxu0
      %6406 = vmatprep.mubr.f32.mxu0 0.0
      %6407 = vmatmul.mubr.f32.gmra.mrb[0].mxu0 %v6273
      %v6408 = vpop.f32.mrb[0].mxu0
      %v6409 = vadd.f32 0.0, %v6408
      %v6410 = vpop.f32.mrb[0].mxu0
      %6411 = vmatprep.mubr.f32.mxu0 0.0
      %6412 = vmatmul.mubr.f32.gmra.mrb[0].mxu0 %v6276
      %v6413 = vpop.f32.mrb[0].mxu0
      %v6414 = vadd.f32 0.0, %v6413
      %v6415 = vpop.f32.mrb[0].mxu0
      %6416 = vmatprep.mubr.f32.mxu0 0.0
      %6417 = vmatmul.mubr.f32.gmra.mrb[0].mxu0 %v6279
      %v6418 = vpop.f32.mrb[0].mxu0
      %v6419 = vadd.f32 0.0, %v6418
      %v6420 = vpop.f32.mrb[0].mxu0
      %6421 = vmatprep.mubr.f32.mxu0 0.0
      %6422 = vmatmul.mubr.f32.gmra.mrb[0].mxu0 %v6282
      %v6423 = vpop.f32.mrb[0].mxu0
      %v6424 = vadd.f32 0.0, %v6423
      %v6425 = vpop.f32.mrb[0].mxu0
      %6426 = vmatprep.mubr.f32.mxu0 0.0
      %6427 = vmatmul.mubr.f32.gmra.mrb[0].mxu0 %v6285
      %v6428 = vpop.f32.mrb[0].mxu0
      %v6429 = vadd.f32 0.0, %v6428
      %v6430 = vpop.f32.mrb[0].mxu0
      %6431 = vdwg.mxu0
      %v6432 = vadd.f32 %v6188, %v6354
      %v6433 = vadd.f32 %v6189, %v6359
      %v6434 = vadd.f32 %v6190, %v6364
      %v6435 = vadd.f32 %v6191, %v6369
      %v6436 = vadd.f32 %v6192, %v6374
      %v6437 = vadd.f32 %v6193, %v6379
      %v6438 = vadd.f32 %v6194, %v6384
      %v6439 = vadd.f32 %v6195, %v6389
      %v6440 = vadd.f32 %v6196, %v6394
      %v6441 = vadd.f32 %v6197, %v6399
      %v6442 = vadd.f32 %v6198, %v6404
      %v6443 = vadd.f32 %v6199, %v6409
      %v6444 = vadd.f32 %v6200, %v6414
      %v6445 = vadd.f32 %v6201, %v6419
      %v6446 = vadd.f32 %v6202, %v6424
      %v6447 = vadd.f32 %v6203, %v6429
      %s6448 = scalar_lea.vmem [#allocation3], 320
      %v6449 = vld [vmem:[%s6448] sm:$0xff]
      %v6450 = vld [vmem:[%s6448 + $0x8] sm:$0xff]
      %v6451 = vld [vmem:[%s6448 + $0x10] sm:$0xff]
      %v6452 = vld [vmem:[%s6448 + $0x18] sm:$0xff]
      %v6453 = vld [vmem:[%s6448 + $0x20] sm:$0xff]
      %v6454 = vld [vmem:[%s6448 + $0x28] sm:$0xff]
      %v6455 = vld [vmem:[%s6448 + $0x30] sm:$0xff]
      %v6456 = vld [vmem:[%s6448 + $0x38] sm:$0xff]
      %v6457 = vld [vmem:[%s6448 + $0x40] sm:$0xff]
      %v6458 = vld [vmem:[%s6448 + $0x48] sm:$0xff]
      %v6459 = vld [vmem:[%s6448 + $0x50] sm:$0xff]
      %v6460 = vld [vmem:[%s6448 + $0x58] sm:$0xff]
      %v6461 = vld [vmem:[%s6448 + $0x60] sm:$0xff]
      %v6462 = vld [vmem:[%s6448 + $0x68] sm:$0xff]
      %v6463 = vld [vmem:[%s6448 + $0x70] sm:$0xff]
      %v6464 = vld [vmem:[%s6448 + $0x78] sm:$0xff]
      %s6465 = scalar_lea.vmem %s2, 56
      %v6466 = vld [vmem:[%s6465] sm:$0xff]
      %v6468 = vsel %vm188, %v6449, 0
      %v6471 = vsel %vm188, %v6450, 0
      %v6474 = vsel %vm188, %v6451, 0
      %v6477 = vsel %vm188, %v6452, 0
      %v6480 = vsel %vm188, %v6453, 0
      %v6483 = vsel %vm188, %v6454, 0
      %v6486 = vsel %vm188, %v6455, 0
      %v6489 = vsel %vm188, %v6456, 0
      %v6492 = vsel %vm188, %v6457, 0
      %v6495 = vsel %vm188, %v6458, 0
      %v6498 = vsel %vm188, %v6459, 0
      %v6501 = vsel %vm188, %v6460, 0
      %v6504 = vsel %vm188, %v6461, 0
      %v6507 = vsel %vm188, %v6462, 0
      %v6510 = vsel %vm188, %v6463, 0
      %v6513 = vsel %vm188, %v6464, 0
      %6515 = vmatprep.subr.mxu0 0.0
      %6516 = vmatpush1.msra.mxu0 %v6466
      %6517 = vmatprep.subr.mxu0 0.0
      %6518 = vmatpush1.msra.mxu0 0.0
      %6519 = vmatprep.subr.mxu0 0.0
      %6520 = vmatpush1.msra.mxu0 0.0
      %6521 = vmatprep.subr.mxu0 0.0
      %6522 = vmatpush1.msra.mxu0 0.0
      %6523 = vmatprep.subr.mxu0 0.0
      %6524 = vmatpush1.msra.mxu0 0.0
      %6525 = vmatprep.subr.mxu0 0.0
      %6526 = vmatpush1.msra.mxu0 0.0
      %6527 = vmatprep.subr.mxu0 0.0
      %6528 = vmatpush1.msra.mxu0 0.0
      %6529 = vmatprep.subr.mxu0 0.0
      %6530 = vmatpush1.msra.mxu0 0.0
      %6531 = vmatprep.subr.mxu0 0.0
      %6532 = vmatpush1.msra.mxu0 0.0
      %6533 = vmatprep.subr.mxu0 0.0
      %6534 = vmatpush1.msra.mxu0 0.0
      %6535 = vmatprep.subr.mxu0 0.0
      %6536 = vmatpush1.msra.mxu0 0.0
      %6537 = vmatprep.subr.mxu0 0.0
      %6538 = vmatpush1.msra.mxu0 0.0
      %6539 = vmatprep.subr.mxu0 0.0
      %6540 = vmatpush1.msra.mxu0 0.0
      %6541 = vmatprep.subr.mxu0 0.0
      %6542 = vmatpush1.msra.mxu0 0.0
      %6543 = vmatprep.subr.mxu0 0.0
      %6544 = vmatpush1.msra.mxu0 0.0
      %6545 = vmatprep.subr.mxu0 0.0
      %6546 = vmatpush1.msra.mxu0 0.0
      %6547 = vmatprep.subr.mxu0 0.0
      %6548 = vmatpush1.msra.mxu0 0.0
      %6549 = vmatprep.subr.mxu0 0.0
      %6550 = vmatpush1.msra.mxu0 0.0
      %6551 = vmatprep.subr.mxu0 0.0
      %6552 = vmatpush1.msra.mxu0 0.0
      %6553 = vmatprep.subr.mxu0 0.0
      %6554 = vmatpush1.msra.mxu0 0.0
      %6555 = vmatprep.subr.mxu0 0.0
      %6556 = vmatpush1.msra.mxu0 0.0
      %6557 = vmatprep.subr.mxu0 0.0
      %6558 = vmatpush1.msra.mxu0 0.0
      %6559 = vmatprep.subr.mxu0 0.0
      %6560 = vmatpush1.msra.mxu0 0.0
      %6561 = vmatprep.subr.mxu0 0.0
      %6562 = vmatpush1.msra.mxu0 0.0
      %6563 = vmatprep.subr.mxu0 0.0
      %6564 = vmatpush1.msra.mxu0 0.0
      %6565 = vmatprep.subr.mxu0 0.0
      %6566 = vmatpush1.msra.mxu0 0.0
      %6567 = vmatprep.subr.mxu0 0.0
      %6568 = vmatpush1.msra.mxu0 0.0
      %6569 = vmatprep.subr.mxu0 0.0
      %6570 = vmatpush1.msra.mxu0 0.0
      %6571 = vmatprep.subr.mxu0 0.0
      %6572 = vmatpush1.msra.mxu0 0.0
      %6573 = vmatprep.subr.mxu0 0.0
      %6574 = vmatpush1.msra.mxu0 0.0
      %6575 = vmatprep.subr.mxu0 0.0
      %6576 = vmatpush1.msra.mxu0 0.0
      %6577 = vmatprep.subr.mxu0 0.0
      %6578 = vmatpush1.msra.mxu0 0.0
      %6579 = vmatprep.mubr.f32.mxu0 0.0
      %6580 = vmatmul.mubr.f32.gmra.mrb[0].mxu0 %v6468
      %v6581 = vpop.f32.mrb[0].mxu0
      %v6582 = vadd.f32 0.0, %v6581
      %v6583 = vpop.f32.mrb[0].mxu0
      %6584 = vmatprep.mubr.f32.mxu0 0.0
      %6585 = vmatmul.mubr.f32.gmra.mrb[0].mxu0 %v6471
      %v6586 = vpop.f32.mrb[0].mxu0
      %v6587 = vadd.f32 0.0, %v6586
      %v6588 = vpop.f32.mrb[0].mxu0
      %6589 = vmatprep.mubr.f32.mxu0 0.0
      %6590 = vmatmul.mubr.f32.gmra.mrb[0].mxu0 %v6474
      %v6591 = vpop.f32.mrb[0].mxu0
      %v6592 = vadd.f32 0.0, %v6591
      %v6593 = vpop.f32.mrb[0].mxu0
      %6594 = vmatprep.mubr.f32.mxu0 0.0
      %6595 = vmatmul.mubr.f32.gmra.mrb[0].mxu0 %v6477
      %v6596 = vpop.f32.mrb[0].mxu0
      %v6597 = vadd.f32 0.0, %v6596
      %v6598 = vpop.f32.mrb[0].mxu0
      %6599 = vmatprep.mubr.f32.mxu0 0.0
      %6600 = vmatmul.mubr.f32.gmra.mrb[0].mxu0 %v6480
      %v6601 = vpop.f32.mrb[0].mxu0
      %v6602 = vadd.f32 0.0, %v6601
      %v6603 = vpop.f32.mrb[0].mxu0
      %6604 = vmatprep.mubr.f32.mxu0 0.0
      %6605 = vmatmul.mubr.f32.gmra.mrb[0].mxu0 %v6483
      %v6606 = vpop.f32.mrb[0].mxu0
      %v6607 = vadd.f32 0.0, %v6606
      %v6608 = vpop.f32.mrb[0].mxu0
      %6609 = vmatprep.mubr.f32.mxu0 0.0
      %6610 = vmatmul.mubr.f32.gmra.mrb[0].mxu0 %v6486
      %v6611 = vpop.f32.mrb[0].mxu0
      %v6612 = vadd.f32 0.0, %v6611
      %v6613 = vpop.f32.mrb[0].mxu0
      %6614 = vmatprep.mubr.f32.mxu0 0.0
      %6615 = vmatmul.mubr.f32.gmra.mrb[0].mxu0 %v6489
      %v6616 = vpop.f32.mrb[0].mxu0
      %v6617 = vadd.f32 0.0, %v6616
      %v6618 = vpop.f32.mrb[0].mxu0
      %6619 = vmatprep.mubr.f32.mxu0 0.0
      %6620 = vmatmul.mubr.f32.gmra.mrb[0].mxu0 %v6492
      %v6621 = vpop.f32.mrb[0].mxu0
      %v6622 = vadd.f32 0.0, %v6621
      %v6623 = vpop.f32.mrb[0].mxu0
      %6624 = vmatprep.mubr.f32.mxu0 0.0
      %6625 = vmatmul.mubr.f32.gmra.mrb[0].mxu0 %v6495
      %v6626 = vpop.f32.mrb[0].mxu0
      %v6627 = vadd.f32 0.0, %v6626
      %v6628 = vpop.f32.mrb[0].mxu0
      %6629 = vmatprep.mubr.f32.mxu0 0.0
      %6630 = vmatmul.mubr.f32.gmra.mrb[0].mxu0 %v6498
      %v6631 = vpop.f32.mrb[0].mxu0
      %v6632 = vadd.f32 0.0, %v6631
      %v6633 = vpop.f32.mrb[0].mxu0
      %6634 = vmatprep.mubr.f32.mxu0 0.0
      %6635 = vmatmul.mubr.f32.gmra.mrb[0].mxu0 %v6501
      %v6636 = vpop.f32.mrb[0].mxu0
      %v6637 = vadd.f32 0.0, %v6636
      %v6638 = vpop.f32.mrb[0].mxu0
      %6639 = vmatprep.mubr.f32.mxu0 0.0
      %6640 = vmatmul.mubr.f32.gmra.mrb[0].mxu0 %v6504
      %v6641 = vpop.f32.mrb[0].mxu0
      %v6642 = vadd.f32 0.0, %v6641
      %v6643 = vpop.f32.mrb[0].mxu0
      %6644 = vmatprep.mubr.f32.mxu0 0.0
      %6645 = vmatmul.mubr.f32.gmra.mrb[0].mxu0 %v6507
      %v6646 = vpop.f32.mrb[0].mxu0
      %v6647 = vadd.f32 0.0, %v6646
      %v6648 = vpop.f32.mrb[0].mxu0
      %6649 = vmatprep.mubr.f32.mxu0 0.0
      %6650 = vmatmul.mubr.f32.gmra.mrb[0].mxu0 %v6510
      %v6651 = vpop.f32.mrb[0].mxu0
      %v6652 = vadd.f32 0.0, %v6651
      %v6653 = vpop.f32.mrb[0].mxu0
      %6654 = vmatprep.mubr.f32.mxu0 0.0
      %6655 = vmatmul.mubr.f32.gmra.mrb[0].mxu0 %v6513
      %v6656 = vpop.f32.mrb[0].mxu0
      %v6657 = vadd.f32 0.0, %v6656
      %v6658 = vpop.f32.mrb[0].mxu0
      %6659 = vdwg.mxu0
      %v6660 = vadd.f32 %v6432, %v6582
      %v6661 = vadd.f32 %v6433, %v6587
      %v6662 = vadd.f32 %v6434, %v6592
      %v6663 = vadd.f32 %v6435, %v6597
      %v6664 = vadd.f32 %v6436, %v6602
      %v6665 = vadd.f32 %v6437, %v6607
      %v6666 = vadd.f32 %v6438, %v6612
      %v6667 = vadd.f32 %v6439, %v6617
      %v6668 = vadd.f32 %v6440, %v6622
      %v6669 = vadd.f32 %v6441, %v6627
      %v6670 = vadd.f32 %v6442, %v6632
      %v6671 = vadd.f32 %v6443, %v6637
      %v6672 = vadd.f32 %v6444, %v6642
      %v6673 = vadd.f32 %v6445, %v6647
      %v6674 = vadd.f32 %v6446, %v6652
      %v6675 = vadd.f32 %v6447, %v6657
      %s6676 = scalar_lea.vmem [#allocation3], 608
      %v6677 = vld [vmem:[%s6676] sm:$0xff]
      %v6678 = vld [vmem:[%s6676 + $0x8] sm:$0xff]
      %v6679 = vld [vmem:[%s6676 + $0x10] sm:$0xff]
      %v6680 = vld [vmem:[%s6676 + $0x18] sm:$0xff]
      %v6681 = vld [vmem:[%s6676 + $0x20] sm:$0xff]
      %v6682 = vld [vmem:[%s6676 + $0x28] sm:$0xff]
      %v6683 = vld [vmem:[%s6676 + $0x30] sm:$0xff]
      %v6684 = vld [vmem:[%s6676 + $0x38] sm:$0xff]
      %v6685 = vld [vmem:[%s6676 + $0x40] sm:$0xff]
      %v6686 = vld [vmem:[%s6676 + $0x48] sm:$0xff]
      %v6687 = vld [vmem:[%s6676 + $0x50] sm:$0xff]
      %v6688 = vld [vmem:[%s6676 + $0x58] sm:$0xff]
      %v6689 = vld [vmem:[%s6676 + $0x60] sm:$0xff]
      %v6690 = vld [vmem:[%s6676 + $0x68] sm:$0xff]
      %v6691 = vld [vmem:[%s6676 + $0x70] sm:$0xff]
      %v6692 = vld [vmem:[%s6676 + $0x78] sm:$0xff]
      %v6693 = vsel %vm314, %v6677, 0.0
      %v6694 = vsel %vm315, %v6678, 0.0
      %v6695 = vsel %vm314, %v6679, 0.0
      %v6696 = vsel %vm315, %v6680, 0.0
      %v6697 = vsel %vm314, %v6681, 0.0
      %v6698 = vsel %vm315, %v6682, 0.0
      %v6699 = vsel %vm314, %v6683, 0.0
      %v6700 = vsel %vm315, %v6684, 0.0
      %v6701 = vsel %vm314, %v6685, 0.0
      %v6702 = vsel %vm315, %v6686, 0.0
      %v6703 = vsel %vm314, %v6687, 0.0
      %v6704 = vsel %vm315, %v6688, 0.0
      %v6705 = vsel %vm314, %v6689, 0.0
      %v6706 = vsel %vm315, %v6690, 0.0
      %v6707 = vsel %vm314, %v6691, 0.0
      %v6708 = vsel %vm315, %v6692, 0.0
      %s6709 = scalar_lea.vmem %s2, 64
      %v6710 = vld [vmem:[%s6709] sm:$0xff]
      %v6712 = vsel %vm188, %v6693, 0
      %v6715 = vsel %vm188, %v6694, 0
      %v6718 = vsel %vm188, %v6695, 0
      %v6721 = vsel %vm188, %v6696, 0
      %v6724 = vsel %vm188, %v6697, 0
      %v6727 = vsel %vm188, %v6698, 0
      %v6730 = vsel %vm188, %v6699, 0
      %v6733 = vsel %vm188, %v6700, 0
      %v6736 = vsel %vm188, %v6701, 0
      %v6739 = vsel %vm188, %v6702, 0
      %v6742 = vsel %vm188, %v6703, 0
      %v6745 = vsel %vm188, %v6704, 0
      %v6748 = vsel %vm188, %v6705, 0
      %v6751 = vsel %vm188, %v6706, 0
      %v6754 = vsel %vm188, %v6707, 0
      %v6757 = vsel %vm188, %v6708, 0
      %6759 = vmatprep.subr.mxu0 0.0
      %6760 = vmatpush1.msra.mxu0 %v6710
      %6761 = vmatprep.subr.mxu0 0.0
      %6762 = vmatpush1.msra.mxu0 0.0
      %6763 = vmatprep.subr.mxu0 0.0
      %6764 = vmatpush1.msra.mxu0 0.0
      %6765 = vmatprep.subr.mxu0 0.0
      %6766 = vmatpush1.msra.mxu0 0.0
      %6767 = vmatprep.subr.mxu0 0.0
      %6768 = vmatpush1.msra.mxu0 0.0
      %6769 = vmatprep.subr.mxu0 0.0
      %6770 = vmatpush1.msra.mxu0 0.0
      %6771 = vmatprep.subr.mxu0 0.0
      %6772 = vmatpush1.msra.mxu0 0.0
      %6773 = vmatprep.subr.mxu0 0.0
      %6774 = vmatpush1.msra.mxu0 0.0
      %6775 = vmatprep.subr.mxu0 0.0
      %6776 = vmatpush1.msra.mxu0 0.0
      %6777 = vmatprep.subr.mxu0 0.0
      %6778 = vmatpush1.msra.mxu0 0.0
      %6779 = vmatprep.subr.mxu0 0.0
      %6780 = vmatpush1.msra.mxu0 0.0
      %6781 = vmatprep.subr.mxu0 0.0
      %6782 = vmatpush1.msra.mxu0 0.0
      %6783 = vmatprep.subr.mxu0 0.0
      %6784 = vmatpush1.msra.mxu0 0.0
      %6785 = vmatprep.subr.mxu0 0.0
      %6786 = vmatpush1.msra.mxu0 0.0
      %6787 = vmatprep.subr.mxu0 0.0
      %6788 = vmatpush1.msra.mxu0 0.0
      %6789 = vmatprep.subr.mxu0 0.0
      %6790 = vmatpush1.msra.mxu0 0.0
      %6791 = vmatprep.subr.mxu0 0.0
      %6792 = vmatpush1.msra.mxu0 0.0
      %6793 = vmatprep.subr.mxu0 0.0
      %6794 = vmatpush1.msra.mxu0 0.0
      %6795 = vmatprep.subr.mxu0 0.0
      %6796 = vmatpush1.msra.mxu0 0.0
      %6797 = vmatprep.subr.mxu0 0.0
      %6798 = vmatpush1.msra.mxu0 0.0
      %6799 = vmatprep.subr.mxu0 0.0
      %6800 = vmatpush1.msra.mxu0 0.0
      %6801 = vmatprep.subr.mxu0 0.0
      %6802 = vmatpush1.msra.mxu0 0.0
      %6803 = vmatprep.subr.mxu0 0.0
      %6804 = vmatpush1.msra.mxu0 0.0
      %6805 = vmatprep.subr.mxu0 0.0
      %6806 = vmatpush1.msra.mxu0 0.0
      %6807 = vmatprep.subr.mxu0 0.0
      %6808 = vmatpush1.msra.mxu0 0.0
      %6809 = vmatprep.subr.mxu0 0.0
      %6810 = vmatpush1.msra.mxu0 0.0
      %6811 = vmatprep.subr.mxu0 0.0
      %6812 = vmatpush1.msra.mxu0 0.0
      %6813 = vmatprep.subr.mxu0 0.0
      %6814 = vmatpush1.msra.mxu0 0.0
      %6815 = vmatprep.subr.mxu0 0.0
      %6816 = vmatpush1.msra.mxu0 0.0
      %6817 = vmatprep.subr.mxu0 0.0
      %6818 = vmatpush1.msra.mxu0 0.0
      %6819 = vmatprep.subr.mxu0 0.0
      %6820 = vmatpush1.msra.mxu0 0.0
      %6821 = vmatprep.subr.mxu0 0.0
      %6822 = vmatpush1.msra.mxu0 0.0
      %6823 = vmatprep.mubr.f32.mxu0 0.0
      %6824 = vmatmul.mubr.f32.gmra.mrb[0].mxu0 %v6712
      %v6825 = vpop.f32.mrb[0].mxu0
      %v6826 = vadd.f32 0.0, %v6825
      %v6827 = vpop.f32.mrb[0].mxu0
      %6828 = vmatprep.mubr.f32.mxu0 0.0
      %6829 = vmatmul.mubr.f32.gmra.mrb[0].mxu0 %v6715
      %v6830 = vpop.f32.mrb[0].mxu0
      %v6831 = vadd.f32 0.0, %v6830
      %v6832 = vpop.f32.mrb[0].mxu0
      %6833 = vmatprep.mubr.f32.mxu0 0.0
      %6834 = vmatmul.mubr.f32.gmra.mrb[0].mxu0 %v6718
      %v6835 = vpop.f32.mrb[0].mxu0
      %v6836 = vadd.f32 0.0, %v6835
      %v6837 = vpop.f32.mrb[0].mxu0
      %6838 = vmatprep.mubr.f32.mxu0 0.0
      %6839 = vmatmul.mubr.f32.gmra.mrb[0].mxu0 %v6721
      %v6840 = vpop.f32.mrb[0].mxu0
      %v6841 = vadd.f32 0.0, %v6840
      %v6842 = vpop.f32.mrb[0].mxu0
      %6843 = vmatprep.mubr.f32.mxu0 0.0
      %6844 = vmatmul.mubr.f32.gmra.mrb[0].mxu0 %v6724
      %v6845 = vpop.f32.mrb[0].mxu0
      %v6846 = vadd.f32 0.0, %v6845
      %v6847 = vpop.f32.mrb[0].mxu0
      %6848 = vmatprep.mubr.f32.mxu0 0.0
      %6849 = vmatmul.mubr.f32.gmra.mrb[0].mxu0 %v6727
      %v6850 = vpop.f32.mrb[0].mxu0
      %v6851 = vadd.f32 0.0, %v6850
      %v6852 = vpop.f32.mrb[0].mxu0
      %6853 = vmatprep.mubr.f32.mxu0 0.0
      %6854 = vmatmul.mubr.f32.gmra.mrb[0].mxu0 %v6730
      %v6855 = vpop.f32.mrb[0].mxu0
      %v6856 = vadd.f32 0.0, %v6855
      %v6857 = vpop.f32.mrb[0].mxu0
      %6858 = vmatprep.mubr.f32.mxu0 0.0
      %6859 = vmatmul.mubr.f32.gmra.mrb[0].mxu0 %v6733
      %v6860 = vpop.f32.mrb[0].mxu0
      %v6861 = vadd.f32 0.0, %v6860
      %v6862 = vpop.f32.mrb[0].mxu0
      %6863 = vmatprep.mubr.f32.mxu0 0.0
      %6864 = vmatmul.mubr.f32.gmra.mrb[0].mxu0 %v6736
      %v6865 = vpop.f32.mrb[0].mxu0
      %v6866 = vadd.f32 0.0, %v6865
      %v6867 = vpop.f32.mrb[0].mxu0
      %6868 = vmatprep.mubr.f32.mxu0 0.0
      %6869 = vmatmul.mubr.f32.gmra.mrb[0].mxu0 %v6739
      %v6870 = vpop.f32.mrb[0].mxu0
      %v6871 = vadd.f32 0.0, %v6870
      %v6872 = vpop.f32.mrb[0].mxu0
      %6873 = vmatprep.mubr.f32.mxu0 0.0
      %6874 = vmatmul.mubr.f32.gmra.mrb[0].mxu0 %v6742
      %v6875 = vpop.f32.mrb[0].mxu0
      %v6876 = vadd.f32 0.0, %v6875
      %v6877 = vpop.f32.mrb[0].mxu0
      %6878 = vmatprep.mubr.f32.mxu0 0.0
      %6879 = vmatmul.mubr.f32.gmra.mrb[0].mxu0 %v6745
      %v6880 = vpop.f32.mrb[0].mxu0
      %v6881 = vadd.f32 0.0, %v6880
      %v6882 = vpop.f32.mrb[0].mxu0
      %6883 = vmatprep.mubr.f32.mxu0 0.0
      %6884 = vmatmul.mubr.f32.gmra.mrb[0].mxu0 %v6748
      %v6885 = vpop.f32.mrb[0].mxu0
      %v6886 = vadd.f32 0.0, %v6885
      %v6887 = vpop.f32.mrb[0].mxu0
      %6888 = vmatprep.mubr.f32.mxu0 0.0
      %6889 = vmatmul.mubr.f32.gmra.mrb[0].mxu0 %v6751
      %v6890 = vpop.f32.mrb[0].mxu0
      %v6891 = vadd.f32 0.0, %v6890
      %v6892 = vpop.f32.mrb[0].mxu0
      %6893 = vmatprep.mubr.f32.mxu0 0.0
      %6894 = vmatmul.mubr.f32.gmra.mrb[0].mxu0 %v6754
      %v6895 = vpop.f32.mrb[0].mxu0
      %v6896 = vadd.f32 0.0, %v6895
      %v6897 = vpop.f32.mrb[0].mxu0
      %6898 = vmatprep.mubr.f32.mxu0 0.0
      %6899 = vmatmul.mubr.f32.gmra.mrb[0].mxu0 %v6757
      %v6900 = vpop.f32.mrb[0].mxu0
      %v6901 = vadd.f32 0.0, %v6900
      %v6902 = vpop.f32.mrb[0].mxu0
      %6903 = vdwg.mxu0
      %v6904 = vadd.f32 %v6660, %v6826
      %v6905 = vadd.f32 %v6661, %v6831
      %v6906 = vadd.f32 %v6662, %v6836
      %v6907 = vadd.f32 %v6663, %v6841
      %v6908 = vadd.f32 %v6664, %v6846
      %v6909 = vadd.f32 %v6665, %v6851
      %v6910 = vadd.f32 %v6666, %v6856
      %v6911 = vadd.f32 %v6667, %v6861
      %v6912 = vadd.f32 %v6668, %v6866
      %v6913 = vadd.f32 %v6669, %v6871
      %v6914 = vadd.f32 %v6670, %v6876
      %v6915 = vadd.f32 %v6671, %v6881
      %v6916 = vadd.f32 %v6672, %v6886
      %v6917 = vadd.f32 %v6673, %v6891
      %v6918 = vadd.f32 %v6674, %v6896
      %v6919 = vadd.f32 %v6675, %v6901
      %v6920 = vld [vmem:[%s187] sm:$0xff]
      %v6921 = vld [vmem:[%s187 + $0x8] sm:$0xff]
      %v6922 = vld [vmem:[%s187 + $0x10] sm:$0xff]
      %v6923 = vld [vmem:[%s187 + $0x18] sm:$0xff]
      %v6924 = vld [vmem:[%s187 + $0x20] sm:$0xff]
      %v6925 = vld [vmem:[%s187 + $0x28] sm:$0xff]
      %v6926 = vld [vmem:[%s187 + $0x30] sm:$0xff]
      %v6927 = vld [vmem:[%s187 + $0x38] sm:$0xff]
      %v6928 = vld [vmem:[%s187 + $0x40] sm:$0xff]
      %v6929 = vld [vmem:[%s187 + $0x48] sm:$0xff]
      %v6930 = vld [vmem:[%s187 + $0x50] sm:$0xff]
      %v6931 = vld [vmem:[%s187 + $0x58] sm:$0xff]
      %v6932 = vld [vmem:[%s187 + $0x60] sm:$0xff]
      %v6933 = vld [vmem:[%s187 + $0x68] sm:$0xff]
      %v6934 = vld [vmem:[%s187 + $0x70] sm:$0xff]
      %v6935 = vld [vmem:[%s187 + $0x78] sm:$0xff]
      %v6936 = vadd.f32 %v6904, %v6920
      %v6937 = vadd.f32 %v6905, %v6921
      %v6938 = vadd.f32 %v6906, %v6922
      %v6939 = vadd.f32 %v6907, %v6923
      %v6940 = vadd.f32 %v6908, %v6924
      %v6941 = vadd.f32 %v6909, %v6925
      %v6942 = vadd.f32 %v6910, %v6926
      %v6943 = vadd.f32 %v6911, %v6927
      %v6944 = vadd.f32 %v6912, %v6928
      %v6945 = vadd.f32 %v6913, %v6929
      %v6946 = vadd.f32 %v6914, %v6930
      %v6947 = vadd.f32 %v6915, %v6931
      %v6948 = vadd.f32 %v6916, %v6932
      %v6949 = vadd.f32 %v6917, %v6933
      %v6950 = vadd.f32 %v6918, %v6934
      %v6951 = vadd.f32 %v6919, %v6935
      %v6952 = vmax.f32 %v6936, 0.0
      %v6953 = vmax.f32 %v6937, 0.0
      %v6954 = vmax.f32 %v6938, 0.0
      %v6955 = vmax.f32 %v6939, 0.0
      %v6956 = vmax.f32 %v6940, 0.0
      %v6957 = vmax.f32 %v6941, 0.0
      %v6958 = vmax.f32 %v6942, 0.0
      %v6959 = vmax.f32 %v6943, 0.0
      %v6960 = vmax.f32 %v6944, 0.0
      %v6961 = vmax.f32 %v6945, 0.0
      %v6962 = vmax.f32 %v6946, 0.0
      %v6963 = vmax.f32 %v6947, 0.0
      %v6964 = vmax.f32 %v6948, 0.0
      %v6965 = vmax.f32 %v6949, 0.0
      %v6966 = vmax.f32 %v6950, 0.0
      %v6967 = vmax.f32 %v6951, 0.0
      %vm6968 = vcmask 31744
      %6969 = vst.msk [vmem:[%s170] sm:$0xff] %vm6968, %v6952
      %6970 = vst.msk [vmem:[%s170 + $0x8] sm:$0xff] %vm6968, %v6953
      %6971 = vst.msk [vmem:[%s170 + $0x10] sm:$0xff] %vm6968, %v6954
      %6972 = vst.msk [vmem:[%s170 + $0x18] sm:$0xff] %vm6968, %v6955
      %6973 = vst.msk [vmem:[%s170 + $0x20] sm:$0xff] %vm6968, %v6956
      %6974 = vst.msk [vmem:[%s170 + $0x28] sm:$0xff] %vm6968, %v6957
      %6975 = vst.msk [vmem:[%s170 + $0x30] sm:$0xff] %vm6968, %v6958
      %6976 = vst.msk [vmem:[%s170 + $0x38] sm:$0xff] %vm6968, %v6959
      %6977 = vst.msk [vmem:[%s170 + $0x40] sm:$0xff] %vm6968, %v6960
      %6978 = vst.msk [vmem:[%s170 + $0x48] sm:$0xff] %vm6968, %v6961
      %6979 = vst.msk [vmem:[%s170 + $0x50] sm:$0xff] %vm6968, %v6962
      %6980 = vst.msk [vmem:[%s170 + $0x58] sm:$0xff] %vm6968, %v6963
      %6981 = vst.msk [vmem:[%s170 + $0x60] sm:$0xff] %vm6968, %v6964
      %6982 = vst.msk [vmem:[%s170 + $0x68] sm:$0xff] %vm6968, %v6965
      %6983 = vst.msk [vmem:[%s170 + $0x70] sm:$0xff] %vm6968, %v6966
      %6984 = vst.msk [vmem:[%s170 + $0x78] sm:$0xff] %vm6968, %v6967
      %s6985 = scalar_lea.vmem [#allocation3], 128
      %v6986 = vld [vmem:[%s6985] sm:$0xff]
      %v6987 = vld [vmem:[%s6985 + $0x8] sm:$0xff]
      %v6988 = vld [vmem:[%s6985 + $0x10] sm:$0xff]
      %v6989 = vld [vmem:[%s6985 + $0x18] sm:$0xff]
      %v6990 = vld [vmem:[%s6985 + $0x20] sm:$0xff]
      %v6991 = vld [vmem:[%s6985 + $0x28] sm:$0xff]
      %v6992 = vld [vmem:[%s6985 + $0x30] sm:$0xff]
      %v6993 = vld [vmem:[%s6985 + $0x38] sm:$0xff]
      %v6994 = vld [vmem:[%s6985 + $0x40] sm:$0xff]
      %v6995 = vld [vmem:[%s6985 + $0x48] sm:$0xff]
      %v6996 = vld [vmem:[%s6985 + $0x50] sm:$0xff]
      %v6997 = vld [vmem:[%s6985 + $0x58] sm:$0xff]
      %v6998 = vld [vmem:[%s6985 + $0x60] sm:$0xff]
      %v6999 = vld [vmem:[%s6985 + $0x68] sm:$0xff]
      %v7000 = vld [vmem:[%s6985 + $0x70] sm:$0xff]
      %v7001 = vld [vmem:[%s6985 + $0x78] sm:$0xff]
      %v7002 = vsel %vm312, %v6986, 0.0
      %v7003 = vsel %vm313, %v6987, 0.0
      %v7004 = vsel %vm312, %v6988, 0.0
      %v7005 = vsel %vm313, %v6989, 0.0
      %v7006 = vsel %vm312, %v6990, 0.0
      %v7007 = vsel %vm313, %v6991, 0.0
      %v7008 = vsel %vm312, %v6992, 0.0
      %v7009 = vsel %vm313, %v6993, 0.0
      %v7010 = vsel %vm312, %v6994, 0.0
      %v7011 = vsel %vm313, %v6995, 0.0
      %v7012 = vsel %vm312, %v6996, 0.0
      %v7013 = vsel %vm313, %v6997, 0.0
      %v7014 = vsel %vm312, %v6998, 0.0
      %v7015 = vsel %vm313, %v6999, 0.0
      %v7016 = vsel %vm312, %v7000, 0.0
      %v7017 = vsel %vm313, %v7001, 0.0
      %v7018 = vld [vmem:[%s2] sm:$0xff]
      %s7019 = scalar_lea.vmem [#allocation3], 416
      %v7020 = vld [vmem:[%s7019] sm:$0xff]
      %v7021 = vld [vmem:[%s7019 + $0x8] sm:$0xff]
      %v7022 = vld [vmem:[%s7019 + $0x10] sm:$0xff]
      %v7023 = vld [vmem:[%s7019 + $0x18] sm:$0xff]
      %v7024 = vld [vmem:[%s7019 + $0x20] sm:$0xff]
      %v7025 = vld [vmem:[%s7019 + $0x28] sm:$0xff]
      %v7026 = vld [vmem:[%s7019 + $0x30] sm:$0xff]
      %v7027 = vld [vmem:[%s7019 + $0x38] sm:$0xff]
      %v7028 = vld [vmem:[%s7019 + $0x40] sm:$0xff]
      %v7029 = vld [vmem:[%s7019 + $0x48] sm:$0xff]
      %v7030 = vld [vmem:[%s7019 + $0x50] sm:$0xff]
      %v7031 = vld [vmem:[%s7019 + $0x58] sm:$0xff]
      %v7032 = vld [vmem:[%s7019 + $0x60] sm:$0xff]
      %v7033 = vld [vmem:[%s7019 + $0x68] sm:$0xff]
      %v7034 = vld [vmem:[%s7019 + $0x70] sm:$0xff]
      %v7035 = vld [vmem:[%s7019 + $0x78] sm:$0xff]
      %v7036 = vld [vmem:[%s4843] sm:$0xff]
      %v7038 = vsel %vm188, %v7020, 0
      %v7041 = vsel %vm188, %v7021, 0
      %v7044 = vsel %vm188, %v7022, 0
      %v7047 = vsel %vm188, %v7023, 0
      %v7050 = vsel %vm188, %v7024, 0
      %v7053 = vsel %vm188, %v7025, 0
      %v7056 = vsel %vm188, %v7026, 0
      %v7059 = vsel %vm188, %v7027, 0
      %v7062 = vsel %vm188, %v7028, 0
      %v7065 = vsel %vm188, %v7029, 0
      %v7068 = vsel %vm188, %v7030, 0
      %v7071 = vsel %vm188, %v7031, 0
      %v7074 = vsel %vm188, %v7032, 0
      %v7077 = vsel %vm188, %v7033, 0
      %v7080 = vsel %vm188, %v7034, 0
      %v7083 = vsel %vm188, %v7035, 0
      %7085 = vmatprep.subr.mxu0 0.0
      %7086 = vmatpush1.msra.mxu0 %v7036
      %7087 = vmatprep.subr.mxu0 0.0
      %7088 = vmatpush1.msra.mxu0 0.0
      %7089 = vmatprep.subr.mxu0 0.0
      %7090 = vmatpush1.msra.mxu0 0.0
      %7091 = vmatprep.subr.mxu0 0.0
      %7092 = vmatpush1.msra.mxu0 0.0
      %7093 = vmatprep.subr.mxu0 0.0
      %7094 = vmatpush1.msra.mxu0 0.0
      %7095 = vmatprep.subr.mxu0 0.0
      %7096 = vmatpush1.msra.mxu0 0.0
      %7097 = vmatprep.subr.mxu0 0.0
      %7098 = vmatpush1.msra.mxu0 0.0
      %7099 = vmatprep.subr.mxu0 0.0
      %7100 = vmatpush1.msra.mxu0 0.0
      %7101 = vmatprep.subr.mxu0 0.0
      %7102 = vmatpush1.msra.mxu0 0.0
      %7103 = vmatprep.subr.mxu0 0.0
      %7104 = vmatpush1.msra.mxu0 0.0
      %7105 = vmatprep.subr.mxu0 0.0
      %7106 = vmatpush1.msra.mxu0 0.0
      %7107 = vmatprep.subr.mxu0 0.0
      %7108 = vmatpush1.msra.mxu0 0.0
      %7109 = vmatprep.subr.mxu0 0.0
      %7110 = vmatpush1.msra.mxu0 0.0
      %7111 = vmatprep.subr.mxu0 0.0
      %7112 = vmatpush1.msra.mxu0 0.0
      %7113 = vmatprep.subr.mxu0 0.0
      %7114 = vmatpush1.msra.mxu0 0.0
      %7115 = vmatprep.subr.mxu0 0.0
      %7116 = vmatpush1.msra.mxu0 0.0
      %7117 = vmatprep.subr.mxu0 0.0
      %7118 = vmatpush1.msra.mxu0 0.0
      %7119 = vmatprep.subr.mxu0 0.0
      %7120 = vmatpush1.msra.mxu0 0.0
      %7121 = vmatprep.subr.mxu0 0.0
      %7122 = vmatpush1.msra.mxu0 0.0
      %7123 = vmatprep.subr.mxu0 0.0
      %7124 = vmatpush1.msra.mxu0 0.0
      %7125 = vmatprep.subr.mxu0 0.0
      %7126 = vmatpush1.msra.mxu0 0.0
      %7127 = vmatprep.subr.mxu0 0.0
      %7128 = vmatpush1.msra.mxu0 0.0
      %7129 = vmatprep.subr.mxu0 0.0
      %7130 = vmatpush1.msra.mxu0 0.0
      %7131 = vmatprep.subr.mxu0 0.0
      %7132 = vmatpush1.msra.mxu0 0.0
      %7133 = vmatprep.subr.mxu0 0.0
      %7134 = vmatpush1.msra.mxu0 0.0
      %7135 = vmatprep.subr.mxu0 0.0
      %7136 = vmatpush1.msra.mxu0 0.0
      %7137 = vmatprep.subr.mxu0 0.0
      %7138 = vmatpush1.msra.mxu0 0.0
      %7139 = vmatprep.subr.mxu0 0.0
      %7140 = vmatpush1.msra.mxu0 0.0
      %7141 = vmatprep.subr.mxu0 0.0
      %7142 = vmatpush1.msra.mxu0 0.0
      %7143 = vmatprep.subr.mxu0 0.0
      %7144 = vmatpush1.msra.mxu0 0.0
      %7145 = vmatprep.subr.mxu0 0.0
      %7146 = vmatpush1.msra.mxu0 0.0
      %7147 = vmatprep.subr.mxu0 0.0
      %7148 = vmatpush1.msra.mxu0 0.0
      %7149 = vmatprep.mubr.f32.mxu0 0.0
      %7150 = vmatmul.mubr.f32.gmra.mrb[0].mxu0 %v7038
      %v7151 = vpop.f32.mrb[0].mxu0
      %v7152 = vadd.f32 0.0, %v7151
      %v7153 = vpop.f32.mrb[0].mxu0
      %7154 = vmatprep.mubr.f32.mxu0 0.0
      %7155 = vmatmul.mubr.f32.gmra.mrb[0].mxu0 %v7041
      %v7156 = vpop.f32.mrb[0].mxu0
      %v7157 = vadd.f32 0.0, %v7156
      %v7158 = vpop.f32.mrb[0].mxu0
      %7159 = vmatprep.mubr.f32.mxu0 0.0
      %7160 = vmatmul.mubr.f32.gmra.mrb[0].mxu0 %v7044
      %v7161 = vpop.f32.mrb[0].mxu0
      %v7162 = vadd.f32 0.0, %v7161
      %v7163 = vpop.f32.mrb[0].mxu0
      %7164 = vmatprep.mubr.f32.mxu0 0.0
      %7165 = vmatmul.mubr.f32.gmra.mrb[0].mxu0 %v7047
      %v7166 = vpop.f32.mrb[0].mxu0
      %v7167 = vadd.f32 0.0, %v7166
      %v7168 = vpop.f32.mrb[0].mxu0
      %7169 = vmatprep.mubr.f32.mxu0 0.0
      %7170 = vmatmul.mubr.f32.gmra.mrb[0].mxu0 %v7050
      %v7171 = vpop.f32.mrb[0].mxu0
      %v7172 = vadd.f32 0.0, %v7171
      %v7173 = vpop.f32.mrb[0].mxu0
      %7174 = vmatprep.mubr.f32.mxu0 0.0
      %7175 = vmatmul.mubr.f32.gmra.mrb[0].mxu0 %v7053
      %v7176 = vpop.f32.mrb[0].mxu0
      %v7177 = vadd.f32 0.0, %v7176
      %v7178 = vpop.f32.mrb[0].mxu0
      %7179 = vmatprep.mubr.f32.mxu0 0.0
      %7180 = vmatmul.mubr.f32.gmra.mrb[0].mxu0 %v7056
      %v7181 = vpop.f32.mrb[0].mxu0
      %v7182 = vadd.f32 0.0, %v7181
      %v7183 = vpop.f32.mrb[0].mxu0
      %7184 = vmatprep.mubr.f32.mxu0 0.0
      %7185 = vmatmul.mubr.f32.gmra.mrb[0].mxu0 %v7059
      %v7186 = vpop.f32.mrb[0].mxu0
      %v7187 = vadd.f32 0.0, %v7186
      %v7188 = vpop.f32.mrb[0].mxu0
      %7189 = vmatprep.mubr.f32.mxu0 0.0
      %7190 = vmatmul.mubr.f32.gmra.mrb[0].mxu0 %v7062
      %v7191 = vpop.f32.mrb[0].mxu0
      %v7192 = vadd.f32 0.0, %v7191
      %v7193 = vpop.f32.mrb[0].mxu0
      %7194 = vmatprep.mubr.f32.mxu0 0.0
      %7195 = vmatmul.mubr.f32.gmra.mrb[0].mxu0 %v7065
      %v7196 = vpop.f32.mrb[0].mxu0
      %v7197 = vadd.f32 0.0, %v7196
      %v7198 = vpop.f32.mrb[0].mxu0
      %7199 = vmatprep.mubr.f32.mxu0 0.0
      %7200 = vmatmul.mubr.f32.gmra.mrb[0].mxu0 %v7068
      %v7201 = vpop.f32.mrb[0].mxu0
      %v7202 = vadd.f32 0.0, %v7201
      %v7203 = vpop.f32.mrb[0].mxu0
      %7204 = vmatprep.mubr.f32.mxu0 0.0
      %7205 = vmatmul.mubr.f32.gmra.mrb[0].mxu0 %v7071
      %v7206 = vpop.f32.mrb[0].mxu0
      %v7207 = vadd.f32 0.0, %v7206
      %v7208 = vpop.f32.mrb[0].mxu0
      %7209 = vmatprep.mubr.f32.mxu0 0.0
      %7210 = vmatmul.mubr.f32.gmra.mrb[0].mxu0 %v7074
      %v7211 = vpop.f32.mrb[0].mxu0
      %v7212 = vadd.f32 0.0, %v7211
      %v7213 = vpop.f32.mrb[0].mxu0
      %7214 = vmatprep.mubr.f32.mxu0 0.0
      %7215 = vmatmul.mubr.f32.gmra.mrb[0].mxu0 %v7077
      %v7216 = vpop.f32.mrb[0].mxu0
      %v7217 = vadd.f32 0.0, %v7216
      %v7218 = vpop.f32.mrb[0].mxu0
      %7219 = vmatprep.mubr.f32.mxu0 0.0
      %7220 = vmatmul.mubr.f32.gmra.mrb[0].mxu0 %v7080
      %v7221 = vpop.f32.mrb[0].mxu0
      %v7222 = vadd.f32 0.0, %v7221
      %v7223 = vpop.f32.mrb[0].mxu0
      %7224 = vmatprep.mubr.f32.mxu0 0.0
      %7225 = vmatmul.mubr.f32.gmra.mrb[0].mxu0 %v7083
      %v7226 = vpop.f32.mrb[0].mxu0
      %v7227 = vadd.f32 0.0, %v7226
      %v7228 = vpop.f32.mrb[0].mxu0
      %7229 = vdwg.mxu0
      %v7231 = vsel %vm188, %v7002, 0
      %v7234 = vsel %vm188, %v7003, 0
      %v7237 = vsel %vm188, %v7004, 0
      %v7240 = vsel %vm188, %v7005, 0
      %v7243 = vsel %vm188, %v7006, 0
      %v7246 = vsel %vm188, %v7007, 0
      %v7249 = vsel %vm188, %v7008, 0
      %v7252 = vsel %vm188, %v7009, 0
      %v7255 = vsel %vm188, %v7010, 0
      %v7258 = vsel %vm188, %v7011, 0
      %v7261 = vsel %vm188, %v7012, 0
      %v7264 = vsel %vm188, %v7013, 0
      %v7267 = vsel %vm188, %v7014, 0
      %v7270 = vsel %vm188, %v7015, 0
      %v7273 = vsel %vm188, %v7016, 0
      %v7276 = vsel %vm188, %v7017, 0
      %7278 = vmatprep.subr.mxu0 0.0
      %7279 = vmatpush1.msra.mxu0 %v7018
      %7280 = vmatprep.subr.mxu0 0.0
      %7281 = vmatpush1.msra.mxu0 0.0
      %7282 = vmatprep.subr.mxu0 0.0
      %7283 = vmatpush1.msra.mxu0 0.0
      %7284 = vmatprep.subr.mxu0 0.0
      %7285 = vmatpush1.msra.mxu0 0.0
      %7286 = vmatprep.subr.mxu0 0.0
      %7287 = vmatpush1.msra.mxu0 0.0
      %7288 = vmatprep.subr.mxu0 0.0
      %7289 = vmatpush1.msra.mxu0 0.0
      %7290 = vmatprep.subr.mxu0 0.0
      %7291 = vmatpush1.msra.mxu0 0.0
      %7292 = vmatprep.subr.mxu0 0.0
      %7293 = vmatpush1.msra.mxu0 0.0
      %7294 = vmatprep.subr.mxu0 0.0
      %7295 = vmatpush1.msra.mxu0 0.0
      %7296 = vmatprep.subr.mxu0 0.0
      %7297 = vmatpush1.msra.mxu0 0.0
      %7298 = vmatprep.subr.mxu0 0.0
      %7299 = vmatpush1.msra.mxu0 0.0
      %7300 = vmatprep.subr.mxu0 0.0
      %7301 = vmatpush1.msra.mxu0 0.0
      %7302 = vmatprep.subr.mxu0 0.0
      %7303 = vmatpush1.msra.mxu0 0.0
      %7304 = vmatprep.subr.mxu0 0.0
      %7305 = vmatpush1.msra.mxu0 0.0
      %7306 = vmatprep.subr.mxu0 0.0
      %7307 = vmatpush1.msra.mxu0 0.0
      %7308 = vmatprep.subr.mxu0 0.0
      %7309 = vmatpush1.msra.mxu0 0.0
      %7310 = vmatprep.subr.mxu0 0.0
      %7311 = vmatpush1.msra.mxu0 0.0
      %7312 = vmatprep.subr.mxu0 0.0
      %7313 = vmatpush1.msra.mxu0 0.0
      %7314 = vmatprep.subr.mxu0 0.0
      %7315 = vmatpush1.msra.mxu0 0.0
      %7316 = vmatprep.subr.mxu0 0.0
      %7317 = vmatpush1.msra.mxu0 0.0
      %7318 = vmatprep.subr.mxu0 0.0
      %7319 = vmatpush1.msra.mxu0 0.0
      %7320 = vmatprep.subr.mxu0 0.0
      %7321 = vmatpush1.msra.mxu0 0.0
      %7322 = vmatprep.subr.mxu0 0.0
      %7323 = vmatpush1.msra.mxu0 0.0
      %7324 = vmatprep.subr.mxu0 0.0
      %7325 = vmatpush1.msra.mxu0 0.0
      %7326 = vmatprep.subr.mxu0 0.0
      %7327 = vmatpush1.msra.mxu0 0.0
      %7328 = vmatprep.subr.mxu0 0.0
      %7329 = vmatpush1.msra.mxu0 0.0
      %7330 = vmatprep.subr.mxu0 0.0
      %7331 = vmatpush1.msra.mxu0 0.0
      %7332 = vmatprep.subr.mxu0 0.0
      %7333 = vmatpush1.msra.mxu0 0.0
      %7334 = vmatprep.subr.mxu0 0.0
      %7335 = vmatpush1.msra.mxu0 0.0
      %7336 = vmatprep.subr.mxu0 0.0
      %7337 = vmatpush1.msra.mxu0 0.0
      %7338 = vmatprep.subr.mxu0 0.0
      %7339 = vmatpush1.msra.mxu0 0.0
      %7340 = vmatprep.subr.mxu0 0.0
      %7341 = vmatpush1.msra.mxu0 0.0
      %7342 = vmatprep.mubr.f32.mxu0 0.0
      %7343 = vmatmul.mubr.f32.gmra.mrb[0].mxu0 %v7231
      %v7344 = vpop.f32.mrb[0].mxu0
      %v7345 = vadd.f32 %v7152, %v7344
      %v7346 = vpop.f32.mrb[0].mxu0
      %7347 = vmatprep.mubr.f32.mxu0 0.0
      %7348 = vmatmul.mubr.f32.gmra.mrb[0].mxu0 %v7234
      %v7349 = vpop.f32.mrb[0].mxu0
      %v7350 = vadd.f32 %v7157, %v7349
      %v7351 = vpop.f32.mrb[0].mxu0
      %7352 = vmatprep.mubr.f32.mxu0 0.0
      %7353 = vmatmul.mubr.f32.gmra.mrb[0].mxu0 %v7237
      %v7354 = vpop.f32.mrb[0].mxu0
      %v7355 = vadd.f32 %v7162, %v7354
      %v7356 = vpop.f32.mrb[0].mxu0
      %7357 = vmatprep.mubr.f32.mxu0 0.0
      %7358 = vmatmul.mubr.f32.gmra.mrb[0].mxu0 %v7240
      %v7359 = vpop.f32.mrb[0].mxu0
      %v7360 = vadd.f32 %v7167, %v7359
      %v7361 = vpop.f32.mrb[0].mxu0
      %7362 = vmatprep.mubr.f32.mxu0 0.0
      %7363 = vmatmul.mubr.f32.gmra.mrb[0].mxu0 %v7243
      %v7364 = vpop.f32.mrb[0].mxu0
      %v7365 = vadd.f32 %v7172, %v7364
      %v7366 = vpop.f32.mrb[0].mxu0
      %7367 = vmatprep.mubr.f32.mxu0 0.0
      %7368 = vmatmul.mubr.f32.gmra.mrb[0].mxu0 %v7246
      %v7369 = vpop.f32.mrb[0].mxu0
      %v7370 = vadd.f32 %v7177, %v7369
      %v7371 = vpop.f32.mrb[0].mxu0
      %7372 = vmatprep.mubr.f32.mxu0 0.0
      %7373 = vmatmul.mubr.f32.gmra.mrb[0].mxu0 %v7249
      %v7374 = vpop.f32.mrb[0].mxu0
      %v7375 = vadd.f32 %v7182, %v7374
      %v7376 = vpop.f32.mrb[0].mxu0
      %7377 = vmatprep.mubr.f32.mxu0 0.0
      %7378 = vmatmul.mubr.f32.gmra.mrb[0].mxu0 %v7252
      %v7379 = vpop.f32.mrb[0].mxu0
      %v7380 = vadd.f32 %v7187, %v7379
      %v7381 = vpop.f32.mrb[0].mxu0
      %7382 = vmatprep.mubr.f32.mxu0 0.0
      %7383 = vmatmul.mubr.f32.gmra.mrb[0].mxu0 %v7255
      %v7384 = vpop.f32.mrb[0].mxu0
      %v7385 = vadd.f32 %v7192, %v7384
      %v7386 = vpop.f32.mrb[0].mxu0
      %7387 = vmatprep.mubr.f32.mxu0 0.0
      %7388 = vmatmul.mubr.f32.gmra.mrb[0].mxu0 %v7258
      %v7389 = vpop.f32.mrb[0].mxu0
      %v7390 = vadd.f32 %v7197, %v7389
      %v7391 = vpop.f32.mrb[0].mxu0
      %7392 = vmatprep.mubr.f32.mxu0 0.0
      %7393 = vmatmul.mubr.f32.gmra.mrb[0].mxu0 %v7261
      %v7394 = vpop.f32.mrb[0].mxu0
      %v7395 = vadd.f32 %v7202, %v7394
      %v7396 = vpop.f32.mrb[0].mxu0
      %7397 = vmatprep.mubr.f32.mxu0 0.0
      %7398 = vmatmul.mubr.f32.gmra.mrb[0].mxu0 %v7264
      %v7399 = vpop.f32.mrb[0].mxu0
      %v7400 = vadd.f32 %v7207, %v7399
      %v7401 = vpop.f32.mrb[0].mxu0
      %7402 = vmatprep.mubr.f32.mxu0 0.0
      %7403 = vmatmul.mubr.f32.gmra.mrb[0].mxu0 %v7267
      %v7404 = vpop.f32.mrb[0].mxu0
      %v7405 = vadd.f32 %v7212, %v7404
      %v7406 = vpop.f32.mrb[0].mxu0
      %7407 = vmatprep.mubr.f32.mxu0 0.0
      %7408 = vmatmul.mubr.f32.gmra.mrb[0].mxu0 %v7270
      %v7409 = vpop.f32.mrb[0].mxu0
      %v7410 = vadd.f32 %v7217, %v7409
      %v7411 = vpop.f32.mrb[0].mxu0
      %7412 = vmatprep.mubr.f32.mxu0 0.0
      %7413 = vmatmul.mubr.f32.gmra.mrb[0].mxu0 %v7273
      %v7414 = vpop.f32.mrb[0].mxu0
      %v7415 = vadd.f32 %v7222, %v7414
      %v7416 = vpop.f32.mrb[0].mxu0
      %7417 = vmatprep.mubr.f32.mxu0 0.0
      %7418 = vmatmul.mubr.f32.gmra.mrb[0].mxu0 %v7276
      %v7419 = vpop.f32.mrb[0].mxu0
      %v7420 = vadd.f32 %v7227, %v7419
      %v7421 = vpop.f32.mrb[0].mxu0
      %7422 = vdwg.mxu0
      %s7423 = scalar_lea.vmem [#allocation3], 704
      %v7424 = vld [vmem:[%s7423] sm:$0xff]
      %v7425 = vld [vmem:[%s7423 + $0x8] sm:$0xff]
      %v7426 = vld [vmem:[%s7423 + $0x10] sm:$0xff]
      %v7427 = vld [vmem:[%s7423 + $0x18] sm:$0xff]
      %v7428 = vld [vmem:[%s7423 + $0x20] sm:$0xff]
      %v7429 = vld [vmem:[%s7423 + $0x28] sm:$0xff]
      %v7430 = vld [vmem:[%s7423 + $0x30] sm:$0xff]
      %v7431 = vld [vmem:[%s7423 + $0x38] sm:$0xff]
      %v7432 = vld [vmem:[%s7423 + $0x40] sm:$0xff]
      %v7433 = vld [vmem:[%s7423 + $0x48] sm:$0xff]
      %v7434 = vld [vmem:[%s7423 + $0x50] sm:$0xff]
      %v7435 = vld [vmem:[%s7423 + $0x58] sm:$0xff]
      %v7436 = vld [vmem:[%s7423 + $0x60] sm:$0xff]
      %v7437 = vld [vmem:[%s7423 + $0x68] sm:$0xff]
      %v7438 = vld [vmem:[%s7423 + $0x70] sm:$0xff]
      %v7439 = vld [vmem:[%s7423 + $0x78] sm:$0xff]
      %v7440 = vsel %vm314, %v7424, 0.0
      %v7441 = vsel %vm315, %v7425, 0.0
      %v7442 = vsel %vm314, %v7426, 0.0
      %v7443 = vsel %vm315, %v7427, 0.0
      %v7444 = vsel %vm314, %v7428, 0.0
      %v7445 = vsel %vm315, %v7429, 0.0
      %v7446 = vsel %vm314, %v7430, 0.0
      %v7447 = vsel %vm315, %v7431, 0.0
      %v7448 = vsel %vm314, %v7432, 0.0
      %v7449 = vsel %vm315, %v7433, 0.0
      %v7450 = vsel %vm314, %v7434, 0.0
      %v7451 = vsel %vm315, %v7435, 0.0
      %v7452 = vsel %vm314, %v7436, 0.0
      %v7453 = vsel %vm315, %v7437, 0.0
      %v7454 = vsel %vm314, %v7438, 0.0
      %v7455 = vsel %vm315, %v7439, 0.0
      %v7456 = vld [vmem:[%s5280] sm:$0xff]
      %v7458 = vsel %vm188, %v7440, 0
      %v7461 = vsel %vm188, %v7441, 0
      %v7464 = vsel %vm188, %v7442, 0
      %v7467 = vsel %vm188, %v7443, 0
      %v7470 = vsel %vm188, %v7444, 0
      %v7473 = vsel %vm188, %v7445, 0
      %v7476 = vsel %vm188, %v7446, 0
      %v7479 = vsel %vm188, %v7447, 0
      %v7482 = vsel %vm188, %v7448, 0
      %v7485 = vsel %vm188, %v7449, 0
      %v7488 = vsel %vm188, %v7450, 0
      %v7491 = vsel %vm188, %v7451, 0
      %v7494 = vsel %vm188, %v7452, 0
      %v7497 = vsel %vm188, %v7453, 0
      %v7500 = vsel %vm188, %v7454, 0
      %v7503 = vsel %vm188, %v7455, 0
      %7505 = vmatprep.subr.mxu0 0.0
      %7506 = vmatpush1.msra.mxu0 %v7456
      %7507 = vmatprep.subr.mxu0 0.0
      %7508 = vmatpush1.msra.mxu0 0.0
      %7509 = vmatprep.subr.mxu0 0.0
      %7510 = vmatpush1.msra.mxu0 0.0
      %7511 = vmatprep.subr.mxu0 0.0
      %7512 = vmatpush1.msra.mxu0 0.0
      %7513 = vmatprep.subr.mxu0 0.0
      %7514 = vmatpush1.msra.mxu0 0.0
      %7515 = vmatprep.subr.mxu0 0.0
      %7516 = vmatpush1.msra.mxu0 0.0
      %7517 = vmatprep.subr.mxu0 0.0
      %7518 = vmatpush1.msra.mxu0 0.0
      %7519 = vmatprep.subr.mxu0 0.0
      %7520 = vmatpush1.msra.mxu0 0.0
      %7521 = vmatprep.subr.mxu0 0.0
      %7522 = vmatpush1.msra.mxu0 0.0
      %7523 = vmatprep.subr.mxu0 0.0
      %7524 = vmatpush1.msra.mxu0 0.0
      %7525 = vmatprep.subr.mxu0 0.0
      %7526 = vmatpush1.msra.mxu0 0.0
      %7527 = vmatprep.subr.mxu0 0.0
      %7528 = vmatpush1.msra.mxu0 0.0
      %7529 = vmatprep.subr.mxu0 0.0
      %7530 = vmatpush1.msra.mxu0 0.0
      %7531 = vmatprep.subr.mxu0 0.0
      %7532 = vmatpush1.msra.mxu0 0.0
      %7533 = vmatprep.subr.mxu0 0.0
      %7534 = vmatpush1.msra.mxu0 0.0
      %7535 = vmatprep.subr.mxu0 0.0
      %7536 = vmatpush1.msra.mxu0 0.0
      %7537 = vmatprep.subr.mxu0 0.0
      %7538 = vmatpush1.msra.mxu0 0.0
      %7539 = vmatprep.subr.mxu0 0.0
      %7540 = vmatpush1.msra.mxu0 0.0
      %7541 = vmatprep.subr.mxu0 0.0
      %7542 = vmatpush1.msra.mxu0 0.0
      %7543 = vmatprep.subr.mxu0 0.0
      %7544 = vmatpush1.msra.mxu0 0.0
      %7545 = vmatprep.subr.mxu0 0.0
      %7546 = vmatpush1.msra.mxu0 0.0
      %7547 = vmatprep.subr.mxu0 0.0
      %7548 = vmatpush1.msra.mxu0 0.0
      %7549 = vmatprep.subr.mxu0 0.0
      %7550 = vmatpush1.msra.mxu0 0.0
      %7551 = vmatprep.subr.mxu0 0.0
      %7552 = vmatpush1.msra.mxu0 0.0
      %7553 = vmatprep.subr.mxu0 0.0
      %7554 = vmatpush1.msra.mxu0 0.0
      %7555 = vmatprep.subr.mxu0 0.0
      %7556 = vmatpush1.msra.mxu0 0.0
      %7557 = vmatprep.subr.mxu0 0.0
      %7558 = vmatpush1.msra.mxu0 0.0
      %7559 = vmatprep.subr.mxu0 0.0
      %7560 = vmatpush1.msra.mxu0 0.0
      %7561 = vmatprep.subr.mxu0 0.0
      %7562 = vmatpush1.msra.mxu0 0.0
      %7563 = vmatprep.subr.mxu0 0.0
      %7564 = vmatpush1.msra.mxu0 0.0
      %7565 = vmatprep.subr.mxu0 0.0
      %7566 = vmatpush1.msra.mxu0 0.0
      %7567 = vmatprep.subr.mxu0 0.0
      %7568 = vmatpush1.msra.mxu0 0.0
      %7569 = vmatprep.mubr.f32.mxu0 0.0
      %7570 = vmatmul.mubr.f32.gmra.mrb[0].mxu0 %v7458
      %v7571 = vpop.f32.mrb[0].mxu0
      %v7572 = vadd.f32 0.0, %v7571
      %v7573 = vpop.f32.mrb[0].mxu0
      %7574 = vmatprep.mubr.f32.mxu0 0.0
      %7575 = vmatmul.mubr.f32.gmra.mrb[0].mxu0 %v7461
      %v7576 = vpop.f32.mrb[0].mxu0
      %v7577 = vadd.f32 0.0, %v7576
      %v7578 = vpop.f32.mrb[0].mxu0
      %7579 = vmatprep.mubr.f32.mxu0 0.0
      %7580 = vmatmul.mubr.f32.gmra.mrb[0].mxu0 %v7464
      %v7581 = vpop.f32.mrb[0].mxu0
      %v7582 = vadd.f32 0.0, %v7581
      %v7583 = vpop.f32.mrb[0].mxu0
      %7584 = vmatprep.mubr.f32.mxu0 0.0
      %7585 = vmatmul.mubr.f32.gmra.mrb[0].mxu0 %v7467
      %v7586 = vpop.f32.mrb[0].mxu0
      %v7587 = vadd.f32 0.0, %v7586
      %v7588 = vpop.f32.mrb[0].mxu0
      %7589 = vmatprep.mubr.f32.mxu0 0.0
      %7590 = vmatmul.mubr.f32.gmra.mrb[0].mxu0 %v7470
      %v7591 = vpop.f32.mrb[0].mxu0
      %v7592 = vadd.f32 0.0, %v7591
      %v7593 = vpop.f32.mrb[0].mxu0
      %7594 = vmatprep.mubr.f32.mxu0 0.0
      %7595 = vmatmul.mubr.f32.gmra.mrb[0].mxu0 %v7473
      %v7596 = vpop.f32.mrb[0].mxu0
      %v7597 = vadd.f32 0.0, %v7596
      %v7598 = vpop.f32.mrb[0].mxu0
      %7599 = vmatprep.mubr.f32.mxu0 0.0
      %7600 = vmatmul.mubr.f32.gmra.mrb[0].mxu0 %v7476
      %v7601 = vpop.f32.mrb[0].mxu0
      %v7602 = vadd.f32 0.0, %v7601
      %v7603 = vpop.f32.mrb[0].mxu0
      %7604 = vmatprep.mubr.f32.mxu0 0.0
      %7605 = vmatmul.mubr.f32.gmra.mrb[0].mxu0 %v7479
      %v7606 = vpop.f32.mrb[0].mxu0
      %v7607 = vadd.f32 0.0, %v7606
      %v7608 = vpop.f32.mrb[0].mxu0
      %7609 = vmatprep.mubr.f32.mxu0 0.0
      %7610 = vmatmul.mubr.f32.gmra.mrb[0].mxu0 %v7482
      %v7611 = vpop.f32.mrb[0].mxu0
      %v7612 = vadd.f32 0.0, %v7611
      %v7613 = vpop.f32.mrb[0].mxu0
      %7614 = vmatprep.mubr.f32.mxu0 0.0
      %7615 = vmatmul.mubr.f32.gmra.mrb[0].mxu0 %v7485
      %v7616 = vpop.f32.mrb[0].mxu0
      %v7617 = vadd.f32 0.0, %v7616
      %v7618 = vpop.f32.mrb[0].mxu0
      %7619 = vmatprep.mubr.f32.mxu0 0.0
      %7620 = vmatmul.mubr.f32.gmra.mrb[0].mxu0 %v7488
      %v7621 = vpop.f32.mrb[0].mxu0
      %v7622 = vadd.f32 0.0, %v7621
      %v7623 = vpop.f32.mrb[0].mxu0
      %7624 = vmatprep.mubr.f32.mxu0 0.0
      %7625 = vmatmul.mubr.f32.gmra.mrb[0].mxu0 %v7491
      %v7626 = vpop.f32.mrb[0].mxu0
      %v7627 = vadd.f32 0.0, %v7626
      %v7628 = vpop.f32.mrb[0].mxu0
      %7629 = vmatprep.mubr.f32.mxu0 0.0
      %7630 = vmatmul.mubr.f32.gmra.mrb[0].mxu0 %v7494
      %v7631 = vpop.f32.mrb[0].mxu0
      %v7632 = vadd.f32 0.0, %v7631
      %v7633 = vpop.f32.mrb[0].mxu0
      %7634 = vmatprep.mubr.f32.mxu0 0.0
      %7635 = vmatmul.mubr.f32.gmra.mrb[0].mxu0 %v7497
      %v7636 = vpop.f32.mrb[0].mxu0
      %v7637 = vadd.f32 0.0, %v7636
      %v7638 = vpop.f32.mrb[0].mxu0
      %7639 = vmatprep.mubr.f32.mxu0 0.0
      %7640 = vmatmul.mubr.f32.gmra.mrb[0].mxu0 %v7500
      %v7641 = vpop.f32.mrb[0].mxu0
      %v7642 = vadd.f32 0.0, %v7641
      %v7643 = vpop.f32.mrb[0].mxu0
      %7644 = vmatprep.mubr.f32.mxu0 0.0
      %7645 = vmatmul.mubr.f32.gmra.mrb[0].mxu0 %v7503
      %v7646 = vpop.f32.mrb[0].mxu0
      %v7647 = vadd.f32 0.0, %v7646
      %v7648 = vpop.f32.mrb[0].mxu0
      %7649 = vdwg.mxu0
      %v7650 = vadd.f32 %v7345, %v7572
      %v7651 = vadd.f32 %v7350, %v7577
      %v7652 = vadd.f32 %v7355, %v7582
      %v7653 = vadd.f32 %v7360, %v7587
      %v7654 = vadd.f32 %v7365, %v7592
      %v7655 = vadd.f32 %v7370, %v7597
      %v7656 = vadd.f32 %v7375, %v7602
      %v7657 = vadd.f32 %v7380, %v7607
      %v7658 = vadd.f32 %v7385, %v7612
      %v7659 = vadd.f32 %v7390, %v7617
      %v7660 = vadd.f32 %v7395, %v7622
      %v7661 = vadd.f32 %v7400, %v7627
      %v7662 = vadd.f32 %v7405, %v7632
      %v7663 = vadd.f32 %v7410, %v7637
      %v7664 = vadd.f32 %v7415, %v7642
      %v7665 = vadd.f32 %v7420, %v7647
      %v7666 = vld [vmem:[%s4727] sm:$0xff]
      %v7667 = vld [vmem:[%s4727 + $0x8] sm:$0xff]
      %v7668 = vld [vmem:[%s4727 + $0x10] sm:$0xff]
      %v7669 = vld [vmem:[%s4727 + $0x18] sm:$0xff]
      %v7670 = vld [vmem:[%s4727 + $0x20] sm:$0xff]
      %v7671 = vld [vmem:[%s4727 + $0x28] sm:$0xff]
      %v7672 = vld [vmem:[%s4727 + $0x30] sm:$0xff]
      %v7673 = vld [vmem:[%s4727 + $0x38] sm:$0xff]
      %v7674 = vld [vmem:[%s4727 + $0x40] sm:$0xff]
      %v7675 = vld [vmem:[%s4727 + $0x48] sm:$0xff]
      %v7676 = vld [vmem:[%s4727 + $0x50] sm:$0xff]
      %v7677 = vld [vmem:[%s4727 + $0x58] sm:$0xff]
      %v7678 = vld [vmem:[%s4727 + $0x60] sm:$0xff]
      %v7679 = vld [vmem:[%s4727 + $0x68] sm:$0xff]
      %v7680 = vld [vmem:[%s4727 + $0x70] sm:$0xff]
      %v7681 = vld [vmem:[%s4727 + $0x78] sm:$0xff]
      %v7682 = vsel %vm312, %v7666, 0.0
      %v7683 = vsel %vm313, %v7667, 0.0
      %v7684 = vsel %vm312, %v7668, 0.0
      %v7685 = vsel %vm313, %v7669, 0.0
      %v7686 = vsel %vm312, %v7670, 0.0
      %v7687 = vsel %vm313, %v7671, 0.0
      %v7688 = vsel %vm312, %v7672, 0.0
      %v7689 = vsel %vm313, %v7673, 0.0
      %v7690 = vsel %vm312, %v7674, 0.0
      %v7691 = vsel %vm313, %v7675, 0.0
      %v7692 = vsel %vm312, %v7676, 0.0
      %v7693 = vsel %vm313, %v7677, 0.0
      %v7694 = vsel %vm312, %v7678, 0.0
      %v7695 = vsel %vm313, %v7679, 0.0
      %v7696 = vsel %vm312, %v7680, 0.0
      %v7697 = vsel %vm313, %v7681, 0.0
      %v7698 = vld [vmem:[%s5523] sm:$0xff]
      %v7700 = vsel %vm188, %v7682, 0
      %v7703 = vsel %vm188, %v7683, 0
      %v7706 = vsel %vm188, %v7684, 0
      %v7709 = vsel %vm188, %v7685, 0
      %v7712 = vsel %vm188, %v7686, 0
      %v7715 = vsel %vm188, %v7687, 0
      %v7718 = vsel %vm188, %v7688, 0
      %v7721 = vsel %vm188, %v7689, 0
      %v7724 = vsel %vm188, %v7690, 0
      %v7727 = vsel %vm188, %v7691, 0
      %v7730 = vsel %vm188, %v7692, 0
      %v7733 = vsel %vm188, %v7693, 0
      %v7736 = vsel %vm188, %v7694, 0
      %v7739 = vsel %vm188, %v7695, 0
      %v7742 = vsel %vm188, %v7696, 0
      %v7745 = vsel %vm188, %v7697, 0
      %7747 = vmatprep.subr.mxu0 0.0
      %7748 = vmatpush1.msra.mxu0 %v7698
      %7749 = vmatprep.subr.mxu0 0.0
      %7750 = vmatpush1.msra.mxu0 0.0
      %7751 = vmatprep.subr.mxu0 0.0
      %7752 = vmatpush1.msra.mxu0 0.0
      %7753 = vmatprep.subr.mxu0 0.0
      %7754 = vmatpush1.msra.mxu0 0.0
      %7755 = vmatprep.subr.mxu0 0.0
      %7756 = vmatpush1.msra.mxu0 0.0
      %7757 = vmatprep.subr.mxu0 0.0
      %7758 = vmatpush1.msra.mxu0 0.0
      %7759 = vmatprep.subr.mxu0 0.0
      %7760 = vmatpush1.msra.mxu0 0.0
      %7761 = vmatprep.subr.mxu0 0.0
      %7762 = vmatpush1.msra.mxu0 0.0
      %7763 = vmatprep.subr.mxu0 0.0
      %7764 = vmatpush1.msra.mxu0 0.0
      %7765 = vmatprep.subr.mxu0 0.0
      %7766 = vmatpush1.msra.mxu0 0.0
      %7767 = vmatprep.subr.mxu0 0.0
      %7768 = vmatpush1.msra.mxu0 0.0
      %7769 = vmatprep.subr.mxu0 0.0
      %7770 = vmatpush1.msra.mxu0 0.0
      %7771 = vmatprep.subr.mxu0 0.0
      %7772 = vmatpush1.msra.mxu0 0.0
      %7773 = vmatprep.subr.mxu0 0.0
      %7774 = vmatpush1.msra.mxu0 0.0
      %7775 = vmatprep.subr.mxu0 0.0
      %7776 = vmatpush1.msra.mxu0 0.0
      %7777 = vmatprep.subr.mxu0 0.0
      %7778 = vmatpush1.msra.mxu0 0.0
      %7779 = vmatprep.subr.mxu0 0.0
      %7780 = vmatpush1.msra.mxu0 0.0
      %7781 = vmatprep.subr.mxu0 0.0
      %7782 = vmatpush1.msra.mxu0 0.0
      %7783 = vmatprep.subr.mxu0 0.0
      %7784 = vmatpush1.msra.mxu0 0.0
      %7785 = vmatprep.subr.mxu0 0.0
      %7786 = vmatpush1.msra.mxu0 0.0
      %7787 = vmatprep.subr.mxu0 0.0
      %7788 = vmatpush1.msra.mxu0 0.0
      %7789 = vmatprep.subr.mxu0 0.0
      %7790 = vmatpush1.msra.mxu0 0.0
      %7791 = vmatprep.subr.mxu0 0.0
      %7792 = vmatpush1.msra.mxu0 0.0
      %7793 = vmatprep.subr.mxu0 0.0
      %7794 = vmatpush1.msra.mxu0 0.0
      %7795 = vmatprep.subr.mxu0 0.0
      %7796 = vmatpush1.msra.mxu0 0.0
      %7797 = vmatprep.subr.mxu0 0.0
      %7798 = vmatpush1.msra.mxu0 0.0
      %7799 = vmatprep.subr.mxu0 0.0
      %7800 = vmatpush1.msra.mxu0 0.0
      %7801 = vmatprep.subr.mxu0 0.0
      %7802 = vmatpush1.msra.mxu0 0.0
      %7803 = vmatprep.subr.mxu0 0.0
      %7804 = vmatpush1.msra.mxu0 0.0
      %7805 = vmatprep.subr.mxu0 0.0
      %7806 = vmatpush1.msra.mxu0 0.0
      %7807 = vmatprep.subr.mxu0 0.0
      %7808 = vmatpush1.msra.mxu0 0.0
      %7809 = vmatprep.subr.mxu0 0.0
      %7810 = vmatpush1.msra.mxu0 0.0
      %7811 = vmatprep.mubr.f32.mxu0 0.0
      %7812 = vmatmul.mubr.f32.gmra.mrb[0].mxu0 %v7700
      %v7813 = vpop.f32.mrb[0].mxu0
      %v7814 = vadd.f32 0.0, %v7813
      %v7815 = vpop.f32.mrb[0].mxu0
      %7816 = vmatprep.mubr.f32.mxu0 0.0
      %7817 = vmatmul.mubr.f32.gmra.mrb[0].mxu0 %v7703
      %v7818 = vpop.f32.mrb[0].mxu0
      %v7819 = vadd.f32 0.0, %v7818
      %v7820 = vpop.f32.mrb[0].mxu0
      %7821 = vmatprep.mubr.f32.mxu0 0.0
      %7822 = vmatmul.mubr.f32.gmra.mrb[0].mxu0 %v7706
      %v7823 = vpop.f32.mrb[0].mxu0
      %v7824 = vadd.f32 0.0, %v7823
      %v7825 = vpop.f32.mrb[0].mxu0
      %7826 = vmatprep.mubr.f32.mxu0 0.0
      %7827 = vmatmul.mubr.f32.gmra.mrb[0].mxu0 %v7709
      %v7828 = vpop.f32.mrb[0].mxu0
      %v7829 = vadd.f32 0.0, %v7828
      %v7830 = vpop.f32.mrb[0].mxu0
      %7831 = vmatprep.mubr.f32.mxu0 0.0
      %7832 = vmatmul.mubr.f32.gmra.mrb[0].mxu0 %v7712
      %v7833 = vpop.f32.mrb[0].mxu0
      %v7834 = vadd.f32 0.0, %v7833
      %v7835 = vpop.f32.mrb[0].mxu0
      %7836 = vmatprep.mubr.f32.mxu0 0.0
      %7837 = vmatmul.mubr.f32.gmra.mrb[0].mxu0 %v7715
      %v7838 = vpop.f32.mrb[0].mxu0
      %v7839 = vadd.f32 0.0, %v7838
      %v7840 = vpop.f32.mrb[0].mxu0
      %7841 = vmatprep.mubr.f32.mxu0 0.0
      %7842 = vmatmul.mubr.f32.gmra.mrb[0].mxu0 %v7718
      %v7843 = vpop.f32.mrb[0].mxu0
      %v7844 = vadd.f32 0.0, %v7843
      %v7845 = vpop.f32.mrb[0].mxu0
      %7846 = vmatprep.mubr.f32.mxu0 0.0
      %7847 = vmatmul.mubr.f32.gmra.mrb[0].mxu0 %v7721
      %v7848 = vpop.f32.mrb[0].mxu0
      %v7849 = vadd.f32 0.0, %v7848
      %v7850 = vpop.f32.mrb[0].mxu0
      %7851 = vmatprep.mubr.f32.mxu0 0.0
      %7852 = vmatmul.mubr.f32.gmra.mrb[0].mxu0 %v7724
      %v7853 = vpop.f32.mrb[0].mxu0
      %v7854 = vadd.f32 0.0, %v7853
      %v7855 = vpop.f32.mrb[0].mxu0
      %7856 = vmatprep.mubr.f32.mxu0 0.0
      %7857 = vmatmul.mubr.f32.gmra.mrb[0].mxu0 %v7727
      %v7858 = vpop.f32.mrb[0].mxu0
      %v7859 = vadd.f32 0.0, %v7858
      %v7860 = vpop.f32.mrb[0].mxu0
      %7861 = vmatprep.mubr.f32.mxu0 0.0
      %7862 = vmatmul.mubr.f32.gmra.mrb[0].mxu0 %v7730
      %v7863 = vpop.f32.mrb[0].mxu0
      %v7864 = vadd.f32 0.0, %v7863
      %v7865 = vpop.f32.mrb[0].mxu0
      %7866 = vmatprep.mubr.f32.mxu0 0.0
      %7867 = vmatmul.mubr.f32.gmra.mrb[0].mxu0 %v7733
      %v7868 = vpop.f32.mrb[0].mxu0
      %v7869 = vadd.f32 0.0, %v7868
      %v7870 = vpop.f32.mrb[0].mxu0
      %7871 = vmatprep.mubr.f32.mxu0 0.0
      %7872 = vmatmul.mubr.f32.gmra.mrb[0].mxu0 %v7736
      %v7873 = vpop.f32.mrb[0].mxu0
      %v7874 = vadd.f32 0.0, %v7873
      %v7875 = vpop.f32.mrb[0].mxu0
      %7876 = vmatprep.mubr.f32.mxu0 0.0
      %7877 = vmatmul.mubr.f32.gmra.mrb[0].mxu0 %v7739
      %v7878 = vpop.f32.mrb[0].mxu0
      %v7879 = vadd.f32 0.0, %v7878
      %v7880 = vpop.f32.mrb[0].mxu0
      %7881 = vmatprep.mubr.f32.mxu0 0.0
      %7882 = vmatmul.mubr.f32.gmra.mrb[0].mxu0 %v7742
      %v7883 = vpop.f32.mrb[0].mxu0
      %v7884 = vadd.f32 0.0, %v7883
      %v7885 = vpop.f32.mrb[0].mxu0
      %7886 = vmatprep.mubr.f32.mxu0 0.0
      %7887 = vmatmul.mubr.f32.gmra.mrb[0].mxu0 %v7745
      %v7888 = vpop.f32.mrb[0].mxu0
      %v7889 = vadd.f32 0.0, %v7888
      %v7890 = vpop.f32.mrb[0].mxu0
      %7891 = vdwg.mxu0
      %v7892 = vadd.f32 %v7650, %v7814
      %v7893 = vadd.f32 %v7651, %v7819
      %v7894 = vadd.f32 %v7652, %v7824
      %v7895 = vadd.f32 %v7653, %v7829
      %v7896 = vadd.f32 %v7654, %v7834
      %v7897 = vadd.f32 %v7655, %v7839
      %v7898 = vadd.f32 %v7656, %v7844
      %v7899 = vadd.f32 %v7657, %v7849
      %v7900 = vadd.f32 %v7658, %v7854
      %v7901 = vadd.f32 %v7659, %v7859
      %v7902 = vadd.f32 %v7660, %v7864
      %v7903 = vadd.f32 %v7661, %v7869
      %v7904 = vadd.f32 %v7662, %v7874
      %v7905 = vadd.f32 %v7663, %v7879
      %v7906 = vadd.f32 %v7664, %v7884
      %v7907 = vadd.f32 %v7665, %v7889
      %v7908 = vld [vmem:[%s4710] sm:$0xff]
      %v7909 = vld [vmem:[%s4710 + $0x8] sm:$0xff]
      %v7910 = vld [vmem:[%s4710 + $0x10] sm:$0xff]
      %v7911 = vld [vmem:[%s4710 + $0x18] sm:$0xff]
      %v7912 = vld [vmem:[%s4710 + $0x20] sm:$0xff]
      %v7913 = vld [vmem:[%s4710 + $0x28] sm:$0xff]
      %v7914 = vld [vmem:[%s4710 + $0x30] sm:$0xff]
      %v7915 = vld [vmem:[%s4710 + $0x38] sm:$0xff]
      %v7916 = vld [vmem:[%s4710 + $0x40] sm:$0xff]
      %v7917 = vld [vmem:[%s4710 + $0x48] sm:$0xff]
      %v7918 = vld [vmem:[%s4710 + $0x50] sm:$0xff]
      %v7919 = vld [vmem:[%s4710 + $0x58] sm:$0xff]
      %v7920 = vld [vmem:[%s4710 + $0x60] sm:$0xff]
      %v7921 = vld [vmem:[%s4710 + $0x68] sm:$0xff]
      %v7922 = vld [vmem:[%s4710 + $0x70] sm:$0xff]
      %v7923 = vld [vmem:[%s4710 + $0x78] sm:$0xff]
      %v7924 = vld [vmem:[%s5750] sm:$0xff]
      %v7926 = vsel %vm188, %v7908, 0
      %v7929 = vsel %vm188, %v7909, 0
      %v7932 = vsel %vm188, %v7910, 0
      %v7935 = vsel %vm188, %v7911, 0
      %v7938 = vsel %vm188, %v7912, 0
      %v7941 = vsel %vm188, %v7913, 0
      %v7944 = vsel %vm188, %v7914, 0
      %v7947 = vsel %vm188, %v7915, 0
      %v7950 = vsel %vm188, %v7916, 0
      %v7953 = vsel %vm188, %v7917, 0
      %v7956 = vsel %vm188, %v7918, 0
      %v7959 = vsel %vm188, %v7919, 0
      %v7962 = vsel %vm188, %v7920, 0
      %v7965 = vsel %vm188, %v7921, 0
      %v7968 = vsel %vm188, %v7922, 0
      %v7971 = vsel %vm188, %v7923, 0
      %7973 = vmatprep.subr.mxu0 0.0
      %7974 = vmatpush1.msra.mxu0 %v7924
      %7975 = vmatprep.subr.mxu0 0.0
      %7976 = vmatpush1.msra.mxu0 0.0
      %7977 = vmatprep.subr.mxu0 0.0
      %7978 = vmatpush1.msra.mxu0 0.0
      %7979 = vmatprep.subr.mxu0 0.0
      %7980 = vmatpush1.msra.mxu0 0.0
      %7981 = vmatprep.subr.mxu0 0.0
      %7982 = vmatpush1.msra.mxu0 0.0
      %7983 = vmatprep.subr.mxu0 0.0
      %7984 = vmatpush1.msra.mxu0 0.0
      %7985 = vmatprep.subr.mxu0 0.0
      %7986 = vmatpush1.msra.mxu0 0.0
      %7987 = vmatprep.subr.mxu0 0.0
      %7988 = vmatpush1.msra.mxu0 0.0
      %7989 = vmatprep.subr.mxu0 0.0
      %7990 = vmatpush1.msra.mxu0 0.0
      %7991 = vmatprep.subr.mxu0 0.0
      %7992 = vmatpush1.msra.mxu0 0.0
      %7993 = vmatprep.subr.mxu0 0.0
      %7994 = vmatpush1.msra.mxu0 0.0
      %7995 = vmatprep.subr.mxu0 0.0
      %7996 = vmatpush1.msra.mxu0 0.0
      %7997 = vmatprep.subr.mxu0 0.0
      %7998 = vmatpush1.msra.mxu0 0.0
      %7999 = vmatprep.subr.mxu0 0.0
      %8000 = vmatpush1.msra.mxu0 0.0
      %8001 = vmatprep.subr.mxu0 0.0
      %8002 = vmatpush1.msra.mxu0 0.0
      %8003 = vmatprep.subr.mxu0 0.0
      %8004 = vmatpush1.msra.mxu0 0.0
      %8005 = vmatprep.subr.mxu0 0.0
      %8006 = vmatpush1.msra.mxu0 0.0
      %8007 = vmatprep.subr.mxu0 0.0
      %8008 = vmatpush1.msra.mxu0 0.0
      %8009 = vmatprep.subr.mxu0 0.0
      %8010 = vmatpush1.msra.mxu0 0.0
      %8011 = vmatprep.subr.mxu0 0.0
      %8012 = vmatpush1.msra.mxu0 0.0
      %8013 = vmatprep.subr.mxu0 0.0
      %8014 = vmatpush1.msra.mxu0 0.0
      %8015 = vmatprep.subr.mxu0 0.0
      %8016 = vmatpush1.msra.mxu0 0.0
      %8017 = vmatprep.subr.mxu0 0.0
      %8018 = vmatpush1.msra.mxu0 0.0
      %8019 = vmatprep.subr.mxu0 0.0
      %8020 = vmatpush1.msra.mxu0 0.0
      %8021 = vmatprep.subr.mxu0 0.0
      %8022 = vmatpush1.msra.mxu0 0.0
      %8023 = vmatprep.subr.mxu0 0.0
      %8024 = vmatpush1.msra.mxu0 0.0
      %8025 = vmatprep.subr.mxu0 0.0
      %8026 = vmatpush1.msra.mxu0 0.0
      %8027 = vmatprep.subr.mxu0 0.0
      %8028 = vmatpush1.msra.mxu0 0.0
      %8029 = vmatprep.subr.mxu0 0.0
      %8030 = vmatpush1.msra.mxu0 0.0
      %8031 = vmatprep.subr.mxu0 0.0
      %8032 = vmatpush1.msra.mxu0 0.0
      %8033 = vmatprep.subr.mxu0 0.0
      %8034 = vmatpush1.msra.mxu0 0.0
      %8035 = vmatprep.subr.mxu0 0.0
      %8036 = vmatpush1.msra.mxu0 0.0
      %8037 = vmatprep.mubr.f32.mxu0 0.0
      %8038 = vmatmul.mubr.f32.gmra.mrb[0].mxu0 %v7926
      %v8039 = vpop.f32.mrb[0].mxu0
      %v8040 = vadd.f32 0.0, %v8039
      %v8041 = vpop.f32.mrb[0].mxu0
      %8042 = vmatprep.mubr.f32.mxu0 0.0
      %8043 = vmatmul.mubr.f32.gmra.mrb[0].mxu0 %v7929
      %v8044 = vpop.f32.mrb[0].mxu0
      %v8045 = vadd.f32 0.0, %v8044
      %v8046 = vpop.f32.mrb[0].mxu0
      %8047 = vmatprep.mubr.f32.mxu0 0.0
      %8048 = vmatmul.mubr.f32.gmra.mrb[0].mxu0 %v7932
      %v8049 = vpop.f32.mrb[0].mxu0
      %v8050 = vadd.f32 0.0, %v8049
      %v8051 = vpop.f32.mrb[0].mxu0
      %8052 = vmatprep.mubr.f32.mxu0 0.0
      %8053 = vmatmul.mubr.f32.gmra.mrb[0].mxu0 %v7935
      %v8054 = vpop.f32.mrb[0].mxu0
      %v8055 = vadd.f32 0.0, %v8054
      %v8056 = vpop.f32.mrb[0].mxu0
      %8057 = vmatprep.mubr.f32.mxu0 0.0
      %8058 = vmatmul.mubr.f32.gmra.mrb[0].mxu0 %v7938
      %v8059 = vpop.f32.mrb[0].mxu0
      %v8060 = vadd.f32 0.0, %v8059
      %v8061 = vpop.f32.mrb[0].mxu0
      %8062 = vmatprep.mubr.f32.mxu0 0.0
      %8063 = vmatmul.mubr.f32.gmra.mrb[0].mxu0 %v7941
      %v8064 = vpop.f32.mrb[0].mxu0
      %v8065 = vadd.f32 0.0, %v8064
      %v8066 = vpop.f32.mrb[0].mxu0
      %8067 = vmatprep.mubr.f32.mxu0 0.0
      %8068 = vmatmul.mubr.f32.gmra.mrb[0].mxu0 %v7944
      %v8069 = vpop.f32.mrb[0].mxu0
      %v8070 = vadd.f32 0.0, %v8069
      %v8071 = vpop.f32.mrb[0].mxu0
      %8072 = vmatprep.mubr.f32.mxu0 0.0
      %8073 = vmatmul.mubr.f32.gmra.mrb[0].mxu0 %v7947
      %v8074 = vpop.f32.mrb[0].mxu0
      %v8075 = vadd.f32 0.0, %v8074
      %v8076 = vpop.f32.mrb[0].mxu0
      %8077 = vmatprep.mubr.f32.mxu0 0.0
      %8078 = vmatmul.mubr.f32.gmra.mrb[0].mxu0 %v7950
      %v8079 = vpop.f32.mrb[0].mxu0
      %v8080 = vadd.f32 0.0, %v8079
      %v8081 = vpop.f32.mrb[0].mxu0
      %8082 = vmatprep.mubr.f32.mxu0 0.0
      %8083 = vmatmul.mubr.f32.gmra.mrb[0].mxu0 %v7953
      %v8084 = vpop.f32.mrb[0].mxu0
      %v8085 = vadd.f32 0.0, %v8084
      %v8086 = vpop.f32.mrb[0].mxu0
      %8087 = vmatprep.mubr.f32.mxu0 0.0
      %8088 = vmatmul.mubr.f32.gmra.mrb[0].mxu0 %v7956
      %v8089 = vpop.f32.mrb[0].mxu0
      %v8090 = vadd.f32 0.0, %v8089
      %v8091 = vpop.f32.mrb[0].mxu0
      %8092 = vmatprep.mubr.f32.mxu0 0.0
      %8093 = vmatmul.mubr.f32.gmra.mrb[0].mxu0 %v7959
      %v8094 = vpop.f32.mrb[0].mxu0
      %v8095 = vadd.f32 0.0, %v8094
      %v8096 = vpop.f32.mrb[0].mxu0
      %8097 = vmatprep.mubr.f32.mxu0 0.0
      %8098 = vmatmul.mubr.f32.gmra.mrb[0].mxu0 %v7962
      %v8099 = vpop.f32.mrb[0].mxu0
      %v8100 = vadd.f32 0.0, %v8099
      %v8101 = vpop.f32.mrb[0].mxu0
      %8102 = vmatprep.mubr.f32.mxu0 0.0
      %8103 = vmatmul.mubr.f32.gmra.mrb[0].mxu0 %v7965
      %v8104 = vpop.f32.mrb[0].mxu0
      %v8105 = vadd.f32 0.0, %v8104
      %v8106 = vpop.f32.mrb[0].mxu0
      %8107 = vmatprep.mubr.f32.mxu0 0.0
      %8108 = vmatmul.mubr.f32.gmra.mrb[0].mxu0 %v7968
      %v8109 = vpop.f32.mrb[0].mxu0
      %v8110 = vadd.f32 0.0, %v8109
      %v8111 = vpop.f32.mrb[0].mxu0
      %8112 = vmatprep.mubr.f32.mxu0 0.0
      %8113 = vmatmul.mubr.f32.gmra.mrb[0].mxu0 %v7971
      %v8114 = vpop.f32.mrb[0].mxu0
      %v8115 = vadd.f32 0.0, %v8114
      %v8116 = vpop.f32.mrb[0].mxu0
      %8117 = vdwg.mxu0
      %v8118 = vadd.f32 %v7892, %v8040
      %v8119 = vadd.f32 %v7893, %v8045
      %v8120 = vadd.f32 %v7894, %v8050
      %v8121 = vadd.f32 %v7895, %v8055
      %v8122 = vadd.f32 %v7896, %v8060
      %v8123 = vadd.f32 %v7897, %v8065
      %v8124 = vadd.f32 %v7898, %v8070
      %v8125 = vadd.f32 %v7899, %v8075
      %v8126 = vadd.f32 %v7900, %v8080
      %v8127 = vadd.f32 %v7901, %v8085
      %v8128 = vadd.f32 %v7902, %v8090
      %v8129 = vadd.f32 %v7903, %v8095
      %v8130 = vadd.f32 %v7904, %v8100
      %v8131 = vadd.f32 %v7905, %v8105
      %v8132 = vadd.f32 %v7906, %v8110
      %v8133 = vadd.f32 %v7907, %v8115
      %v8134 = vld [vmem:[%s4744] sm:$0xff]
      %v8135 = vld [vmem:[%s4744 + $0x8] sm:$0xff]
      %v8136 = vld [vmem:[%s4744 + $0x10] sm:$0xff]
      %v8137 = vld [vmem:[%s4744 + $0x18] sm:$0xff]
      %v8138 = vld [vmem:[%s4744 + $0x20] sm:$0xff]
      %v8139 = vld [vmem:[%s4744 + $0x28] sm:$0xff]
      %v8140 = vld [vmem:[%s4744 + $0x30] sm:$0xff]
      %v8141 = vld [vmem:[%s4744 + $0x38] sm:$0xff]
      %v8142 = vld [vmem:[%s4744 + $0x40] sm:$0xff]
      %v8143 = vld [vmem:[%s4744 + $0x48] sm:$0xff]
      %v8144 = vld [vmem:[%s4744 + $0x50] sm:$0xff]
      %v8145 = vld [vmem:[%s4744 + $0x58] sm:$0xff]
      %v8146 = vld [vmem:[%s4744 + $0x60] sm:$0xff]
      %v8147 = vld [vmem:[%s4744 + $0x68] sm:$0xff]
      %v8148 = vld [vmem:[%s4744 + $0x70] sm:$0xff]
      %v8149 = vld [vmem:[%s4744 + $0x78] sm:$0xff]
      %v8150 = vsel %vm314, %v8134, 0.0
      %v8151 = vsel %vm315, %v8135, 0.0
      %v8152 = vsel %vm314, %v8136, 0.0
      %v8153 = vsel %vm315, %v8137, 0.0
      %v8154 = vsel %vm314, %v8138, 0.0
      %v8155 = vsel %vm315, %v8139, 0.0
      %v8156 = vsel %vm314, %v8140, 0.0
      %v8157 = vsel %vm315, %v8141, 0.0
      %v8158 = vsel %vm314, %v8142, 0.0
      %v8159 = vsel %vm315, %v8143, 0.0
      %v8160 = vsel %vm314, %v8144, 0.0
      %v8161 = vsel %vm315, %v8145, 0.0
      %v8162 = vsel %vm314, %v8146, 0.0
      %v8163 = vsel %vm315, %v8147, 0.0
      %v8164 = vsel %vm314, %v8148, 0.0
      %v8165 = vsel %vm315, %v8149, 0.0
      %v8166 = vld [vmem:[%s5993] sm:$0xff]
      %v8168 = vsel %vm188, %v8150, 0
      %v8171 = vsel %vm188, %v8151, 0
      %v8174 = vsel %vm188, %v8152, 0
      %v8177 = vsel %vm188, %v8153, 0
      %v8180 = vsel %vm188, %v8154, 0
      %v8183 = vsel %vm188, %v8155, 0
      %v8186 = vsel %vm188, %v8156, 0
      %v8189 = vsel %vm188, %v8157, 0
      %v8192 = vsel %vm188, %v8158, 0
      %v8195 = vsel %vm188, %v8159, 0
      %v8198 = vsel %vm188, %v8160, 0
      %v8201 = vsel %vm188, %v8161, 0
      %v8204 = vsel %vm188, %v8162, 0
      %v8207 = vsel %vm188, %v8163, 0
      %v8210 = vsel %vm188, %v8164, 0
      %v8213 = vsel %vm188, %v8165, 0
      %8215 = vmatprep.subr.mxu0 0.0
      %8216 = vmatpush1.msra.mxu0 %v8166
      %8217 = vmatprep.subr.mxu0 0.0
      %8218 = vmatpush1.msra.mxu0 0.0
      %8219 = vmatprep.subr.mxu0 0.0
      %8220 = vmatpush1.msra.mxu0 0.0
      %8221 = vmatprep.subr.mxu0 0.0
      %8222 = vmatpush1.msra.mxu0 0.0
      %8223 = vmatprep.subr.mxu0 0.0
      %8224 = vmatpush1.msra.mxu0 0.0
      %8225 = vmatprep.subr.mxu0 0.0
      %8226 = vmatpush1.msra.mxu0 0.0
      %8227 = vmatprep.subr.mxu0 0.0
      %8228 = vmatpush1.msra.mxu0 0.0
      %8229 = vmatprep.subr.mxu0 0.0
      %8230 = vmatpush1.msra.mxu0 0.0
      %8231 = vmatprep.subr.mxu0 0.0
      %8232 = vmatpush1.msra.mxu0 0.0
      %8233 = vmatprep.subr.mxu0 0.0
      %8234 = vmatpush1.msra.mxu0 0.0
      %8235 = vmatprep.subr.mxu0 0.0
      %8236 = vmatpush1.msra.mxu0 0.0
      %8237 = vmatprep.subr.mxu0 0.0
      %8238 = vmatpush1.msra.mxu0 0.0
      %8239 = vmatprep.subr.mxu0 0.0
      %8240 = vmatpush1.msra.mxu0 0.0
      %8241 = vmatprep.subr.mxu0 0.0
      %8242 = vmatpush1.msra.mxu0 0.0
      %8243 = vmatprep.subr.mxu0 0.0
      %8244 = vmatpush1.msra.mxu0 0.0
      %8245 = vmatprep.subr.mxu0 0.0
      %8246 = vmatpush1.msra.mxu0 0.0
      %8247 = vmatprep.subr.mxu0 0.0
      %8248 = vmatpush1.msra.mxu0 0.0
      %8249 = vmatprep.subr.mxu0 0.0
      %8250 = vmatpush1.msra.mxu0 0.0
      %8251 = vmatprep.subr.mxu0 0.0
      %8252 = vmatpush1.msra.mxu0 0.0
      %8253 = vmatprep.subr.mxu0 0.0
      %8254 = vmatpush1.msra.mxu0 0.0
      %8255 = vmatprep.subr.mxu0 0.0
      %8256 = vmatpush1.msra.mxu0 0.0
      %8257 = vmatprep.subr.mxu0 0.0
      %8258 = vmatpush1.msra.mxu0 0.0
      %8259 = vmatprep.subr.mxu0 0.0
      %8260 = vmatpush1.msra.mxu0 0.0
      %8261 = vmatprep.subr.mxu0 0.0
      %8262 = vmatpush1.msra.mxu0 0.0
      %8263 = vmatprep.subr.mxu0 0.0
      %8264 = vmatpush1.msra.mxu0 0.0
      %8265 = vmatprep.subr.mxu0 0.0
      %8266 = vmatpush1.msra.mxu0 0.0
      %8267 = vmatprep.subr.mxu0 0.0
      %8268 = vmatpush1.msra.mxu0 0.0
      %8269 = vmatprep.subr.mxu0 0.0
      %8270 = vmatpush1.msra.mxu0 0.0
      %8271 = vmatprep.subr.mxu0 0.0
      %8272 = vmatpush1.msra.mxu0 0.0
      %8273 = vmatprep.subr.mxu0 0.0
      %8274 = vmatpush1.msra.mxu0 0.0
      %8275 = vmatprep.subr.mxu0 0.0
      %8276 = vmatpush1.msra.mxu0 0.0
      %8277 = vmatprep.subr.mxu0 0.0
      %8278 = vmatpush1.msra.mxu0 0.0
      %8279 = vmatprep.mubr.f32.mxu0 0.0
      %8280 = vmatmul.mubr.f32.gmra.mrb[0].mxu0 %v8168
      %v8281 = vpop.f32.mrb[0].mxu0
      %v8282 = vadd.f32 0.0, %v8281
      %v8283 = vpop.f32.mrb[0].mxu0
      %8284 = vmatprep.mubr.f32.mxu0 0.0
      %8285 = vmatmul.mubr.f32.gmra.mrb[0].mxu0 %v8171
      %v8286 = vpop.f32.mrb[0].mxu0
      %v8287 = vadd.f32 0.0, %v8286
      %v8288 = vpop.f32.mrb[0].mxu0
      %8289 = vmatprep.mubr.f32.mxu0 0.0
      %8290 = vmatmul.mubr.f32.gmra.mrb[0].mxu0 %v8174
      %v8291 = vpop.f32.mrb[0].mxu0
      %v8292 = vadd.f32 0.0, %v8291
      %v8293 = vpop.f32.mrb[0].mxu0
      %8294 = vmatprep.mubr.f32.mxu0 0.0
      %8295 = vmatmul.mubr.f32.gmra.mrb[0].mxu0 %v8177
      %v8296 = vpop.f32.mrb[0].mxu0
      %v8297 = vadd.f32 0.0, %v8296
      %v8298 = vpop.f32.mrb[0].mxu0
      %8299 = vmatprep.mubr.f32.mxu0 0.0
      %8300 = vmatmul.mubr.f32.gmra.mrb[0].mxu0 %v8180
      %v8301 = vpop.f32.mrb[0].mxu0
      %v8302 = vadd.f32 0.0, %v8301
      %v8303 = vpop.f32.mrb[0].mxu0
      %8304 = vmatprep.mubr.f32.mxu0 0.0
      %8305 = vmatmul.mubr.f32.gmra.mrb[0].mxu0 %v8183
      %v8306 = vpop.f32.mrb[0].mxu0
      %v8307 = vadd.f32 0.0, %v8306
      %v8308 = vpop.f32.mrb[0].mxu0
      %8309 = vmatprep.mubr.f32.mxu0 0.0
      %8310 = vmatmul.mubr.f32.gmra.mrb[0].mxu0 %v8186
      %v8311 = vpop.f32.mrb[0].mxu0
      %v8312 = vadd.f32 0.0, %v8311
      %v8313 = vpop.f32.mrb[0].mxu0
      %8314 = vmatprep.mubr.f32.mxu0 0.0
      %8315 = vmatmul.mubr.f32.gmra.mrb[0].mxu0 %v8189
      %v8316 = vpop.f32.mrb[0].mxu0
      %v8317 = vadd.f32 0.0, %v8316
      %v8318 = vpop.f32.mrb[0].mxu0
      %8319 = vmatprep.mubr.f32.mxu0 0.0
      %8320 = vmatmul.mubr.f32.gmra.mrb[0].mxu0 %v8192
      %v8321 = vpop.f32.mrb[0].mxu0
      %v8322 = vadd.f32 0.0, %v8321
      %v8323 = vpop.f32.mrb[0].mxu0
      %8324 = vmatprep.mubr.f32.mxu0 0.0
      %8325 = vmatmul.mubr.f32.gmra.mrb[0].mxu0 %v8195
      %v8326 = vpop.f32.mrb[0].mxu0
      %v8327 = vadd.f32 0.0, %v8326
      %v8328 = vpop.f32.mrb[0].mxu0
      %8329 = vmatprep.mubr.f32.mxu0 0.0
      %8330 = vmatmul.mubr.f32.gmra.mrb[0].mxu0 %v8198
      %v8331 = vpop.f32.mrb[0].mxu0
      %v8332 = vadd.f32 0.0, %v8331
      %v8333 = vpop.f32.mrb[0].mxu0
      %8334 = vmatprep.mubr.f32.mxu0 0.0
      %8335 = vmatmul.mubr.f32.gmra.mrb[0].mxu0 %v8201
      %v8336 = vpop.f32.mrb[0].mxu0
      %v8337 = vadd.f32 0.0, %v8336
      %v8338 = vpop.f32.mrb[0].mxu0
      %8339 = vmatprep.mubr.f32.mxu0 0.0
      %8340 = vmatmul.mubr.f32.gmra.mrb[0].mxu0 %v8204
      %v8341 = vpop.f32.mrb[0].mxu0
      %v8342 = vadd.f32 0.0, %v8341
      %v8343 = vpop.f32.mrb[0].mxu0
      %8344 = vmatprep.mubr.f32.mxu0 0.0
      %8345 = vmatmul.mubr.f32.gmra.mrb[0].mxu0 %v8207
      %v8346 = vpop.f32.mrb[0].mxu0
      %v8347 = vadd.f32 0.0, %v8346
      %v8348 = vpop.f32.mrb[0].mxu0
      %8349 = vmatprep.mubr.f32.mxu0 0.0
      %8350 = vmatmul.mubr.f32.gmra.mrb[0].mxu0 %v8210
      %v8351 = vpop.f32.mrb[0].mxu0
      %v8352 = vadd.f32 0.0, %v8351
      %v8353 = vpop.f32.mrb[0].mxu0
      %8354 = vmatprep.mubr.f32.mxu0 0.0
      %8355 = vmatmul.mubr.f32.gmra.mrb[0].mxu0 %v8213
      %v8356 = vpop.f32.mrb[0].mxu0
      %v8357 = vadd.f32 0.0, %v8356
      %v8358 = vpop.f32.mrb[0].mxu0
      %8359 = vdwg.mxu0
      %v8360 = vadd.f32 %v8118, %v8282
      %v8361 = vadd.f32 %v8119, %v8287
      %v8362 = vadd.f32 %v8120, %v8292
      %v8363 = vadd.f32 %v8121, %v8297
      %v8364 = vadd.f32 %v8122, %v8302
      %v8365 = vadd.f32 %v8123, %v8307
      %v8366 = vadd.f32 %v8124, %v8312
      %v8367 = vadd.f32 %v8125, %v8317
      %v8368 = vadd.f32 %v8126, %v8322
      %v8369 = vadd.f32 %v8127, %v8327
      %v8370 = vadd.f32 %v8128, %v8332
      %v8371 = vadd.f32 %v8129, %v8337
      %v8372 = vadd.f32 %v8130, %v8342
      %v8373 = vadd.f32 %v8131, %v8347
      %v8374 = vadd.f32 %v8132, %v8352
      %v8375 = vadd.f32 %v8133, %v8357
      %s8376 = scalar_lea.vmem [#allocation3], 160
      %v8377 = vld [vmem:[%s8376] sm:$0xff]
      %v8378 = vld [vmem:[%s8376 + $0x8] sm:$0xff]
      %v8379 = vld [vmem:[%s8376 + $0x10] sm:$0xff]
      %v8380 = vld [vmem:[%s8376 + $0x18] sm:$0xff]
      %v8381 = vld [vmem:[%s8376 + $0x20] sm:$0xff]
      %v8382 = vld [vmem:[%s8376 + $0x28] sm:$0xff]
      %v8383 = vld [vmem:[%s8376 + $0x30] sm:$0xff]
      %v8384 = vld [vmem:[%s8376 + $0x38] sm:$0xff]
      %v8385 = vld [vmem:[%s8376 + $0x40] sm:$0xff]
      %v8386 = vld [vmem:[%s8376 + $0x48] sm:$0xff]
      %v8387 = vld [vmem:[%s8376 + $0x50] sm:$0xff]
      %v8388 = vld [vmem:[%s8376 + $0x58] sm:$0xff]
      %v8389 = vld [vmem:[%s8376 + $0x60] sm:$0xff]
      %v8390 = vld [vmem:[%s8376 + $0x68] sm:$0xff]
      %v8391 = vld [vmem:[%s8376 + $0x70] sm:$0xff]
      %v8392 = vld [vmem:[%s8376 + $0x78] sm:$0xff]
      %v8393 = vsel %vm312, %v8377, 0.0
      %v8394 = vsel %vm313, %v8378, 0.0
      %v8395 = vsel %vm312, %v8379, 0.0
      %v8396 = vsel %vm313, %v8380, 0.0
      %v8397 = vsel %vm312, %v8381, 0.0
      %v8398 = vsel %vm313, %v8382, 0.0
      %v8399 = vsel %vm312, %v8383, 0.0
      %v8400 = vsel %vm313, %v8384, 0.0
      %v8401 = vsel %vm312, %v8385, 0.0
      %v8402 = vsel %vm313, %v8386, 0.0
      %v8403 = vsel %vm312, %v8387, 0.0
      %v8404 = vsel %vm313, %v8388, 0.0
      %v8405 = vsel %vm312, %v8389, 0.0
      %v8406 = vsel %vm313, %v8390, 0.0
      %v8407 = vsel %vm312, %v8391, 0.0
      %v8408 = vsel %vm313, %v8392, 0.0
      %v8409 = vsel 1, %v8393, 0.0
      %v8410 = vsel 1, %v8394, 0.0
      %v8411 = vsel 1, %v8395, 0.0
      %v8412 = vsel 1, %v8396, 0.0
      %v8413 = vsel 1, %v8397, 0.0
      %v8414 = vsel 1, %v8398, 0.0
      %v8415 = vsel 1, %v8399, 0.0
      %v8416 = vsel 1, %v8400, 0.0
      %v8417 = vsel 1, %v8401, 0.0
      %v8418 = vsel 1, %v8402, 0.0
      %v8419 = vsel 1, %v8403, 0.0
      %v8420 = vsel 1, %v8404, 0.0
      %v8421 = vsel 1, %v8405, 0.0
      %v8422 = vsel 1, %v8406, 0.0
      %v8423 = vsel 0, %v8407, 0.0
      %v8424 = vsel 0, %v8408, 0.0
      %v8425 = vld [vmem:[%s6237] sm:$0xff]
      %v8427 = vsel %vm188, %v8409, 0
      %v8430 = vsel %vm188, %v8410, 0
      %v8433 = vsel %vm188, %v8411, 0
      %v8436 = vsel %vm188, %v8412, 0
      %v8439 = vsel %vm188, %v8413, 0
      %v8442 = vsel %vm188, %v8414, 0
      %v8445 = vsel %vm188, %v8415, 0
      %v8448 = vsel %vm188, %v8416, 0
      %v8451 = vsel %vm188, %v8417, 0
      %v8454 = vsel %vm188, %v8418, 0
      %v8457 = vsel %vm188, %v8419, 0
      %v8460 = vsel %vm188, %v8420, 0
      %v8463 = vsel %vm188, %v8421, 0
      %v8466 = vsel %vm188, %v8422, 0
      %v8469 = vsel %vm188, %v8423, 0
      %v8472 = vsel %vm188, %v8424, 0
      %8474 = vmatprep.subr.mxu0 0.0
      %8475 = vmatpush1.msra.mxu0 %v8425
      %8476 = vmatprep.subr.mxu0 0.0
      %8477 = vmatpush1.msra.mxu0 0.0
      %8478 = vmatprep.subr.mxu0 0.0
      %8479 = vmatpush1.msra.mxu0 0.0
      %8480 = vmatprep.subr.mxu0 0.0
      %8481 = vmatpush1.msra.mxu0 0.0
      %8482 = vmatprep.subr.mxu0 0.0
      %8483 = vmatpush1.msra.mxu0 0.0
      %8484 = vmatprep.subr.mxu0 0.0
      %8485 = vmatpush1.msra.mxu0 0.0
      %8486 = vmatprep.subr.mxu0 0.0
      %8487 = vmatpush1.msra.mxu0 0.0
      %8488 = vmatprep.subr.mxu0 0.0
      %8489 = vmatpush1.msra.mxu0 0.0
      %8490 = vmatprep.subr.mxu0 0.0
      %8491 = vmatpush1.msra.mxu0 0.0
      %8492 = vmatprep.subr.mxu0 0.0
      %8493 = vmatpush1.msra.mxu0 0.0
      %8494 = vmatprep.subr.mxu0 0.0
      %8495 = vmatpush1.msra.mxu0 0.0
      %8496 = vmatprep.subr.mxu0 0.0
      %8497 = vmatpush1.msra.mxu0 0.0
      %8498 = vmatprep.subr.mxu0 0.0
      %8499 = vmatpush1.msra.mxu0 0.0
      %8500 = vmatprep.subr.mxu0 0.0
      %8501 = vmatpush1.msra.mxu0 0.0
      %8502 = vmatprep.subr.mxu0 0.0
      %8503 = vmatpush1.msra.mxu0 0.0
      %8504 = vmatprep.subr.mxu0 0.0
      %8505 = vmatpush1.msra.mxu0 0.0
      %8506 = vmatprep.subr.mxu0 0.0
      %8507 = vmatpush1.msra.mxu0 0.0
      %8508 = vmatprep.subr.mxu0 0.0
      %8509 = vmatpush1.msra.mxu0 0.0
      %8510 = vmatprep.subr.mxu0 0.0
      %8511 = vmatpush1.msra.mxu0 0.0
      %8512 = vmatprep.subr.mxu0 0.0
      %8513 = vmatpush1.msra.mxu0 0.0
      %8514 = vmatprep.subr.mxu0 0.0
      %8515 = vmatpush1.msra.mxu0 0.0
      %8516 = vmatprep.subr.mxu0 0.0
      %8517 = vmatpush1.msra.mxu0 0.0
      %8518 = vmatprep.subr.mxu0 0.0
      %8519 = vmatpush1.msra.mxu0 0.0
      %8520 = vmatprep.subr.mxu0 0.0
      %8521 = vmatpush1.msra.mxu0 0.0
      %8522 = vmatprep.subr.mxu0 0.0
      %8523 = vmatpush1.msra.mxu0 0.0
      %8524 = vmatprep.subr.mxu0 0.0
      %8525 = vmatpush1.msra.mxu0 0.0
      %8526 = vmatprep.subr.mxu0 0.0
      %8527 = vmatpush1.msra.mxu0 0.0
      %8528 = vmatprep.subr.mxu0 0.0
      %8529 = vmatpush1.msra.mxu0 0.0
      %8530 = vmatprep.subr.mxu0 0.0
      %8531 = vmatpush1.msra.mxu0 0.0
      %8532 = vmatprep.subr.mxu0 0.0
      %8533 = vmatpush1.msra.mxu0 0.0
      %8534 = vmatprep.subr.mxu0 0.0
      %8535 = vmatpush1.msra.mxu0 0.0
      %8536 = vmatprep.subr.mxu0 0.0
      %8537 = vmatpush1.msra.mxu0 0.0
      %8538 = vmatprep.mubr.f32.mxu0 0.0
      %8539 = vmatmul.mubr.f32.gmra.mrb[0].mxu0 %v8427
      %v8540 = vpop.f32.mrb[0].mxu0
      %v8541 = vadd.f32 0.0, %v8540
      %v8542 = vpop.f32.mrb[0].mxu0
      %8543 = vmatprep.mubr.f32.mxu0 0.0
      %8544 = vmatmul.mubr.f32.gmra.mrb[0].mxu0 %v8430
      %v8545 = vpop.f32.mrb[0].mxu0
      %v8546 = vadd.f32 0.0, %v8545
      %v8547 = vpop.f32.mrb[0].mxu0
      %8548 = vmatprep.mubr.f32.mxu0 0.0
      %8549 = vmatmul.mubr.f32.gmra.mrb[0].mxu0 %v8433
      %v8550 = vpop.f32.mrb[0].mxu0
      %v8551 = vadd.f32 0.0, %v8550
      %v8552 = vpop.f32.mrb[0].mxu0
      %8553 = vmatprep.mubr.f32.mxu0 0.0
      %8554 = vmatmul.mubr.f32.gmra.mrb[0].mxu0 %v8436
      %v8555 = vpop.f32.mrb[0].mxu0
      %v8556 = vadd.f32 0.0, %v8555
      %v8557 = vpop.f32.mrb[0].mxu0
      %8558 = vmatprep.mubr.f32.mxu0 0.0
      %8559 = vmatmul.mubr.f32.gmra.mrb[0].mxu0 %v8439
      %v8560 = vpop.f32.mrb[0].mxu0
      %v8561 = vadd.f32 0.0, %v8560
      %v8562 = vpop.f32.mrb[0].mxu0
      %8563 = vmatprep.mubr.f32.mxu0 0.0
      %8564 = vmatmul.mubr.f32.gmra.mrb[0].mxu0 %v8442
      %v8565 = vpop.f32.mrb[0].mxu0
      %v8566 = vadd.f32 0.0, %v8565
      %v8567 = vpop.f32.mrb[0].mxu0
      %8568 = vmatprep.mubr.f32.mxu0 0.0
      %8569 = vmatmul.mubr.f32.gmra.mrb[0].mxu0 %v8445
      %v8570 = vpop.f32.mrb[0].mxu0
      %v8571 = vadd.f32 0.0, %v8570
      %v8572 = vpop.f32.mrb[0].mxu0
      %8573 = vmatprep.mubr.f32.mxu0 0.0
      %8574 = vmatmul.mubr.f32.gmra.mrb[0].mxu0 %v8448
      %v8575 = vpop.f32.mrb[0].mxu0
      %v8576 = vadd.f32 0.0, %v8575
      %v8577 = vpop.f32.mrb[0].mxu0
      %8578 = vmatprep.mubr.f32.mxu0 0.0
      %8579 = vmatmul.mubr.f32.gmra.mrb[0].mxu0 %v8451
      %v8580 = vpop.f32.mrb[0].mxu0
      %v8581 = vadd.f32 0.0, %v8580
      %v8582 = vpop.f32.mrb[0].mxu0
      %8583 = vmatprep.mubr.f32.mxu0 0.0
      %8584 = vmatmul.mubr.f32.gmra.mrb[0].mxu0 %v8454
      %v8585 = vpop.f32.mrb[0].mxu0
      %v8586 = vadd.f32 0.0, %v8585
      %v8587 = vpop.f32.mrb[0].mxu0
      %8588 = vmatprep.mubr.f32.mxu0 0.0
      %8589 = vmatmul.mubr.f32.gmra.mrb[0].mxu0 %v8457
      %v8590 = vpop.f32.mrb[0].mxu0
      %v8591 = vadd.f32 0.0, %v8590
      %v8592 = vpop.f32.mrb[0].mxu0
      %8593 = vmatprep.mubr.f32.mxu0 0.0
      %8594 = vmatmul.mubr.f32.gmra.mrb[0].mxu0 %v8460
      %v8595 = vpop.f32.mrb[0].mxu0
      %v8596 = vadd.f32 0.0, %v8595
      %v8597 = vpop.f32.mrb[0].mxu0
      %8598 = vmatprep.mubr.f32.mxu0 0.0
      %8599 = vmatmul.mubr.f32.gmra.mrb[0].mxu0 %v8463
      %v8600 = vpop.f32.mrb[0].mxu0
      %v8601 = vadd.f32 0.0, %v8600
      %v8602 = vpop.f32.mrb[0].mxu0
      %8603 = vmatprep.mubr.f32.mxu0 0.0
      %8604 = vmatmul.mubr.f32.gmra.mrb[0].mxu0 %v8466
      %v8605 = vpop.f32.mrb[0].mxu0
      %v8606 = vadd.f32 0.0, %v8605
      %v8607 = vpop.f32.mrb[0].mxu0
      %8608 = vmatprep.mubr.f32.mxu0 0.0
      %8609 = vmatmul.mubr.f32.gmra.mrb[0].mxu0 %v8469
      %v8610 = vpop.f32.mrb[0].mxu0
      %v8611 = vadd.f32 0.0, %v8610
      %v8612 = vpop.f32.mrb[0].mxu0
      %8613 = vmatprep.mubr.f32.mxu0 0.0
      %8614 = vmatmul.mubr.f32.gmra.mrb[0].mxu0 %v8472
      %v8615 = vpop.f32.mrb[0].mxu0
      %v8616 = vadd.f32 0.0, %v8615
      %v8617 = vpop.f32.mrb[0].mxu0
      %8618 = vdwg.mxu0
      %v8619 = vadd.f32 %v8360, %v8541
      %v8620 = vadd.f32 %v8361, %v8546
      %v8621 = vadd.f32 %v8362, %v8551
      %v8622 = vadd.f32 %v8363, %v8556
      %v8623 = vadd.f32 %v8364, %v8561
      %v8624 = vadd.f32 %v8365, %v8566
      %v8625 = vadd.f32 %v8366, %v8571
      %v8626 = vadd.f32 %v8367, %v8576
      %v8627 = vadd.f32 %v8368, %v8581
      %v8628 = vadd.f32 %v8369, %v8586
      %v8629 = vadd.f32 %v8370, %v8591
      %v8630 = vadd.f32 %v8371, %v8596
      %v8631 = vadd.f32 %v8372, %v8601
      %v8632 = vadd.f32 %v8373, %v8606
      %v8633 = vadd.f32 %v8374, %v8611
      %v8634 = vadd.f32 %v8375, %v8616
      %s8635 = scalar_lea.vmem [#allocation3], 448
      %v8636 = vld [vmem:[%s8635] sm:$0xff]
      %v8637 = vld [vmem:[%s8635 + $0x8] sm:$0xff]
      %v8638 = vld [vmem:[%s8635 + $0x10] sm:$0xff]
      %v8639 = vld [vmem:[%s8635 + $0x18] sm:$0xff]
      %v8640 = vld [vmem:[%s8635 + $0x20] sm:$0xff]
      %v8641 = vld [vmem:[%s8635 + $0x28] sm:$0xff]
      %v8642 = vld [vmem:[%s8635 + $0x30] sm:$0xff]
      %v8643 = vld [vmem:[%s8635 + $0x38] sm:$0xff]
      %v8644 = vld [vmem:[%s8635 + $0x40] sm:$0xff]
      %v8645 = vld [vmem:[%s8635 + $0x48] sm:$0xff]
      %v8646 = vld [vmem:[%s8635 + $0x50] sm:$0xff]
      %v8647 = vld [vmem:[%s8635 + $0x58] sm:$0xff]
      %v8648 = vld [vmem:[%s8635 + $0x60] sm:$0xff]
      %v8649 = vld [vmem:[%s8635 + $0x68] sm:$0xff]
      %v8650 = vld [vmem:[%s8635 + $0x70] sm:$0xff]
      %v8651 = vld [vmem:[%s8635 + $0x78] sm:$0xff]
      %v8652 = vsel 1, %v8636, 0.0
      %v8653 = vsel 1, %v8637, 0.0
      %v8654 = vsel 1, %v8638, 0.0
      %v8655 = vsel 1, %v8639, 0.0
      %v8656 = vsel 1, %v8640, 0.0
      %v8657 = vsel 1, %v8641, 0.0
      %v8658 = vsel 1, %v8642, 0.0
      %v8659 = vsel 1, %v8643, 0.0
      %v8660 = vsel 1, %v8644, 0.0
      %v8661 = vsel 1, %v8645, 0.0
      %v8662 = vsel 1, %v8646, 0.0
      %v8663 = vsel 1, %v8647, 0.0
      %v8664 = vsel 1, %v8648, 0.0
      %v8665 = vsel 1, %v8649, 0.0
      %v8666 = vsel 0, %v8650, 0.0
      %v8667 = vsel 0, %v8651, 0.0
      %v8668 = vld [vmem:[%s6465] sm:$0xff]
      %v8670 = vsel %vm188, %v8652, 0
      %v8673 = vsel %vm188, %v8653, 0
      %v8676 = vsel %vm188, %v8654, 0
      %v8679 = vsel %vm188, %v8655, 0
      %v8682 = vsel %vm188, %v8656, 0
      %v8685 = vsel %vm188, %v8657, 0
      %v8688 = vsel %vm188, %v8658, 0
      %v8691 = vsel %vm188, %v8659, 0
      %v8694 = vsel %vm188, %v8660, 0
      %v8697 = vsel %vm188, %v8661, 0
      %v8700 = vsel %vm188, %v8662, 0
      %v8703 = vsel %vm188, %v8663, 0
      %v8706 = vsel %vm188, %v8664, 0
      %v8709 = vsel %vm188, %v8665, 0
      %v8712 = vsel %vm188, %v8666, 0
      %v8715 = vsel %vm188, %v8667, 0
      %8717 = vmatprep.subr.mxu0 0.0
      %8718 = vmatpush1.msra.mxu0 %v8668
      %8719 = vmatprep.subr.mxu0 0.0
      %8720 = vmatpush1.msra.mxu0 0.0
      %8721 = vmatprep.subr.mxu0 0.0
      %8722 = vmatpush1.msra.mxu0 0.0
      %8723 = vmatprep.subr.mxu0 0.0
      %8724 = vmatpush1.msra.mxu0 0.0
      %8725 = vmatprep.subr.mxu0 0.0
      %8726 = vmatpush1.msra.mxu0 0.0
      %8727 = vmatprep.subr.mxu0 0.0
      %8728 = vmatpush1.msra.mxu0 0.0
      %8729 = vmatprep.subr.mxu0 0.0
      %8730 = vmatpush1.msra.mxu0 0.0
      %8731 = vmatprep.subr.mxu0 0.0
      %8732 = vmatpush1.msra.mxu0 0.0
      %8733 = vmatprep.subr.mxu0 0.0
      %8734 = vmatpush1.msra.mxu0 0.0
      %8735 = vmatprep.subr.mxu0 0.0
      %8736 = vmatpush1.msra.mxu0 0.0
      %8737 = vmatprep.subr.mxu0 0.0
      %8738 = vmatpush1.msra.mxu0 0.0
      %8739 = vmatprep.subr.mxu0 0.0
      %8740 = vmatpush1.msra.mxu0 0.0
      %8741 = vmatprep.subr.mxu0 0.0
      %8742 = vmatpush1.msra.mxu0 0.0
      %8743 = vmatprep.subr.mxu0 0.0
      %8744 = vmatpush1.msra.mxu0 0.0
      %8745 = vmatprep.subr.mxu0 0.0
      %8746 = vmatpush1.msra.mxu0 0.0
      %8747 = vmatprep.subr.mxu0 0.0
      %8748 = vmatpush1.msra.mxu0 0.0
      %8749 = vmatprep.subr.mxu0 0.0
      %8750 = vmatpush1.msra.mxu0 0.0
      %8751 = vmatprep.subr.mxu0 0.0
      %8752 = vmatpush1.msra.mxu0 0.0
      %8753 = vmatprep.subr.mxu0 0.0
      %8754 = vmatpush1.msra.mxu0 0.0
      %8755 = vmatprep.subr.mxu0 0.0
      %8756 = vmatpush1.msra.mxu0 0.0
      %8757 = vmatprep.subr.mxu0 0.0
      %8758 = vmatpush1.msra.mxu0 0.0
      %8759 = vmatprep.subr.mxu0 0.0
      %8760 = vmatpush1.msra.mxu0 0.0
      %8761 = vmatprep.subr.mxu0 0.0
      %8762 = vmatpush1.msra.mxu0 0.0
      %8763 = vmatprep.subr.mxu0 0.0
      %8764 = vmatpush1.msra.mxu0 0.0
      %8765 = vmatprep.subr.mxu0 0.0
      %8766 = vmatpush1.msra.mxu0 0.0
      %8767 = vmatprep.subr.mxu0 0.0
      %8768 = vmatpush1.msra.mxu0 0.0
      %8769 = vmatprep.subr.mxu0 0.0
      %8770 = vmatpush1.msra.mxu0 0.0
      %8771 = vmatprep.subr.mxu0 0.0
      %8772 = vmatpush1.msra.mxu0 0.0
      %8773 = vmatprep.subr.mxu0 0.0
      %8774 = vmatpush1.msra.mxu0 0.0
      %8775 = vmatprep.subr.mxu0 0.0
      %8776 = vmatpush1.msra.mxu0 0.0
      %8777 = vmatprep.subr.mxu0 0.0
      %8778 = vmatpush1.msra.mxu0 0.0
      %8779 = vmatprep.subr.mxu0 0.0
      %8780 = vmatpush1.msra.mxu0 0.0
      %8781 = vmatprep.mubr.f32.mxu0 0.0
      %8782 = vmatmul.mubr.f32.gmra.mrb[0].mxu0 %v8670
      %v8783 = vpop.f32.mrb[0].mxu0
      %v8784 = vadd.f32 0.0, %v8783
      %v8785 = vpop.f32.mrb[0].mxu0
      %8786 = vmatprep.mubr.f32.mxu0 0.0
      %8787 = vmatmul.mubr.f32.gmra.mrb[0].mxu0 %v8673
      %v8788 = vpop.f32.mrb[0].mxu0
      %v8789 = vadd.f32 0.0, %v8788
      %v8790 = vpop.f32.mrb[0].mxu0
      %8791 = vmatprep.mubr.f32.mxu0 0.0
      %8792 = vmatmul.mubr.f32.gmra.mrb[0].mxu0 %v8676
      %v8793 = vpop.f32.mrb[0].mxu0
      %v8794 = vadd.f32 0.0, %v8793
      %v8795 = vpop.f32.mrb[0].mxu0
      %8796 = vmatprep.mubr.f32.mxu0 0.0
      %8797 = vmatmul.mubr.f32.gmra.mrb[0].mxu0 %v8679
      %v8798 = vpop.f32.mrb[0].mxu0
      %v8799 = vadd.f32 0.0, %v8798
      %v8800 = vpop.f32.mrb[0].mxu0
      %8801 = vmatprep.mubr.f32.mxu0 0.0
      %8802 = vmatmul.mubr.f32.gmra.mrb[0].mxu0 %v8682
      %v8803 = vpop.f32.mrb[0].mxu0
      %v8804 = vadd.f32 0.0, %v8803
      %v8805 = vpop.f32.mrb[0].mxu0
      %8806 = vmatprep.mubr.f32.mxu0 0.0
      %8807 = vmatmul.mubr.f32.gmra.mrb[0].mxu0 %v8685
      %v8808 = vpop.f32.mrb[0].mxu0
      %v8809 = vadd.f32 0.0, %v8808
      %v8810 = vpop.f32.mrb[0].mxu0
      %8811 = vmatprep.mubr.f32.mxu0 0.0
      %8812 = vmatmul.mubr.f32.gmra.mrb[0].mxu0 %v8688
      %v8813 = vpop.f32.mrb[0].mxu0
      %v8814 = vadd.f32 0.0, %v8813
      %v8815 = vpop.f32.mrb[0].mxu0
      %8816 = vmatprep.mubr.f32.mxu0 0.0
      %8817 = vmatmul.mubr.f32.gmra.mrb[0].mxu0 %v8691
      %v8818 = vpop.f32.mrb[0].mxu0
      %v8819 = vadd.f32 0.0, %v8818
      %v8820 = vpop.f32.mrb[0].mxu0
      %8821 = vmatprep.mubr.f32.mxu0 0.0
      %8822 = vmatmul.mubr.f32.gmra.mrb[0].mxu0 %v8694
      %v8823 = vpop.f32.mrb[0].mxu0
      %v8824 = vadd.f32 0.0, %v8823
      %v8825 = vpop.f32.mrb[0].mxu0
      %8826 = vmatprep.mubr.f32.mxu0 0.0
      %8827 = vmatmul.mubr.f32.gmra.mrb[0].mxu0 %v8697
      %v8828 = vpop.f32.mrb[0].mxu0
      %v8829 = vadd.f32 0.0, %v8828
      %v8830 = vpop.f32.mrb[0].mxu0
      %8831 = vmatprep.mubr.f32.mxu0 0.0
      %8832 = vmatmul.mubr.f32.gmra.mrb[0].mxu0 %v8700
      %v8833 = vpop.f32.mrb[0].mxu0
      %v8834 = vadd.f32 0.0, %v8833
      %v8835 = vpop.f32.mrb[0].mxu0
      %8836 = vmatprep.mubr.f32.mxu0 0.0
      %8837 = vmatmul.mubr.f32.gmra.mrb[0].mxu0 %v8703
      %v8838 = vpop.f32.mrb[0].mxu0
      %v8839 = vadd.f32 0.0, %v8838
      %v8840 = vpop.f32.mrb[0].mxu0
      %8841 = vmatprep.mubr.f32.mxu0 0.0
      %8842 = vmatmul.mubr.f32.gmra.mrb[0].mxu0 %v8706
      %v8843 = vpop.f32.mrb[0].mxu0
      %v8844 = vadd.f32 0.0, %v8843
      %v8845 = vpop.f32.mrb[0].mxu0
      %8846 = vmatprep.mubr.f32.mxu0 0.0
      %8847 = vmatmul.mubr.f32.gmra.mrb[0].mxu0 %v8709
      %v8848 = vpop.f32.mrb[0].mxu0
      %v8849 = vadd.f32 0.0, %v8848
      %v8850 = vpop.f32.mrb[0].mxu0
      %8851 = vmatprep.mubr.f32.mxu0 0.0
      %8852 = vmatmul.mubr.f32.gmra.mrb[0].mxu0 %v8712
      %v8853 = vpop.f32.mrb[0].mxu0
      %v8854 = vadd.f32 0.0, %v8853
      %v8855 = vpop.f32.mrb[0].mxu0
      %8856 = vmatprep.mubr.f32.mxu0 0.0
      %8857 = vmatmul.mubr.f32.gmra.mrb[0].mxu0 %v8715
      %v8858 = vpop.f32.mrb[0].mxu0
      %v8859 = vadd.f32 0.0, %v8858
      %v8860 = vpop.f32.mrb[0].mxu0
      %8861 = vdwg.mxu0
      %v8862 = vadd.f32 %v8619, %v8784
      %v8863 = vadd.f32 %v8620, %v8789
      %v8864 = vadd.f32 %v8621, %v8794
      %v8865 = vadd.f32 %v8622, %v8799
      %v8866 = vadd.f32 %v8623, %v8804
      %v8867 = vadd.f32 %v8624, %v8809
      %v8868 = vadd.f32 %v8625, %v8814
      %v8869 = vadd.f32 %v8626, %v8819
      %v8870 = vadd.f32 %v8627, %v8824
      %v8871 = vadd.f32 %v8628, %v8829
      %v8872 = vadd.f32 %v8629, %v8834
      %v8873 = vadd.f32 %v8630, %v8839
      %v8874 = vadd.f32 %v8631, %v8844
      %v8875 = vadd.f32 %v8632, %v8849
      %v8876 = vadd.f32 %v8633, %v8854
      %v8877 = vadd.f32 %v8634, %v8859
      %s8878 = scalar_lea.vmem [#allocation3], 736
      %v8879 = vld [vmem:[%s8878] sm:$0xff]
      %v8880 = vld [vmem:[%s8878 + $0x8] sm:$0xff]
      %v8881 = vld [vmem:[%s8878 + $0x10] sm:$0xff]
      %v8882 = vld [vmem:[%s8878 + $0x18] sm:$0xff]
      %v8883 = vld [vmem:[%s8878 + $0x20] sm:$0xff]
      %v8884 = vld [vmem:[%s8878 + $0x28] sm:$0xff]
      %v8885 = vld [vmem:[%s8878 + $0x30] sm:$0xff]
      %v8886 = vld [vmem:[%s8878 + $0x38] sm:$0xff]
      %v8887 = vld [vmem:[%s8878 + $0x40] sm:$0xff]
      %v8888 = vld [vmem:[%s8878 + $0x48] sm:$0xff]
      %v8889 = vld [vmem:[%s8878 + $0x50] sm:$0xff]
      %v8890 = vld [vmem:[%s8878 + $0x58] sm:$0xff]
      %v8891 = vld [vmem:[%s8878 + $0x60] sm:$0xff]
      %v8892 = vld [vmem:[%s8878 + $0x68] sm:$0xff]
      %v8893 = vld [vmem:[%s8878 + $0x70] sm:$0xff]
      %v8894 = vld [vmem:[%s8878 + $0x78] sm:$0xff]
      %v8895 = vsel %vm314, %v8879, 0.0
      %v8896 = vsel %vm315, %v8880, 0.0
      %v8897 = vsel %vm314, %v8881, 0.0
      %v8898 = vsel %vm315, %v8882, 0.0
      %v8899 = vsel %vm314, %v8883, 0.0
      %v8900 = vsel %vm315, %v8884, 0.0
      %v8901 = vsel %vm314, %v8885, 0.0
      %v8902 = vsel %vm315, %v8886, 0.0
      %v8903 = vsel %vm314, %v8887, 0.0
      %v8904 = vsel %vm315, %v8888, 0.0
      %v8905 = vsel %vm314, %v8889, 0.0
      %v8906 = vsel %vm315, %v8890, 0.0
      %v8907 = vsel %vm314, %v8891, 0.0
      %v8908 = vsel %vm315, %v8892, 0.0
      %v8909 = vsel %vm314, %v8893, 0.0
      %v8910 = vsel %vm315, %v8894, 0.0
      %v8911 = vsel 1, %v8895, 0.0
      %v8912 = vsel 1, %v8896, 0.0
      %v8913 = vsel 1, %v8897, 0.0
      %v8914 = vsel 1, %v8898, 0.0
      %v8915 = vsel 1, %v8899, 0.0
      %v8916 = vsel 1, %v8900, 0.0
      %v8917 = vsel 1, %v8901, 0.0
      %v8918 = vsel 1, %v8902, 0.0
      %v8919 = vsel 1, %v8903, 0.0
      %v8920 = vsel 1, %v8904, 0.0
      %v8921 = vsel 1, %v8905, 0.0
      %v8922 = vsel 1, %v8906, 0.0
      %v8923 = vsel 1, %v8907, 0.0
      %v8924 = vsel 1, %v8908, 0.0
      %v8925 = vsel 0, %v8909, 0.0
      %v8926 = vsel 0, %v8910, 0.0
      %v8927 = vld [vmem:[%s6709] sm:$0xff]
      %v8929 = vsel %vm188, %v8911, 0
      %v8932 = vsel %vm188, %v8912, 0
      %v8935 = vsel %vm188, %v8913, 0
      %v8938 = vsel %vm188, %v8914, 0
      %v8941 = vsel %vm188, %v8915, 0
      %v8944 = vsel %vm188, %v8916, 0
      %v8947 = vsel %vm188, %v8917, 0
      %v8950 = vsel %vm188, %v8918, 0
      %v8953 = vsel %vm188, %v8919, 0
      %v8956 = vsel %vm188, %v8920, 0
      %v8959 = vsel %vm188, %v8921, 0
      %v8962 = vsel %vm188, %v8922, 0
      %v8965 = vsel %vm188, %v8923, 0
      %v8968 = vsel %vm188, %v8924, 0
      %v8971 = vsel %vm188, %v8925, 0
      %v8974 = vsel %vm188, %v8926, 0
      %8976 = vmatprep.subr.mxu0 0.0
      %8977 = vmatpush1.msra.mxu0 %v8927
      %8978 = vmatprep.subr.mxu0 0.0
      %8979 = vmatpush1.msra.mxu0 0.0
      %8980 = vmatprep.subr.mxu0 0.0
      %8981 = vmatpush1.msra.mxu0 0.0
      %8982 = vmatprep.subr.mxu0 0.0
      %8983 = vmatpush1.msra.mxu0 0.0
      %8984 = vmatprep.subr.mxu0 0.0
      %8985 = vmatpush1.msra.mxu0 0.0
      %8986 = vmatprep.subr.mxu0 0.0
      %8987 = vmatpush1.msra.mxu0 0.0
      %8988 = vmatprep.subr.mxu0 0.0
      %8989 = vmatpush1.msra.mxu0 0.0
      %8990 = vmatprep.subr.mxu0 0.0
      %8991 = vmatpush1.msra.mxu0 0.0
      %8992 = vmatprep.subr.mxu0 0.0
      %8993 = vmatpush1.msra.mxu0 0.0
      %8994 = vmatprep.subr.mxu0 0.0
      %8995 = vmatpush1.msra.mxu0 0.0
      %8996 = vmatprep.subr.mxu0 0.0
      %8997 = vmatpush1.msra.mxu0 0.0
      %8998 = vmatprep.subr.mxu0 0.0
      %8999 = vmatpush1.msra.mxu0 0.0
      %9000 = vmatprep.subr.mxu0 0.0
      %9001 = vmatpush1.msra.mxu0 0.0
      %9002 = vmatprep.subr.mxu0 0.0
      %9003 = vmatpush1.msra.mxu0 0.0
      %9004 = vmatprep.subr.mxu0 0.0
      %9005 = vmatpush1.msra.mxu0 0.0
      %9006 = vmatprep.subr.mxu0 0.0
      %9007 = vmatpush1.msra.mxu0 0.0
      %9008 = vmatprep.subr.mxu0 0.0
      %9009 = vmatpush1.msra.mxu0 0.0
      %9010 = vmatprep.subr.mxu0 0.0
      %9011 = vmatpush1.msra.mxu0 0.0
      %9012 = vmatprep.subr.mxu0 0.0
      %9013 = vmatpush1.msra.mxu0 0.0
      %9014 = vmatprep.subr.mxu0 0.0
      %9015 = vmatpush1.msra.mxu0 0.0
      %9016 = vmatprep.subr.mxu0 0.0
      %9017 = vmatpush1.msra.mxu0 0.0
      %9018 = vmatprep.subr.mxu0 0.0
      %9019 = vmatpush1.msra.mxu0 0.0
      %9020 = vmatprep.subr.mxu0 0.0
      %9021 = vmatpush1.msra.mxu0 0.0
      %9022 = vmatprep.subr.mxu0 0.0
      %9023 = vmatpush1.msra.mxu0 0.0
      %9024 = vmatprep.subr.mxu0 0.0
      %9025 = vmatpush1.msra.mxu0 0.0
      %9026 = vmatprep.subr.mxu0 0.0
      %9027 = vmatpush1.msra.mxu0 0.0
      %9028 = vmatprep.subr.mxu0 0.0
      %9029 = vmatpush1.msra.mxu0 0.0
      %9030 = vmatprep.subr.mxu0 0.0
      %9031 = vmatpush1.msra.mxu0 0.0
      %9032 = vmatprep.subr.mxu0 0.0
      %9033 = vmatpush1.msra.mxu0 0.0
      %9034 = vmatprep.subr.mxu0 0.0
      %9035 = vmatpush1.msra.mxu0 0.0
      %9036 = vmatprep.subr.mxu0 0.0
      %9037 = vmatpush1.msra.mxu0 0.0
      %9038 = vmatprep.subr.mxu0 0.0
      %9039 = vmatpush1.msra.mxu0 0.0
      %9040 = vmatprep.mubr.f32.mxu0 0.0
      %9041 = vmatmul.mubr.f32.gmra.mrb[0].mxu0 %v8929
      %v9042 = vpop.f32.mrb[0].mxu0
      %v9043 = vadd.f32 0.0, %v9042
      %v9044 = vpop.f32.mrb[0].mxu0
      %9045 = vmatprep.mubr.f32.mxu0 0.0
      %9046 = vmatmul.mubr.f32.gmra.mrb[0].mxu0 %v8932
      %v9047 = vpop.f32.mrb[0].mxu0
      %v9048 = vadd.f32 0.0, %v9047
      %v9049 = vpop.f32.mrb[0].mxu0
      %9050 = vmatprep.mubr.f32.mxu0 0.0
      %9051 = vmatmul.mubr.f32.gmra.mrb[0].mxu0 %v8935
      %v9052 = vpop.f32.mrb[0].mxu0
      %v9053 = vadd.f32 0.0, %v9052
      %v9054 = vpop.f32.mrb[0].mxu0
      %9055 = vmatprep.mubr.f32.mxu0 0.0
      %9056 = vmatmul.mubr.f32.gmra.mrb[0].mxu0 %v8938
      %v9057 = vpop.f32.mrb[0].mxu0
      %v9058 = vadd.f32 0.0, %v9057
      %v9059 = vpop.f32.mrb[0].mxu0
      %9060 = vmatprep.mubr.f32.mxu0 0.0
      %9061 = vmatmul.mubr.f32.gmra.mrb[0].mxu0 %v8941
      %v9062 = vpop.f32.mrb[0].mxu0
      %v9063 = vadd.f32 0.0, %v9062
      %v9064 = vpop.f32.mrb[0].mxu0
      %9065 = vmatprep.mubr.f32.mxu0 0.0
      %9066 = vmatmul.mubr.f32.gmra.mrb[0].mxu0 %v8944
      %v9067 = vpop.f32.mrb[0].mxu0
      %v9068 = vadd.f32 0.0, %v9067
      %v9069 = vpop.f32.mrb[0].mxu0
      %9070 = vmatprep.mubr.f32.mxu0 0.0
      %9071 = vmatmul.mubr.f32.gmra.mrb[0].mxu0 %v8947
      %v9072 = vpop.f32.mrb[0].mxu0
      %v9073 = vadd.f32 0.0, %v9072
      %v9074 = vpop.f32.mrb[0].mxu0
      %9075 = vmatprep.mubr.f32.mxu0 0.0
      %9076 = vmatmul.mubr.f32.gmra.mrb[0].mxu0 %v8950
      %v9077 = vpop.f32.mrb[0].mxu0
      %v9078 = vadd.f32 0.0, %v9077
      %v9079 = vpop.f32.mrb[0].mxu0
      %9080 = vmatprep.mubr.f32.mxu0 0.0
      %9081 = vmatmul.mubr.f32.gmra.mrb[0].mxu0 %v8953
      %v9082 = vpop.f32.mrb[0].mxu0
      %v9083 = vadd.f32 0.0, %v9082
      %v9084 = vpop.f32.mrb[0].mxu0
      %9085 = vmatprep.mubr.f32.mxu0 0.0
      %9086 = vmatmul.mubr.f32.gmra.mrb[0].mxu0 %v8956
      %v9087 = vpop.f32.mrb[0].mxu0
      %v9088 = vadd.f32 0.0, %v9087
      %v9089 = vpop.f32.mrb[0].mxu0
      %9090 = vmatprep.mubr.f32.mxu0 0.0
      %9091 = vmatmul.mubr.f32.gmra.mrb[0].mxu0 %v8959
      %v9092 = vpop.f32.mrb[0].mxu0
      %v9093 = vadd.f32 0.0, %v9092
      %v9094 = vpop.f32.mrb[0].mxu0
      %9095 = vmatprep.mubr.f32.mxu0 0.0
      %9096 = vmatmul.mubr.f32.gmra.mrb[0].mxu0 %v8962
      %v9097 = vpop.f32.mrb[0].mxu0
      %v9098 = vadd.f32 0.0, %v9097
      %v9099 = vpop.f32.mrb[0].mxu0
      %9100 = vmatprep.mubr.f32.mxu0 0.0
      %9101 = vmatmul.mubr.f32.gmra.mrb[0].mxu0 %v8965
      %v9102 = vpop.f32.mrb[0].mxu0
      %v9103 = vadd.f32 0.0, %v9102
      %v9104 = vpop.f32.mrb[0].mxu0
      %9105 = vmatprep.mubr.f32.mxu0 0.0
      %9106 = vmatmul.mubr.f32.gmra.mrb[0].mxu0 %v8968
      %v9107 = vpop.f32.mrb[0].mxu0
      %v9108 = vadd.f32 0.0, %v9107
      %v9109 = vpop.f32.mrb[0].mxu0
      %9110 = vmatprep.mubr.f32.mxu0 0.0
      %9111 = vmatmul.mubr.f32.gmra.mrb[0].mxu0 %v8971
      %v9112 = vpop.f32.mrb[0].mxu0
      %v9113 = vadd.f32 0.0, %v9112
      %v9114 = vpop.f32.mrb[0].mxu0
      %9115 = vmatprep.mubr.f32.mxu0 0.0
      %9116 = vmatmul.mubr.f32.gmra.mrb[0].mxu0 %v8974
      %v9117 = vpop.f32.mrb[0].mxu0
      %v9118 = vadd.f32 0.0, %v9117
      %v9119 = vpop.f32.mrb[0].mxu0
      %9120 = vdwg.mxu0
      %v9121 = vadd.f32 %v8862, %v9043
      %v9122 = vadd.f32 %v8863, %v9048
      %v9123 = vadd.f32 %v8864, %v9053
      %v9124 = vadd.f32 %v8865, %v9058
      %v9125 = vadd.f32 %v8866, %v9063
      %v9126 = vadd.f32 %v8867, %v9068
      %v9127 = vadd.f32 %v8868, %v9073
      %v9128 = vadd.f32 %v8869, %v9078
      %v9129 = vadd.f32 %v8870, %v9083
      %v9130 = vadd.f32 %v8871, %v9088
      %v9131 = vadd.f32 %v8872, %v9093
      %v9132 = vadd.f32 %v8873, %v9098
      %v9133 = vadd.f32 %v8874, %v9103
      %v9134 = vadd.f32 %v8875, %v9108
      %v9135 = vadd.f32 %v8876, %v9113
      %v9136 = vadd.f32 %v8877, %v9118
      %v9137 = vld [vmem:[%s258] sm:$0xff]
      %v9138 = vld [vmem:[%s258 + $0x8] sm:$0xff]
      %v9139 = vld [vmem:[%s258 + $0x10] sm:$0xff]
      %v9140 = vld [vmem:[%s258 + $0x18] sm:$0xff]
      %v9141 = vld [vmem:[%s258 + $0x20] sm:$0xff]
      %v9142 = vld [vmem:[%s258 + $0x28] sm:$0xff]
      %v9143 = vld [vmem:[%s258 + $0x30] sm:$0xff]
      %v9144 = vld [vmem:[%s258 + $0x38] sm:$0xff]
      %v9145 = vld [vmem:[%s258 + $0x40] sm:$0xff]
      %v9146 = vld [vmem:[%s258 + $0x48] sm:$0xff]
      %v9147 = vld [vmem:[%s258 + $0x50] sm:$0xff]
      %v9148 = vld [vmem:[%s258 + $0x58] sm:$0xff]
      %v9149 = vld [vmem:[%s258 + $0x60] sm:$0xff]
      %v9150 = vld [vmem:[%s258 + $0x68] sm:$0xff]
      %v9151 = vld [vmem:[%s258 + $0x70] sm:$0xff]
      %v9152 = vld [vmem:[%s258 + $0x78] sm:$0xff]
      %v9153 = vadd.f32 %v9121, %v9137
      %v9154 = vadd.f32 %v9122, %v9138
      %v9155 = vadd.f32 %v9123, %v9139
      %v9156 = vadd.f32 %v9124, %v9140
      %v9157 = vadd.f32 %v9125, %v9141
      %v9158 = vadd.f32 %v9126, %v9142
      %v9159 = vadd.f32 %v9127, %v9143
      %v9160 = vadd.f32 %v9128, %v9144
      %v9161 = vadd.f32 %v9129, %v9145
      %v9162 = vadd.f32 %v9130, %v9146
      %v9163 = vadd.f32 %v9131, %v9147
      %v9164 = vadd.f32 %v9132, %v9148
      %v9165 = vadd.f32 %v9133, %v9149
      %v9166 = vadd.f32 %v9134, %v9150
      %v9167 = vadd.f32 %v9135, %v9151
      %v9168 = vadd.f32 %v9136, %v9152
      %v9169 = vmax.f32 %v9153, 0.0
      %v9170 = vmax.f32 %v9154, 0.0
      %v9171 = vmax.f32 %v9155, 0.0
      %v9172 = vmax.f32 %v9156, 0.0
      %v9173 = vmax.f32 %v9157, 0.0
      %v9174 = vmax.f32 %v9158, 0.0
      %v9175 = vmax.f32 %v9159, 0.0
      %v9176 = vmax.f32 %v9160, 0.0
      %v9177 = vmax.f32 %v9161, 0.0
      %v9178 = vmax.f32 %v9162, 0.0
      %v9179 = vmax.f32 %v9163, 0.0
      %v9180 = vmax.f32 %v9164, 0.0
      %v9181 = vmax.f32 %v9165, 0.0
      %v9182 = vmax.f32 %v9166, 0.0
      %v9183 = vmax.f32 %v9167, 0.0
      %v9184 = vmax.f32 %v9168, 0.0
      %s9185 = scalar_lea.vmem %s170, 128
      %9186 = vst.msk [vmem:[%s9185] sm:$0xff] %vm6968, %v9169
      %9187 = vst.msk [vmem:[%s9185 + $0x8] sm:$0xff] %vm6968, %v9170
      %9188 = vst.msk [vmem:[%s9185 + $0x10] sm:$0xff] %vm6968, %v9171
      %9189 = vst.msk [vmem:[%s9185 + $0x18] sm:$0xff] %vm6968, %v9172
      %9190 = vst.msk [vmem:[%s9185 + $0x20] sm:$0xff] %vm6968, %v9173
      %9191 = vst.msk [vmem:[%s9185 + $0x28] sm:$0xff] %vm6968, %v9174
      %9192 = vst.msk [vmem:[%s9185 + $0x30] sm:$0xff] %vm6968, %v9175
      %9193 = vst.msk [vmem:[%s9185 + $0x38] sm:$0xff] %vm6968, %v9176
      %9194 = vst.msk [vmem:[%s9185 + $0x40] sm:$0xff] %vm6968, %v9177
      %9195 = vst.msk [vmem:[%s9185 + $0x48] sm:$0xff] %vm6968, %v9178
      %9196 = vst.msk [vmem:[%s9185 + $0x50] sm:$0xff] %vm6968, %v9179
      %9197 = vst.msk [vmem:[%s9185 + $0x58] sm:$0xff] %vm6968, %v9180
      %9198 = vst.msk [vmem:[%s9185 + $0x60] sm:$0xff] %vm6968, %v9181
      %9199 = vst.msk [vmem:[%s9185 + $0x68] sm:$0xff] %vm6968, %v9182
      %9200 = vst.msk [vmem:[%s9185 + $0x70] sm:$0xff] %vm6968, %v9183
      %9201 = vst.msk [vmem:[%s9185 + $0x78] sm:$0xff] %vm6968, %v9184
      %p9202 = scmp.lt.s32.totalorder %s14, 1
      %s9203 = scalar_select %p9202, %s14, 1
      %s9204 = smul.addr %s9203, 32
      %s9205 = smul.addr %s9204, 8
      %s9206 = scalar_lea.vmem %s3, %s9205
      // Predicated region
      $region33: #{tpu_custom_call.1} parent=31 // pred_check
        %p9207 = pneg %p100
      $region34: #{tpu_custom_call.1} parent=31 // pred_check_branch
        %9209 = sbr.rel (%p9207) target = $region36
      $region35: #{tpu_custom_call.1} parent=31 // pred_region
        _
      $region36: #{tpu_custom_call.1} parent=31 // pred_fallthru
        _
    $region32: #{tpu_custom_call.1} parent=5 // pred_fallthru
      _
    %p9210 = scmp.le.s32.totalorder 2, %s9
    // Predicated region
    $region37: #{tpu_custom_call.1} parent=5 // pred_check
      %p9211 = pneg %p9210
    $region38: #{tpu_custom_call.1} parent=5 // pred_check_branch
      %9213 = sbr.rel (%p9211) target = $region40
    $region39: #{tpu_custom_call.1} parent=5 // pred_region
      %s9214 = ssub.s32 %s9, 2
      // Predicated region
      $region41: #{tpu_custom_call.1} parent=39 // pred_check
        %p9215 = pneg %p106
      $region42: #{tpu_custom_call.1} parent=39 // pred_check_branch
        %9217 = sbr.rel (%p9215) target = $region44
      $region43: #{tpu_custom_call.1} parent=39 // pred_region
        %p9218 = scmp.lt.s32.totalorder %s15, 1
        %s9219 = scalar_select %p9218, %s15, 1
        %s9220 = smul.addr %s9219, 32
        %s9221 = smul.addr %s9220, 8
        %s9222 = scalar_lea.vmem %s3, %s9221
      $region44: #{tpu_custom_call.1} parent=39 // pred_fallthru
        _
    $region40: #{tpu_custom_call.1} parent=5 // pred_fallthru
      _
  $region6: #{tpu_custom_call.1} parent=0 // loop_footer
    %s13 = sadd.s32 1, %s9
  $region7: #{tpu_custom_call.1} parent=0 // loop_footer_branch
    %8 = sbr.rel target = $region3
  $region8: #{tpu_custom_call.1} parent=0 // loop_exit
    _

</llo_original>
